<compile_context>
chip_gen: v6e
topology: v6e:2x2x1
jax: 0.10.0
libtpu: 0.0.40
codegen_flags: <defaults>
</compile_context>

<pallas_src>
import numpy as np

import jax
import jax.numpy as jnp
from jax.experimental import pallas as pl
from jax.experimental.pallas import tpu as pltpu

_MIB = 1024 * 1024


# ----------------------------------------------------------------------------
# Octonion (Cayley-Dickson) multiplication table
# ----------------------------------------------------------------------------
def _cd_conj(x):
    return [x[0]] + [-v for v in x[1:]]


def _cd_mul(x, y):
    n = len(x)
    if n == 1:
        return [x[0] * y[0]]
    h = n // 2
    a, b = x[:h], x[h:]
    c, d = y[:h], y[h:]
    ac = _cd_mul(a, c)
    db = _cd_mul(_cd_conj(d), b)
    da = _cd_mul(d, a)
    bc = _cd_mul(b, _cd_conj(c))
    return [ac[i] - db[i] for i in range(h)] + [da[i] + bc[i] for i in range(h)]


def octonion_table(num_components=8):
    """table[i][j] = (k, sign) with e_i * e_j = sign * e_k."""
    table = [[None] * num_components for _ in range(num_components)]
    for i in range(num_components):
        for j in range(num_components):
            ei = [0] * num_components
            ej = [0] * num_components
            ei[i] = 1
            ej[j] = 1
            prod = _cd_mul(ei, ej)
            k = int(np.argmax(np.abs(prod)))
            sign = int(prod[k])
            table[i][j] = (k, sign)
    return table


def octonion_inverse_table(num_components=8):
    """jmap[i][k] = (j, sign): block (i, k) of the assembled matrix holds sign * W_j."""
    table = octonion_table(num_components)
    n = num_components
    jmap = [[None] * n for _ in range(n)]
    for i in range(n):
        for j in range(n):
            k, s = table[i][j]
            jmap[i][k] = (j, s)
    return jmap


def make_hypercomplex_kernel(weights):
    """Assemble the (in_features, out_features) real matrix from component weights."""
    num_components = len(weights)
    table = octonion_table(num_components)
    block_rows = []
    for i in range(num_components):
        cols = [None] * num_components
        for j in range(num_components):
            k, sign = table[i][j]
            cols[k] = sign * weights[j]
        block_rows.append(jnp.concatenate(cols, axis=1))
    return jnp.concatenate(block_rows, axis=0)  # (8*in_f, 8*out_f)


# ----------------------------------------------------------------------------
# Hardware-dependent configuration
# ----------------------------------------------------------------------------
def _round_up(x, m):
    return ((x + m - 1) // m) * m


def _vmem_capacity_bytes():
    try:
        info = pltpu.get_tpu_info()
        for attr in ("vmem_capacity_bytes", "vmem_bytes", "vmem_size_bytes"):
            v = getattr(info, attr, None)
            if v:
                return int(v)
    except Exception:
        pass
    return 64 * _MIB  # conservative (v7x-class) default if detection fails


def _tile_config():
    cap = _vmem_capacity_bytes()
    if cap <= 96 * _MIB:
        # v7x-class: 64 MiB VMEM per TensorCore -> stay within ~32 MiB scoped budget.
        # Tiles are 256-multiples to match the 2x256^2 MXU.
        return dict(tm=512, tn=1024, tk=1024,
                    vmem_limit=32 * _MIB, stream_budget=20 * _MIB)
    # v5e / v6e class: 128 MiB VMEM; raise the scoped limit and use a deeper K tile.
    return dict(tm=512, tn=1024, tk=2048,
                vmem_limit=80 * _MIB, stream_budget=48 * _MIB)


# ----------------------------------------------------------------------------
# Path A: tiled matmul with the assembled K   (out = x @ K + bias)
# ----------------------------------------------------------------------------
def _tiled_kernel_bias(x_ref, k_ref, b_ref, o_ref, acc_ref):
    kk = pl.program_id(2)

    @pl.when(kk == 0)
    def _():
        acc_ref[...] = jnp.zeros_like(acc_ref)

    acc_ref[...] += jnp.dot(x_ref[...], k_ref[...], preferred_element_type=jnp.float32)

    @pl.when(kk == pl.num_programs(2) - 1)
    def _():
        o_ref[...] = (acc_ref[...] + b_ref[...]).astype(o_ref.dtype)


def _tiled_kernel_nobias(x_ref, k_ref, o_ref, acc_ref):
    kk = pl.program_id(2)

    @pl.when(kk == 0)
    def _():
        acc_ref[...] = jnp.zeros_like(acc_ref)

    acc_ref[...] += jnp.dot(x_ref[...], k_ref[...], preferred_element_type=jnp.float32)

    @pl.when(kk == pl.num_programs(2) - 1)
    def _():
        o_ref[...] = acc_ref[...].astype(o_ref.dtype)


def hyper_linear_tiled(x, k_padded, bias_padded, *, out_features, out_dtype,
                       tm, tn, tk, vmem_limit_bytes):
    """x: (M, IN); k_padded: (Kp, Np) pre-padded/pre-cast; bias_padded: (1, Np) f32 or None."""
    M, IN = x.shape
    Kp, Np = k_padded.shape

    tm = min(tm, _round_up(M, 16))   # bf16 packs 16 rows per sublane group
    Mp = _round_up(M, tm)

    # Megacore / multi-TensorCore balance: keep >= 2 parallel output blocks when possible.
    while (Mp // tm) * (Np // tn) < 2:
        if tn >= 256:
            tn //= 2
        elif tm >= 32:
            tm //= 2
            Mp = _round_up(M, tm)
        else:
            break

    # Per-call pad/cast of activations only (K/bias are cached pre-padded on the module).
    x_p = jnp.pad(x, ((0, Mp - M), (0, Kp - IN))).astype(k_padded.dtype)

    grid = (Mp // tm, Np // tn, Kp // tk)
    has_bias = bias_padded is not None

    in_specs = [
        pl.BlockSpec((tm, tk), lambda i, j, k: (i, k)),
        # TODO(synk): try pipeline_mode=pl.Buffered(3) on this K spec if a profile shows an
        #             exposed K-tile fetch at the start of each (i, j) reduction sweep.
        pl.BlockSpec((tk, tn), lambda i, j, k: (k, j)),
    ]
    operands = [x_p, k_padded]
    if has_bias:
        in_specs.append(pl.BlockSpec((1, tn), lambda i, j, k: (0, j)))
        operands.append(bias_padded)

    out_itemsize = jnp.dtype(out_dtype).itemsize
    cost = pl.CostEstimate(
        flops=2 * Mp * Np * Kp,
        transcendentals=0,
        bytes_accessed=(x_p.size * x_p.dtype.itemsize
                        + k_padded.size * k_padded.dtype.itemsize
                        + (bias_padded.size * bias_padded.dtype.itemsize if has_bias else 0)
                        + Mp * Np * out_itemsize),
    )

    out_p = pl.pallas_call(
        _tiled_kernel_bias if has_bias else _tiled_kernel_nobias,
        out_shape=jax.ShapeDtypeStruct((Mp, Np), out_dtype),
        grid_spec=pltpu.PrefetchScalarGridSpec(
            num_scalar_prefetch=0,
            grid=grid,
            in_specs=in_specs,
            out_specs=pl.BlockSpec((tm, tn), lambda i, j, k: (i, j)),
            scratch_shapes=[pltpu.VMEM((tm, tn), jnp.float32)],
        ),
        compiler_params=pltpu.CompilerParams(
            dimension_semantics=("parallel", "parallel", "arbitrary"),
            vmem_limit_bytes=vmem_limit_bytes,
        ),
        cost_estimate=cost,
    )(*operands)

    return out_p[:M, :out_features]


# ----------------------------------------------------------------------------
# Path B: component-streaming kernel (small/medium M; weight-stationary in VMEM)
#   out[:, k-block] = sum_i sign(i,k) * x[:, i-block] @ W_{j(i,k)}
# ----------------------------------------------------------------------------
def _make_stream_kernel(jmap, num_components, in_f_p, out_f_p, has_bias):
    n = num_components

    def kernel(*refs):
        if has_bias:
            x_ref, w_ref, b_ref, o_ref = refs
        else:
            x_ref, w_ref, o_ref = refs
        for k in range(n):                        # output component block (static unroll)
            acc = None
            for i in range(n):                    # input component block (static unroll)
                j, sign = jmap[i][k]              # static table: block (i,k) holds sign*W_j
                xi = x_ref[:, i * in_f_p:(i + 1) * in_f_p]
                p = jnp.dot(xi, w_ref[j], preferred_element_type=jnp.float32)
                term = p if sign > 0 else -p      # octonion sign folded into +/- accumulation
                acc = term if acc is None else acc + term
            if has_bias:
                acc = acc + b_ref[:, k * out_f_p:(k + 1) * out_f_p]
            o_ref[:, k * out_f_p:(k + 1) * out_f_p] = acc.astype(o_ref.dtype)

    return kernel


def hyper_linear_stream(x, w_stack, bias_stream, jmap, *, in_f, out_f, out_features,
                        out_dtype, vmem_limit_bytes):
    """x: (M, IN); w_stack: (n, in_f_p, out_f_p) pre-padded/pre-cast component weights."""
    M, _ = x.shape
    n, in_f_p, out_f_p = w_stack.shape
    Mp = max(16, _round_up(M, 16))

    # Pad every input component block to its lane-aligned width (128-multiple) so all
    # in-kernel slices are lane-aligned; cheap for the small-M regime this path targets.
    x3 = jnp.pad(x.reshape(M, n, in_f), ((0, Mp - M), (0, 0), (0, in_f_p - in_f)))
    x_p = x3.reshape(Mp, n * in_f_p).astype(w_stack.dtype)

    has_bias = bias_stream is not None
    kernel = _make_stream_kernel(jmap, n, in_f_p, out_f_p, has_bias)

    in_specs = [
        pl.BlockSpec((Mp, n * in_f_p), lambda _: (0, 0)),
        pl.BlockSpec((n, in_f_p, out_f_p), lambda _: (0, 0, 0)),
    ]
    operands = [x_p, w_stack]
    if has_bias:
        in_specs.append(pl.BlockSpec((1, n * out_f_p), lambda _: (0, 0)))
        operands.append(bias_stream)

    out_itemsize = jnp.dtype(out_dtype).itemsize
    cost = pl.CostEstimate(
        flops=2 * Mp * (n * in_f_p) * (n * out_f_p),
        transcendentals=0,
        bytes_accessed=(x_p.size * x_p.dtype.itemsize
                        + w_stack.size * w_stack.dtype.itemsize
                        + (bias_stream.size * bias_stream.dtype.itemsize if has_bias else 0)
                        + Mp * n * out_f_p * out_itemsize),
    )

    out_p = pl.pallas_call(
        kernel,
        out_shape=jax.ShapeDtypeStruct((Mp, n * out_f_p), out_dtype),
        grid_spec=pltpu.PrefetchScalarGridSpec(
            num_scalar_prefetch=0,
            grid=(1,),
            in_specs=in_specs,
            out_specs=pl.BlockSpec((Mp, n * out_f_p), lambda _: (0, 0)),
        ),
        compiler_params=pltpu.CompilerParams(
            dimension_semantics=("arbitrary",),
            vmem_limit_bytes=vmem_limit_bytes,
        ),
        cost_estimate=cost,
    )(*operands)

    out = out_p.reshape(Mp, n, out_f_p)[:M, :, :out_f].reshape(M, out_features)
    return out


# ----------------------------------------------------------------------------
# HyperLinear module equivalent
# ----------------------------------------------------------------------------
class HyperLinearPallas:
    def __init__(self, in_features, out_features, num_components=8, bias=True, seed=0,
                 compute_dtype=jnp.bfloat16, out_dtype=None, stream_m_threshold=1024):
        assert in_features % num_components == 0 and out_features % num_components == 0
        self.num_components = num_components
        self.in_features = in_features // num_components      # per-component (as in PyTorch)
        self.out_features = out_features // num_components
        self.total_in = in_features
        self.total_out = out_features
        self.compute_dtype = compute_dtype
        self.out_dtype = out_dtype                              # None -> follow input dtype
        self.stream_m_threshold = stream_m_threshold

        key = jax.random.PRNGKey(seed)
        keys = jax.random.split(key, num_components)
        # He-style deterministic init (synthetic; same shapes as hypercomplex_init).
        fan_in = self.in_features * num_components
        scale = 1.0 / np.sqrt(2.0 * fan_in)
        self.weights = [
            scale * jax.random.normal(keys[c], (self.in_features, self.out_features),
                                      dtype=jnp.float32)
            for c in range(num_components)
        ]
        self.bias = jnp.zeros((self.total_out,), jnp.float32) if bias else None

        # Hardware-dependent tile / VMEM configuration (v5e/v6e vs v7x).
        self._cfg = _tile_config()

        # ---- component-streaming cache (pre-padded/pre-cast ONCE; 8x less data than K) ----
        self._jmap = octonion_inverse_table(num_components)
        in_f_p = max(128, _round_up(self.in_features, 128))
        out_f_p = max(128, _round_up(self.out_features, 128))
        self._w_stack = jnp.stack([
            jnp.pad(w, ((0, in_f_p - self.in_features), (0, out_f_p - self.out_features)))
            for w in self.weights
        ]).astype(compute_dtype)                                # (n, in_f_p, out_f_p)
        if self.bias is not None:
            b2 = self.bias.reshape(num_components, self.out_features)
            self._bias_stream = jnp.pad(
                b2, ((0, 0), (0, out_f_p - self.out_features))
            ).reshape(1, num_components * out_f_p).astype(jnp.float32)
        else:
            self._bias_stream = None

        # ---- assembled-K cache for the tiled path (built lazily, once, pre-cast) ----
        self._tiled_cache = None

    def _get_tiled_cache(self):
        if self._tiled_cache is None:
            kmat = make_hypercomplex_kernel(self.weights)       # (IN, OUT) f32
            tn = min(self._cfg["tn"], _round_up(self.total_out, 128))
            tk = min(self._cfg["tk"], _round_up(self.total_in, 128))
            Np = _round_up(self.total_out, tn)
            Kp = _round_up(self.total_in, tk)
            k_p = jnp.pad(kmat, ((0, Kp - self.total_in), (0, Np - self.total_out))
                          ).astype(self.compute_dtype)
            b_p = (jnp.pad(self.bias, (0, Np - self.total_out))
                   .astype(jnp.float32).reshape(1, Np)
                   if self.bias is not None else None)
            self._tiled_cache = (k_p, b_p, tn, tk)
        return self._tiled_cache

    def _stream_fits(self, M):
        n, in_f_p, out_f_p = self._w_stack.shape
        Mp = max(16, _round_up(M, 16))
        bytes_needed = 2 * (Mp * n * in_f_p * 2                 # x (bf16), 2x for buffering
                            + self._w_stack.size * 2
                            + Mp * n * out_f_p * 4              # worst-case f32 output
                            + (n * out_f_p * 4 if self.bias is not None else 0))
        return bytes_needed <= self._cfg["stream_budget"]

    def _forward_2d(self, x2, force_path=None):
        M = x2.shape[0]
        out_dtype = self.out_dtype if self.out_dtype is not None else x2.dtype
        use_stream = (M <= self.stream_m_threshold) and self._stream_fits(M)
        if force_path == "tiled":
            use_stream = False
        elif force_path == "stream":
            use_stream = True

        if use_stream:
            return hyper_linear_stream(
                x2, self._w_stack, self._bias_stream, self._jmap,
                in_f=self.in_features, out_f=self.out_features,
                out_features=self.total_out, out_dtype=out_dtype,
                vmem_limit_bytes=self._cfg["vmem_limit"])

        k_p, b_p, tn, tk = self._get_tiled_cache()
        return hyper_linear_tiled(
            x2, k_p, b_p, out_features=self.total_out, out_dtype=out_dtype,
            tm=self._cfg["tm"], tn=tn, tk=tk,
            vmem_limit_bytes=self._cfg["vmem_limit"])

    def __call__(self, x, force_path=None):
        if x.ndim == 3:
            T, N, C = x.shape
            out = self._forward_2d(x.reshape(T * N, C), force_path)
            return out.reshape(T, N, out.shape[1])
        elif x.ndim == 2:
            return self._forward_2d(x, force_path)
        else:
            raise NotImplementedError


# ----------------------------------------------------------------------------
if __name__ == "__main__":
    key = jax.random.PRNGKey(0)

    in_features = 32    # 8 components x 4 features each
    out_features = 64   # 8 components x 8 features each
    T, N = 2, 4         # 3D input (T, N, C); flattened rows = 8

    layer = HyperLinearPallas(in_features, out_features, num_components=8, bias=True, seed=0)

    x = jax.random.normal(key, (T, N, in_features), dtype=jnp.float32)

    # Default dispatch: small M -> component-streaming kernel.
    out_stream = jax.block_until_ready(layer(x))
    assert out_stream.shape == (T, N, out_features)

    # Also exercise the tiled assembled-K kernel.
    out_tiled = jax.block_until_ready(layer(x, force_path="tiled"))
    assert out_tiled.shape == (T, N, out_features)

    # Plain-JAX reference with the same bf16-operand / f32-accumulation numerics.
    kmat = make_hypercomplex_kernel(layer.weights)
    x_flat = x.reshape(T * N, in_features)
    ref = (
        jnp.dot(x_flat.astype(jnp.bfloat16), kmat.astype(jnp.bfloat16),
                preferred_element_type=jnp.float32)
        + layer.bias
    ).reshape(T, N, out_features)

    np.testing.assert_allclose(np.asarray(out_stream), np.asarray(ref), rtol=1e-2, atol=1e-2)
    np.testing.assert_allclose(np.asarray(out_tiled), np.asarray(ref), rtol=1e-2, atol=1e-2)

    print("KERNEL_OK")
</pallas_src>

<mosaic_0001>
module attributes {stable_mosaic.version = 11 : i64} {
  func.func @kernel(%arg0: i32, %arg1: memref<16x1024xbf16, #tpu.memory_space<vmem>>, %arg2: memref<8x128x128xbf16, #tpu.memory_space<vmem>>, %arg3: memref<1x1024xf32, #tpu.memory_space<vmem>>, %arg4: memref<16x1024xf32, #tpu.memory_space<vmem>>) attributes {dimension_semantics = [#tpu.dimension_semantics<arbitrary>], iteration_bounds = array<i64: 1>, scalar_prefetch = 0 : i64, scratch_operands = 0 : i64, tpu.core_type = #tpu.core_type<tc>, window_params = [{pipeline_mode = #tpu.pipeline_mode<synchronous>, transform_indices = @transform_0, window_bounds = array<i64: 16, 1024>}, {pipeline_mode = #tpu.pipeline_mode<synchronous>, transform_indices = @transform_1, window_bounds = array<i64: 8, 128, 128>}, {pipeline_mode = #tpu.pipeline_mode<synchronous>, transform_indices = @transform_2, window_bounds = array<i64: 1, 1024>}, {pipeline_mode = #tpu.pipeline_mode<synchronous>, transform_indices = @transform_3, window_bounds = array<i64: 16, 1024>}]} {
    %c0 = arith.constant 0 : index
    %c0_0 = arith.constant 0 : index
    %0 = vector.load %arg1[%c0, %c0_0] : memref<16x1024xbf16, #tpu.memory_space<vmem>>, vector<16x128xbf16>
    %c0_1 = arith.constant 0 : index
    %c0_2 = arith.constant 0 : index
    %c0_3 = arith.constant 0 : index
    %1 = vector.load %arg2[%c0_1, %c0_2, %c0_3] : memref<8x128x128xbf16, #tpu.memory_space<vmem>>, vector<1x128x128xbf16>
    %2 = vector.shape_cast %1 : vector<1x128x128xbf16> to vector<128x128xbf16>
    %cst = arith.constant dense<0.000000e+00> : vector<16x128xf32>
    %3 = tpu.matmul %0, %2, %cst {dimension_numbers = #tpu.dot_dimension_numbers<[1], [0], [0], [1], [0, 0, 1, 1], [], []>} : vector<16x128xbf16>, vector<128x128xbf16>, vector<16x128xf32> -> vector<16x128xf32>
    %c0_4 = arith.constant 0 : index
    %c128 = arith.constant 128 : index
    %4 = vector.load %arg1[%c0_4, %c128] : memref<16x1024xbf16, #tpu.memory_space<vmem>>, vector<16x128xbf16>
    %c1 = arith.constant 1 : index
    %c0_5 = arith.constant 0 : index
    %c0_6 = arith.constant 0 : index
    %5 = vector.load %arg2[%c1, %c0_5, %c0_6] : memref<8x128x128xbf16, #tpu.memory_space<vmem>>, vector<1x128x128xbf16>
    %6 = vector.shape_cast %5 : vector<1x128x128xbf16> to vector<128x128xbf16>
    %cst_7 = arith.constant dense<0.000000e+00> : vector<16x128xf32>
    %7 = tpu.matmul %4, %6, %cst_7 {dimension_numbers = #tpu.dot_dimension_numbers<[1], [0], [0], [1], [0, 0, 1, 1], [], []>} : vector<16x128xbf16>, vector<128x128xbf16>, vector<16x128xf32> -> vector<16x128xf32>
    %cst_8 = arith.constant 0.000000e+00 : f32
    %8 = vector.broadcast %cst_8 : f32 to vector<16x128xf32>
    %9 = arith.subf %8, %7 : vector<16x128xf32>
    %10 = arith.addf %3, %9 : vector<16x128xf32>
    %c0_9 = arith.constant 0 : index
    %c256 = arith.constant 256 : index
    %11 = vector.load %arg1[%c0_9, %c256] : memref<16x1024xbf16, #tpu.memory_space<vmem>>, vector<16x128xbf16>
    %c2 = arith.constant 2 : index
    %c0_10 = arith.constant 0 : index
    %c0_11 = arith.constant 0 : index
    %12 = vector.load %arg2[%c2, %c0_10, %c0_11] : memref<8x128x128xbf16, #tpu.memory_space<vmem>>, vector<1x128x128xbf16>
    %13 = vector.shape_cast %12 : vector<1x128x128xbf16> to vector<128x128xbf16>
    %cst_12 = arith.constant dense<0.000000e+00> : vector<16x128xf32>
    %14 = tpu.matmul %11, %13, %cst_12 {dimension_numbers = #tpu.dot_dimension_numbers<[1], [0], [0], [1], [0, 0, 1, 1], [], []>} : vector<16x128xbf16>, vector<128x128xbf16>, vector<16x128xf32> -> vector<16x128xf32>
    %cst_13 = arith.constant 0.000000e+00 : f32
    %15 = vector.broadcast %cst_13 : f32 to vector<16x128xf32>
    %16 = arith.subf %15, %14 : vector<16x128xf32>
    %17 = arith.addf %10, %16 : vector<16x128xf32>
    %c0_14 = arith.constant 0 : index
    %c384 = arith.constant 384 : index
    %18 = vector.load %arg1[%c0_14, %c384] : memref<16x1024xbf16, #tpu.memory_space<vmem>>, vector<16x128xbf16>
    %c3 = arith.constant 3 : index
    %c0_15 = arith.constant 0 : index
    %c0_16 = arith.constant 0 : index
    %19 = vector.load %arg2[%c3, %c0_15, %c0_16] : memref<8x128x128xbf16, #tpu.memory_space<vmem>>, vector<1x128x128xbf16>
    %20 = vector.shape_cast %19 : vector<1x128x128xbf16> to vector<128x128xbf16>
    %cst_17 = arith.constant dense<0.000000e+00> : vector<16x128xf32>
    %21 = tpu.matmul %18, %20, %cst_17 {dimension_numbers = #tpu.dot_dimension_numbers<[1], [0], [0], [1], [0, 0, 1, 1], [], []>} : vector<16x128xbf16>, vector<128x128xbf16>, vector<16x128xf32> -> vector<16x128xf32>
    %cst_18 = arith.constant 0.000000e+00 : f32
    %22 = vector.broadcast %cst_18 : f32 to vector<16x128xf32>
    %23 = arith.subf %22, %21 : vector<16x128xf32>
    %24 = arith.addf %17, %23 : vector<16x128xf32>
    %c0_19 = arith.constant 0 : index
    %c512 = arith.constant 512 : index
    %25 = vector.load %arg1[%c0_19, %c512] : memref<16x1024xbf16, #tpu.memory_space<vmem>>, vector<16x128xbf16>
    %c4 = arith.constant 4 : index
    %c0_20 = arith.constant 0 : index
    %c0_21 = arith.constant 0 : index
    %26 = vector.load %arg2[%c4, %c0_20, %c0_21] : memref<8x128x128xbf16, #tpu.memory_space<vmem>>, vector<1x128x128xbf16>
    %27 = vector.shape_cast %26 : vector<1x128x128xbf16> to vector<128x128xbf16>
    %cst_22 = arith.constant dense<0.000000e+00> : vector<16x128xf32>
    %28 = tpu.matmul %25, %27, %cst_22 {dimension_numbers = #tpu.dot_dimension_numbers<[1], [0], [0], [1], [0, 0, 1, 1], [], []>} : vector<16x128xbf16>, vector<128x128xbf16>, vector<16x128xf32> -> vector<16x128xf32>
    %cst_23 = arith.constant 0.000000e+00 : f32
    %29 = vector.broadcast %cst_23 : f32 to vector<16x128xf32>
    %30 = arith.subf %29, %28 : vector<16x128xf32>
    %31 = arith.addf %24, %30 : vector<16x128xf32>
    %c0_24 = arith.constant 0 : index
    %c640 = arith.constant 640 : index
    %32 = vector.load %arg1[%c0_24, %c640] : memref<16x1024xbf16, #tpu.memory_space<vmem>>, vector<16x128xbf16>
    %c5 = arith.constant 5 : index
    %c0_25 = arith.constant 0 : index
    %c0_26 = arith.constant 0 : index
    %33 = vector.load %arg2[%c5, %c0_25, %c0_26] : memref<8x128x128xbf16, #tpu.memory_space<vmem>>, vector<1x128x128xbf16>
    %34 = vector.shape_cast %33 : vector<1x128x128xbf16> to vector<128x128xbf16>
    %cst_27 = arith.constant dense<0.000000e+00> : vector<16x128xf32>
    %35 = tpu.matmul %32, %34, %cst_27 {dimension_numbers = #tpu.dot_dimension_numbers<[1], [0], [0], [1], [0, 0, 1, 1], [], []>} : vector<16x128xbf16>, vector<128x128xbf16>, vector<16x128xf32> -> vector<16x128xf32>
    %cst_28 = arith.constant 0.000000e+00 : f32
    %36 = vector.broadcast %cst_28 : f32 to vector<16x128xf32>
    %37 = arith.subf %36, %35 : vector<16x128xf32>
    %38 = arith.addf %31, %37 : vector<16x128xf32>
    %c0_29 = arith.constant 0 : index
    %c768 = arith.constant 768 : index
    %39 = vector.load %arg1[%c0_29, %c768] : memref<16x1024xbf16, #tpu.memory_space<vmem>>, vector<16x128xbf16>
    %c6 = arith.constant 6 : index
    %c0_30 = arith.constant 0 : index
    %c0_31 = arith.constant 0 : index
    %40 = vector.load %arg2[%c6, %c0_30, %c0_31] : memref<8x128x128xbf16, #tpu.memory_space<vmem>>, vector<1x128x128xbf16>
    %41 = vector.shape_cast %40 : vector<1x128x128xbf16> to vector<128x128xbf16>
    %cst_32 = arith.constant dense<0.000000e+00> : vector<16x128xf32>
    %42 = tpu.matmul %39, %41, %cst_32 {dimension_numbers = #tpu.dot_dimension_numbers<[1], [0], [0], [1], [0, 0, 1, 1], [], []>} : vector<16x128xbf16>, vector<128x128xbf16>, vector<16x128xf32> -> vector<16x128xf32>
    %cst_33 = arith.constant 0.000000e+00 : f32
    %43 = vector.broadcast %cst_33 : f32 to vector<16x128xf32>
    %44 = arith.subf %43, %42 : vector<16x128xf32>
    %45 = arith.addf %38, %44 : vector<16x128xf32>
    %c0_34 = arith.constant 0 : index
    %c896 = arith.constant 896 : index
    %46 = vector.load %arg1[%c0_34, %c896] : memref<16x1024xbf16, #tpu.memory_space<vmem>>, vector<16x128xbf16>
    %c7 = arith.constant 7 : index
    %c0_35 = arith.constant 0 : index
    %c0_36 = arith.constant 0 : index
    %47 = vector.load %arg2[%c7, %c0_35, %c0_36] : memref<8x128x128xbf16, #tpu.memory_space<vmem>>, vector<1x128x128xbf16>
    %48 = vector.shape_cast %47 : vector<1x128x128xbf16> to vector<128x128xbf16>
    %cst_37 = arith.constant dense<0.000000e+00> : vector<16x128xf32>
    %49 = tpu.matmul %46, %48, %cst_37 {dimension_numbers = #tpu.dot_dimension_numbers<[1], [0], [0], [1], [0, 0, 1, 1], [], []>} : vector<16x128xbf16>, vector<128x128xbf16>, vector<16x128xf32> -> vector<16x128xf32>
    %cst_38 = arith.constant 0.000000e+00 : f32
    %50 = vector.broadcast %cst_38 : f32 to vector<16x128xf32>
    %51 = arith.subf %50, %49 : vector<16x128xf32>
    %52 = arith.addf %45, %51 : vector<16x128xf32>
    %c0_39 = arith.constant 0 : index
    %c0_40 = arith.constant 0 : index
    %53 = vector.load %arg3[%c0_39, %c0_40] : memref<1x1024xf32, #tpu.memory_space<vmem>>, vector<1x128xf32>
    %54 = vector.broadcast %53 : vector<1x128xf32> to vector<16x128xf32>
    %55 = arith.addf %52, %54 : vector<16x128xf32>
    %c0_41 = arith.constant 0 : index
    %c0_42 = arith.constant 0 : index
    %56 = vector.load %arg4[%c0_41, %c0_42] : memref<16x1024xf32, #tpu.memory_space<vmem>>, vector<16x128xf32>
    tpu.vector_store %arg4[%c0_41, %c0_42], %55 {strides = array<i32>} : memref<16x1024xf32, #tpu.memory_space<vmem>>, vector<16x128xf32>,
    %c0_43 = arith.constant 0 : index
    %c0_44 = arith.constant 0 : index
    %57 = vector.load %arg1[%c0_43, %c0_44] : memref<16x1024xbf16, #tpu.memory_space<vmem>>, vector<16x128xbf16>
    %c1_45 = arith.constant 1 : index
    %c0_46 = arith.constant 0 : index
    %c0_47 = arith.constant 0 : index
    %58 = vector.load %arg2[%c1_45, %c0_46, %c0_47] : memref<8x128x128xbf16, #tpu.memory_space<vmem>>, vector<1x128x128xbf16>
    %59 = vector.shape_cast %58 : vector<1x128x128xbf16> to vector<128x128xbf16>
    %cst_48 = arith.constant dense<0.000000e+00> : vector<16x128xf32>
    %60 = tpu.matmul %57, %59, %cst_48 {dimension_numbers = #tpu.dot_dimension_numbers<[1], [0], [0], [1], [0, 0, 1, 1], [], []>} : vector<16x128xbf16>, vector<128x128xbf16>, vector<16x128xf32> -> vector<16x128xf32>
    %c0_49 = arith.constant 0 : index
    %c128_50 = arith.constant 128 : index
    %61 = vector.load %arg1[%c0_49, %c128_50] : memref<16x1024xbf16, #tpu.memory_space<vmem>>, vector<16x128xbf16>
    %c0_51 = arith.constant 0 : index
    %c0_52 = arith.constant 0 : index
    %c0_53 = arith.constant 0 : index
    %62 = vector.load %arg2[%c0_51, %c0_52, %c0_53] : memref<8x128x128xbf16, #tpu.memory_space<vmem>>, vector<1x128x128xbf16>
    %63 = vector.shape_cast %62 : vector<1x128x128xbf16> to vector<128x128xbf16>
    %cst_54 = arith.constant dense<0.000000e+00> : vector<16x128xf32>
    %64 = tpu.matmul %61, %63, %cst_54 {dimension_numbers = #tpu.dot_dimension_numbers<[1], [0], [0], [1], [0, 0, 1, 1], [], []>} : vector<16x128xbf16>, vector<128x128xbf16>, vector<16x128xf32> -> vector<16x128xf32>
    %65 = arith.addf %60, %64 : vector<16x128xf32>
    %c0_55 = arith.constant 0 : index
    %c256_56 = arith.constant 256 : index
    %66 = vector.load %arg1[%c0_55, %c256_56] : memref<16x1024xbf16, #tpu.memory_space<vmem>>, vector<16x128xbf16>
    %c3_57 = arith.constant 3 : index
    %c0_58 = arith.constant 0 : index
    %c0_59 = arith.constant 0 : index
    %67 = vector.load %arg2[%c3_57, %c0_58, %c0_59] : memref<8x128x128xbf16, #tpu.memory_space<vmem>>, vector<1x128x128xbf16>
    %68 = vector.shape_cast %67 : vector<1x128x128xbf16> to vector<128x128xbf16>
    %cst_60 = arith.constant dense<0.000000e+00> : vector<16x128xf32>
    %69 = tpu.matmul %66, %68, %cst_60 {dimension_numbers = #tpu.dot_dimension_numbers<[1], [0], [0], [1], [0, 0, 1, 1], [], []>} : vector<16x128xbf16>, vector<128x128xbf16>, vector<16x128xf32> -> vector<16x128xf32>
    %70 = arith.addf %65, %69 : vector<16x128xf32>
    %c0_61 = arith.constant 0 : index
    %c384_62 = arith.constant 384 : index
    %71 = vector.load %arg1[%c0_61, %c384_62] : memref<16x1024xbf16, #tpu.memory_space<vmem>>, vector<16x128xbf16>
    %c2_63 = arith.constant 2 : index
    %c0_64 = arith.constant 0 : index
    %c0_65 = arith.constant 0 : index
    %72 = vector.load %arg2[%c2_63, %c0_64, %c0_65] : memref<8x128x128xbf16, #tpu.memory_space<vmem>>, vector<1x128x128xbf16>
    %73 = vector.shape_cast %72 : vector<1x128x128xbf16> to vector<128x128xbf16>
    %cst_66 = arith.constant dense<0.000000e+00> : vector<16x128xf32>
    %74 = tpu.matmul %71, %73, %cst_66 {dimension_numbers = #tpu.dot_dimension_numbers<[1], [0], [0], [1], [0, 0, 1, 1], [], []>} : vector<16x128xbf16>, vector<128x128xbf16>, vector<16x128xf32> -> vector<16x128xf32>
    %cst_67 = arith.constant 0.000000e+00 : f32
    %75 = vector.broadcast %cst_67 : f32 to vector<16x128xf32>
    %76 = arith.subf %75, %74 : vector<16x128xf32>
    %77 = arith.addf %70, %76 : vector<16x128xf32>
    %c0_68 = arith.constant 0 : index
    %c512_69 = arith.constant 512 : index
    %78 = vector.load %arg1[%c0_68, %c512_69] : memref<16x1024xbf16, #tpu.memory_space<vmem>>, vector<16x128xbf16>
    %c5_70 = arith.constant 5 : index
    %c0_71 = arith.constant 0 : index
    %c0_72 = arith.constant 0 : index
    %79 = vector.load %arg2[%c5_70, %c0_71, %c0_72] : memref<8x128x128xbf16, #tpu.memory_space<vmem>>, vector<1x128x128xbf16>
    %80 = vector.shape_cast %79 : vector<1x128x128xbf16> to vector<128x128xbf16>
    %cst_73 = arith.constant dense<0.000000e+00> : vector<16x128xf32>
    %81 = tpu.matmul %78, %80, %cst_73 {dimension_numbers = #tpu.dot_dimension_numbers<[1], [0], [0], [1], [0, 0, 1, 1], [], []>} : vector<16x128xbf16>, vector<128x128xbf16>, vector<16x128xf32> -> vector<16x128xf32>
    %82 = arith.addf %77, %81 : vector<16x128xf32>
    %c0_74 = arith.constant 0 : index
    %c640_75 = arith.constant 640 : index
    %83 = vector.load %arg1[%c0_74, %c640_75] : memref<16x1024xbf16, #tpu.memory_space<vmem>>, vector<16x128xbf16>
    %c4_76 = arith.constant 4 : index
    %c0_77 = arith.constant 0 : index
    %c0_78 = arith.constant 0 : index
    %84 = vector.load %arg2[%c4_76, %c0_77, %c0_78] : memref<8x128x128xbf16, #tpu.memory_space<vmem>>, vector<1x128x128xbf16>
    %85 = vector.shape_cast %84 : vector<1x128x128xbf16> to vector<128x128xbf16>
    %cst_79 = arith.constant dense<0.000000e+00> : vector<16x128xf32>
    %86 = tpu.matmul %83, %85, %cst_79 {dimension_numbers = #tpu.dot_dimension_numbers<[1], [0], [0], [1], [0, 0, 1, 1], [], []>} : vector<16x128xbf16>, vector<128x128xbf16>, vector<16x128xf32> -> vector<16x128xf32>
    %cst_80 = arith.constant 0.000000e+00 : f32
    %87 = vector.broadcast %cst_80 : f32 to vector<16x128xf32>
    %88 = arith.subf %87, %86 : vector<16x128xf32>
    %89 = arith.addf %82, %88 : vector<16x128xf32>
    %c0_81 = arith.constant 0 : index
    %c768_82 = arith.constant 768 : index
    %90 = vector.load %arg1[%c0_81, %c768_82] : memref<16x1024xbf16, #tpu.memory_space<vmem>>, vector<16x128xbf16>
    %c7_83 = arith.constant 7 : index
    %c0_84 = arith.constant 0 : index
    %c0_85 = arith.constant 0 : index
    %91 = vector.load %arg2[%c7_83, %c0_84, %c0_85] : memref<8x128x128xbf16, #tpu.memory_space<vmem>>, vector<1x128x128xbf16>
    %92 = vector.shape_cast %91 : vector<1x128x128xbf16> to vector<128x128xbf16>
    %cst_86 = arith.constant dense<0.000000e+00> : vector<16x128xf32>
    %93 = tpu.matmul %90, %92, %cst_86 {dimension_numbers = #tpu.dot_dimension_numbers<[1], [0], [0], [1], [0, 0, 1, 1], [], []>} : vector<16x128xbf16>, vector<128x128xbf16>, vector<16x128xf32> -> vector<16x128xf32>
    %cst_87 = arith.constant 0.000000e+00 : f32
    %94 = vector.broadcast %cst_87 : f32 to vector<16x128xf32>
    %95 = arith.subf %94, %93 : vector<16x128xf32>
    %96 = arith.addf %89, %95 : vector<16x128xf32>
    %c0_88 = arith.constant 0 : index
    %c896_89 = arith.constant 896 : index
    %97 = vector.load %arg1[%c0_88, %c896_89] : memref<16x1024xbf16, #tpu.memory_space<vmem>>, vector<16x128xbf16>
    %c6_90 = arith.constant 6 : index
    %c0_91 = arith.constant 0 : index
    %c0_92 = arith.constant 0 : index
    %98 = vector.load %arg2[%c6_90, %c0_91, %c0_92] : memref<8x128x128xbf16, #tpu.memory_space<vmem>>, vector<1x128x128xbf16>
    %99 = vector.shape_cast %98 : vector<1x128x128xbf16> to vector<128x128xbf16>
    %cst_93 = arith.constant dense<0.000000e+00> : vector<16x128xf32>
    %100 = tpu.matmul %97, %99, %cst_93 {dimension_numbers = #tpu.dot_dimension_numbers<[1], [0], [0], [1], [0, 0, 1, 1], [], []>} : vector<16x128xbf16>, vector<128x128xbf16>, vector<16x128xf32> -> vector<16x128xf32>
    %101 = arith.addf %96, %100 : vector<16x128xf32>
    %c0_94 = arith.constant 0 : index
    %c128_95 = arith.constant 128 : index
    %102 = vector.load %arg3[%c0_94, %c128_95] : memref<1x1024xf32, #tpu.memory_space<vmem>>, vector<1x128xf32>
    %103 = vector.broadcast %102 : vector<1x128xf32> to vector<16x128xf32>
    %104 = arith.addf %101, %103 : vector<16x128xf32>
    %c0_96 = arith.constant 0 : index
    %c128_97 = arith.constant 128 : index
    %105 = vector.load %arg4[%c0_96, %c128_97] : memref<16x1024xf32, #tpu.memory_space<vmem>>, vector<16x128xf32>
    tpu.vector_store %arg4[%c0_96, %c128_97], %104 {strides = array<i32>} : memref<16x1024xf32, #tpu.memory_space<vmem>>, vector<16x128xf32>,
    %c0_98 = arith.constant 0 : index
    %c0_99 = arith.constant 0 : index
    %106 = vector.load %arg1[%c0_98, %c0_99] : memref<16x1024xbf16, #tpu.memory_space<vmem>>, vector<16x128xbf16>
    %c2_100 = arith.constant 2 : index
    %c0_101 = arith.constant 0 : index
    %c0_102 = arith.constant 0 : index
    %107 = vector.load %arg2[%c2_100, %c0_101, %c0_102] : memref<8x128x128xbf16, #tpu.memory_space<vmem>>, vector<1x128x128xbf16>
    %108 = vector.shape_cast %107 : vector<1x128x128xbf16> to vector<128x128xbf16>
    %cst_103 = arith.constant dense<0.000000e+00> : vector<16x128xf32>
    %109 = tpu.matmul %106, %108, %cst_103 {dimension_numbers = #tpu.dot_dimension_numbers<[1], [0], [0], [1], [0, 0, 1, 1], [], []>} : vector<16x128xbf16>, vector<128x128xbf16>, vector<16x128xf32> -> vector<16x128xf32>
    %c0_104 = arith.constant 0 : index
    %c128_105 = arith.constant 128 : index
    %110 = vector.load %arg1[%c0_104, %c128_105] : memref<16x1024xbf16, #tpu.memory_space<vmem>>, vector<16x128xbf16>
    %c3_106 = arith.constant 3 : index
    %c0_107 = arith.constant 0 : index
    %c0_108 = arith.constant 0 : index
    %111 = vector.load %arg2[%c3_106, %c0_107, %c0_108] : memref<8x128x128xbf16, #tpu.memory_space<vmem>>, vector<1x128x128xbf16>
    %112 = vector.shape_cast %111 : vector<1x128x128xbf16> to vector<128x128xbf16>
    %cst_109 = arith.constant dense<0.000000e+00> : vector<16x128xf32>
    %113 = tpu.matmul %110, %112, %cst_109 {dimension_numbers = #tpu.dot_dimension_numbers<[1], [0], [0], [1], [0, 0, 1, 1], [], []>} : vector<16x128xbf16>, vector<128x128xbf16>, vector<16x128xf32> -> vector<16x128xf32>
    %cst_110 = arith.constant 0.000000e+00 : f32
    %114 = vector.broadcast %cst_110 : f32 to vector<16x128xf32>
    %115 = arith.subf %114, %113 : vector<16x128xf32>
    %116 = arith.addf %109, %115 : vector<16x128xf32>
    %c0_111 = arith.constant 0 : index
    %c256_112 = arith.constant 256 : index
    %117 = vector.load %arg1[%c0_111, %c256_112] : memref<16x1024xbf16, #tpu.memory_space<vmem>>, vector<16x128xbf16>
    %c0_113 = arith.constant 0 : index
    %c0_114 = arith.constant 0 : index
    %c0_115 = arith.constant 0 : index
    %118 = vector.load %arg2[%c0_113, %c0_114, %c0_115] : memref<8x128x128xbf16, #tpu.memory_space<vmem>>, vector<1x128x128xbf16>
    %119 = vector.shape_cast %118 : vector<1x128x128xbf16> to vector<128x128xbf16>
    %cst_116 = arith.constant dense<0.000000e+00> : vector<16x128xf32>
    %120 = tpu.matmul %117, %119, %cst_116 {dimension_numbers = #tpu.dot_dimension_numbers<[1], [0], [0], [1], [0, 0, 1, 1], [], []>} : vector<16x128xbf16>, vector<128x128xbf16>, vector<16x128xf32> -> vector<16x128xf32>
    %121 = arith.addf %116, %120 : vector<16x128xf32>
    %c0_117 = arith.constant 0 : index
    %c384_118 = arith.constant 384 : index
    %122 = vector.load %arg1[%c0_117, %c384_118] : memref<16x1024xbf16, #tpu.memory_space<vmem>>, vector<16x128xbf16>
    %c1_119 = arith.constant 1 : index
    %c0_120 = arith.constant 0 : index
    %c0_121 = arith.constant 0 : index
    %123 = vector.load %arg2[%c1_119, %c0_120, %c0_121] : memref<8x128x128xbf16, #tpu.memory_space<vmem>>, vector<1x128x128xbf16>
    %124 = vector.shape_cast %123 : vector<1x128x128xbf16> to vector<128x128xbf16>
    %cst_122 = arith.constant dense<0.000000e+00> : vector<16x128xf32>
    %125 = tpu.matmul %122, %124, %cst_122 {dimension_numbers = #tpu.dot_dimension_numbers<[1], [0], [0], [1], [0, 0, 1, 1], [], []>} : vector<16x128xbf16>, vector<128x128xbf16>, vector<16x128xf32> -> vector<16x128xf32>
    %126 = arith.addf %121, %125 : vector<16x128xf32>
    %c0_123 = arith.constant 0 : index
    %c512_124 = arith.constant 512 : index
    %127 = vector.load %arg1[%c0_123, %c512_124] : memref<16x1024xbf16, #tpu.memory_space<vmem>>, vector<16x128xbf16>
    %c6_125 = arith.constant 6 : index
    %c0_126 = arith.constant 0 : index
    %c0_127 = arith.constant 0 : index
    %128 = vector.load %arg2[%c6_125, %c0_126, %c0_127] : memref<8x128x128xbf16, #tpu.memory_space<vmem>>, vector<1x128x128xbf16>
    %129 = vector.shape_cast %128 : vector<1x128x128xbf16> to vector<128x128xbf16>
    %cst_128 = arith.constant dense<0.000000e+00> : vector<16x128xf32>
    %130 = tpu.matmul %127, %129, %cst_128 {dimension_numbers = #tpu.dot_dimension_numbers<[1], [0], [0], [1], [0, 0, 1, 1], [], []>} : vector<16x128xbf16>, vector<128x128xbf16>, vector<16x128xf32> -> vector<16x128xf32>
    %131 = arith.addf %126, %130 : vector<16x128xf32>
    %c0_129 = arith.constant 0 : index
    %c640_130 = arith.constant 640 : index
    %132 = vector.load %arg1[%c0_129, %c640_130] : memref<16x1024xbf16, #tpu.memory_space<vmem>>, vector<16x128xbf16>
    %c7_131 = arith.constant 7 : index
    %c0_132 = arith.constant 0 : index
    %c0_133 = arith.constant 0 : index
    %133 = vector.load %arg2[%c7_131, %c0_132, %c0_133] : memref<8x128x128xbf16, #tpu.memory_space<vmem>>, vector<1x128x128xbf16>
    %134 = vector.shape_cast %133 : vector<1x128x128xbf16> to vector<128x128xbf16>
    %cst_134 = arith.constant dense<0.000000e+00> : vector<16x128xf32>
    %135 = tpu.matmul %132, %134, %cst_134 {dimension_numbers = #tpu.dot_dimension_numbers<[1], [0], [0], [1], [0, 0, 1, 1], [], []>} : vector<16x128xbf16>, vector<128x128xbf16>, vector<16x128xf32> -> vector<16x128xf32>
    %136 = arith.addf %131, %135 : vector<16x128xf32>
    %c0_135 = arith.constant 0 : index
    %c768_136 = arith.constant 768 : index
    %137 = vector.load %arg1[%c0_135, %c768_136] : memref<16x1024xbf16, #tpu.memory_space<vmem>>, vector<16x128xbf16>
    %c4_137 = arith.constant 4 : index
    %c0_138 = arith.constant 0 : index
    %c0_139 = arith.constant 0 : index
    %138 = vector.load %arg2[%c4_137, %c0_138, %c0_139] : memref<8x128x128xbf16, #tpu.memory_space<vmem>>, vector<1x128x128xbf16>
    %139 = vector.shape_cast %138 : vector<1x128x128xbf16> to vector<128x128xbf16>
    %cst_140 = arith.constant dense<0.000000e+00> : vector<16x128xf32>
    %140 = tpu.matmul %137, %139, %cst_140 {dimension_numbers = #tpu.dot_dimension_numbers<[1], [0], [0], [1], [0, 0, 1, 1], [], []>} : vector<16x128xbf16>, vector<128x128xbf16>, vector<16x128xf32> -> vector<16x128xf32>
    %cst_141 = arith.constant 0.000000e+00 : f32
    %141 = vector.broadcast %cst_141 : f32 to vector<16x128xf32>
    %142 = arith.subf %141, %140 : vector<16x128xf32>
    %143 = arith.addf %136, %142 : vector<16x128xf32>
    %c0_142 = arith.constant 0 : index
    %c896_143 = arith.constant 896 : index
    %144 = vector.load %arg1[%c0_142, %c896_143] : memref<16x1024xbf16, #tpu.memory_space<vmem>>, vector<16x128xbf16>
    %c5_144 = arith.constant 5 : index
    %c0_145 = arith.constant 0 : index
    %c0_146 = arith.constant 0 : index
    %145 = vector.load %arg2[%c5_144, %c0_145, %c0_146] : memref<8x128x128xbf16, #tpu.memory_space<vmem>>, vector<1x128x128xbf16>
    %146 = vector.shape_cast %145 : vector<1x128x128xbf16> to vector<128x128xbf16>
    %cst_147 = arith.constant dense<0.000000e+00> : vector<16x128xf32>
    %147 = tpu.matmul %144, %146, %cst_147 {dimension_numbers = #tpu.dot_dimension_numbers<[1], [0], [0], [1], [0, 0, 1, 1], [], []>} : vector<16x128xbf16>, vector<128x128xbf16>, vector<16x128xf32> -> vector<16x128xf32>
    %cst_148 = arith.constant 0.000000e+00 : f32
    %148 = vector.broadcast %cst_148 : f32 to vector<16x128xf32>
    %149 = arith.subf %148, %147 : vector<16x128xf32>
    %150 = arith.addf %143, %149 : vector<16x128xf32>
    %c0_149 = arith.constant 0 : index
    %c256_150 = arith.constant 256 : index
    %151 = vector.load %arg3[%c0_149, %c256_150] : memref<1x1024xf32, #tpu.memory_space<vmem>>, vector<1x128xf32>
    %152 = vector.broadcast %151 : vector<1x128xf32> to vector<16x128xf32>
    %153 = arith.addf %150, %152 : vector<16x128xf32>
    %c0_151 = arith.constant 0 : index
    %c256_152 = arith.constant 256 : index
    %154 = vector.load %arg4[%c0_151, %c256_152] : memref<16x1024xf32, #tpu.memory_space<vmem>>, vector<16x128xf32>
    tpu.vector_store %arg4[%c0_151, %c256_152], %153 {strides = array<i32>} : memref<16x1024xf32, #tpu.memory_space<vmem>>, vector<16x128xf32>,
    %c0_153 = arith.constant 0 : index
    %c0_154 = arith.constant 0 : index
    %155 = vector.load %arg1[%c0_153, %c0_154] : memref<16x1024xbf16, #tpu.memory_space<vmem>>, vector<16x128xbf16>
    %c3_155 = arith.constant 3 : index
    %c0_156 = arith.constant 0 : index
    %c0_157 = arith.constant 0 : index
    %156 = vector.load %arg2[%c3_155, %c0_156, %c0_157] : memref<8x128x128xbf16, #tpu.memory_space<vmem>>, vector<1x128x128xbf16>
    %157 = vector.shape_cast %156 : vector<1x128x128xbf16> to vector<128x128xbf16>
    %cst_158 = arith.constant dense<0.000000e+00> : vector<16x128xf32>
    %158 = tpu.matmul %155, %157, %cst_158 {dimension_numbers = #tpu.dot_dimension_numbers<[1], [0], [0], [1], [0, 0, 1, 1], [], []>} : vector<16x128xbf16>, vector<128x128xbf16>, vector<16x128xf32> -> vector<16x128xf32>
    %c0_159 = arith.constant 0 : index
    %c128_160 = arith.constant 128 : index
    %159 = vector.load %arg1[%c0_159, %c128_160] : memref<16x1024xbf16, #tpu.memory_space<vmem>>, vector<16x128xbf16>
    %c2_161 = arith.constant 2 : index
    %c0_162 = arith.constant 0 : index
    %c0_163 = arith.constant 0 : index
    %160 = vector.load %arg2[%c2_161, %c0_162, %c0_163] : memref<8x128x128xbf16, #tpu.memory_space<vmem>>, vector<1x128x128xbf16>
    %161 = vector.shape_cast %160 : vector<1x128x128xbf16> to vector<128x128xbf16>
    %cst_164 = arith.constant dense<0.000000e+00> : vector<16x128xf32>
    %162 = tpu.matmul %159, %161, %cst_164 {dimension_numbers = #tpu.dot_dimension_numbers<[1], [0], [0], [1], [0, 0, 1, 1], [], []>} : vector<16x128xbf16>, vector<128x128xbf16>, vector<16x128xf32> -> vector<16x128xf32>
    %163 = arith.addf %158, %162 : vector<16x128xf32>
    %c0_165 = arith.constant 0 : index
    %c256_166 = arith.constant 256 : index
    %164 = vector.load %arg1[%c0_165, %c256_166] : memref<16x1024xbf16, #tpu.memory_space<vmem>>, vector<16x128xbf16>
    %c1_167 = arith.constant 1 : index
    %c0_168 = arith.constant 0 : index
    %c0_169 = arith.constant 0 : index
    %165 = vector.load %arg2[%c1_167, %c0_168, %c0_169] : memref<8x128x128xbf16, #tpu.memory_space<vmem>>, vector<1x128x128xbf16>
    %166 = vector.shape_cast %165 : vector<1x128x128xbf16> to vector<128x128xbf16>
    %cst_170 = arith.constant dense<0.000000e+00> : vector<16x128xf32>
    %167 = tpu.matmul %164, %166, %cst_170 {dimension_numbers = #tpu.dot_dimension_numbers<[1], [0], [0], [1], [0, 0, 1, 1], [], []>} : vector<16x128xbf16>, vector<128x128xbf16>, vector<16x128xf32> -> vector<16x128xf32>
    %cst_171 = arith.constant 0.000000e+00 : f32
    %168 = vector.broadcast %cst_171 : f32 to vector<16x128xf32>
    %169 = arith.subf %168, %167 : vector<16x128xf32>
    %170 = arith.addf %163, %169 : vector<16x128xf32>
    %c0_172 = arith.constant 0 : index
    %c384_173 = arith.constant 384 : index
    %171 = vector.load %arg1[%c0_172, %c384_173] : memref<16x1024xbf16, #tpu.memory_space<vmem>>, vector<16x128xbf16>
    %c0_174 = arith.constant 0 : index
    %c0_175 = arith.constant 0 : index
    %c0_176 = arith.constant 0 : index
    %172 = vector.load %arg2[%c0_174, %c0_175, %c0_176] : memref<8x128x128xbf16, #tpu.memory_space<vmem>>, vector<1x128x128xbf16>
    %173 = vector.shape_cast %172 : vector<1x128x128xbf16> to vector<128x128xbf16>
    %cst_177 = arith.constant dense<0.000000e+00> : vector<16x128xf32>
    %174 = tpu.matmul %171, %173, %cst_177 {dimension_numbers = #tpu.dot_dimension_numbers<[1], [0], [0], [1], [0, 0, 1, 1], [], []>} : vector<16x128xbf16>, vector<128x128xbf16>, vector<16x128xf32> -> vector<16x128xf32>
    %175 = arith.addf %170, %174 : vector<16x128xf32>
    %c0_178 = arith.constant 0 : index
    %c512_179 = arith.constant 512 : index
    %176 = vector.load %arg1[%c0_178, %c512_179] : memref<16x1024xbf16, #tpu.memory_space<vmem>>, vector<16x128xbf16>
    %c7_180 = arith.constant 7 : index
    %c0_181 = arith.constant 0 : index
    %c0_182 = arith.constant 0 : index
    %177 = vector.load %arg2[%c7_180, %c0_181, %c0_182] : memref<8x128x128xbf16, #tpu.memory_space<vmem>>, vector<1x128x128xbf16>
    %178 = vector.shape_cast %177 : vector<1x128x128xbf16> to vector<128x128xbf16>
    %cst_183 = arith.constant dense<0.000000e+00> : vector<16x128xf32>
    %179 = tpu.matmul %176, %178, %cst_183 {dimension_numbers = #tpu.dot_dimension_numbers<[1], [0], [0], [1], [0, 0, 1, 1], [], []>} : vector<16x128xbf16>, vector<128x128xbf16>, vector<16x128xf32> -> vector<16x128xf32>
    %180 = arith.addf %175, %179 : vector<16x128xf32>
    %c0_184 = arith.constant 0 : index
    %c640_185 = arith.constant 640 : index
    %181 = vector.load %arg1[%c0_184, %c640_185] : memref<16x1024xbf16, #tpu.memory_space<vmem>>, vector<16x128xbf16>
    %c6_186 = arith.constant 6 : index
    %c0_187 = arith.constant 0 : index
    %c0_188 = arith.constant 0 : index
    %182 = vector.load %arg2[%c6_186, %c0_187, %c0_188] : memref<8x128x128xbf16, #tpu.memory_space<vmem>>, vector<1x128x128xbf16>
    %183 = vector.shape_cast %182 : vector<1x128x128xbf16> to vector<128x128xbf16>
    %cst_189 = arith.constant dense<0.000000e+00> : vector<16x128xf32>
    %184 = tpu.matmul %181, %183, %cst_189 {dimension_numbers = #tpu.dot_dimension_numbers<[1], [0], [0], [1], [0, 0, 1, 1], [], []>} : vector<16x128xbf16>, vector<128x128xbf16>, vector<16x128xf32> -> vector<16x128xf32>
    %cst_190 = arith.constant 0.000000e+00 : f32
    %185 = vector.broadcast %cst_190 : f32 to vector<16x128xf32>
    %186 = arith.subf %185, %184 : vector<16x128xf32>
    %187 = arith.addf %180, %186 : vector<16x128xf32>
    %c0_191 = arith.constant 0 : index
    %c768_192 = arith.constant 768 : index
    %188 = vector.load %arg1[%c0_191, %c768_192] : memref<16x1024xbf16, #tpu.memory_space<vmem>>, vector<16x128xbf16>
    %c5_193 = arith.constant 5 : index
    %c0_194 = arith.constant 0 : index
    %c0_195 = arith.constant 0 : index
    %189 = vector.load %arg2[%c5_193, %c0_194, %c0_195] : memref<8x128x128xbf16, #tpu.memory_space<vmem>>, vector<1x128x128xbf16>
    %190 = vector.shape_cast %189 : vector<1x128x128xbf16> to vector<128x128xbf16>
    %cst_196 = arith.constant dense<0.000000e+00> : vector<16x128xf32>
    %191 = tpu.matmul %188, %190, %cst_196 {dimension_numbers = #tpu.dot_dimension_numbers<[1], [0], [0], [1], [0, 0, 1, 1], [], []>} : vector<16x128xbf16>, vector<128x128xbf16>, vector<16x128xf32> -> vector<16x128xf32>
    %192 = arith.addf %187, %191 : vector<16x128xf32>
    %c0_197 = arith.constant 0 : index
    %c896_198 = arith.constant 896 : index
    %193 = vector.load %arg1[%c0_197, %c896_198] : memref<16x1024xbf16, #tpu.memory_space<vmem>>, vector<16x128xbf16>
    %c4_199 = arith.constant 4 : index
    %c0_200 = arith.constant 0 : index
    %c0_201 = arith.constant 0 : index
    %194 = vector.load %arg2[%c4_199, %c0_200, %c0_201] : memref<8x128x128xbf16, #tpu.memory_space<vmem>>, vector<1x128x128xbf16>
    %195 = vector.shape_cast %194 : vector<1x128x128xbf16> to vector<128x128xbf16>
    %cst_202 = arith.constant dense<0.000000e+00> : vector<16x128xf32>
    %196 = tpu.matmul %193, %195, %cst_202 {dimension_numbers = #tpu.dot_dimension_numbers<[1], [0], [0], [1], [0, 0, 1, 1], [], []>} : vector<16x128xbf16>, vector<128x128xbf16>, vector<16x128xf32> -> vector<16x128xf32>
    %cst_203 = arith.constant 0.000000e+00 : f32
    %197 = vector.broadcast %cst_203 : f32 to vector<16x128xf32>
    %198 = arith.subf %197, %196 : vector<16x128xf32>
    %199 = arith.addf %192, %198 : vector<16x128xf32>
    %c0_204 = arith.constant 0 : index
    %c384_205 = arith.constant 384 : index
    %200 = vector.load %arg3[%c0_204, %c384_205] : memref<1x1024xf32, #tpu.memory_space<vmem>>, vector<1x128xf32>
    %201 = vector.broadcast %200 : vector<1x128xf32> to vector<16x128xf32>
    %202 = arith.addf %199, %201 : vector<16x128xf32>
    %c0_206 = arith.constant 0 : index
    %c384_207 = arith.constant 384 : index
    %203 = vector.load %arg4[%c0_206, %c384_207] : memref<16x1024xf32, #tpu.memory_space<vmem>>, vector<16x128xf32>
    tpu.vector_store %arg4[%c0_206, %c384_207], %202 {strides = array<i32>} : memref<16x1024xf32, #tpu.memory_space<vmem>>, vector<16x128xf32>,
    %c0_208 = arith.constant 0 : index
    %c0_209 = arith.constant 0 : index
    %204 = vector.load %arg1[%c0_208, %c0_209] : memref<16x1024xbf16, #tpu.memory_space<vmem>>, vector<16x128xbf16>
    %c4_210 = arith.constant 4 : index
    %c0_211 = arith.constant 0 : index
    %c0_212 = arith.constant 0 : index
    %205 = vector.load %arg2[%c4_210, %c0_211, %c0_212] : memref<8x128x128xbf16, #tpu.memory_space<vmem>>, vector<1x128x128xbf16>
    %206 = vector.shape_cast %205 : vector<1x128x128xbf16> to vector<128x128xbf16>
    %cst_213 = arith.constant dense<0.000000e+00> : vector<16x128xf32>
    %207 = tpu.matmul %204, %206, %cst_213 {dimension_numbers = #tpu.dot_dimension_numbers<[1], [0], [0], [1], [0, 0, 1, 1], [], []>} : vector<16x128xbf16>, vector<128x128xbf16>, vector<16x128xf32> -> vector<16x128xf32>
    %c0_214 = arith.constant 0 : index
    %c128_215 = arith.constant 128 : index
    %208 = vector.load %arg1[%c0_214, %c128_215] : memref<16x1024xbf16, #tpu.memory_space<vmem>>, vector<16x128xbf16>
    %c5_216 = arith.constant 5 : index
    %c0_217 = arith.constant 0 : index
    %c0_218 = arith.constant 0 : index
    %209 = vector.load %arg2[%c5_216, %c0_217, %c0_218] : memref<8x128x128xbf16, #tpu.memory_space<vmem>>, vector<1x128x128xbf16>
    %210 = vector.shape_cast %209 : vector<1x128x128xbf16> to vector<128x128xbf16>
    %cst_219 = arith.constant dense<0.000000e+00> : vector<16x128xf32>
    %211 = tpu.matmul %208, %210, %cst_219 {dimension_numbers = #tpu.dot_dimension_numbers<[1], [0], [0], [1], [0, 0, 1, 1], [], []>} : vector<16x128xbf16>, vector<128x128xbf16>, vector<16x128xf32> -> vector<16x128xf32>
    %cst_220 = arith.constant 0.000000e+00 : f32
    %212 = vector.broadcast %cst_220 : f32 to vector<16x128xf32>
    %213 = arith.subf %212, %211 : vector<16x128xf32>
    %214 = arith.addf %207, %213 : vector<16x128xf32>
    %c0_221 = arith.constant 0 : index
    %c256_222 = arith.constant 256 : index
    %215 = vector.load %arg1[%c0_221, %c256_222] : memref<16x1024xbf16, #tpu.memory_space<vmem>>, vector<16x128xbf16>
    %c6_223 = arith.constant 6 : index
    %c0_224 = arith.constant 0 : index
    %c0_225 = arith.constant 0 : index
    %216 = vector.load %arg2[%c6_223, %c0_224, %c0_225] : memref<8x128x128xbf16, #tpu.memory_space<vmem>>, vector<1x128x128xbf16>
    %217 = vector.shape_cast %216 : vector<1x128x128xbf16> to vector<128x128xbf16>
    %cst_226 = arith.constant dense<0.000000e+00> : vector<16x128xf32>
    %218 = tpu.matmul %215, %217, %cst_226 {dimension_numbers = #tpu.dot_dimension_numbers<[1], [0], [0], [1], [0, 0, 1, 1], [], []>} : vector<16x128xbf16>, vector<128x128xbf16>, vector<16x128xf32> -> vector<16x128xf32>
    %cst_227 = arith.constant 0.000000e+00 : f32
    %219 = vector.broadcast %cst_227 : f32 to vector<16x128xf32>
    %220 = arith.subf %219, %218 : vector<16x128xf32>
    %221 = arith.addf %214, %220 : vector<16x128xf32>
    %c0_228 = arith.constant 0 : index
    %c384_229 = arith.constant 384 : index
    %222 = vector.load %arg1[%c0_228, %c384_229] : memref<16x1024xbf16, #tpu.memory_space<vmem>>, vector<16x128xbf16>
    %c7_230 = arith.constant 7 : index
    %c0_231 = arith.constant 0 : index
    %c0_232 = arith.constant 0 : index
    %223 = vector.load %arg2[%c7_230, %c0_231, %c0_232] : memref<8x128x128xbf16, #tpu.memory_space<vmem>>, vector<1x128x128xbf16>
    %224 = vector.shape_cast %223 : vector<1x128x128xbf16> to vector<128x128xbf16>
    %cst_233 = arith.constant dense<0.000000e+00> : vector<16x128xf32>
    %225 = tpu.matmul %222, %224, %cst_233 {dimension_numbers = #tpu.dot_dimension_numbers<[1], [0], [0], [1], [0, 0, 1, 1], [], []>} : vector<16x128xbf16>, vector<128x128xbf16>, vector<16x128xf32> -> vector<16x128xf32>
    %cst_234 = arith.constant 0.000000e+00 : f32
    %226 = vector.broadcast %cst_234 : f32 to vector<16x128xf32>
    %227 = arith.subf %226, %225 : vector<16x128xf32>
    %228 = arith.addf %221, %227 : vector<16x128xf32>
    %c0_235 = arith.constant 0 : index
    %c512_236 = arith.constant 512 : index
    %229 = vector.load %arg1[%c0_235, %c512_236] : memref<16x1024xbf16, #tpu.memory_space<vmem>>, vector<16x128xbf16>
    %c0_237 = arith.constant 0 : index
    %c0_238 = arith.constant 0 : index
    %c0_239 = arith.constant 0 : index
    %230 = vector.load %arg2[%c0_237, %c0_238, %c0_239] : memref<8x128x128xbf16, #tpu.memory_space<vmem>>, vector<1x128x128xbf16>
    %231 = vector.shape_cast %230 : vector<1x128x128xbf16> to vector<128x128xbf16>
    %cst_240 = arith.constant dense<0.000000e+00> : vector<16x128xf32>
    %232 = tpu.matmul %229, %231, %cst_240 {dimension_numbers = #tpu.dot_dimension_numbers<[1], [0], [0], [1], [0, 0, 1, 1], [], []>} : vector<16x128xbf16>, vector<128x128xbf16>, vector<16x128xf32> -> vector<16x128xf32>
    %233 = arith.addf %228, %232 : vector<16x128xf32>
    %c0_241 = arith.constant 0 : index
    %c640_242 = arith.constant 640 : index
    %234 = vector.load %arg1[%c0_241, %c640_242] : memref<16x1024xbf16, #tpu.memory_space<vmem>>, vector<16x128xbf16>
    %c1_243 = arith.constant 1 : index
    %c0_244 = arith.constant 0 : index
    %c0_245 = arith.constant 0 : index
    %235 = vector.load %arg2[%c1_243, %c0_244, %c0_245] : memref<8x128x128xbf16, #tpu.memory_space<vmem>>, vector<1x128x128xbf16>
    %236 = vector.shape_cast %235 : vector<1x128x128xbf16> to vector<128x128xbf16>
    %cst_246 = arith.constant dense<0.000000e+00> : vector<16x128xf32>
    %237 = tpu.matmul %234, %236, %cst_246 {dimension_numbers = #tpu.dot_dimension_numbers<[1], [0], [0], [1], [0, 0, 1, 1], [], []>} : vector<16x128xbf16>, vector<128x128xbf16>, vector<16x128xf32> -> vector<16x128xf32>
    %238 = arith.addf %233, %237 : vector<16x128xf32>
    %c0_247 = arith.constant 0 : index
    %c768_248 = arith.constant 768 : index
    %239 = vector.load %arg1[%c0_247, %c768_248] : memref<16x1024xbf16, #tpu.memory_space<vmem>>, vector<16x128xbf16>
    %c2_249 = arith.constant 2 : index
    %c0_250 = arith.constant 0 : index
    %c0_251 = arith.constant 0 : index
    %240 = vector.load %arg2[%c2_249, %c0_250, %c0_251] : memref<8x128x128xbf16, #tpu.memory_space<vmem>>, vector<1x128x128xbf16>
    %241 = vector.shape_cast %240 : vector<1x128x128xbf16> to vector<128x128xbf16>
    %cst_252 = arith.constant dense<0.000000e+00> : vector<16x128xf32>
    %242 = tpu.matmul %239, %241, %cst_252 {dimension_numbers = #tpu.dot_dimension_numbers<[1], [0], [0], [1], [0, 0, 1, 1], [], []>} : vector<16x128xbf16>, vector<128x128xbf16>, vector<16x128xf32> -> vector<16x128xf32>
    %243 = arith.addf %238, %242 : vector<16x128xf32>
    %c0_253 = arith.constant 0 : index
    %c896_254 = arith.constant 896 : index
    %244 = vector.load %arg1[%c0_253, %c896_254] : memref<16x1024xbf16, #tpu.memory_space<vmem>>, vector<16x128xbf16>
    %c3_255 = arith.constant 3 : index
    %c0_256 = arith.constant 0 : index
    %c0_257 = arith.constant 0 : index
    %245 = vector.load %arg2[%c3_255, %c0_256, %c0_257] : memref<8x128x128xbf16, #tpu.memory_space<vmem>>, vector<1x128x128xbf16>
    %246 = vector.shape_cast %245 : vector<1x128x128xbf16> to vector<128x128xbf16>
    %cst_258 = arith.constant dense<0.000000e+00> : vector<16x128xf32>
    %247 = tpu.matmul %244, %246, %cst_258 {dimension_numbers = #tpu.dot_dimension_numbers<[1], [0], [0], [1], [0, 0, 1, 1], [], []>} : vector<16x128xbf16>, vector<128x128xbf16>, vector<16x128xf32> -> vector<16x128xf32>
    %248 = arith.addf %243, %247 : vector<16x128xf32>
    %c0_259 = arith.constant 0 : index
    %c512_260 = arith.constant 512 : index
    %249 = vector.load %arg3[%c0_259, %c512_260] : memref<1x1024xf32, #tpu.memory_space<vmem>>, vector<1x128xf32>
    %250 = vector.broadcast %249 : vector<1x128xf32> to vector<16x128xf32>
    %251 = arith.addf %248, %250 : vector<16x128xf32>
    %c0_261 = arith.constant 0 : index
    %c512_262 = arith.constant 512 : index
    %252 = vector.load %arg4[%c0_261, %c512_262] : memref<16x1024xf32, #tpu.memory_space<vmem>>, vector<16x128xf32>
    tpu.vector_store %arg4[%c0_261, %c512_262], %251 {strides = array<i32>} : memref<16x1024xf32, #tpu.memory_space<vmem>>, vector<16x128xf32>,
    %c0_263 = arith.constant 0 : index
    %c0_264 = arith.constant 0 : index
    %253 = vector.load %arg1[%c0_263, %c0_264] : memref<16x1024xbf16, #tpu.memory_space<vmem>>, vector<16x128xbf16>
    %c5_265 = arith.constant 5 : index
    %c0_266 = arith.constant 0 : index
    %c0_267 = arith.constant 0 : index
    %254 = vector.load %arg2[%c5_265, %c0_266, %c0_267] : memref<8x128x128xbf16, #tpu.memory_space<vmem>>, vector<1x128x128xbf16>
    %255 = vector.shape_cast %254 : vector<1x128x128xbf16> to vector<128x128xbf16>
    %cst_268 = arith.constant dense<0.000000e+00> : vector<16x128xf32>
    %256 = tpu.matmul %253, %255, %cst_268 {dimension_numbers = #tpu.dot_dimension_numbers<[1], [0], [0], [1], [0, 0, 1, 1], [], []>} : vector<16x128xbf16>, vector<128x128xbf16>, vector<16x128xf32> -> vector<16x128xf32>
    %c0_269 = arith.constant 0 : index
    %c128_270 = arith.constant 128 : index
    %257 = vector.load %arg1[%c0_269, %c128_270] : memref<16x1024xbf16, #tpu.memory_space<vmem>>, vector<16x128xbf16>
    %c4_271 = arith.constant 4 : index
    %c0_272 = arith.constant 0 : index
    %c0_273 = arith.constant 0 : index
    %258 = vector.load %arg2[%c4_271, %c0_272, %c0_273] : memref<8x128x128xbf16, #tpu.memory_space<vmem>>, vector<1x128x128xbf16>
    %259 = vector.shape_cast %258 : vector<1x128x128xbf16> to vector<128x128xbf16>
    %cst_274 = arith.constant dense<0.000000e+00> : vector<16x128xf32>
    %260 = tpu.matmul %257, %259, %cst_274 {dimension_numbers = #tpu.dot_dimension_numbers<[1], [0], [0], [1], [0, 0, 1, 1], [], []>} : vector<16x128xbf16>, vector<128x128xbf16>, vector<16x128xf32> -> vector<16x128xf32>
    %261 = arith.addf %256, %260 : vector<16x128xf32>
    %c0_275 = arith.constant 0 : index
    %c256_276 = arith.constant 256 : index
    %262 = vector.load %arg1[%c0_275, %c256_276] : memref<16x1024xbf16, #tpu.memory_space<vmem>>, vector<16x128xbf16>
    %c7_277 = arith.constant 7 : index
    %c0_278 = arith.constant 0 : index
    %c0_279 = arith.constant 0 : index
    %263 = vector.load %arg2[%c7_277, %c0_278, %c0_279] : memref<8x128x128xbf16, #tpu.memory_space<vmem>>, vector<1x128x128xbf16>
    %264 = vector.shape_cast %263 : vector<1x128x128xbf16> to vector<128x128xbf16>
    %cst_280 = arith.constant dense<0.000000e+00> : vector<16x128xf32>
    %265 = tpu.matmul %262, %264, %cst_280 {dimension_numbers = #tpu.dot_dimension_numbers<[1], [0], [0], [1], [0, 0, 1, 1], [], []>} : vector<16x128xbf16>, vector<128x128xbf16>, vector<16x128xf32> -> vector<16x128xf32>
    %cst_281 = arith.constant 0.000000e+00 : f32
    %266 = vector.broadcast %cst_281 : f32 to vector<16x128xf32>
    %267 = arith.subf %266, %265 : vector<16x128xf32>
    %268 = arith.addf %261, %267 : vector<16x128xf32>
    %c0_282 = arith.constant 0 : index
    %c384_283 = arith.constant 384 : index
    %269 = vector.load %arg1[%c0_282, %c384_283] : memref<16x1024xbf16, #tpu.memory_space<vmem>>, vector<16x128xbf16>
    %c6_284 = arith.constant 6 : index
    %c0_285 = arith.constant 0 : index
    %c0_286 = arith.constant 0 : index
    %270 = vector.load %arg2[%c6_284, %c0_285, %c0_286] : memref<8x128x128xbf16, #tpu.memory_space<vmem>>, vector<1x128x128xbf16>
    %271 = vector.shape_cast %270 : vector<1x128x128xbf16> to vector<128x128xbf16>
    %cst_287 = arith.constant dense<0.000000e+00> : vector<16x128xf32>
    %272 = tpu.matmul %269, %271, %cst_287 {dimension_numbers = #tpu.dot_dimension_numbers<[1], [0], [0], [1], [0, 0, 1, 1], [], []>} : vector<16x128xbf16>, vector<128x128xbf16>, vector<16x128xf32> -> vector<16x128xf32>
    %273 = arith.addf %268, %272 : vector<16x128xf32>
    %c0_288 = arith.constant 0 : index
    %c512_289 = arith.constant 512 : index
    %274 = vector.load %arg1[%c0_288, %c512_289] : memref<16x1024xbf16, #tpu.memory_space<vmem>>, vector<16x128xbf16>
    %c1_290 = arith.constant 1 : index
    %c0_291 = arith.constant 0 : index
    %c0_292 = arith.constant 0 : index
    %275 = vector.load %arg2[%c1_290, %c0_291, %c0_292] : memref<8x128x128xbf16, #tpu.memory_space<vmem>>, vector<1x128x128xbf16>
    %276 = vector.shape_cast %275 : vector<1x128x128xbf16> to vector<128x128xbf16>
    %cst_293 = arith.constant dense<0.000000e+00> : vector<16x128xf32>
    %277 = tpu.matmul %274, %276, %cst_293 {dimension_numbers = #tpu.dot_dimension_numbers<[1], [0], [0], [1], [0, 0, 1, 1], [], []>} : vector<16x128xbf16>, vector<128x128xbf16>, vector<16x128xf32> -> vector<16x128xf32>
    %cst_294 = arith.constant 0.000000e+00 : f32
    %278 = vector.broadcast %cst_294 : f32 to vector<16x128xf32>
    %279 = arith.subf %278, %277 : vector<16x128xf32>
    %280 = arith.addf %273, %279 : vector<16x128xf32>
    %c0_295 = arith.constant 0 : index
    %c640_296 = arith.constant 640 : index
    %281 = vector.load %arg1[%c0_295, %c640_296] : memref<16x1024xbf16, #tpu.memory_space<vmem>>, vector<16x128xbf16>
    %c0_297 = arith.constant 0 : index
    %c0_298 = arith.constant 0 : index
    %c0_299 = arith.constant 0 : index
    %282 = vector.load %arg2[%c0_297, %c0_298, %c0_299] : memref<8x128x128xbf16, #tpu.memory_space<vmem>>, vector<1x128x128xbf16>
    %283 = vector.shape_cast %282 : vector<1x128x128xbf16> to vector<128x128xbf16>
    %cst_300 = arith.constant dense<0.000000e+00> : vector<16x128xf32>
    %284 = tpu.matmul %281, %283, %cst_300 {dimension_numbers = #tpu.dot_dimension_numbers<[1], [0], [0], [1], [0, 0, 1, 1], [], []>} : vector<16x128xbf16>, vector<128x128xbf16>, vector<16x128xf32> -> vector<16x128xf32>
    %285 = arith.addf %280, %284 : vector<16x128xf32>
    %c0_301 = arith.constant 0 : index
    %c768_302 = arith.constant 768 : index
    %286 = vector.load %arg1[%c0_301, %c768_302] : memref<16x1024xbf16, #tpu.memory_space<vmem>>, vector<16x128xbf16>
    %c3_303 = arith.constant 3 : index
    %c0_304 = arith.constant 0 : index
    %c0_305 = arith.constant 0 : index
    %287 = vector.load %arg2[%c3_303, %c0_304, %c0_305] : memref<8x128x128xbf16, #tpu.memory_space<vmem>>, vector<1x128x128xbf16>
    %288 = vector.shape_cast %287 : vector<1x128x128xbf16> to vector<128x128xbf16>
    %cst_306 = arith.constant dense<0.000000e+00> : vector<16x128xf32>
    %289 = tpu.matmul %286, %288, %cst_306 {dimension_numbers = #tpu.dot_dimension_numbers<[1], [0], [0], [1], [0, 0, 1, 1], [], []>} : vector<16x128xbf16>, vector<128x128xbf16>, vector<16x128xf32> -> vector<16x128xf32>
    %cst_307 = arith.constant 0.000000e+00 : f32
    %290 = vector.broadcast %cst_307 : f32 to vector<16x128xf32>
    %291 = arith.subf %290, %289 : vector<16x128xf32>
    %292 = arith.addf %285, %291 : vector<16x128xf32>
    %c0_308 = arith.constant 0 : index
    %c896_309 = arith.constant 896 : index
    %293 = vector.load %arg1[%c0_308, %c896_309] : memref<16x1024xbf16, #tpu.memory_space<vmem>>, vector<16x128xbf16>
    %c2_310 = arith.constant 2 : index
    %c0_311 = arith.constant 0 : index
    %c0_312 = arith.constant 0 : index
    %294 = vector.load %arg2[%c2_310, %c0_311, %c0_312] : memref<8x128x128xbf16, #tpu.memory_space<vmem>>, vector<1x128x128xbf16>
    %295 = vector.shape_cast %294 : vector<1x128x128xbf16> to vector<128x128xbf16>
    %cst_313 = arith.constant dense<0.000000e+00> : vector<16x128xf32>
    %296 = tpu.matmul %293, %295, %cst_313 {dimension_numbers = #tpu.dot_dimension_numbers<[1], [0], [0], [1], [0, 0, 1, 1], [], []>} : vector<16x128xbf16>, vector<128x128xbf16>, vector<16x128xf32> -> vector<16x128xf32>
    %297 = arith.addf %292, %296 : vector<16x128xf32>
    %c0_314 = arith.constant 0 : index
    %c640_315 = arith.constant 640 : index
    %298 = vector.load %arg3[%c0_314, %c640_315] : memref<1x1024xf32, #tpu.memory_space<vmem>>, vector<1x128xf32>
    %299 = vector.broadcast %298 : vector<1x128xf32> to vector<16x128xf32>
    %300 = arith.addf %297, %299 : vector<16x128xf32>
    %c0_316 = arith.constant 0 : index
    %c640_317 = arith.constant 640 : index
    %301 = vector.load %arg4[%c0_316, %c640_317] : memref<16x1024xf32, #tpu.memory_space<vmem>>, vector<16x128xf32>
    tpu.vector_store %arg4[%c0_316, %c640_317], %300 {strides = array<i32>} : memref<16x1024xf32, #tpu.memory_space<vmem>>, vector<16x128xf32>,
    %c0_318 = arith.constant 0 : index
    %c0_319 = arith.constant 0 : index
    %302 = vector.load %arg1[%c0_318, %c0_319] : memref<16x1024xbf16, #tpu.memory_space<vmem>>, vector<16x128xbf16>
    %c6_320 = arith.constant 6 : index
    %c0_321 = arith.constant 0 : index
    %c0_322 = arith.constant 0 : index
    %303 = vector.load %arg2[%c6_320, %c0_321, %c0_322] : memref<8x128x128xbf16, #tpu.memory_space<vmem>>, vector<1x128x128xbf16>
    %304 = vector.shape_cast %303 : vector<1x128x128xbf16> to vector<128x128xbf16>
    %cst_323 = arith.constant dense<0.000000e+00> : vector<16x128xf32>
    %305 = tpu.matmul %302, %304, %cst_323 {dimension_numbers = #tpu.dot_dimension_numbers<[1], [0], [0], [1], [0, 0, 1, 1], [], []>} : vector<16x128xbf16>, vector<128x128xbf16>, vector<16x128xf32> -> vector<16x128xf32>
    %c0_324 = arith.constant 0 : index
    %c128_325 = arith.constant 128 : index
    %306 = vector.load %arg1[%c0_324, %c128_325] : memref<16x1024xbf16, #tpu.memory_space<vmem>>, vector<16x128xbf16>
    %c7_326 = arith.constant 7 : index
    %c0_327 = arith.constant 0 : index
    %c0_328 = arith.constant 0 : index
    %307 = vector.load %arg2[%c7_326, %c0_327, %c0_328] : memref<8x128x128xbf16, #tpu.memory_space<vmem>>, vector<1x128x128xbf16>
    %308 = vector.shape_cast %307 : vector<1x128x128xbf16> to vector<128x128xbf16>
    %cst_329 = arith.constant dense<0.000000e+00> : vector<16x128xf32>
    %309 = tpu.matmul %306, %308, %cst_329 {dimension_numbers = #tpu.dot_dimension_numbers<[1], [0], [0], [1], [0, 0, 1, 1], [], []>} : vector<16x128xbf16>, vector<128x128xbf16>, vector<16x128xf32> -> vector<16x128xf32>
    %310 = arith.addf %305, %309 : vector<16x128xf32>
    %c0_330 = arith.constant 0 : index
    %c256_331 = arith.constant 256 : index
    %311 = vector.load %arg1[%c0_330, %c256_331] : memref<16x1024xbf16, #tpu.memory_space<vmem>>, vector<16x128xbf16>
    %c4_332 = arith.constant 4 : index
    %c0_333 = arith.constant 0 : index
    %c0_334 = arith.constant 0 : index
    %312 = vector.load %arg2[%c4_332, %c0_333, %c0_334] : memref<8x128x128xbf16, #tpu.memory_space<vmem>>, vector<1x128x128xbf16>
    %313 = vector.shape_cast %312 : vector<1x128x128xbf16> to vector<128x128xbf16>
    %cst_335 = arith.constant dense<0.000000e+00> : vector<16x128xf32>
    %314 = tpu.matmul %311, %313, %cst_335 {dimension_numbers = #tpu.dot_dimension_numbers<[1], [0], [0], [1], [0, 0, 1, 1], [], []>} : vector<16x128xbf16>, vector<128x128xbf16>, vector<16x128xf32> -> vector<16x128xf32>
    %315 = arith.addf %310, %314 : vector<16x128xf32>
    %c0_336 = arith.constant 0 : index
    %c384_337 = arith.constant 384 : index
    %316 = vector.load %arg1[%c0_336, %c384_337] : memref<16x1024xbf16, #tpu.memory_space<vmem>>, vector<16x128xbf16>
    %c5_338 = arith.constant 5 : index
    %c0_339 = arith.constant 0 : index
    %c0_340 = arith.constant 0 : index
    %317 = vector.load %arg2[%c5_338, %c0_339, %c0_340] : memref<8x128x128xbf16, #tpu.memory_space<vmem>>, vector<1x128x128xbf16>
    %318 = vector.shape_cast %317 : vector<1x128x128xbf16> to vector<128x128xbf16>
    %cst_341 = arith.constant dense<0.000000e+00> : vector<16x128xf32>
    %319 = tpu.matmul %316, %318, %cst_341 {dimension_numbers = #tpu.dot_dimension_numbers<[1], [0], [0], [1], [0, 0, 1, 1], [], []>} : vector<16x128xbf16>, vector<128x128xbf16>, vector<16x128xf32> -> vector<16x128xf32>
    %cst_342 = arith.constant 0.000000e+00 : f32
    %320 = vector.broadcast %cst_342 : f32 to vector<16x128xf32>
    %321 = arith.subf %320, %319 : vector<16x128xf32>
    %322 = arith.addf %315, %321 : vector<16x128xf32>
    %c0_343 = arith.constant 0 : index
    %c512_344 = arith.constant 512 : index
    %323 = vector.load %arg1[%c0_343, %c512_344] : memref<16x1024xbf16, #tpu.memory_space<vmem>>, vector<16x128xbf16>
    %c2_345 = arith.constant 2 : index
    %c0_346 = arith.constant 0 : index
    %c0_347 = arith.constant 0 : index
    %324 = vector.load %arg2[%c2_345, %c0_346, %c0_347] : memref<8x128x128xbf16, #tpu.memory_space<vmem>>, vector<1x128x128xbf16>
    %325 = vector.shape_cast %324 : vector<1x128x128xbf16> to vector<128x128xbf16>
    %cst_348 = arith.constant dense<0.000000e+00> : vector<16x128xf32>
    %326 = tpu.matmul %323, %325, %cst_348 {dimension_numbers = #tpu.dot_dimension_numbers<[1], [0], [0], [1], [0, 0, 1, 1], [], []>} : vector<16x128xbf16>, vector<128x128xbf16>, vector<16x128xf32> -> vector<16x128xf32>
    %cst_349 = arith.constant 0.000000e+00 : f32
    %327 = vector.broadcast %cst_349 : f32 to vector<16x128xf32>
    %328 = arith.subf %327, %326 : vector<16x128xf32>
    %329 = arith.addf %322, %328 : vector<16x128xf32>
    %c0_350 = arith.constant 0 : index
    %c640_351 = arith.constant 640 : index
    %330 = vector.load %arg1[%c0_350, %c640_351] : memref<16x1024xbf16, #tpu.memory_space<vmem>>, vector<16x128xbf16>
    %c3_352 = arith.constant 3 : index
    %c0_353 = arith.constant 0 : index
    %c0_354 = arith.constant 0 : index
    %331 = vector.load %arg2[%c3_352, %c0_353, %c0_354] : memref<8x128x128xbf16, #tpu.memory_space<vmem>>, vector<1x128x128xbf16>
    %332 = vector.shape_cast %331 : vector<1x128x128xbf16> to vector<128x128xbf16>
    %cst_355 = arith.constant dense<0.000000e+00> : vector<16x128xf32>
    %333 = tpu.matmul %330, %332, %cst_355 {dimension_numbers = #tpu.dot_dimension_numbers<[1], [0], [0], [1], [0, 0, 1, 1], [], []>} : vector<16x128xbf16>, vector<128x128xbf16>, vector<16x128xf32> -> vector<16x128xf32>
    %334 = arith.addf %329, %333 : vector<16x128xf32>
    %c0_356 = arith.constant 0 : index
    %c768_357 = arith.constant 768 : index
    %335 = vector.load %arg1[%c0_356, %c768_357] : memref<16x1024xbf16, #tpu.memory_space<vmem>>, vector<16x128xbf16>
    %c0_358 = arith.constant 0 : index
    %c0_359 = arith.constant 0 : index
    %c0_360 = arith.constant 0 : index
    %336 = vector.load %arg2[%c0_358, %c0_359, %c0_360] : memref<8x128x128xbf16, #tpu.memory_space<vmem>>, vector<1x128x128xbf16>
    %337 = vector.shape_cast %336 : vector<1x128x128xbf16> to vector<128x128xbf16>
    %cst_361 = arith.constant dense<0.000000e+00> : vector<16x128xf32>
    %338 = tpu.matmul %335, %337, %cst_361 {dimension_numbers = #tpu.dot_dimension_numbers<[1], [0], [0], [1], [0, 0, 1, 1], [], []>} : vector<16x128xbf16>, vector<128x128xbf16>, vector<16x128xf32> -> vector<16x128xf32>
    %339 = arith.addf %334, %338 : vector<16x128xf32>
    %c0_362 = arith.constant 0 : index
    %c896_363 = arith.constant 896 : index
    %340 = vector.load %arg1[%c0_362, %c896_363] : memref<16x1024xbf16, #tpu.memory_space<vmem>>, vector<16x128xbf16>
    %c1_364 = arith.constant 1 : index
    %c0_365 = arith.constant 0 : index
    %c0_366 = arith.constant 0 : index
    %341 = vector.load %arg2[%c1_364, %c0_365, %c0_366] : memref<8x128x128xbf16, #tpu.memory_space<vmem>>, vector<1x128x128xbf16>
    %342 = vector.shape_cast %341 : vector<1x128x128xbf16> to vector<128x128xbf16>
    %cst_367 = arith.constant dense<0.000000e+00> : vector<16x128xf32>
    %343 = tpu.matmul %340, %342, %cst_367 {dimension_numbers = #tpu.dot_dimension_numbers<[1], [0], [0], [1], [0, 0, 1, 1], [], []>} : vector<16x128xbf16>, vector<128x128xbf16>, vector<16x128xf32> -> vector<16x128xf32>
    %cst_368 = arith.constant 0.000000e+00 : f32
    %344 = vector.broadcast %cst_368 : f32 to vector<16x128xf32>
    %345 = arith.subf %344, %343 : vector<16x128xf32>
    %346 = arith.addf %339, %345 : vector<16x128xf32>
    %c0_369 = arith.constant 0 : index
    %c768_370 = arith.constant 768 : index
    %347 = vector.load %arg3[%c0_369, %c768_370] : memref<1x1024xf32, #tpu.memory_space<vmem>>, vector<1x128xf32>
    %348 = vector.broadcast %347 : vector<1x128xf32> to vector<16x128xf32>
    %349 = arith.addf %346, %348 : vector<16x128xf32>
    %c0_371 = arith.constant 0 : index
    %c768_372 = arith.constant 768 : index
    %350 = vector.load %arg4[%c0_371, %c768_372] : memref<16x1024xf32, #tpu.memory_space<vmem>>, vector<16x128xf32>
    tpu.vector_store %arg4[%c0_371, %c768_372], %349 {strides = array<i32>} : memref<16x1024xf32, #tpu.memory_space<vmem>>, vector<16x128xf32>,
    %c0_373 = arith.constant 0 : index
    %c0_374 = arith.constant 0 : index
    %351 = vector.load %arg1[%c0_373, %c0_374] : memref<16x1024xbf16, #tpu.memory_space<vmem>>, vector<16x128xbf16>
    %c7_375 = arith.constant 7 : index
    %c0_376 = arith.constant 0 : index
    %c0_377 = arith.constant 0 : index
    %352 = vector.load %arg2[%c7_375, %c0_376, %c0_377] : memref<8x128x128xbf16, #tpu.memory_space<vmem>>, vector<1x128x128xbf16>
    %353 = vector.shape_cast %352 : vector<1x128x128xbf16> to vector<128x128xbf16>
    %cst_378 = arith.constant dense<0.000000e+00> : vector<16x128xf32>
    %354 = tpu.matmul %351, %353, %cst_378 {dimension_numbers = #tpu.dot_dimension_numbers<[1], [0], [0], [1], [0, 0, 1, 1], [], []>} : vector<16x128xbf16>, vector<128x128xbf16>, vector<16x128xf32> -> vector<16x128xf32>
    %c0_379 = arith.constant 0 : index
    %c128_380 = arith.constant 128 : index
    %355 = vector.load %arg1[%c0_379, %c128_380] : memref<16x1024xbf16, #tpu.memory_space<vmem>>, vector<16x128xbf16>
    %c6_381 = arith.constant 6 : index
    %c0_382 = arith.constant 0 : index
    %c0_383 = arith.constant 0 : index
    %356 = vector.load %arg2[%c6_381, %c0_382, %c0_383] : memref<8x128x128xbf16, #tpu.memory_space<vmem>>, vector<1x128x128xbf16>
    %357 = vector.shape_cast %356 : vector<1x128x128xbf16> to vector<128x128xbf16>
    %cst_384 = arith.constant dense<0.000000e+00> : vector<16x128xf32>
    %358 = tpu.matmul %355, %357, %cst_384 {dimension_numbers = #tpu.dot_dimension_numbers<[1], [0], [0], [1], [0, 0, 1, 1], [], []>} : vector<16x128xbf16>, vector<128x128xbf16>, vector<16x128xf32> -> vector<16x128xf32>
    %cst_385 = arith.constant 0.000000e+00 : f32
    %359 = vector.broadcast %cst_385 : f32 to vector<16x128xf32>
    %360 = arith.subf %359, %358 : vector<16x128xf32>
    %361 = arith.addf %354, %360 : vector<16x128xf32>
    %c0_386 = arith.constant 0 : index
    %c256_387 = arith.constant 256 : index
    %362 = vector.load %arg1[%c0_386, %c256_387] : memref<16x1024xbf16, #tpu.memory_space<vmem>>, vector<16x128xbf16>
    %c5_388 = arith.constant 5 : index
    %c0_389 = arith.constant 0 : index
    %c0_390 = arith.constant 0 : index
    %363 = vector.load %arg2[%c5_388, %c0_389, %c0_390] : memref<8x128x128xbf16, #tpu.memory_space<vmem>>, vector<1x128x128xbf16>
    %364 = vector.shape_cast %363 : vector<1x128x128xbf16> to vector<128x128xbf16>
    %cst_391 = arith.constant dense<0.000000e+00> : vector<16x128xf32>
    %365 = tpu.matmul %362, %364, %cst_391 {dimension_numbers = #tpu.dot_dimension_numbers<[1], [0], [0], [1], [0, 0, 1, 1], [], []>} : vector<16x128xbf16>, vector<128x128xbf16>, vector<16x128xf32> -> vector<16x128xf32>
    %366 = arith.addf %361, %365 : vector<16x128xf32>
    %c0_392 = arith.constant 0 : index
    %c384_393 = arith.constant 384 : index
    %367 = vector.load %arg1[%c0_392, %c384_393] : memref<16x1024xbf16, #tpu.memory_space<vmem>>, vector<16x128xbf16>
    %c4_394 = arith.constant 4 : index
    %c0_395 = arith.constant 0 : index
    %c0_396 = arith.constant 0 : index
    %368 = vector.load %arg2[%c4_394, %c0_395, %c0_396] : memref<8x128x128xbf16, #tpu.memory_space<vmem>>, vector<1x128x128xbf16>
    %369 = vector.shape_cast %368 : vector<1x128x128xbf16> to vector<128x128xbf16>
    %cst_397 = arith.constant dense<0.000000e+00> : vector<16x128xf32>
    %370 = tpu.matmul %367, %369, %cst_397 {dimension_numbers = #tpu.dot_dimension_numbers<[1], [0], [0], [1], [0, 0, 1, 1], [], []>} : vector<16x128xbf16>, vector<128x128xbf16>, vector<16x128xf32> -> vector<16x128xf32>
    %371 = arith.addf %366, %370 : vector<16x128xf32>
    %c0_398 = arith.constant 0 : index
    %c512_399 = arith.constant 512 : index
    %372 = vector.load %arg1[%c0_398, %c512_399] : memref<16x1024xbf16, #tpu.memory_space<vmem>>, vector<16x128xbf16>
    %c3_400 = arith.constant 3 : index
    %c0_401 = arith.constant 0 : index
    %c0_402 = arith.constant 0 : index
    %373 = vector.load %arg2[%c3_400, %c0_401, %c0_402] : memref<8x128x128xbf16, #tpu.memory_space<vmem>>, vector<1x128x128xbf16>
    %374 = vector.shape_cast %373 : vector<1x128x128xbf16> to vector<128x128xbf16>
    %cst_403 = arith.constant dense<0.000000e+00> : vector<16x128xf32>
    %375 = tpu.matmul %372, %374, %cst_403 {dimension_numbers = #tpu.dot_dimension_numbers<[1], [0], [0], [1], [0, 0, 1, 1], [], []>} : vector<16x128xbf16>, vector<128x128xbf16>, vector<16x128xf32> -> vector<16x128xf32>
    %cst_404 = arith.constant 0.000000e+00 : f32
    %376 = vector.broadcast %cst_404 : f32 to vector<16x128xf32>
    %377 = arith.subf %376, %375 : vector<16x128xf32>
    %378 = arith.addf %371, %377 : vector<16x128xf32>
    %c0_405 = arith.constant 0 : index
    %c640_406 = arith.constant 640 : index
    %379 = vector.load %arg1[%c0_405, %c640_406] : memref<16x1024xbf16, #tpu.memory_space<vmem>>, vector<16x128xbf16>
    %c2_407 = arith.constant 2 : index
    %c0_408 = arith.constant 0 : index
    %c0_409 = arith.constant 0 : index
    %380 = vector.load %arg2[%c2_407, %c0_408, %c0_409] : memref<8x128x128xbf16, #tpu.memory_space<vmem>>, vector<1x128x128xbf16>
    %381 = vector.shape_cast %380 : vector<1x128x128xbf16> to vector<128x128xbf16>
    %cst_410 = arith.constant dense<0.000000e+00> : vector<16x128xf32>
    %382 = tpu.matmul %379, %381, %cst_410 {dimension_numbers = #tpu.dot_dimension_numbers<[1], [0], [0], [1], [0, 0, 1, 1], [], []>} : vector<16x128xbf16>, vector<128x128xbf16>, vector<16x128xf32> -> vector<16x128xf32>
    %cst_411 = arith.constant 0.000000e+00 : f32
    %383 = vector.broadcast %cst_411 : f32 to vector<16x128xf32>
    %384 = arith.subf %383, %382 : vector<16x128xf32>
    %385 = arith.addf %378, %384 : vector<16x128xf32>
    %c0_412 = arith.constant 0 : index
    %c768_413 = arith.constant 768 : index
    %386 = vector.load %arg1[%c0_412, %c768_413] : memref<16x1024xbf16, #tpu.memory_space<vmem>>, vector<16x128xbf16>
    %c1_414 = arith.constant 1 : index
    %c0_415 = arith.constant 0 : index
    %c0_416 = arith.constant 0 : index
    %387 = vector.load %arg2[%c1_414, %c0_415, %c0_416] : memref<8x128x128xbf16, #tpu.memory_space<vmem>>, vector<1x128x128xbf16>
    %388 = vector.shape_cast %387 : vector<1x128x128xbf16> to vector<128x128xbf16>
    %cst_417 = arith.constant dense<0.000000e+00> : vector<16x128xf32>
    %389 = tpu.matmul %386, %388, %cst_417 {dimension_numbers = #tpu.dot_dimension_numbers<[1], [0], [0], [1], [0, 0, 1, 1], [], []>} : vector<16x128xbf16>, vector<128x128xbf16>, vector<16x128xf32> -> vector<16x128xf32>
    %390 = arith.addf %385, %389 : vector<16x128xf32>
    %c0_418 = arith.constant 0 : index
    %c896_419 = arith.constant 896 : index
    %391 = vector.load %arg1[%c0_418, %c896_419] : memref<16x1024xbf16, #tpu.memory_space<vmem>>, vector<16x128xbf16>
    %c0_420 = arith.constant 0 : index
    %c0_421 = arith.constant 0 : index
    %c0_422 = arith.constant 0 : index
    %392 = vector.load %arg2[%c0_420, %c0_421, %c0_422] : memref<8x128x128xbf16, #tpu.memory_space<vmem>>, vector<1x128x128xbf16>
    %393 = vector.shape_cast %392 : vector<1x128x128xbf16> to vector<128x128xbf16>
    %cst_423 = arith.constant dense<0.000000e+00> : vector<16x128xf32>
    %394 = tpu.matmul %391, %393, %cst_423 {dimension_numbers = #tpu.dot_dimension_numbers<[1], [0], [0], [1], [0, 0, 1, 1], [], []>} : vector<16x128xbf16>, vector<128x128xbf16>, vector<16x128xf32> -> vector<16x128xf32>
    %395 = arith.addf %390, %394 : vector<16x128xf32>
    %c0_424 = arith.constant 0 : index
    %c896_425 = arith.constant 896 : index
    %396 = vector.load %arg3[%c0_424, %c896_425] : memref<1x1024xf32, #tpu.memory_space<vmem>>, vector<1x128xf32>
    %397 = vector.broadcast %396 : vector<1x128xf32> to vector<16x128xf32>
    %398 = arith.addf %395, %397 : vector<16x128xf32>
    %c0_426 = arith.constant 0 : index
    %c896_427 = arith.constant 896 : index
    %399 = vector.load %arg4[%c0_426, %c896_427] : memref<16x1024xf32, #tpu.memory_space<vmem>>, vector<16x128xf32>
    tpu.vector_store %arg4[%c0_426, %c896_427], %398 {strides = array<i32>} : memref<16x1024xf32, #tpu.memory_space<vmem>>, vector<16x128xf32>,
    return
  }
  func.func @transform_0(%arg0: i32) -> (i32, i32) {
    %c0_i32 = arith.constant 0 : i32
    %c0_i32_0 = arith.constant 0 : i32
    %c0_i32_1 = arith.constant 0 : i32
    return %c0_i32, %c0_i32_0 : i32, i32
  }
  func.func @transform_1(%arg0: i32) -> (i32, i32, i32) {
    %c0_i32 = arith.constant 0 : i32
    %c0_i32_0 = arith.constant 0 : i32
    %c0_i32_1 = arith.constant 0 : i32
    %c0_i32_2 = arith.constant 0 : i32
    return %c0_i32, %c0_i32_0, %c0_i32_1 : i32, i32, i32
  }
  func.func @transform_2(%arg0: i32) -> (i32, i32) {
    %c0_i32 = arith.constant 0 : i32
    %c0_i32_0 = arith.constant 0 : i32
    %c0_i32_1 = arith.constant 0 : i32
    return %c0_i32, %c0_i32_0 : i32, i32
  }
  func.func @transform_3(%arg0: i32) -> (i32, i32) {
    %c0_i32 = arith.constant 0 : i32
    %c0_i32_0 = arith.constant 0 : i32
    %c0_i32_1 = arith.constant 0 : i32
    return %c0_i32, %c0_i32_0 : i32, i32
  }
}

</mosaic_0001>

<llo_original>
// kernel: tpu_custom_call.1
$region0: #{tpu_custom_call.1}
  #allocation0 [shape = 'u32[]', space=smem, size = 0x4, offset = 0x4, fixed_abs, tag = 'smem constant byte address 0x4 - core index']
  #allocation1 [shape = 'u32[144,128]{1,0:T(1,128)}', space=vmem, size = 0x12000, scoped, tag = 'internal scratch']
  %s0 = inlined_call_operand.hbm [shape: bf16[16,1024], index: 0, kind: input, shape index: {}]
  %s1 = inlined_call_operand.hbm [shape: bf16[8,128,128], index: 1, kind: input, shape index: {}]
  %s2 = inlined_call_operand.hbm [shape: f32[1,1024], index: 2, kind: input, shape index: {}]
  %s3 = inlined_call_operand.hbm [shape: f32[16,1024], index: 3, kind: output, shape index: {}]
  %s4 = sld [smem:[#allocation0]]
  $region34: #{tpu_custom_call.1} parent=0
    _
  %s6 = ssub.s32 1, %s4
  %s7 = scalar_select 0, %s6, %s4
  $region1: #{tpu_custom_call.1} parent=0
    #allocation2 [shape = 'u8[32768]{0}', space=vmem, size = 0x8000, scoped, tag = 'input window, operand 0, single buffered']
    #allocation3 [shape = 's32[1]{0}', space=sflag, size = 0x4, scoped, tag = 'scoped memory for tpu_custom_call.1']
    #allocation4 [shape = 's32[1]{0}', space=sflag, size = 0x4, scoped, tag = 'scoped memory for tpu_custom_call.1']
    #allocation5 [shape = 'u8[262144]{0}', space=vmem, size = 0x40000, scoped, tag = 'input window, operand 1, single buffered']
    #allocation6 [shape = 's32[1]{0}', space=sflag, size = 0x4, scoped, tag = 'scoped memory for tpu_custom_call.1']
    #allocation7 [shape = 'u8[4096]{0}', space=vmem, size = 0x1000, scoped, tag = 'input window, operand 2, single buffered']
    #allocation8 [shape = 'u8[65536]{0}', space=vmem, size = 0x10000, scoped, tag = 'output window, operand 0, single buffered']
    %8 = vsyncpa [#allocation3], 0
    %9 = vsyncpa [#allocation6], 0
    %10 = vsyncpa [#allocation4], 0
    // Predicated region
    $region2: #{tpu_custom_call.1} parent=1 // pred_check
      _
    $region3: #{tpu_custom_call.1} parent=1 // pred_check_branch
      %12 = sbr.rel (0) target = $region5
    $region4: #{tpu_custom_call.1} parent=1 // pred_region
      %s14 = ssub.s32 1024, 1024
      %15 = vsyncadd [#allocation3], %s14
      %s16 = sshll.u32 [#allocation2], 4
      %s17 = int_to_ptr.vmem [resolvable:$true] %s16
      %22 = dma.hbm_to_vmem [thread:$0]  %s0, 1024, %s17, [#allocation3], 512, 512, 32
    $region5: #{tpu_custom_call.1} parent=1 // pred_fallthru
      _
    // Predicated region
    $region6: #{tpu_custom_call.1} parent=1 // pred_check
      _
    $region7: #{tpu_custom_call.1} parent=1 // pred_check_branch
      %24 = sbr.rel (0) target = $region9
    $region8: #{tpu_custom_call.1} parent=1 // pred_region
      %s26 = ssub.s32 8192, 8192
      %27 = vsyncadd [#allocation6], %s26
      %s28 = sshll.u32 [#allocation5], 4
      %s29 = int_to_ptr.vmem [resolvable:$true] %s28
      %34 = dma.hbm_to_vmem [thread:$0]  %s1, 8192, %s29, [#allocation6], 64, 64, 4
    $region9: #{tpu_custom_call.1} parent=1 // pred_fallthru
      _
    // Predicated region
    $region10: #{tpu_custom_call.1} parent=1 // pred_check
      _
    $region11: #{tpu_custom_call.1} parent=1 // pred_check_branch
      %36 = sbr.rel (0) target = $region13
    $region12: #{tpu_custom_call.1} parent=1 // pred_region
      %s38 = ssub.s32 128, 128
      %39 = vsyncadd [#allocation6], %s38
      %s41 = sshll.u32 [#allocation7], 4
      %s42 = int_to_ptr.vmem [resolvable:$true] %s41
      %44 = dma.hbm_to_vmem [thread:$0]  %s2, 128, %s42, [#allocation6]
    $region13: #{tpu_custom_call.1} parent=1 // pred_fallthru
      _
    // Predicated region
    $region14: #{tpu_custom_call.1} parent=1 // pred_check
      _
    $region15: #{tpu_custom_call.1} parent=1 // pred_check_branch
      %46 = sbr.rel (0) target = $region17
    $region16: #{tpu_custom_call.1} parent=1 // pred_region
      %47 = dma.done [#allocation3], 1024
    $region17: #{tpu_custom_call.1} parent=1 // pred_fallthru
      _
    // Predicated region
    $region18: #{tpu_custom_call.1} parent=1 // pred_check
      _
    $region19: #{tpu_custom_call.1} parent=1 // pred_check_branch
      %49 = sbr.rel (0) target = $region21
    $region20: #{tpu_custom_call.1} parent=1 // pred_region
      %50 = dma.done [#allocation6], 8192
    $region21: #{tpu_custom_call.1} parent=1 // pred_fallthru
      _
    // Predicated region
    $region22: #{tpu_custom_call.1} parent=1 // pred_check
      _
    $region23: #{tpu_custom_call.1} parent=1 // pred_check_branch
      %52 = sbr.rel (0) target = $region25
    $region24: #{tpu_custom_call.1} parent=1 // pred_region
      %53 = dma.done [#allocation6], 128
    $region25: #{tpu_custom_call.1} parent=1 // pred_fallthru
      _
    %v55 = vld [vmem:[#allocation2] sm:$0xf]
    %v56 = vld [vmem:[#allocation2 + $0x20] sm:$0xf]
    %v57 = vld [vmem:[#allocation5] sm:$0xf]
    %v58 = vld [vmem:[#allocation5 + $0x4] sm:$0xf]
    %v59 = vld [vmem:[#allocation5 + $0x8] sm:$0xf]
    %v60 = vld [vmem:[#allocation5 + $0xc] sm:$0xf]
    %v61 = vld [vmem:[#allocation5 + $0x10] sm:$0xf]
    %v62 = vld [vmem:[#allocation5 + $0x14] sm:$0xf]
    %v63 = vld [vmem:[#allocation5 + $0x18] sm:$0xf]
    %v64 = vld [vmem:[#allocation5 + $0x1c] sm:$0xf]
    %v65 = vld [vmem:[#allocation5 + $0x20] sm:$0xf]
    %v66 = vld [vmem:[#allocation5 + $0x24] sm:$0xf]
    %v67 = vld [vmem:[#allocation5 + $0x28] sm:$0xf]
    %v68 = vld [vmem:[#allocation5 + $0x2c] sm:$0xf]
    %v69 = vld [vmem:[#allocation5 + $0x30] sm:$0xf]
    %v70 = vld [vmem:[#allocation5 + $0x34] sm:$0xf]
    %v71 = vld [vmem:[#allocation5 + $0x38] sm:$0xf]
    %v72 = vld [vmem:[#allocation5 + $0x3c] sm:$0xf]
    %v73 = vld [vmem:[#allocation2 + $0x4] sm:$0xf]
    %v74 = vld [vmem:[#allocation2 + $0x24] sm:$0xf]
    %s75 = scalar_lea.vmem [#allocation5], 64
    %v76 = vld [vmem:[%s75] sm:$0xf]
    %v77 = vld [vmem:[%s75 + $0x4] sm:$0xf]
    %v78 = vld [vmem:[%s75 + $0x8] sm:$0xf]
    %v79 = vld [vmem:[%s75 + $0xc] sm:$0xf]
    %v80 = vld [vmem:[%s75 + $0x10] sm:$0xf]
    %v81 = vld [vmem:[%s75 + $0x14] sm:$0xf]
    %v82 = vld [vmem:[%s75 + $0x18] sm:$0xf]
    %v83 = vld [vmem:[%s75 + $0x1c] sm:$0xf]
    %v84 = vld [vmem:[%s75 + $0x20] sm:$0xf]
    %v85 = vld [vmem:[%s75 + $0x24] sm:$0xf]
    %v86 = vld [vmem:[%s75 + $0x28] sm:$0xf]
    %v87 = vld [vmem:[%s75 + $0x2c] sm:$0xf]
    %v88 = vld [vmem:[%s75 + $0x30] sm:$0xf]
    %v89 = vld [vmem:[%s75 + $0x34] sm:$0xf]
    %v90 = vld [vmem:[%s75 + $0x38] sm:$0xf]
    %v91 = vld [vmem:[%s75 + $0x3c] sm:$0xf]
    %v94 = vunpack.c.l.b16 %v73
    %v95 = vunpack.c.l.b16 %v74
    %v96 = vpack.c.b16 %v95, %v94
    %v114 = vunpack.c.l.b16 %v76
    %v115 = vunpack.c.l.b16 %v77
    %v116 = vunpack.c.l.b16 %v78
    %v117 = vunpack.c.l.b16 %v79
    %v118 = vunpack.c.l.b16 %v80
    %v119 = vunpack.c.l.b16 %v81
    %v120 = vunpack.c.l.b16 %v82
    %v121 = vunpack.c.l.b16 %v83
    %v122 = vunpack.c.l.b16 %v84
    %v123 = vunpack.c.l.b16 %v85
    %v124 = vunpack.c.l.b16 %v86
    %v125 = vunpack.c.l.b16 %v87
    %v126 = vunpack.c.l.b16 %v88
    %v127 = vunpack.c.l.b16 %v89
    %v128 = vunpack.c.l.b16 %v90
    %v129 = vunpack.c.l.b16 %v91
    %v130 = vpack.c.b16 %v115, %v114
    %v131 = vpack.c.b16 %v117, %v116
    %v132 = vpack.c.b16 %v119, %v118
    %v133 = vpack.c.b16 %v121, %v120
    %v134 = vpack.c.b16 %v123, %v122
    %v135 = vpack.c.b16 %v125, %v124
    %v136 = vpack.c.b16 %v127, %v126
    %v137 = vpack.c.b16 %v129, %v128
    %146 = vmatprep.subr.bf16.mxu0 0
    %147 = vmatpush1.bf16.msra.mxu0 %v137
    %148 = vmatprep.subr.bf16.mxu0 0
    %149 = vmatpush1.bf16.msra.mxu0 %v136
    %150 = vmatprep.subr.bf16.mxu0 0
    %151 = vmatpush1.bf16.msra.mxu0 %v135
    %152 = vmatprep.subr.bf16.mxu0 0
    %153 = vmatpush1.bf16.msra.mxu0 %v134
    %154 = vmatprep.subr.bf16.mxu0 0
    %155 = vmatpush1.bf16.msra.mxu0 %v133
    %156 = vmatprep.subr.bf16.mxu0 0
    %157 = vmatpush1.bf16.msra.mxu0 %v132
    %158 = vmatprep.subr.bf16.mxu0 0
    %159 = vmatpush1.bf16.msra.mxu0 %v131
    %160 = vmatprep.subr.bf16.mxu0 0
    %161 = vmatpush1.bf16.msra.mxu0 %v130
    %162 = vmatprep.subr.bf16.mxu0 0
    %163 = vmatpush2.bf16.msra.mxu0 0
    %164 = vmatprep.subr.bf16.mxu0 0
    %165 = vmatpush2.bf16.msra.mxu0 0
    %166 = vmatprep.subr.bf16.mxu0 0
    %167 = vmatpush2.bf16.msra.mxu0 0
    %168 = vmatprep.subr.bf16.mxu0 0
    %169 = vmatpush2.bf16.msra.mxu0 0
    %170 = vmatprep.subr.bf16.mxu0 0
    %171 = vmatpush2.bf16.msra.mxu0 0
    %172 = vmatprep.subr.bf16.mxu0 0
    %173 = vmatpush2.bf16.msra.mxu0 0
    %174 = vmatprep.subr.bf16.mxu0 0
    %175 = vmatpush2.bf16.msra.mxu0 0
    %176 = vmatprep.subr.bf16.mxu0 0
    %177 = vmatpush2.bf16.msra.mxu0 0
    %178 = vmatprep.mubr.bf16.mxu0 0
    %179 = vmatmul.mubr.bf16.gmra.mxu0 %v96
    %v180 = vpop.f32.mrf.mxu0
    %v181 = vadd.f32 0.0, %v180
    %v182 = vpop.f32.mrf.mxu0
    %v183 = vpop.f32.mrf.mxu0
    %v184 = vadd.f32 0.0, %v183
    %v185 = vpop.f32.mrf.mxu0
    %186 = vdwg.mxu0
    %v187 = vsub.f32 0.0, %v181
    %v188 = vsub.f32 0.0, %v184
    %v191 = vunpack.c.l.b16 %v55
    %v192 = vunpack.c.l.b16 %v56
    %v193 = vpack.c.b16 %v192, %v191
    %v211 = vunpack.c.l.b16 %v57
    %v212 = vunpack.c.l.b16 %v58
    %v213 = vunpack.c.l.b16 %v59
    %v214 = vunpack.c.l.b16 %v60
    %v215 = vunpack.c.l.b16 %v61
    %v216 = vunpack.c.l.b16 %v62
    %v217 = vunpack.c.l.b16 %v63
    %v218 = vunpack.c.l.b16 %v64
    %v219 = vunpack.c.l.b16 %v65
    %v220 = vunpack.c.l.b16 %v66
    %v221 = vunpack.c.l.b16 %v67
    %v222 = vunpack.c.l.b16 %v68
    %v223 = vunpack.c.l.b16 %v69
    %v224 = vunpack.c.l.b16 %v70
    %v225 = vunpack.c.l.b16 %v71
    %v226 = vunpack.c.l.b16 %v72
    %v227 = vpack.c.b16 %v212, %v211
    %v228 = vpack.c.b16 %v214, %v213
    %v229 = vpack.c.b16 %v216, %v215
    %v230 = vpack.c.b16 %v218, %v217
    %v231 = vpack.c.b16 %v220, %v219
    %v232 = vpack.c.b16 %v222, %v221
    %v233 = vpack.c.b16 %v224, %v223
    %v234 = vpack.c.b16 %v226, %v225
    %243 = vmatprep.subr.bf16.mxu0 0
    %244 = vmatpush1.bf16.msra.mxu0 %v234
    %245 = vmatprep.subr.bf16.mxu0 0
    %246 = vmatpush1.bf16.msra.mxu0 %v233
    %247 = vmatprep.subr.bf16.mxu0 0
    %248 = vmatpush1.bf16.msra.mxu0 %v232
    %249 = vmatprep.subr.bf16.mxu0 0
    %250 = vmatpush1.bf16.msra.mxu0 %v231
    %251 = vmatprep.subr.bf16.mxu0 0
    %252 = vmatpush1.bf16.msra.mxu0 %v230
    %253 = vmatprep.subr.bf16.mxu0 0
    %254 = vmatpush1.bf16.msra.mxu0 %v229
    %255 = vmatprep.subr.bf16.mxu0 0
    %256 = vmatpush1.bf16.msra.mxu0 %v228
    %257 = vmatprep.subr.bf16.mxu0 0
    %258 = vmatpush1.bf16.msra.mxu0 %v227
    %259 = vmatprep.subr.bf16.mxu0 0
    %260 = vmatpush2.bf16.msra.mxu0 0
    %261 = vmatprep.subr.bf16.mxu0 0
    %262 = vmatpush2.bf16.msra.mxu0 0
    %263 = vmatprep.subr.bf16.mxu0 0
    %264 = vmatpush2.bf16.msra.mxu0 0
    %265 = vmatprep.subr.bf16.mxu0 0
    %266 = vmatpush2.bf16.msra.mxu0 0
    %267 = vmatprep.subr.bf16.mxu0 0
    %268 = vmatpush2.bf16.msra.mxu0 0
    %269 = vmatprep.subr.bf16.mxu0 0
    %270 = vmatpush2.bf16.msra.mxu0 0
    %271 = vmatprep.subr.bf16.mxu0 0
    %272 = vmatpush2.bf16.msra.mxu0 0
    %273 = vmatprep.subr.bf16.mxu0 0
    %274 = vmatpush2.bf16.msra.mxu0 0
    %275 = vmatprep.mubr.bf16.mxu0 0
    %276 = vmatmul.mubr.bf16.gmra.mxu0 %v193
    %v277 = vpop.f32.mrf.mxu0
    %v278 = vadd.f32 %v187, %v277
    %v279 = vpop.f32.mrf.mxu0
    %v280 = vpop.f32.mrf.mxu0
    %v281 = vadd.f32 %v188, %v280
    %v282 = vpop.f32.mrf.mxu0
    %283 = vdwg.mxu0
    %v284 = vld [vmem:[#allocation2 + $0x8] sm:$0xf]
    %v285 = vld [vmem:[#allocation2 + $0x28] sm:$0xf]
    %s286 = scalar_lea.vmem [#allocation5], 128
    %v287 = vld [vmem:[%s286] sm:$0xf]
    %v288 = vld [vmem:[%s286 + $0x4] sm:$0xf]
    %v289 = vld [vmem:[%s286 + $0x8] sm:$0xf]
    %v290 = vld [vmem:[%s286 + $0xc] sm:$0xf]
    %v291 = vld [vmem:[%s286 + $0x10] sm:$0xf]
    %v292 = vld [vmem:[%s286 + $0x14] sm:$0xf]
    %v293 = vld [vmem:[%s286 + $0x18] sm:$0xf]
    %v294 = vld [vmem:[%s286 + $0x1c] sm:$0xf]
    %v295 = vld [vmem:[%s286 + $0x20] sm:$0xf]
    %v296 = vld [vmem:[%s286 + $0x24] sm:$0xf]
    %v297 = vld [vmem:[%s286 + $0x28] sm:$0xf]
    %v298 = vld [vmem:[%s286 + $0x2c] sm:$0xf]
    %v299 = vld [vmem:[%s286 + $0x30] sm:$0xf]
    %v300 = vld [vmem:[%s286 + $0x34] sm:$0xf]
    %v301 = vld [vmem:[%s286 + $0x38] sm:$0xf]
    %v302 = vld [vmem:[%s286 + $0x3c] sm:$0xf]
    %v305 = vunpack.c.l.b16 %v284
    %v306 = vunpack.c.l.b16 %v285
    %v307 = vpack.c.b16 %v306, %v305
    %v325 = vunpack.c.l.b16 %v287
    %v326 = vunpack.c.l.b16 %v288
    %v327 = vunpack.c.l.b16 %v289
    %v328 = vunpack.c.l.b16 %v290
    %v329 = vunpack.c.l.b16 %v291
    %v330 = vunpack.c.l.b16 %v292
    %v331 = vunpack.c.l.b16 %v293
    %v332 = vunpack.c.l.b16 %v294
    %v333 = vunpack.c.l.b16 %v295
    %v334 = vunpack.c.l.b16 %v296
    %v335 = vunpack.c.l.b16 %v297
    %v336 = vunpack.c.l.b16 %v298
    %v337 = vunpack.c.l.b16 %v299
    %v338 = vunpack.c.l.b16 %v300
    %v339 = vunpack.c.l.b16 %v301
    %v340 = vunpack.c.l.b16 %v302
    %v341 = vpack.c.b16 %v326, %v325
    %v342 = vpack.c.b16 %v328, %v327
    %v343 = vpack.c.b16 %v330, %v329
    %v344 = vpack.c.b16 %v332, %v331
    %v345 = vpack.c.b16 %v334, %v333
    %v346 = vpack.c.b16 %v336, %v335
    %v347 = vpack.c.b16 %v338, %v337
    %v348 = vpack.c.b16 %v340, %v339
    %357 = vmatprep.subr.bf16.mxu0 0
    %358 = vmatpush1.bf16.msra.mxu0 %v348
    %359 = vmatprep.subr.bf16.mxu0 0
    %360 = vmatpush1.bf16.msra.mxu0 %v347
    %361 = vmatprep.subr.bf16.mxu0 0
    %362 = vmatpush1.bf16.msra.mxu0 %v346
    %363 = vmatprep.subr.bf16.mxu0 0
    %364 = vmatpush1.bf16.msra.mxu0 %v345
    %365 = vmatprep.subr.bf16.mxu0 0
    %366 = vmatpush1.bf16.msra.mxu0 %v344
    %367 = vmatprep.subr.bf16.mxu0 0
    %368 = vmatpush1.bf16.msra.mxu0 %v343
    %369 = vmatprep.subr.bf16.mxu0 0
    %370 = vmatpush1.bf16.msra.mxu0 %v342
    %371 = vmatprep.subr.bf16.mxu0 0
    %372 = vmatpush1.bf16.msra.mxu0 %v341
    %373 = vmatprep.subr.bf16.mxu0 0
    %374 = vmatpush2.bf16.msra.mxu0 0
    %375 = vmatprep.subr.bf16.mxu0 0
    %376 = vmatpush2.bf16.msra.mxu0 0
    %377 = vmatprep.subr.bf16.mxu0 0
    %378 = vmatpush2.bf16.msra.mxu0 0
    %379 = vmatprep.subr.bf16.mxu0 0
    %380 = vmatpush2.bf16.msra.mxu0 0
    %381 = vmatprep.subr.bf16.mxu0 0
    %382 = vmatpush2.bf16.msra.mxu0 0
    %383 = vmatprep.subr.bf16.mxu0 0
    %384 = vmatpush2.bf16.msra.mxu0 0
    %385 = vmatprep.subr.bf16.mxu0 0
    %386 = vmatpush2.bf16.msra.mxu0 0
    %387 = vmatprep.subr.bf16.mxu0 0
    %388 = vmatpush2.bf16.msra.mxu0 0
    %389 = vmatprep.mubr.bf16.mxu0 0
    %390 = vmatmul.mubr.bf16.gmra.mxu0 %v307
    %v391 = vpop.f32.mrf.mxu0
    %v392 = vadd.f32 0.0, %v391
    %v393 = vpop.f32.mrf.mxu0
    %v394 = vpop.f32.mrf.mxu0
    %v395 = vadd.f32 0.0, %v394
    %v396 = vpop.f32.mrf.mxu0
    %397 = vdwg.mxu0
    %v398 = vsub.f32 0.0, %v392
    %v399 = vsub.f32 0.0, %v395
    %v400 = vadd.f32 %v278, %v398
    %v401 = vadd.f32 %v281, %v399
    %v402 = vld [vmem:[#allocation2 + $0xc] sm:$0xf]
    %v403 = vld [vmem:[#allocation2 + $0x2c] sm:$0xf]
    %s404 = scalar_lea.vmem [#allocation5], 192
    %v405 = vld [vmem:[%s404] sm:$0xf]
    %v406 = vld [vmem:[%s404 + $0x4] sm:$0xf]
    %v407 = vld [vmem:[%s404 + $0x8] sm:$0xf]
    %v408 = vld [vmem:[%s404 + $0xc] sm:$0xf]
    %v409 = vld [vmem:[%s404 + $0x10] sm:$0xf]
    %v410 = vld [vmem:[%s404 + $0x14] sm:$0xf]
    %v411 = vld [vmem:[%s404 + $0x18] sm:$0xf]
    %v412 = vld [vmem:[%s404 + $0x1c] sm:$0xf]
    %v413 = vld [vmem:[%s404 + $0x20] sm:$0xf]
    %v414 = vld [vmem:[%s404 + $0x24] sm:$0xf]
    %v415 = vld [vmem:[%s404 + $0x28] sm:$0xf]
    %v416 = vld [vmem:[%s404 + $0x2c] sm:$0xf]
    %v417 = vld [vmem:[%s404 + $0x30] sm:$0xf]
    %v418 = vld [vmem:[%s404 + $0x34] sm:$0xf]
    %v419 = vld [vmem:[%s404 + $0x38] sm:$0xf]
    %v420 = vld [vmem:[%s404 + $0x3c] sm:$0xf]
    %v423 = vunpack.c.l.b16 %v402
    %v424 = vunpack.c.l.b16 %v403
    %v425 = vpack.c.b16 %v424, %v423
    %v443 = vunpack.c.l.b16 %v405
    %v444 = vunpack.c.l.b16 %v406
    %v445 = vunpack.c.l.b16 %v407
    %v446 = vunpack.c.l.b16 %v408
    %v447 = vunpack.c.l.b16 %v409
    %v448 = vunpack.c.l.b16 %v410
    %v449 = vunpack.c.l.b16 %v411
    %v450 = vunpack.c.l.b16 %v412
    %v451 = vunpack.c.l.b16 %v413
    %v452 = vunpack.c.l.b16 %v414
    %v453 = vunpack.c.l.b16 %v415
    %v454 = vunpack.c.l.b16 %v416
    %v455 = vunpack.c.l.b16 %v417
    %v456 = vunpack.c.l.b16 %v418
    %v457 = vunpack.c.l.b16 %v419
    %v458 = vunpack.c.l.b16 %v420
    %v459 = vpack.c.b16 %v444, %v443
    %v460 = vpack.c.b16 %v446, %v445
    %v461 = vpack.c.b16 %v448, %v447
    %v462 = vpack.c.b16 %v450, %v449
    %v463 = vpack.c.b16 %v452, %v451
    %v464 = vpack.c.b16 %v454, %v453
    %v465 = vpack.c.b16 %v456, %v455
    %v466 = vpack.c.b16 %v458, %v457
    %475 = vmatprep.subr.bf16.mxu0 0
    %476 = vmatpush1.bf16.msra.mxu0 %v466
    %477 = vmatprep.subr.bf16.mxu0 0
    %478 = vmatpush1.bf16.msra.mxu0 %v465
    %479 = vmatprep.subr.bf16.mxu0 0
    %480 = vmatpush1.bf16.msra.mxu0 %v464
    %481 = vmatprep.subr.bf16.mxu0 0
    %482 = vmatpush1.bf16.msra.mxu0 %v463
    %483 = vmatprep.subr.bf16.mxu0 0
    %484 = vmatpush1.bf16.msra.mxu0 %v462
    %485 = vmatprep.subr.bf16.mxu0 0
    %486 = vmatpush1.bf16.msra.mxu0 %v461
    %487 = vmatprep.subr.bf16.mxu0 0
    %488 = vmatpush1.bf16.msra.mxu0 %v460
    %489 = vmatprep.subr.bf16.mxu0 0
    %490 = vmatpush1.bf16.msra.mxu0 %v459
    %491 = vmatprep.subr.bf16.mxu0 0
    %492 = vmatpush2.bf16.msra.mxu0 0
    %493 = vmatprep.subr.bf16.mxu0 0
    %494 = vmatpush2.bf16.msra.mxu0 0
    %495 = vmatprep.subr.bf16.mxu0 0
    %496 = vmatpush2.bf16.msra.mxu0 0
    %497 = vmatprep.subr.bf16.mxu0 0
    %498 = vmatpush2.bf16.msra.mxu0 0
    %499 = vmatprep.subr.bf16.mxu0 0
    %500 = vmatpush2.bf16.msra.mxu0 0
    %501 = vmatprep.subr.bf16.mxu0 0
    %502 = vmatpush2.bf16.msra.mxu0 0
    %503 = vmatprep.subr.bf16.mxu0 0
    %504 = vmatpush2.bf16.msra.mxu0 0
    %505 = vmatprep.subr.bf16.mxu0 0
    %506 = vmatpush2.bf16.msra.mxu0 0
    %507 = vmatprep.mubr.bf16.mxu0 0
    %508 = vmatmul.mubr.bf16.gmra.mxu0 %v425
    %v509 = vpop.f32.mrf.mxu0
    %v510 = vadd.f32 0.0, %v509
    %v511 = vpop.f32.mrf.mxu0
    %v512 = vpop.f32.mrf.mxu0
    %v513 = vadd.f32 0.0, %v512
    %v514 = vpop.f32.mrf.mxu0
    %515 = vdwg.mxu0
    %v516 = vsub.f32 0.0, %v510
    %v517 = vsub.f32 0.0, %v513
    %v518 = vadd.f32 %v400, %v516
    %v519 = vadd.f32 %v401, %v517
    %v520 = vld [vmem:[#allocation2 + $0x10] sm:$0xf]
    %v521 = vld [vmem:[#allocation2 + $0x30] sm:$0xf]
    %s522 = scalar_lea.vmem [#allocation5], 256
    %v523 = vld [vmem:[%s522] sm:$0xf]
    %v524 = vld [vmem:[%s522 + $0x4] sm:$0xf]
    %v525 = vld [vmem:[%s522 + $0x8] sm:$0xf]
    %v526 = vld [vmem:[%s522 + $0xc] sm:$0xf]
    %v527 = vld [vmem:[%s522 + $0x10] sm:$0xf]
    %v528 = vld [vmem:[%s522 + $0x14] sm:$0xf]
    %v529 = vld [vmem:[%s522 + $0x18] sm:$0xf]
    %v530 = vld [vmem:[%s522 + $0x1c] sm:$0xf]
    %v531 = vld [vmem:[%s522 + $0x20] sm:$0xf]
    %v532 = vld [vmem:[%s522 + $0x24] sm:$0xf]
    %v533 = vld [vmem:[%s522 + $0x28] sm:$0xf]
    %v534 = vld [vmem:[%s522 + $0x2c] sm:$0xf]
    %v535 = vld [vmem:[%s522 + $0x30] sm:$0xf]
    %v536 = vld [vmem:[%s522 + $0x34] sm:$0xf]
    %v537 = vld [vmem:[%s522 + $0x38] sm:$0xf]
    %v538 = vld [vmem:[%s522 + $0x3c] sm:$0xf]
    %v541 = vunpack.c.l.b16 %v520
    %v542 = vunpack.c.l.b16 %v521
    %v543 = vpack.c.b16 %v542, %v541
    %v561 = vunpack.c.l.b16 %v523
    %v562 = vunpack.c.l.b16 %v524
    %v563 = vunpack.c.l.b16 %v525
    %v564 = vunpack.c.l.b16 %v526
    %v565 = vunpack.c.l.b16 %v527
    %v566 = vunpack.c.l.b16 %v528
    %v567 = vunpack.c.l.b16 %v529
    %v568 = vunpack.c.l.b16 %v530
    %v569 = vunpack.c.l.b16 %v531
    %v570 = vunpack.c.l.b16 %v532
    %v571 = vunpack.c.l.b16 %v533
    %v572 = vunpack.c.l.b16 %v534
    %v573 = vunpack.c.l.b16 %v535
    %v574 = vunpack.c.l.b16 %v536
    %v575 = vunpack.c.l.b16 %v537
    %v576 = vunpack.c.l.b16 %v538
    %v577 = vpack.c.b16 %v562, %v561
    %v578 = vpack.c.b16 %v564, %v563
    %v579 = vpack.c.b16 %v566, %v565
    %v580 = vpack.c.b16 %v568, %v567
    %v581 = vpack.c.b16 %v570, %v569
    %v582 = vpack.c.b16 %v572, %v571
    %v583 = vpack.c.b16 %v574, %v573
    %v584 = vpack.c.b16 %v576, %v575
    %593 = vmatprep.subr.bf16.mxu0 0
    %594 = vmatpush1.bf16.msra.mxu0 %v584
    %595 = vmatprep.subr.bf16.mxu0 0
    %596 = vmatpush1.bf16.msra.mxu0 %v583
    %597 = vmatprep.subr.bf16.mxu0 0
    %598 = vmatpush1.bf16.msra.mxu0 %v582
    %599 = vmatprep.subr.bf16.mxu0 0
    %600 = vmatpush1.bf16.msra.mxu0 %v581
    %601 = vmatprep.subr.bf16.mxu0 0
    %602 = vmatpush1.bf16.msra.mxu0 %v580
    %603 = vmatprep.subr.bf16.mxu0 0
    %604 = vmatpush1.bf16.msra.mxu0 %v579
    %605 = vmatprep.subr.bf16.mxu0 0
    %606 = vmatpush1.bf16.msra.mxu0 %v578
    %607 = vmatprep.subr.bf16.mxu0 0
    %608 = vmatpush1.bf16.msra.mxu0 %v577
    %609 = vmatprep.subr.bf16.mxu0 0
    %610 = vmatpush2.bf16.msra.mxu0 0
    %611 = vmatprep.subr.bf16.mxu0 0
    %612 = vmatpush2.bf16.msra.mxu0 0
    %613 = vmatprep.subr.bf16.mxu0 0
    %614 = vmatpush2.bf16.msra.mxu0 0
    %615 = vmatprep.subr.bf16.mxu0 0
    %616 = vmatpush2.bf16.msra.mxu0 0
    %617 = vmatprep.subr.bf16.mxu0 0
    %618 = vmatpush2.bf16.msra.mxu0 0
    %619 = vmatprep.subr.bf16.mxu0 0
    %620 = vmatpush2.bf16.msra.mxu0 0
    %621 = vmatprep.subr.bf16.mxu0 0
    %622 = vmatpush2.bf16.msra.mxu0 0
    %623 = vmatprep.subr.bf16.mxu0 0
    %624 = vmatpush2.bf16.msra.mxu0 0
    %625 = vmatprep.mubr.bf16.mxu0 0
    %626 = vmatmul.mubr.bf16.gmra.mxu0 %v543
    %v627 = vpop.f32.mrf.mxu0
    %v628 = vadd.f32 0.0, %v627
    %v629 = vpop.f32.mrf.mxu0
    %v630 = vpop.f32.mrf.mxu0
    %v631 = vadd.f32 0.0, %v630
    %v632 = vpop.f32.mrf.mxu0
    %633 = vdwg.mxu0
    %v634 = vsub.f32 0.0, %v628
    %v635 = vsub.f32 0.0, %v631
    %v636 = vadd.f32 %v518, %v634
    %v637 = vadd.f32 %v519, %v635
    %v638 = vld [vmem:[#allocation2 + $0x14] sm:$0xf]
    %v639 = vld [vmem:[#allocation2 + $0x34] sm:$0xf]
    %s640 = scalar_lea.vmem [#allocation5], 320
    %v641 = vld [vmem:[%s640] sm:$0xf]
    %v642 = vld [vmem:[%s640 + $0x4] sm:$0xf]
    %v643 = vld [vmem:[%s640 + $0x8] sm:$0xf]
    %v644 = vld [vmem:[%s640 + $0xc] sm:$0xf]
    %v645 = vld [vmem:[%s640 + $0x10] sm:$0xf]
    %v646 = vld [vmem:[%s640 + $0x14] sm:$0xf]
    %v647 = vld [vmem:[%s640 + $0x18] sm:$0xf]
    %v648 = vld [vmem:[%s640 + $0x1c] sm:$0xf]
    %v649 = vld [vmem:[%s640 + $0x20] sm:$0xf]
    %v650 = vld [vmem:[%s640 + $0x24] sm:$0xf]
    %v651 = vld [vmem:[%s640 + $0x28] sm:$0xf]
    %v652 = vld [vmem:[%s640 + $0x2c] sm:$0xf]
    %v653 = vld [vmem:[%s640 + $0x30] sm:$0xf]
    %v654 = vld [vmem:[%s640 + $0x34] sm:$0xf]
    %v655 = vld [vmem:[%s640 + $0x38] sm:$0xf]
    %v656 = vld [vmem:[%s640 + $0x3c] sm:$0xf]
    %v659 = vunpack.c.l.b16 %v638
    %v660 = vunpack.c.l.b16 %v639
    %v661 = vpack.c.b16 %v660, %v659
    %v679 = vunpack.c.l.b16 %v641
    %v680 = vunpack.c.l.b16 %v642
    %v681 = vunpack.c.l.b16 %v643
    %v682 = vunpack.c.l.b16 %v644
    %v683 = vunpack.c.l.b16 %v645
    %v684 = vunpack.c.l.b16 %v646
    %v685 = vunpack.c.l.b16 %v647
    %v686 = vunpack.c.l.b16 %v648
    %v687 = vunpack.c.l.b16 %v649
    %v688 = vunpack.c.l.b16 %v650
    %v689 = vunpack.c.l.b16 %v651
    %v690 = vunpack.c.l.b16 %v652
    %v691 = vunpack.c.l.b16 %v653
    %v692 = vunpack.c.l.b16 %v654
    %v693 = vunpack.c.l.b16 %v655
    %v694 = vunpack.c.l.b16 %v656
    %v695 = vpack.c.b16 %v680, %v679
    %v696 = vpack.c.b16 %v682, %v681
    %v697 = vpack.c.b16 %v684, %v683
    %v698 = vpack.c.b16 %v686, %v685
    %v699 = vpack.c.b16 %v688, %v687
    %v700 = vpack.c.b16 %v690, %v689
    %v701 = vpack.c.b16 %v692, %v691
    %v702 = vpack.c.b16 %v694, %v693
    %711 = vmatprep.subr.bf16.mxu0 0
    %712 = vmatpush1.bf16.msra.mxu0 %v702
    %713 = vmatprep.subr.bf16.mxu0 0
    %714 = vmatpush1.bf16.msra.mxu0 %v701
    %715 = vmatprep.subr.bf16.mxu0 0
    %716 = vmatpush1.bf16.msra.mxu0 %v700
    %717 = vmatprep.subr.bf16.mxu0 0
    %718 = vmatpush1.bf16.msra.mxu0 %v699
    %719 = vmatprep.subr.bf16.mxu0 0
    %720 = vmatpush1.bf16.msra.mxu0 %v698
    %721 = vmatprep.subr.bf16.mxu0 0
    %722 = vmatpush1.bf16.msra.mxu0 %v697
    %723 = vmatprep.subr.bf16.mxu0 0
    %724 = vmatpush1.bf16.msra.mxu0 %v696
    %725 = vmatprep.subr.bf16.mxu0 0
    %726 = vmatpush1.bf16.msra.mxu0 %v695
    %727 = vmatprep.subr.bf16.mxu0 0
    %728 = vmatpush2.bf16.msra.mxu0 0
    %729 = vmatprep.subr.bf16.mxu0 0
    %730 = vmatpush2.bf16.msra.mxu0 0
    %731 = vmatprep.subr.bf16.mxu0 0
    %732 = vmatpush2.bf16.msra.mxu0 0
    %733 = vmatprep.subr.bf16.mxu0 0
    %734 = vmatpush2.bf16.msra.mxu0 0
    %735 = vmatprep.subr.bf16.mxu0 0
    %736 = vmatpush2.bf16.msra.mxu0 0
    %737 = vmatprep.subr.bf16.mxu0 0
    %738 = vmatpush2.bf16.msra.mxu0 0
    %739 = vmatprep.subr.bf16.mxu0 0
    %740 = vmatpush2.bf16.msra.mxu0 0
    %741 = vmatprep.subr.bf16.mxu0 0
    %742 = vmatpush2.bf16.msra.mxu0 0
    %743 = vmatprep.mubr.bf16.mxu0 0
    %744 = vmatmul.mubr.bf16.gmra.mxu0 %v661
    %v745 = vpop.f32.mrf.mxu0
    %v746 = vadd.f32 0.0, %v745
    %v747 = vpop.f32.mrf.mxu0
    %v748 = vpop.f32.mrf.mxu0
    %v749 = vadd.f32 0.0, %v748
    %v750 = vpop.f32.mrf.mxu0
    %751 = vdwg.mxu0
    %v752 = vsub.f32 0.0, %v746
    %v753 = vsub.f32 0.0, %v749
    %v754 = vadd.f32 %v636, %v752
    %v755 = vadd.f32 %v637, %v753
    %v756 = vld [vmem:[#allocation2 + $0x18] sm:$0xf]
    %v757 = vld [vmem:[#allocation2 + $0x38] sm:$0xf]
    %s758 = scalar_lea.vmem [#allocation5], 384
    %v759 = vld [vmem:[%s758] sm:$0xf]
    %v760 = vld [vmem:[%s758 + $0x4] sm:$0xf]
    %v761 = vld [vmem:[%s758 + $0x8] sm:$0xf]
    %v762 = vld [vmem:[%s758 + $0xc] sm:$0xf]
    %v763 = vld [vmem:[%s758 + $0x10] sm:$0xf]
    %v764 = vld [vmem:[%s758 + $0x14] sm:$0xf]
    %v765 = vld [vmem:[%s758 + $0x18] sm:$0xf]
    %v766 = vld [vmem:[%s758 + $0x1c] sm:$0xf]
    %v767 = vld [vmem:[%s758 + $0x20] sm:$0xf]
    %v768 = vld [vmem:[%s758 + $0x24] sm:$0xf]
    %v769 = vld [vmem:[%s758 + $0x28] sm:$0xf]
    %v770 = vld [vmem:[%s758 + $0x2c] sm:$0xf]
    %v771 = vld [vmem:[%s758 + $0x30] sm:$0xf]
    %v772 = vld [vmem:[%s758 + $0x34] sm:$0xf]
    %v773 = vld [vmem:[%s758 + $0x38] sm:$0xf]
    %v774 = vld [vmem:[%s758 + $0x3c] sm:$0xf]
    %v777 = vunpack.c.l.b16 %v756
    %v778 = vunpack.c.l.b16 %v757
    %v779 = vpack.c.b16 %v778, %v777
    %v797 = vunpack.c.l.b16 %v759
    %v798 = vunpack.c.l.b16 %v760
    %v799 = vunpack.c.l.b16 %v761
    %v800 = vunpack.c.l.b16 %v762
    %v801 = vunpack.c.l.b16 %v763
    %v802 = vunpack.c.l.b16 %v764
    %v803 = vunpack.c.l.b16 %v765
    %v804 = vunpack.c.l.b16 %v766
    %v805 = vunpack.c.l.b16 %v767
    %v806 = vunpack.c.l.b16 %v768
    %v807 = vunpack.c.l.b16 %v769
    %v808 = vunpack.c.l.b16 %v770
    %v809 = vunpack.c.l.b16 %v771
    %v810 = vunpack.c.l.b16 %v772
    %v811 = vunpack.c.l.b16 %v773
    %v812 = vunpack.c.l.b16 %v774
    %v813 = vpack.c.b16 %v798, %v797
    %v814 = vpack.c.b16 %v800, %v799
    %v815 = vpack.c.b16 %v802, %v801
    %v816 = vpack.c.b16 %v804, %v803
    %v817 = vpack.c.b16 %v806, %v805
    %v818 = vpack.c.b16 %v808, %v807
    %v819 = vpack.c.b16 %v810, %v809
    %v820 = vpack.c.b16 %v812, %v811
    %829 = vmatprep.subr.bf16.mxu0 0
    %830 = vmatpush1.bf16.msra.mxu0 %v820
    %831 = vmatprep.subr.bf16.mxu0 0
    %832 = vmatpush1.bf16.msra.mxu0 %v819
    %833 = vmatprep.subr.bf16.mxu0 0
    %834 = vmatpush1.bf16.msra.mxu0 %v818
    %835 = vmatprep.subr.bf16.mxu0 0
    %836 = vmatpush1.bf16.msra.mxu0 %v817
    %837 = vmatprep.subr.bf16.mxu0 0
    %838 = vmatpush1.bf16.msra.mxu0 %v816
    %839 = vmatprep.subr.bf16.mxu0 0
    %840 = vmatpush1.bf16.msra.mxu0 %v815
    %841 = vmatprep.subr.bf16.mxu0 0
    %842 = vmatpush1.bf16.msra.mxu0 %v814
    %843 = vmatprep.subr.bf16.mxu0 0
    %844 = vmatpush1.bf16.msra.mxu0 %v813
    %845 = vmatprep.subr.bf16.mxu0 0
    %846 = vmatpush2.bf16.msra.mxu0 0
    %847 = vmatprep.subr.bf16.mxu0 0
    %848 = vmatpush2.bf16.msra.mxu0 0
    %849 = vmatprep.subr.bf16.mxu0 0
    %850 = vmatpush2.bf16.msra.mxu0 0
    %851 = vmatprep.subr.bf16.mxu0 0
    %852 = vmatpush2.bf16.msra.mxu0 0
    %853 = vmatprep.subr.bf16.mxu0 0
    %854 = vmatpush2.bf16.msra.mxu0 0
    %855 = vmatprep.subr.bf16.mxu0 0
    %856 = vmatpush2.bf16.msra.mxu0 0
    %857 = vmatprep.subr.bf16.mxu0 0
    %858 = vmatpush2.bf16.msra.mxu0 0
    %859 = vmatprep.subr.bf16.mxu0 0
    %860 = vmatpush2.bf16.msra.mxu0 0
    %861 = vmatprep.mubr.bf16.mxu0 0
    %862 = vmatmul.mubr.bf16.gmra.mxu0 %v779
    %v863 = vpop.f32.mrf.mxu0
    %v864 = vadd.f32 0.0, %v863
    %v865 = vpop.f32.mrf.mxu0
    %v866 = vpop.f32.mrf.mxu0
    %v867 = vadd.f32 0.0, %v866
    %v868 = vpop.f32.mrf.mxu0
    %869 = vdwg.mxu0
    %v870 = vsub.f32 0.0, %v864
    %v871 = vsub.f32 0.0, %v867
    %v872 = vadd.f32 %v754, %v870
    %v873 = vadd.f32 %v755, %v871
    %v874 = vld [vmem:[#allocation2 + $0x1c] sm:$0xf]
    %v875 = vld [vmem:[#allocation2 + $0x3c] sm:$0xf]
    %s876 = scalar_lea.vmem [#allocation5], 448
    %v877 = vld [vmem:[%s876] sm:$0xf]
    %v878 = vld [vmem:[%s876 + $0x4] sm:$0xf]
    %v879 = vld [vmem:[%s876 + $0x8] sm:$0xf]
    %v880 = vld [vmem:[%s876 + $0xc] sm:$0xf]
    %v881 = vld [vmem:[%s876 + $0x10] sm:$0xf]
    %v882 = vld [vmem:[%s876 + $0x14] sm:$0xf]
    %v883 = vld [vmem:[%s876 + $0x18] sm:$0xf]
    %v884 = vld [vmem:[%s876 + $0x1c] sm:$0xf]
    %v885 = vld [vmem:[%s876 + $0x20] sm:$0xf]
    %v886 = vld [vmem:[%s876 + $0x24] sm:$0xf]
    %v887 = vld [vmem:[%s876 + $0x28] sm:$0xf]
    %v888 = vld [vmem:[%s876 + $0x2c] sm:$0xf]
    %v889 = vld [vmem:[%s876 + $0x30] sm:$0xf]
    %v890 = vld [vmem:[%s876 + $0x34] sm:$0xf]
    %v891 = vld [vmem:[%s876 + $0x38] sm:$0xf]
    %v892 = vld [vmem:[%s876 + $0x3c] sm:$0xf]
    %v895 = vunpack.c.l.b16 %v874
    %v896 = vunpack.c.l.b16 %v875
    %v897 = vpack.c.b16 %v896, %v895
    %v915 = vunpack.c.l.b16 %v877
    %v916 = vunpack.c.l.b16 %v878
    %v917 = vunpack.c.l.b16 %v879
    %v918 = vunpack.c.l.b16 %v880
    %v919 = vunpack.c.l.b16 %v881
    %v920 = vunpack.c.l.b16 %v882
    %v921 = vunpack.c.l.b16 %v883
    %v922 = vunpack.c.l.b16 %v884
    %v923 = vunpack.c.l.b16 %v885
    %v924 = vunpack.c.l.b16 %v886
    %v925 = vunpack.c.l.b16 %v887
    %v926 = vunpack.c.l.b16 %v888
    %v927 = vunpack.c.l.b16 %v889
    %v928 = vunpack.c.l.b16 %v890
    %v929 = vunpack.c.l.b16 %v891
    %v930 = vunpack.c.l.b16 %v892
    %v931 = vpack.c.b16 %v916, %v915
    %v932 = vpack.c.b16 %v918, %v917
    %v933 = vpack.c.b16 %v920, %v919
    %v934 = vpack.c.b16 %v922, %v921
    %v935 = vpack.c.b16 %v924, %v923
    %v936 = vpack.c.b16 %v926, %v925
    %v937 = vpack.c.b16 %v928, %v927
    %v938 = vpack.c.b16 %v930, %v929
    %947 = vmatprep.subr.bf16.mxu0 0
    %948 = vmatpush1.bf16.msra.mxu0 %v938
    %949 = vmatprep.subr.bf16.mxu0 0
    %950 = vmatpush1.bf16.msra.mxu0 %v937
    %951 = vmatprep.subr.bf16.mxu0 0
    %952 = vmatpush1.bf16.msra.mxu0 %v936
    %953 = vmatprep.subr.bf16.mxu0 0
    %954 = vmatpush1.bf16.msra.mxu0 %v935
    %955 = vmatprep.subr.bf16.mxu0 0
    %956 = vmatpush1.bf16.msra.mxu0 %v934
    %957 = vmatprep.subr.bf16.mxu0 0
    %958 = vmatpush1.bf16.msra.mxu0 %v933
    %959 = vmatprep.subr.bf16.mxu0 0
    %960 = vmatpush1.bf16.msra.mxu0 %v932
    %961 = vmatprep.subr.bf16.mxu0 0
    %962 = vmatpush1.bf16.msra.mxu0 %v931
    %963 = vmatprep.subr.bf16.mxu0 0
    %964 = vmatpush2.bf16.msra.mxu0 0
    %965 = vmatprep.subr.bf16.mxu0 0
    %966 = vmatpush2.bf16.msra.mxu0 0
    %967 = vmatprep.subr.bf16.mxu0 0
    %968 = vmatpush2.bf16.msra.mxu0 0
    %969 = vmatprep.subr.bf16.mxu0 0
    %970 = vmatpush2.bf16.msra.mxu0 0
    %971 = vmatprep.subr.bf16.mxu0 0
    %972 = vmatpush2.bf16.msra.mxu0 0
    %973 = vmatprep.subr.bf16.mxu0 0
    %974 = vmatpush2.bf16.msra.mxu0 0
    %975 = vmatprep.subr.bf16.mxu0 0
    %976 = vmatpush2.bf16.msra.mxu0 0
    %977 = vmatprep.subr.bf16.mxu0 0
    %978 = vmatpush2.bf16.msra.mxu0 0
    %979 = vmatprep.mubr.bf16.mxu0 0
    %980 = vmatmul.mubr.bf16.gmra.mxu0 %v897
    %v981 = vpop.f32.mrf.mxu0
    %v982 = vadd.f32 0.0, %v981
    %v983 = vpop.f32.mrf.mxu0
    %v984 = vpop.f32.mrf.mxu0
    %v985 = vadd.f32 0.0, %v984
    %v986 = vpop.f32.mrf.mxu0
    %987 = vdwg.mxu0
    %v988 = vsub.f32 0.0, %v982
    %v989 = vsub.f32 0.0, %v985
    %v990 = vadd.f32 %v872, %v988
    %v991 = vadd.f32 %v873, %v989
    %v992 = vld [vmem:[#allocation7] sm:$0x1]
    %v994 = vlaneseq
    %v995 = vshrl.u32 %v994, 7
    %v996 = vsub.s32 0, %v995
    %v997 = vrot.slane %v992, %v996
    %v999 = vadd.f32 %v990, %v997
    %v1000 = vadd.f32 %v991, %v997
    %1001 = vst [vmem:[#allocation8] sm:$0xff] %v999
    %1002 = vst [vmem:[#allocation8 + $0x40] sm:$0xff] %v1000
    %v1003 = vld [vmem:[#allocation2] sm:$0xf]
    %v1004 = vld [vmem:[#allocation2 + $0x20] sm:$0xf]
    %v1005 = vld [vmem:[%s75] sm:$0xf]
    %v1006 = vld [vmem:[%s75 + $0x4] sm:$0xf]
    %v1007 = vld [vmem:[%s75 + $0x8] sm:$0xf]
    %v1008 = vld [vmem:[%s75 + $0xc] sm:$0xf]
    %v1009 = vld [vmem:[%s75 + $0x10] sm:$0xf]
    %v1010 = vld [vmem:[%s75 + $0x14] sm:$0xf]
    %v1011 = vld [vmem:[%s75 + $0x18] sm:$0xf]
    %v1012 = vld [vmem:[%s75 + $0x1c] sm:$0xf]
    %v1013 = vld [vmem:[%s75 + $0x20] sm:$0xf]
    %v1014 = vld [vmem:[%s75 + $0x24] sm:$0xf]
    %v1015 = vld [vmem:[%s75 + $0x28] sm:$0xf]
    %v1016 = vld [vmem:[%s75 + $0x2c] sm:$0xf]
    %v1017 = vld [vmem:[%s75 + $0x30] sm:$0xf]
    %v1018 = vld [vmem:[%s75 + $0x34] sm:$0xf]
    %v1019 = vld [vmem:[%s75 + $0x38] sm:$0xf]
    %v1020 = vld [vmem:[%s75 + $0x3c] sm:$0xf]
    %v1021 = vld [vmem:[#allocation2 + $0x4] sm:$0xf]
    %v1022 = vld [vmem:[#allocation2 + $0x24] sm:$0xf]
    %v1023 = vld [vmem:[#allocation5] sm:$0xf]
    %v1024 = vld [vmem:[#allocation5 + $0x4] sm:$0xf]
    %v1025 = vld [vmem:[#allocation5 + $0x8] sm:$0xf]
    %v1026 = vld [vmem:[#allocation5 + $0xc] sm:$0xf]
    %v1027 = vld [vmem:[#allocation5 + $0x10] sm:$0xf]
    %v1028 = vld [vmem:[#allocation5 + $0x14] sm:$0xf]
    %v1029 = vld [vmem:[#allocation5 + $0x18] sm:$0xf]
    %v1030 = vld [vmem:[#allocation5 + $0x1c] sm:$0xf]
    %v1031 = vld [vmem:[#allocation5 + $0x20] sm:$0xf]
    %v1032 = vld [vmem:[#allocation5 + $0x24] sm:$0xf]
    %v1033 = vld [vmem:[#allocation5 + $0x28] sm:$0xf]
    %v1034 = vld [vmem:[#allocation5 + $0x2c] sm:$0xf]
    %v1035 = vld [vmem:[#allocation5 + $0x30] sm:$0xf]
    %v1036 = vld [vmem:[#allocation5 + $0x34] sm:$0xf]
    %v1037 = vld [vmem:[#allocation5 + $0x38] sm:$0xf]
    %v1038 = vld [vmem:[#allocation5 + $0x3c] sm:$0xf]
    %v1041 = vunpack.c.l.b16 %v1021
    %v1042 = vunpack.c.l.b16 %v1022
    %v1043 = vpack.c.b16 %v1042, %v1041
    %v1061 = vunpack.c.l.b16 %v1023
    %v1062 = vunpack.c.l.b16 %v1024
    %v1063 = vunpack.c.l.b16 %v1025
    %v1064 = vunpack.c.l.b16 %v1026
    %v1065 = vunpack.c.l.b16 %v1027
    %v1066 = vunpack.c.l.b16 %v1028
    %v1067 = vunpack.c.l.b16 %v1029
    %v1068 = vunpack.c.l.b16 %v1030
    %v1069 = vunpack.c.l.b16 %v1031
    %v1070 = vunpack.c.l.b16 %v1032
    %v1071 = vunpack.c.l.b16 %v1033
    %v1072 = vunpack.c.l.b16 %v1034
    %v1073 = vunpack.c.l.b16 %v1035
    %v1074 = vunpack.c.l.b16 %v1036
    %v1075 = vunpack.c.l.b16 %v1037
    %v1076 = vunpack.c.l.b16 %v1038
    %v1077 = vpack.c.b16 %v1062, %v1061
    %v1078 = vpack.c.b16 %v1064, %v1063
    %v1079 = vpack.c.b16 %v1066, %v1065
    %v1080 = vpack.c.b16 %v1068, %v1067
    %v1081 = vpack.c.b16 %v1070, %v1069
    %v1082 = vpack.c.b16 %v1072, %v1071
    %v1083 = vpack.c.b16 %v1074, %v1073
    %v1084 = vpack.c.b16 %v1076, %v1075
    %1093 = vmatprep.subr.bf16.mxu0 0
    %1094 = vmatpush1.bf16.msra.mxu0 %v1084
    %1095 = vmatprep.subr.bf16.mxu0 0
    %1096 = vmatpush1.bf16.msra.mxu0 %v1083
    %1097 = vmatprep.subr.bf16.mxu0 0
    %1098 = vmatpush1.bf16.msra.mxu0 %v1082
    %1099 = vmatprep.subr.bf16.mxu0 0
    %1100 = vmatpush1.bf16.msra.mxu0 %v1081
    %1101 = vmatprep.subr.bf16.mxu0 0
    %1102 = vmatpush1.bf16.msra.mxu0 %v1080
    %1103 = vmatprep.subr.bf16.mxu0 0
    %1104 = vmatpush1.bf16.msra.mxu0 %v1079
    %1105 = vmatprep.subr.bf16.mxu0 0
    %1106 = vmatpush1.bf16.msra.mxu0 %v1078
    %1107 = vmatprep.subr.bf16.mxu0 0
    %1108 = vmatpush1.bf16.msra.mxu0 %v1077
    %1109 = vmatprep.subr.bf16.mxu0 0
    %1110 = vmatpush2.bf16.msra.mxu0 0
    %1111 = vmatprep.subr.bf16.mxu0 0
    %1112 = vmatpush2.bf16.msra.mxu0 0
    %1113 = vmatprep.subr.bf16.mxu0 0
    %1114 = vmatpush2.bf16.msra.mxu0 0
    %1115 = vmatprep.subr.bf16.mxu0 0
    %1116 = vmatpush2.bf16.msra.mxu0 0
    %1117 = vmatprep.subr.bf16.mxu0 0
    %1118 = vmatpush2.bf16.msra.mxu0 0
    %1119 = vmatprep.subr.bf16.mxu0 0
    %1120 = vmatpush2.bf16.msra.mxu0 0
    %1121 = vmatprep.subr.bf16.mxu0 0
    %1122 = vmatpush2.bf16.msra.mxu0 0
    %1123 = vmatprep.subr.bf16.mxu0 0
    %1124 = vmatpush2.bf16.msra.mxu0 0
    %1125 = vmatprep.mubr.bf16.mxu0 0
    %1126 = vmatmul.mubr.bf16.gmra.mxu0 %v1043
    %v1127 = vpop.f32.mrf.mxu0
    %v1128 = vadd.f32 0.0, %v1127
    %v1129 = vpop.f32.mrf.mxu0
    %v1130 = vpop.f32.mrf.mxu0
    %v1131 = vadd.f32 0.0, %v1130
    %v1132 = vpop.f32.mrf.mxu0
    %1133 = vdwg.mxu0
    %v1136 = vunpack.c.l.b16 %v1003
    %v1137 = vunpack.c.l.b16 %v1004
    %v1138 = vpack.c.b16 %v1137, %v1136
    %v1156 = vunpack.c.l.b16 %v1005
    %v1157 = vunpack.c.l.b16 %v1006
    %v1158 = vunpack.c.l.b16 %v1007
    %v1159 = vunpack.c.l.b16 %v1008
    %v1160 = vunpack.c.l.b16 %v1009
    %v1161 = vunpack.c.l.b16 %v1010
    %v1162 = vunpack.c.l.b16 %v1011
    %v1163 = vunpack.c.l.b16 %v1012
    %v1164 = vunpack.c.l.b16 %v1013
    %v1165 = vunpack.c.l.b16 %v1014
    %v1166 = vunpack.c.l.b16 %v1015
    %v1167 = vunpack.c.l.b16 %v1016
    %v1168 = vunpack.c.l.b16 %v1017
    %v1169 = vunpack.c.l.b16 %v1018
    %v1170 = vunpack.c.l.b16 %v1019
    %v1171 = vunpack.c.l.b16 %v1020
    %v1172 = vpack.c.b16 %v1157, %v1156
    %v1173 = vpack.c.b16 %v1159, %v1158
    %v1174 = vpack.c.b16 %v1161, %v1160
    %v1175 = vpack.c.b16 %v1163, %v1162
    %v1176 = vpack.c.b16 %v1165, %v1164
    %v1177 = vpack.c.b16 %v1167, %v1166
    %v1178 = vpack.c.b16 %v1169, %v1168
    %v1179 = vpack.c.b16 %v1171, %v1170
    %1188 = vmatprep.subr.bf16.mxu0 0
    %1189 = vmatpush1.bf16.msra.mxu0 %v1179
    %1190 = vmatprep.subr.bf16.mxu0 0
    %1191 = vmatpush1.bf16.msra.mxu0 %v1178
    %1192 = vmatprep.subr.bf16.mxu0 0
    %1193 = vmatpush1.bf16.msra.mxu0 %v1177
    %1194 = vmatprep.subr.bf16.mxu0 0
    %1195 = vmatpush1.bf16.msra.mxu0 %v1176
    %1196 = vmatprep.subr.bf16.mxu0 0
    %1197 = vmatpush1.bf16.msra.mxu0 %v1175
    %1198 = vmatprep.subr.bf16.mxu0 0
    %1199 = vmatpush1.bf16.msra.mxu0 %v1174
    %1200 = vmatprep.subr.bf16.mxu0 0
    %1201 = vmatpush1.bf16.msra.mxu0 %v1173
    %1202 = vmatprep.subr.bf16.mxu0 0
    %1203 = vmatpush1.bf16.msra.mxu0 %v1172
    %1204 = vmatprep.subr.bf16.mxu0 0
    %1205 = vmatpush2.bf16.msra.mxu0 0
    %1206 = vmatprep.subr.bf16.mxu0 0
    %1207 = vmatpush2.bf16.msra.mxu0 0
    %1208 = vmatprep.subr.bf16.mxu0 0
    %1209 = vmatpush2.bf16.msra.mxu0 0
    %1210 = vmatprep.subr.bf16.mxu0 0
    %1211 = vmatpush2.bf16.msra.mxu0 0
    %1212 = vmatprep.subr.bf16.mxu0 0
    %1213 = vmatpush2.bf16.msra.mxu0 0
    %1214 = vmatprep.subr.bf16.mxu0 0
    %1215 = vmatpush2.bf16.msra.mxu0 0
    %1216 = vmatprep.subr.bf16.mxu0 0
    %1217 = vmatpush2.bf16.msra.mxu0 0
    %1218 = vmatprep.subr.bf16.mxu0 0
    %1219 = vmatpush2.bf16.msra.mxu0 0
    %1220 = vmatprep.mubr.bf16.mxu0 0
    %1221 = vmatmul.mubr.bf16.gmra.mxu0 %v1138
    %v1222 = vpop.f32.mrf.mxu0
    %v1223 = vadd.f32 %v1128, %v1222
    %v1224 = vpop.f32.mrf.mxu0
    %v1225 = vpop.f32.mrf.mxu0
    %v1226 = vadd.f32 %v1131, %v1225
    %v1227 = vpop.f32.mrf.mxu0
    %1228 = vdwg.mxu0
    %v1229 = vld [vmem:[#allocation2 + $0x8] sm:$0xf]
    %v1230 = vld [vmem:[#allocation2 + $0x28] sm:$0xf]
    %v1231 = vld [vmem:[%s404] sm:$0xf]
    %v1232 = vld [vmem:[%s404 + $0x4] sm:$0xf]
    %v1233 = vld [vmem:[%s404 + $0x8] sm:$0xf]
    %v1234 = vld [vmem:[%s404 + $0xc] sm:$0xf]
    %v1235 = vld [vmem:[%s404 + $0x10] sm:$0xf]
    %v1236 = vld [vmem:[%s404 + $0x14] sm:$0xf]
    %v1237 = vld [vmem:[%s404 + $0x18] sm:$0xf]
    %v1238 = vld [vmem:[%s404 + $0x1c] sm:$0xf]
    %v1239 = vld [vmem:[%s404 + $0x20] sm:$0xf]
    %v1240 = vld [vmem:[%s404 + $0x24] sm:$0xf]
    %v1241 = vld [vmem:[%s404 + $0x28] sm:$0xf]
    %v1242 = vld [vmem:[%s404 + $0x2c] sm:$0xf]
    %v1243 = vld [vmem:[%s404 + $0x30] sm:$0xf]
    %v1244 = vld [vmem:[%s404 + $0x34] sm:$0xf]
    %v1245 = vld [vmem:[%s404 + $0x38] sm:$0xf]
    %v1246 = vld [vmem:[%s404 + $0x3c] sm:$0xf]
    %v1249 = vunpack.c.l.b16 %v1229
    %v1250 = vunpack.c.l.b16 %v1230
    %v1251 = vpack.c.b16 %v1250, %v1249
    %v1269 = vunpack.c.l.b16 %v1231
    %v1270 = vunpack.c.l.b16 %v1232
    %v1271 = vunpack.c.l.b16 %v1233
    %v1272 = vunpack.c.l.b16 %v1234
    %v1273 = vunpack.c.l.b16 %v1235
    %v1274 = vunpack.c.l.b16 %v1236
    %v1275 = vunpack.c.l.b16 %v1237
    %v1276 = vunpack.c.l.b16 %v1238
    %v1277 = vunpack.c.l.b16 %v1239
    %v1278 = vunpack.c.l.b16 %v1240
    %v1279 = vunpack.c.l.b16 %v1241
    %v1280 = vunpack.c.l.b16 %v1242
    %v1281 = vunpack.c.l.b16 %v1243
    %v1282 = vunpack.c.l.b16 %v1244
    %v1283 = vunpack.c.l.b16 %v1245
    %v1284 = vunpack.c.l.b16 %v1246
    %v1285 = vpack.c.b16 %v1270, %v1269
    %v1286 = vpack.c.b16 %v1272, %v1271
    %v1287 = vpack.c.b16 %v1274, %v1273
    %v1288 = vpack.c.b16 %v1276, %v1275
    %v1289 = vpack.c.b16 %v1278, %v1277
    %v1290 = vpack.c.b16 %v1280, %v1279
    %v1291 = vpack.c.b16 %v1282, %v1281
    %v1292 = vpack.c.b16 %v1284, %v1283
    %1301 = vmatprep.subr.bf16.mxu0 0
    %1302 = vmatpush1.bf16.msra.mxu0 %v1292
    %1303 = vmatprep.subr.bf16.mxu0 0
    %1304 = vmatpush1.bf16.msra.mxu0 %v1291
    %1305 = vmatprep.subr.bf16.mxu0 0
    %1306 = vmatpush1.bf16.msra.mxu0 %v1290
    %1307 = vmatprep.subr.bf16.mxu0 0
    %1308 = vmatpush1.bf16.msra.mxu0 %v1289
    %1309 = vmatprep.subr.bf16.mxu0 0
    %1310 = vmatpush1.bf16.msra.mxu0 %v1288
    %1311 = vmatprep.subr.bf16.mxu0 0
    %1312 = vmatpush1.bf16.msra.mxu0 %v1287
    %1313 = vmatprep.subr.bf16.mxu0 0
    %1314 = vmatpush1.bf16.msra.mxu0 %v1286
    %1315 = vmatprep.subr.bf16.mxu0 0
    %1316 = vmatpush1.bf16.msra.mxu0 %v1285
    %1317 = vmatprep.subr.bf16.mxu0 0
    %1318 = vmatpush2.bf16.msra.mxu0 0
    %1319 = vmatprep.subr.bf16.mxu0 0
    %1320 = vmatpush2.bf16.msra.mxu0 0
    %1321 = vmatprep.subr.bf16.mxu0 0
    %1322 = vmatpush2.bf16.msra.mxu0 0
    %1323 = vmatprep.subr.bf16.mxu0 0
    %1324 = vmatpush2.bf16.msra.mxu0 0
    %1325 = vmatprep.subr.bf16.mxu0 0
    %1326 = vmatpush2.bf16.msra.mxu0 0
    %1327 = vmatprep.subr.bf16.mxu0 0
    %1328 = vmatpush2.bf16.msra.mxu0 0
    %1329 = vmatprep.subr.bf16.mxu0 0
    %1330 = vmatpush2.bf16.msra.mxu0 0
    %1331 = vmatprep.subr.bf16.mxu0 0
    %1332 = vmatpush2.bf16.msra.mxu0 0
    %1333 = vmatprep.mubr.bf16.mxu0 0
    %1334 = vmatmul.mubr.bf16.gmra.mxu0 %v1251
    %v1335 = vpop.f32.mrf.mxu0
    %v1336 = vadd.f32 0.0, %v1335
    %v1337 = vpop.f32.mrf.mxu0
    %v1338 = vpop.f32.mrf.mxu0
    %v1339 = vadd.f32 0.0, %v1338
    %v1340 = vpop.f32.mrf.mxu0
    %1341 = vdwg.mxu0
    %v1342 = vadd.f32 %v1223, %v1336
    %v1343 = vadd.f32 %v1226, %v1339
    %v1344 = vld [vmem:[#allocation2 + $0xc] sm:$0xf]
    %v1345 = vld [vmem:[#allocation2 + $0x2c] sm:$0xf]
    %v1346 = vld [vmem:[%s286] sm:$0xf]
    %v1347 = vld [vmem:[%s286 + $0x4] sm:$0xf]
    %v1348 = vld [vmem:[%s286 + $0x8] sm:$0xf]
    %v1349 = vld [vmem:[%s286 + $0xc] sm:$0xf]
    %v1350 = vld [vmem:[%s286 + $0x10] sm:$0xf]
    %v1351 = vld [vmem:[%s286 + $0x14] sm:$0xf]
    %v1352 = vld [vmem:[%s286 + $0x18] sm:$0xf]
    %v1353 = vld [vmem:[%s286 + $0x1c] sm:$0xf]
    %v1354 = vld [vmem:[%s286 + $0x20] sm:$0xf]
    %v1355 = vld [vmem:[%s286 + $0x24] sm:$0xf]
    %v1356 = vld [vmem:[%s286 + $0x28] sm:$0xf]
    %v1357 = vld [vmem:[%s286 + $0x2c] sm:$0xf]
    %v1358 = vld [vmem:[%s286 + $0x30] sm:$0xf]
    %v1359 = vld [vmem:[%s286 + $0x34] sm:$0xf]
    %v1360 = vld [vmem:[%s286 + $0x38] sm:$0xf]
    %v1361 = vld [vmem:[%s286 + $0x3c] sm:$0xf]
    %v1364 = vunpack.c.l.b16 %v1344
    %v1365 = vunpack.c.l.b16 %v1345
    %v1366 = vpack.c.b16 %v1365, %v1364
    %v1384 = vunpack.c.l.b16 %v1346
    %v1385 = vunpack.c.l.b16 %v1347
    %v1386 = vunpack.c.l.b16 %v1348
    %v1387 = vunpack.c.l.b16 %v1349
    %v1388 = vunpack.c.l.b16 %v1350
    %v1389 = vunpack.c.l.b16 %v1351
    %v1390 = vunpack.c.l.b16 %v1352
    %v1391 = vunpack.c.l.b16 %v1353
    %v1392 = vunpack.c.l.b16 %v1354
    %v1393 = vunpack.c.l.b16 %v1355
    %v1394 = vunpack.c.l.b16 %v1356
    %v1395 = vunpack.c.l.b16 %v1357
    %v1396 = vunpack.c.l.b16 %v1358
    %v1397 = vunpack.c.l.b16 %v1359
    %v1398 = vunpack.c.l.b16 %v1360
    %v1399 = vunpack.c.l.b16 %v1361
    %v1400 = vpack.c.b16 %v1385, %v1384
    %v1401 = vpack.c.b16 %v1387, %v1386
    %v1402 = vpack.c.b16 %v1389, %v1388
    %v1403 = vpack.c.b16 %v1391, %v1390
    %v1404 = vpack.c.b16 %v1393, %v1392
    %v1405 = vpack.c.b16 %v1395, %v1394
    %v1406 = vpack.c.b16 %v1397, %v1396
    %v1407 = vpack.c.b16 %v1399, %v1398
    %1416 = vmatprep.subr.bf16.mxu0 0
    %1417 = vmatpush1.bf16.msra.mxu0 %v1407
    %1418 = vmatprep.subr.bf16.mxu0 0
    %1419 = vmatpush1.bf16.msra.mxu0 %v1406
    %1420 = vmatprep.subr.bf16.mxu0 0
    %1421 = vmatpush1.bf16.msra.mxu0 %v1405
    %1422 = vmatprep.subr.bf16.mxu0 0
    %1423 = vmatpush1.bf16.msra.mxu0 %v1404
    %1424 = vmatprep.subr.bf16.mxu0 0
    %1425 = vmatpush1.bf16.msra.mxu0 %v1403
    %1426 = vmatprep.subr.bf16.mxu0 0
    %1427 = vmatpush1.bf16.msra.mxu0 %v1402
    %1428 = vmatprep.subr.bf16.mxu0 0
    %1429 = vmatpush1.bf16.msra.mxu0 %v1401
    %1430 = vmatprep.subr.bf16.mxu0 0
    %1431 = vmatpush1.bf16.msra.mxu0 %v1400
    %1432 = vmatprep.subr.bf16.mxu0 0
    %1433 = vmatpush2.bf16.msra.mxu0 0
    %1434 = vmatprep.subr.bf16.mxu0 0
    %1435 = vmatpush2.bf16.msra.mxu0 0
    %1436 = vmatprep.subr.bf16.mxu0 0
    %1437 = vmatpush2.bf16.msra.mxu0 0
    %1438 = vmatprep.subr.bf16.mxu0 0
    %1439 = vmatpush2.bf16.msra.mxu0 0
    %1440 = vmatprep.subr.bf16.mxu0 0
    %1441 = vmatpush2.bf16.msra.mxu0 0
    %1442 = vmatprep.subr.bf16.mxu0 0
    %1443 = vmatpush2.bf16.msra.mxu0 0
    %1444 = vmatprep.subr.bf16.mxu0 0
    %1445 = vmatpush2.bf16.msra.mxu0 0
    %1446 = vmatprep.subr.bf16.mxu0 0
    %1447 = vmatpush2.bf16.msra.mxu0 0
    %1448 = vmatprep.mubr.bf16.mxu0 0
    %1449 = vmatmul.mubr.bf16.gmra.mxu0 %v1366
    %v1450 = vpop.f32.mrf.mxu0
    %v1451 = vadd.f32 0.0, %v1450
    %v1452 = vpop.f32.mrf.mxu0
    %v1453 = vpop.f32.mrf.mxu0
    %v1454 = vadd.f32 0.0, %v1453
    %v1455 = vpop.f32.mrf.mxu0
    %1456 = vdwg.mxu0
    %v1457 = vsub.f32 0.0, %v1451
    %v1458 = vsub.f32 0.0, %v1454
    %v1459 = vadd.f32 %v1342, %v1457
    %v1460 = vadd.f32 %v1343, %v1458
    %v1461 = vld [vmem:[#allocation2 + $0x10] sm:$0xf]
    %v1462 = vld [vmem:[#allocation2 + $0x30] sm:$0xf]
    %v1463 = vld [vmem:[%s640] sm:$0xf]
    %v1464 = vld [vmem:[%s640 + $0x4] sm:$0xf]
    %v1465 = vld [vmem:[%s640 + $0x8] sm:$0xf]
    %v1466 = vld [vmem:[%s640 + $0xc] sm:$0xf]
    %v1467 = vld [vmem:[%s640 + $0x10] sm:$0xf]
    %v1468 = vld [vmem:[%s640 + $0x14] sm:$0xf]
    %v1469 = vld [vmem:[%s640 + $0x18] sm:$0xf]
    %v1470 = vld [vmem:[%s640 + $0x1c] sm:$0xf]
    %v1471 = vld [vmem:[%s640 + $0x20] sm:$0xf]
    %v1472 = vld [vmem:[%s640 + $0x24] sm:$0xf]
    %v1473 = vld [vmem:[%s640 + $0x28] sm:$0xf]
    %v1474 = vld [vmem:[%s640 + $0x2c] sm:$0xf]
    %v1475 = vld [vmem:[%s640 + $0x30] sm:$0xf]
    %v1476 = vld [vmem:[%s640 + $0x34] sm:$0xf]
    %v1477 = vld [vmem:[%s640 + $0x38] sm:$0xf]
    %v1478 = vld [vmem:[%s640 + $0x3c] sm:$0xf]
    %v1481 = vunpack.c.l.b16 %v1461
    %v1482 = vunpack.c.l.b16 %v1462
    %v1483 = vpack.c.b16 %v1482, %v1481
    %v1501 = vunpack.c.l.b16 %v1463
    %v1502 = vunpack.c.l.b16 %v1464
    %v1503 = vunpack.c.l.b16 %v1465
    %v1504 = vunpack.c.l.b16 %v1466
    %v1505 = vunpack.c.l.b16 %v1467
    %v1506 = vunpack.c.l.b16 %v1468
    %v1507 = vunpack.c.l.b16 %v1469
    %v1508 = vunpack.c.l.b16 %v1470
    %v1509 = vunpack.c.l.b16 %v1471
    %v1510 = vunpack.c.l.b16 %v1472
    %v1511 = vunpack.c.l.b16 %v1473
    %v1512 = vunpack.c.l.b16 %v1474
    %v1513 = vunpack.c.l.b16 %v1475
    %v1514 = vunpack.c.l.b16 %v1476
    %v1515 = vunpack.c.l.b16 %v1477
    %v1516 = vunpack.c.l.b16 %v1478
    %v1517 = vpack.c.b16 %v1502, %v1501
    %v1518 = vpack.c.b16 %v1504, %v1503
    %v1519 = vpack.c.b16 %v1506, %v1505
    %v1520 = vpack.c.b16 %v1508, %v1507
    %v1521 = vpack.c.b16 %v1510, %v1509
    %v1522 = vpack.c.b16 %v1512, %v1511
    %v1523 = vpack.c.b16 %v1514, %v1513
    %v1524 = vpack.c.b16 %v1516, %v1515
    %1533 = vmatprep.subr.bf16.mxu0 0
    %1534 = vmatpush1.bf16.msra.mxu0 %v1524
    %1535 = vmatprep.subr.bf16.mxu0 0
    %1536 = vmatpush1.bf16.msra.mxu0 %v1523
    %1537 = vmatprep.subr.bf16.mxu0 0
    %1538 = vmatpush1.bf16.msra.mxu0 %v1522
    %1539 = vmatprep.subr.bf16.mxu0 0
    %1540 = vmatpush1.bf16.msra.mxu0 %v1521
    %1541 = vmatprep.subr.bf16.mxu0 0
    %1542 = vmatpush1.bf16.msra.mxu0 %v1520
    %1543 = vmatprep.subr.bf16.mxu0 0
    %1544 = vmatpush1.bf16.msra.mxu0 %v1519
    %1545 = vmatprep.subr.bf16.mxu0 0
    %1546 = vmatpush1.bf16.msra.mxu0 %v1518
    %1547 = vmatprep.subr.bf16.mxu0 0
    %1548 = vmatpush1.bf16.msra.mxu0 %v1517
    %1549 = vmatprep.subr.bf16.mxu0 0
    %1550 = vmatpush2.bf16.msra.mxu0 0
    %1551 = vmatprep.subr.bf16.mxu0 0
    %1552 = vmatpush2.bf16.msra.mxu0 0
    %1553 = vmatprep.subr.bf16.mxu0 0
    %1554 = vmatpush2.bf16.msra.mxu0 0
    %1555 = vmatprep.subr.bf16.mxu0 0
    %1556 = vmatpush2.bf16.msra.mxu0 0
    %1557 = vmatprep.subr.bf16.mxu0 0
    %1558 = vmatpush2.bf16.msra.mxu0 0
    %1559 = vmatprep.subr.bf16.mxu0 0
    %1560 = vmatpush2.bf16.msra.mxu0 0
    %1561 = vmatprep.subr.bf16.mxu0 0
    %1562 = vmatpush2.bf16.msra.mxu0 0
    %1563 = vmatprep.subr.bf16.mxu0 0
    %1564 = vmatpush2.bf16.msra.mxu0 0
    %1565 = vmatprep.mubr.bf16.mxu0 0
    %1566 = vmatmul.mubr.bf16.gmra.mxu0 %v1483
    %v1567 = vpop.f32.mrf.mxu0
    %v1568 = vadd.f32 0.0, %v1567
    %v1569 = vpop.f32.mrf.mxu0
    %v1570 = vpop.f32.mrf.mxu0
    %v1571 = vadd.f32 0.0, %v1570
    %v1572 = vpop.f32.mrf.mxu0
    %1573 = vdwg.mxu0
    %v1574 = vadd.f32 %v1459, %v1568
    %v1575 = vadd.f32 %v1460, %v1571
    %v1576 = vld [vmem:[#allocation2 + $0x14] sm:$0xf]
    %v1577 = vld [vmem:[#allocation2 + $0x34] sm:$0xf]
    %v1578 = vld [vmem:[%s522] sm:$0xf]
    %v1579 = vld [vmem:[%s522 + $0x4] sm:$0xf]
    %v1580 = vld [vmem:[%s522 + $0x8] sm:$0xf]
    %v1581 = vld [vmem:[%s522 + $0xc] sm:$0xf]
    %v1582 = vld [vmem:[%s522 + $0x10] sm:$0xf]
    %v1583 = vld [vmem:[%s522 + $0x14] sm:$0xf]
    %v1584 = vld [vmem:[%s522 + $0x18] sm:$0xf]
    %v1585 = vld [vmem:[%s522 + $0x1c] sm:$0xf]
    %v1586 = vld [vmem:[%s522 + $0x20] sm:$0xf]
    %v1587 = vld [vmem:[%s522 + $0x24] sm:$0xf]
    %v1588 = vld [vmem:[%s522 + $0x28] sm:$0xf]
    %v1589 = vld [vmem:[%s522 + $0x2c] sm:$0xf]
    %v1590 = vld [vmem:[%s522 + $0x30] sm:$0xf]
    %v1591 = vld [vmem:[%s522 + $0x34] sm:$0xf]
    %v1592 = vld [vmem:[%s522 + $0x38] sm:$0xf]
    %v1593 = vld [vmem:[%s522 + $0x3c] sm:$0xf]
    %v1596 = vunpack.c.l.b16 %v1576
    %v1597 = vunpack.c.l.b16 %v1577
    %v1598 = vpack.c.b16 %v1597, %v1596
    %v1616 = vunpack.c.l.b16 %v1578
    %v1617 = vunpack.c.l.b16 %v1579
    %v1618 = vunpack.c.l.b16 %v1580
    %v1619 = vunpack.c.l.b16 %v1581
    %v1620 = vunpack.c.l.b16 %v1582
    %v1621 = vunpack.c.l.b16 %v1583
    %v1622 = vunpack.c.l.b16 %v1584
    %v1623 = vunpack.c.l.b16 %v1585
    %v1624 = vunpack.c.l.b16 %v1586
    %v1625 = vunpack.c.l.b16 %v1587
    %v1626 = vunpack.c.l.b16 %v1588
    %v1627 = vunpack.c.l.b16 %v1589
    %v1628 = vunpack.c.l.b16 %v1590
    %v1629 = vunpack.c.l.b16 %v1591
    %v1630 = vunpack.c.l.b16 %v1592
    %v1631 = vunpack.c.l.b16 %v1593
    %v1632 = vpack.c.b16 %v1617, %v1616
    %v1633 = vpack.c.b16 %v1619, %v1618
    %v1634 = vpack.c.b16 %v1621, %v1620
    %v1635 = vpack.c.b16 %v1623, %v1622
    %v1636 = vpack.c.b16 %v1625, %v1624
    %v1637 = vpack.c.b16 %v1627, %v1626
    %v1638 = vpack.c.b16 %v1629, %v1628
    %v1639 = vpack.c.b16 %v1631, %v1630
    %1648 = vmatprep.subr.bf16.mxu0 0
    %1649 = vmatpush1.bf16.msra.mxu0 %v1639
    %1650 = vmatprep.subr.bf16.mxu0 0
    %1651 = vmatpush1.bf16.msra.mxu0 %v1638
    %1652 = vmatprep.subr.bf16.mxu0 0
    %1653 = vmatpush1.bf16.msra.mxu0 %v1637
    %1654 = vmatprep.subr.bf16.mxu0 0
    %1655 = vmatpush1.bf16.msra.mxu0 %v1636
    %1656 = vmatprep.subr.bf16.mxu0 0
    %1657 = vmatpush1.bf16.msra.mxu0 %v1635
    %1658 = vmatprep.subr.bf16.mxu0 0
    %1659 = vmatpush1.bf16.msra.mxu0 %v1634
    %1660 = vmatprep.subr.bf16.mxu0 0
    %1661 = vmatpush1.bf16.msra.mxu0 %v1633
    %1662 = vmatprep.subr.bf16.mxu0 0
    %1663 = vmatpush1.bf16.msra.mxu0 %v1632
    %1664 = vmatprep.subr.bf16.mxu0 0
    %1665 = vmatpush2.bf16.msra.mxu0 0
    %1666 = vmatprep.subr.bf16.mxu0 0
    %1667 = vmatpush2.bf16.msra.mxu0 0
    %1668 = vmatprep.subr.bf16.mxu0 0
    %1669 = vmatpush2.bf16.msra.mxu0 0
    %1670 = vmatprep.subr.bf16.mxu0 0
    %1671 = vmatpush2.bf16.msra.mxu0 0
    %1672 = vmatprep.subr.bf16.mxu0 0
    %1673 = vmatpush2.bf16.msra.mxu0 0
    %1674 = vmatprep.subr.bf16.mxu0 0
    %1675 = vmatpush2.bf16.msra.mxu0 0
    %1676 = vmatprep.subr.bf16.mxu0 0
    %1677 = vmatpush2.bf16.msra.mxu0 0
    %1678 = vmatprep.subr.bf16.mxu0 0
    %1679 = vmatpush2.bf16.msra.mxu0 0
    %1680 = vmatprep.mubr.bf16.mxu0 0
    %1681 = vmatmul.mubr.bf16.gmra.mxu0 %v1598
    %v1682 = vpop.f32.mrf.mxu0
    %v1683 = vadd.f32 0.0, %v1682
    %v1684 = vpop.f32.mrf.mxu0
    %v1685 = vpop.f32.mrf.mxu0
    %v1686 = vadd.f32 0.0, %v1685
    %v1687 = vpop.f32.mrf.mxu0
    %1688 = vdwg.mxu0
    %v1689 = vsub.f32 0.0, %v1683
    %v1690 = vsub.f32 0.0, %v1686
    %v1691 = vadd.f32 %v1574, %v1689
    %v1692 = vadd.f32 %v1575, %v1690
    %v1693 = vld [vmem:[#allocation2 + $0x18] sm:$0xf]
    %v1694 = vld [vmem:[#allocation2 + $0x38] sm:$0xf]
    %v1695 = vld [vmem:[%s876] sm:$0xf]
    %v1696 = vld [vmem:[%s876 + $0x4] sm:$0xf]
    %v1697 = vld [vmem:[%s876 + $0x8] sm:$0xf]
    %v1698 = vld [vmem:[%s876 + $0xc] sm:$0xf]
    %v1699 = vld [vmem:[%s876 + $0x10] sm:$0xf]
    %v1700 = vld [vmem:[%s876 + $0x14] sm:$0xf]
    %v1701 = vld [vmem:[%s876 + $0x18] sm:$0xf]
    %v1702 = vld [vmem:[%s876 + $0x1c] sm:$0xf]
    %v1703 = vld [vmem:[%s876 + $0x20] sm:$0xf]
    %v1704 = vld [vmem:[%s876 + $0x24] sm:$0xf]
    %v1705 = vld [vmem:[%s876 + $0x28] sm:$0xf]
    %v1706 = vld [vmem:[%s876 + $0x2c] sm:$0xf]
    %v1707 = vld [vmem:[%s876 + $0x30] sm:$0xf]
    %v1708 = vld [vmem:[%s876 + $0x34] sm:$0xf]
    %v1709 = vld [vmem:[%s876 + $0x38] sm:$0xf]
    %v1710 = vld [vmem:[%s876 + $0x3c] sm:$0xf]
    %v1713 = vunpack.c.l.b16 %v1693
    %v1714 = vunpack.c.l.b16 %v1694
    %v1715 = vpack.c.b16 %v1714, %v1713
    %v1733 = vunpack.c.l.b16 %v1695
    %v1734 = vunpack.c.l.b16 %v1696
    %v1735 = vunpack.c.l.b16 %v1697
    %v1736 = vunpack.c.l.b16 %v1698
    %v1737 = vunpack.c.l.b16 %v1699
    %v1738 = vunpack.c.l.b16 %v1700
    %v1739 = vunpack.c.l.b16 %v1701
    %v1740 = vunpack.c.l.b16 %v1702
    %v1741 = vunpack.c.l.b16 %v1703
    %v1742 = vunpack.c.l.b16 %v1704
    %v1743 = vunpack.c.l.b16 %v1705
    %v1744 = vunpack.c.l.b16 %v1706
    %v1745 = vunpack.c.l.b16 %v1707
    %v1746 = vunpack.c.l.b16 %v1708
    %v1747 = vunpack.c.l.b16 %v1709
    %v1748 = vunpack.c.l.b16 %v1710
    %v1749 = vpack.c.b16 %v1734, %v1733
    %v1750 = vpack.c.b16 %v1736, %v1735
    %v1751 = vpack.c.b16 %v1738, %v1737
    %v1752 = vpack.c.b16 %v1740, %v1739
    %v1753 = vpack.c.b16 %v1742, %v1741
    %v1754 = vpack.c.b16 %v1744, %v1743
    %v1755 = vpack.c.b16 %v1746, %v1745
    %v1756 = vpack.c.b16 %v1748, %v1747
    %1765 = vmatprep.subr.bf16.mxu0 0
    %1766 = vmatpush1.bf16.msra.mxu0 %v1756
    %1767 = vmatprep.subr.bf16.mxu0 0
    %1768 = vmatpush1.bf16.msra.mxu0 %v1755
    %1769 = vmatprep.subr.bf16.mxu0 0
    %1770 = vmatpush1.bf16.msra.mxu0 %v1754
    %1771 = vmatprep.subr.bf16.mxu0 0
    %1772 = vmatpush1.bf16.msra.mxu0 %v1753
    %1773 = vmatprep.subr.bf16.mxu0 0
    %1774 = vmatpush1.bf16.msra.mxu0 %v1752
    %1775 = vmatprep.subr.bf16.mxu0 0
    %1776 = vmatpush1.bf16.msra.mxu0 %v1751
    %1777 = vmatprep.subr.bf16.mxu0 0
    %1778 = vmatpush1.bf16.msra.mxu0 %v1750
    %1779 = vmatprep.subr.bf16.mxu0 0
    %1780 = vmatpush1.bf16.msra.mxu0 %v1749
    %1781 = vmatprep.subr.bf16.mxu0 0
    %1782 = vmatpush2.bf16.msra.mxu0 0
    %1783 = vmatprep.subr.bf16.mxu0 0
    %1784 = vmatpush2.bf16.msra.mxu0 0
    %1785 = vmatprep.subr.bf16.mxu0 0
    %1786 = vmatpush2.bf16.msra.mxu0 0
    %1787 = vmatprep.subr.bf16.mxu0 0
    %1788 = vmatpush2.bf16.msra.mxu0 0
    %1789 = vmatprep.subr.bf16.mxu0 0
    %1790 = vmatpush2.bf16.msra.mxu0 0
    %1791 = vmatprep.subr.bf16.mxu0 0
    %1792 = vmatpush2.bf16.msra.mxu0 0
    %1793 = vmatprep.subr.bf16.mxu0 0
    %1794 = vmatpush2.bf16.msra.mxu0 0
    %1795 = vmatprep.subr.bf16.mxu0 0
    %1796 = vmatpush2.bf16.msra.mxu0 0
    %1797 = vmatprep.mubr.bf16.mxu0 0
    %1798 = vmatmul.mubr.bf16.gmra.mxu0 %v1715
    %v1799 = vpop.f32.mrf.mxu0
    %v1800 = vadd.f32 0.0, %v1799
    %v1801 = vpop.f32.mrf.mxu0
    %v1802 = vpop.f32.mrf.mxu0
    %v1803 = vadd.f32 0.0, %v1802
    %v1804 = vpop.f32.mrf.mxu0
    %1805 = vdwg.mxu0
    %v1806 = vsub.f32 0.0, %v1800
    %v1807 = vsub.f32 0.0, %v1803
    %v1808 = vadd.f32 %v1691, %v1806
    %v1809 = vadd.f32 %v1692, %v1807
    %v1810 = vld [vmem:[#allocation2 + $0x1c] sm:$0xf]
    %v1811 = vld [vmem:[#allocation2 + $0x3c] sm:$0xf]
    %v1812 = vld [vmem:[%s758] sm:$0xf]
    %v1813 = vld [vmem:[%s758 + $0x4] sm:$0xf]
    %v1814 = vld [vmem:[%s758 + $0x8] sm:$0xf]
    %v1815 = vld [vmem:[%s758 + $0xc] sm:$0xf]
    %v1816 = vld [vmem:[%s758 + $0x10] sm:$0xf]
    %v1817 = vld [vmem:[%s758 + $0x14] sm:$0xf]
    %v1818 = vld [vmem:[%s758 + $0x18] sm:$0xf]
    %v1819 = vld [vmem:[%s758 + $0x1c] sm:$0xf]
    %v1820 = vld [vmem:[%s758 + $0x20] sm:$0xf]
    %v1821 = vld [vmem:[%s758 + $0x24] sm:$0xf]
    %v1822 = vld [vmem:[%s758 + $0x28] sm:$0xf]
    %v1823 = vld [vmem:[%s758 + $0x2c] sm:$0xf]
    %v1824 = vld [vmem:[%s758 + $0x30] sm:$0xf]
    %v1825 = vld [vmem:[%s758 + $0x34] sm:$0xf]
    %v1826 = vld [vmem:[%s758 + $0x38] sm:$0xf]
    %v1827 = vld [vmem:[%s758 + $0x3c] sm:$0xf]
    %v1830 = vunpack.c.l.b16 %v1810
    %v1831 = vunpack.c.l.b16 %v1811
    %v1832 = vpack.c.b16 %v1831, %v1830
    %v1850 = vunpack.c.l.b16 %v1812
    %v1851 = vunpack.c.l.b16 %v1813
    %v1852 = vunpack.c.l.b16 %v1814
    %v1853 = vunpack.c.l.b16 %v1815
    %v1854 = vunpack.c.l.b16 %v1816
    %v1855 = vunpack.c.l.b16 %v1817
    %v1856 = vunpack.c.l.b16 %v1818
    %v1857 = vunpack.c.l.b16 %v1819
    %v1858 = vunpack.c.l.b16 %v1820
    %v1859 = vunpack.c.l.b16 %v1821
    %v1860 = vunpack.c.l.b16 %v1822
    %v1861 = vunpack.c.l.b16 %v1823
    %v1862 = vunpack.c.l.b16 %v1824
    %v1863 = vunpack.c.l.b16 %v1825
    %v1864 = vunpack.c.l.b16 %v1826
    %v1865 = vunpack.c.l.b16 %v1827
    %v1866 = vpack.c.b16 %v1851, %v1850
    %v1867 = vpack.c.b16 %v1853, %v1852
    %v1868 = vpack.c.b16 %v1855, %v1854
    %v1869 = vpack.c.b16 %v1857, %v1856
    %v1870 = vpack.c.b16 %v1859, %v1858
    %v1871 = vpack.c.b16 %v1861, %v1860
    %v1872 = vpack.c.b16 %v1863, %v1862
    %v1873 = vpack.c.b16 %v1865, %v1864
    %1882 = vmatprep.subr.bf16.mxu0 0
    %1883 = vmatpush1.bf16.msra.mxu0 %v1873
    %1884 = vmatprep.subr.bf16.mxu0 0
    %1885 = vmatpush1.bf16.msra.mxu0 %v1872
    %1886 = vmatprep.subr.bf16.mxu0 0
    %1887 = vmatpush1.bf16.msra.mxu0 %v1871
    %1888 = vmatprep.subr.bf16.mxu0 0
    %1889 = vmatpush1.bf16.msra.mxu0 %v1870
    %1890 = vmatprep.subr.bf16.mxu0 0
    %1891 = vmatpush1.bf16.msra.mxu0 %v1869
    %1892 = vmatprep.subr.bf16.mxu0 0
    %1893 = vmatpush1.bf16.msra.mxu0 %v1868
    %1894 = vmatprep.subr.bf16.mxu0 0
    %1895 = vmatpush1.bf16.msra.mxu0 %v1867
    %1896 = vmatprep.subr.bf16.mxu0 0
    %1897 = vmatpush1.bf16.msra.mxu0 %v1866
    %1898 = vmatprep.subr.bf16.mxu0 0
    %1899 = vmatpush2.bf16.msra.mxu0 0
    %1900 = vmatprep.subr.bf16.mxu0 0
    %1901 = vmatpush2.bf16.msra.mxu0 0
    %1902 = vmatprep.subr.bf16.mxu0 0
    %1903 = vmatpush2.bf16.msra.mxu0 0
    %1904 = vmatprep.subr.bf16.mxu0 0
    %1905 = vmatpush2.bf16.msra.mxu0 0
    %1906 = vmatprep.subr.bf16.mxu0 0
    %1907 = vmatpush2.bf16.msra.mxu0 0
    %1908 = vmatprep.subr.bf16.mxu0 0
    %1909 = vmatpush2.bf16.msra.mxu0 0
    %1910 = vmatprep.subr.bf16.mxu0 0
    %1911 = vmatpush2.bf16.msra.mxu0 0
    %1912 = vmatprep.subr.bf16.mxu0 0
    %1913 = vmatpush2.bf16.msra.mxu0 0
    %1914 = vmatprep.mubr.bf16.mxu0 0
    %1915 = vmatmul.mubr.bf16.gmra.mxu0 %v1832
    %v1916 = vpop.f32.mrf.mxu0
    %v1917 = vadd.f32 0.0, %v1916
    %v1918 = vpop.f32.mrf.mxu0
    %v1919 = vpop.f32.mrf.mxu0
    %v1920 = vadd.f32 0.0, %v1919
    %v1921 = vpop.f32.mrf.mxu0
    %1922 = vdwg.mxu0
    %v1923 = vadd.f32 %v1808, %v1917
    %v1924 = vadd.f32 %v1809, %v1920
    %v1925 = vld [vmem:[#allocation7 + $0x1] sm:$0x1]
    %v1927 = vlaneseq
    %v1928 = vshrl.u32 %v1927, 7
    %v1929 = vsub.s32 0, %v1928
    %v1930 = vrot.slane %v1925, %v1929
    %v1932 = vadd.f32 %v1923, %v1930
    %v1933 = vadd.f32 %v1924, %v1930
    %1934 = vst [vmem:[#allocation8 + $0x8] sm:$0xff] %v1932
    %1935 = vst [vmem:[#allocation8 + $0x48] sm:$0xff] %v1933
    %v1936 = vld [vmem:[#allocation2] sm:$0xf]
    %v1937 = vld [vmem:[#allocation2 + $0x20] sm:$0xf]
    %v1938 = vld [vmem:[%s286] sm:$0xf]
    %v1939 = vld [vmem:[%s286 + $0x4] sm:$0xf]
    %v1940 = vld [vmem:[%s286 + $0x8] sm:$0xf]
    %v1941 = vld [vmem:[%s286 + $0xc] sm:$0xf]
    %v1942 = vld [vmem:[%s286 + $0x10] sm:$0xf]
    %v1943 = vld [vmem:[%s286 + $0x14] sm:$0xf]
    %v1944 = vld [vmem:[%s286 + $0x18] sm:$0xf]
    %v1945 = vld [vmem:[%s286 + $0x1c] sm:$0xf]
    %v1946 = vld [vmem:[%s286 + $0x20] sm:$0xf]
    %v1947 = vld [vmem:[%s286 + $0x24] sm:$0xf]
    %v1948 = vld [vmem:[%s286 + $0x28] sm:$0xf]
    %v1949 = vld [vmem:[%s286 + $0x2c] sm:$0xf]
    %v1950 = vld [vmem:[%s286 + $0x30] sm:$0xf]
    %v1951 = vld [vmem:[%s286 + $0x34] sm:$0xf]
    %v1952 = vld [vmem:[%s286 + $0x38] sm:$0xf]
    %v1953 = vld [vmem:[%s286 + $0x3c] sm:$0xf]
    %v1954 = vld [vmem:[#allocation2 + $0x4] sm:$0xf]
    %v1955 = vld [vmem:[#allocation2 + $0x24] sm:$0xf]
    %v1956 = vld [vmem:[%s404] sm:$0xf]
    %v1957 = vld [vmem:[%s404 + $0x4] sm:$0xf]
    %v1958 = vld [vmem:[%s404 + $0x8] sm:$0xf]
    %v1959 = vld [vmem:[%s404 + $0xc] sm:$0xf]
    %v1960 = vld [vmem:[%s404 + $0x10] sm:$0xf]
    %v1961 = vld [vmem:[%s404 + $0x14] sm:$0xf]
    %v1962 = vld [vmem:[%s404 + $0x18] sm:$0xf]
    %v1963 = vld [vmem:[%s404 + $0x1c] sm:$0xf]
    %v1964 = vld [vmem:[%s404 + $0x20] sm:$0xf]
    %v1965 = vld [vmem:[%s404 + $0x24] sm:$0xf]
    %v1966 = vld [vmem:[%s404 + $0x28] sm:$0xf]
    %v1967 = vld [vmem:[%s404 + $0x2c] sm:$0xf]
    %v1968 = vld [vmem:[%s404 + $0x30] sm:$0xf]
    %v1969 = vld [vmem:[%s404 + $0x34] sm:$0xf]
    %v1970 = vld [vmem:[%s404 + $0x38] sm:$0xf]
    %v1971 = vld [vmem:[%s404 + $0x3c] sm:$0xf]
    %v1974 = vunpack.c.l.b16 %v1954
    %v1975 = vunpack.c.l.b16 %v1955
    %v1976 = vpack.c.b16 %v1975, %v1974
    %v1994 = vunpack.c.l.b16 %v1956
    %v1995 = vunpack.c.l.b16 %v1957
    %v1996 = vunpack.c.l.b16 %v1958
    %v1997 = vunpack.c.l.b16 %v1959
    %v1998 = vunpack.c.l.b16 %v1960
    %v1999 = vunpack.c.l.b16 %v1961
    %v2000 = vunpack.c.l.b16 %v1962
    %v2001 = vunpack.c.l.b16 %v1963
    %v2002 = vunpack.c.l.b16 %v1964
    %v2003 = vunpack.c.l.b16 %v1965
    %v2004 = vunpack.c.l.b16 %v1966
    %v2005 = vunpack.c.l.b16 %v1967
    %v2006 = vunpack.c.l.b16 %v1968
    %v2007 = vunpack.c.l.b16 %v1969
    %v2008 = vunpack.c.l.b16 %v1970
    %v2009 = vunpack.c.l.b16 %v1971
    %v2010 = vpack.c.b16 %v1995, %v1994
    %v2011 = vpack.c.b16 %v1997, %v1996
    %v2012 = vpack.c.b16 %v1999, %v1998
    %v2013 = vpack.c.b16 %v2001, %v2000
    %v2014 = vpack.c.b16 %v2003, %v2002
    %v2015 = vpack.c.b16 %v2005, %v2004
    %v2016 = vpack.c.b16 %v2007, %v2006
    %v2017 = vpack.c.b16 %v2009, %v2008
    %2026 = vmatprep.subr.bf16.mxu0 0
    %2027 = vmatpush1.bf16.msra.mxu0 %v2017
    %2028 = vmatprep.subr.bf16.mxu0 0
    %2029 = vmatpush1.bf16.msra.mxu0 %v2016
    %2030 = vmatprep.subr.bf16.mxu0 0
    %2031 = vmatpush1.bf16.msra.mxu0 %v2015
    %2032 = vmatprep.subr.bf16.mxu0 0
    %2033 = vmatpush1.bf16.msra.mxu0 %v2014
    %2034 = vmatprep.subr.bf16.mxu0 0
    %2035 = vmatpush1.bf16.msra.mxu0 %v2013
    %2036 = vmatprep.subr.bf16.mxu0 0
    %2037 = vmatpush1.bf16.msra.mxu0 %v2012
    %2038 = vmatprep.subr.bf16.mxu0 0
    %2039 = vmatpush1.bf16.msra.mxu0 %v2011
    %2040 = vmatprep.subr.bf16.mxu0 0
    %2041 = vmatpush1.bf16.msra.mxu0 %v2010
    %2042 = vmatprep.subr.bf16.mxu0 0
    %2043 = vmatpush2.bf16.msra.mxu0 0
    %2044 = vmatprep.subr.bf16.mxu0 0
    %2045 = vmatpush2.bf16.msra.mxu0 0
    %2046 = vmatprep.subr.bf16.mxu0 0
    %2047 = vmatpush2.bf16.msra.mxu0 0
    %2048 = vmatprep.subr.bf16.mxu0 0
    %2049 = vmatpush2.bf16.msra.mxu0 0
    %2050 = vmatprep.subr.bf16.mxu0 0
    %2051 = vmatpush2.bf16.msra.mxu0 0
    %2052 = vmatprep.subr.bf16.mxu0 0
    %2053 = vmatpush2.bf16.msra.mxu0 0
    %2054 = vmatprep.subr.bf16.mxu0 0
    %2055 = vmatpush2.bf16.msra.mxu0 0
    %2056 = vmatprep.subr.bf16.mxu0 0
    %2057 = vmatpush2.bf16.msra.mxu0 0
    %2058 = vmatprep.mubr.bf16.mxu0 0
    %2059 = vmatmul.mubr.bf16.gmra.mxu0 %v1976
    %v2060 = vpop.f32.mrf.mxu0
    %v2061 = vadd.f32 0.0, %v2060
    %v2062 = vpop.f32.mrf.mxu0
    %v2063 = vpop.f32.mrf.mxu0
    %v2064 = vadd.f32 0.0, %v2063
    %v2065 = vpop.f32.mrf.mxu0
    %2066 = vdwg.mxu0
    %v2067 = vsub.f32 0.0, %v2061
    %v2068 = vsub.f32 0.0, %v2064
    %v2071 = vunpack.c.l.b16 %v1936
    %v2072 = vunpack.c.l.b16 %v1937
    %v2073 = vpack.c.b16 %v2072, %v2071
    %v2091 = vunpack.c.l.b16 %v1938
    %v2092 = vunpack.c.l.b16 %v1939
    %v2093 = vunpack.c.l.b16 %v1940
    %v2094 = vunpack.c.l.b16 %v1941
    %v2095 = vunpack.c.l.b16 %v1942
    %v2096 = vunpack.c.l.b16 %v1943
    %v2097 = vunpack.c.l.b16 %v1944
    %v2098 = vunpack.c.l.b16 %v1945
    %v2099 = vunpack.c.l.b16 %v1946
    %v2100 = vunpack.c.l.b16 %v1947
    %v2101 = vunpack.c.l.b16 %v1948
    %v2102 = vunpack.c.l.b16 %v1949
    %v2103 = vunpack.c.l.b16 %v1950
    %v2104 = vunpack.c.l.b16 %v1951
    %v2105 = vunpack.c.l.b16 %v1952
    %v2106 = vunpack.c.l.b16 %v1953
    %v2107 = vpack.c.b16 %v2092, %v2091
    %v2108 = vpack.c.b16 %v2094, %v2093
    %v2109 = vpack.c.b16 %v2096, %v2095
    %v2110 = vpack.c.b16 %v2098, %v2097
    %v2111 = vpack.c.b16 %v2100, %v2099
    %v2112 = vpack.c.b16 %v2102, %v2101
    %v2113 = vpack.c.b16 %v2104, %v2103
    %v2114 = vpack.c.b16 %v2106, %v2105
    %2123 = vmatprep.subr.bf16.mxu0 0
    %2124 = vmatpush1.bf16.msra.mxu0 %v2114
    %2125 = vmatprep.subr.bf16.mxu0 0
    %2126 = vmatpush1.bf16.msra.mxu0 %v2113
    %2127 = vmatprep.subr.bf16.mxu0 0
    %2128 = vmatpush1.bf16.msra.mxu0 %v2112
    %2129 = vmatprep.subr.bf16.mxu0 0
    %2130 = vmatpush1.bf16.msra.mxu0 %v2111
    %2131 = vmatprep.subr.bf16.mxu0 0
    %2132 = vmatpush1.bf16.msra.mxu0 %v2110
    %2133 = vmatprep.subr.bf16.mxu0 0
    %2134 = vmatpush1.bf16.msra.mxu0 %v2109
    %2135 = vmatprep.subr.bf16.mxu0 0
    %2136 = vmatpush1.bf16.msra.mxu0 %v2108
    %2137 = vmatprep.subr.bf16.mxu0 0
    %2138 = vmatpush1.bf16.msra.mxu0 %v2107
    %2139 = vmatprep.subr.bf16.mxu0 0
    %2140 = vmatpush2.bf16.msra.mxu0 0
    %2141 = vmatprep.subr.bf16.mxu0 0
    %2142 = vmatpush2.bf16.msra.mxu0 0
    %2143 = vmatprep.subr.bf16.mxu0 0
    %2144 = vmatpush2.bf16.msra.mxu0 0
    %2145 = vmatprep.subr.bf16.mxu0 0
    %2146 = vmatpush2.bf16.msra.mxu0 0
    %2147 = vmatprep.subr.bf16.mxu0 0
    %2148 = vmatpush2.bf16.msra.mxu0 0
    %2149 = vmatprep.subr.bf16.mxu0 0
    %2150 = vmatpush2.bf16.msra.mxu0 0
    %2151 = vmatprep.subr.bf16.mxu0 0
    %2152 = vmatpush2.bf16.msra.mxu0 0
    %2153 = vmatprep.subr.bf16.mxu0 0
    %2154 = vmatpush2.bf16.msra.mxu0 0
    %2155 = vmatprep.mubr.bf16.mxu0 0
    %2156 = vmatmul.mubr.bf16.gmra.mxu0 %v2073
    %v2157 = vpop.f32.mrf.mxu0
    %v2158 = vadd.f32 %v2067, %v2157
    %v2159 = vpop.f32.mrf.mxu0
    %v2160 = vpop.f32.mrf.mxu0
    %v2161 = vadd.f32 %v2068, %v2160
    %v2162 = vpop.f32.mrf.mxu0
    %2163 = vdwg.mxu0
    %v2164 = vld [vmem:[#allocation2 + $0x8] sm:$0xf]
    %v2165 = vld [vmem:[#allocation2 + $0x28] sm:$0xf]
    %v2166 = vld [vmem:[#allocation5] sm:$0xf]
    %v2167 = vld [vmem:[#allocation5 + $0x4] sm:$0xf]
    %v2168 = vld [vmem:[#allocation5 + $0x8] sm:$0xf]
    %v2169 = vld [vmem:[#allocation5 + $0xc] sm:$0xf]
    %v2170 = vld [vmem:[#allocation5 + $0x10] sm:$0xf]
    %v2171 = vld [vmem:[#allocation5 + $0x14] sm:$0xf]
    %v2172 = vld [vmem:[#allocation5 + $0x18] sm:$0xf]
    %v2173 = vld [vmem:[#allocation5 + $0x1c] sm:$0xf]
    %v2174 = vld [vmem:[#allocation5 + $0x20] sm:$0xf]
    %v2175 = vld [vmem:[#allocation5 + $0x24] sm:$0xf]
    %v2176 = vld [vmem:[#allocation5 + $0x28] sm:$0xf]
    %v2177 = vld [vmem:[#allocation5 + $0x2c] sm:$0xf]
    %v2178 = vld [vmem:[#allocation5 + $0x30] sm:$0xf]
    %v2179 = vld [vmem:[#allocation5 + $0x34] sm:$0xf]
    %v2180 = vld [vmem:[#allocation5 + $0x38] sm:$0xf]
    %v2181 = vld [vmem:[#allocation5 + $0x3c] sm:$0xf]
    %v2184 = vunpack.c.l.b16 %v2164
    %v2185 = vunpack.c.l.b16 %v2165
    %v2186 = vpack.c.b16 %v2185, %v2184
    %v2204 = vunpack.c.l.b16 %v2166
    %v2205 = vunpack.c.l.b16 %v2167
    %v2206 = vunpack.c.l.b16 %v2168
    %v2207 = vunpack.c.l.b16 %v2169
    %v2208 = vunpack.c.l.b16 %v2170
    %v2209 = vunpack.c.l.b16 %v2171
    %v2210 = vunpack.c.l.b16 %v2172
    %v2211 = vunpack.c.l.b16 %v2173
    %v2212 = vunpack.c.l.b16 %v2174
    %v2213 = vunpack.c.l.b16 %v2175
    %v2214 = vunpack.c.l.b16 %v2176
    %v2215 = vunpack.c.l.b16 %v2177
    %v2216 = vunpack.c.l.b16 %v2178
    %v2217 = vunpack.c.l.b16 %v2179
    %v2218 = vunpack.c.l.b16 %v2180
    %v2219 = vunpack.c.l.b16 %v2181
    %v2220 = vpack.c.b16 %v2205, %v2204
    %v2221 = vpack.c.b16 %v2207, %v2206
    %v2222 = vpack.c.b16 %v2209, %v2208
    %v2223 = vpack.c.b16 %v2211, %v2210
    %v2224 = vpack.c.b16 %v2213, %v2212
    %v2225 = vpack.c.b16 %v2215, %v2214
    %v2226 = vpack.c.b16 %v2217, %v2216
    %v2227 = vpack.c.b16 %v2219, %v2218
    %2236 = vmatprep.subr.bf16.mxu0 0
    %2237 = vmatpush1.bf16.msra.mxu0 %v2227
    %2238 = vmatprep.subr.bf16.mxu0 0
    %2239 = vmatpush1.bf16.msra.mxu0 %v2226
    %2240 = vmatprep.subr.bf16.mxu0 0
    %2241 = vmatpush1.bf16.msra.mxu0 %v2225
    %2242 = vmatprep.subr.bf16.mxu0 0
    %2243 = vmatpush1.bf16.msra.mxu0 %v2224
    %2244 = vmatprep.subr.bf16.mxu0 0
    %2245 = vmatpush1.bf16.msra.mxu0 %v2223
    %2246 = vmatprep.subr.bf16.mxu0 0
    %2247 = vmatpush1.bf16.msra.mxu0 %v2222
    %2248 = vmatprep.subr.bf16.mxu0 0
    %2249 = vmatpush1.bf16.msra.mxu0 %v2221
    %2250 = vmatprep.subr.bf16.mxu0 0
    %2251 = vmatpush1.bf16.msra.mxu0 %v2220
    %2252 = vmatprep.subr.bf16.mxu0 0
    %2253 = vmatpush2.bf16.msra.mxu0 0
    %2254 = vmatprep.subr.bf16.mxu0 0
    %2255 = vmatpush2.bf16.msra.mxu0 0
    %2256 = vmatprep.subr.bf16.mxu0 0
    %2257 = vmatpush2.bf16.msra.mxu0 0
    %2258 = vmatprep.subr.bf16.mxu0 0
    %2259 = vmatpush2.bf16.msra.mxu0 0
    %2260 = vmatprep.subr.bf16.mxu0 0
    %2261 = vmatpush2.bf16.msra.mxu0 0
    %2262 = vmatprep.subr.bf16.mxu0 0
    %2263 = vmatpush2.bf16.msra.mxu0 0
    %2264 = vmatprep.subr.bf16.mxu0 0
    %2265 = vmatpush2.bf16.msra.mxu0 0
    %2266 = vmatprep.subr.bf16.mxu0 0
    %2267 = vmatpush2.bf16.msra.mxu0 0
    %2268 = vmatprep.mubr.bf16.mxu0 0
    %2269 = vmatmul.mubr.bf16.gmra.mxu0 %v2186
    %v2270 = vpop.f32.mrf.mxu0
    %v2271 = vadd.f32 0.0, %v2270
    %v2272 = vpop.f32.mrf.mxu0
    %v2273 = vpop.f32.mrf.mxu0
    %v2274 = vadd.f32 0.0, %v2273
    %v2275 = vpop.f32.mrf.mxu0
    %2276 = vdwg.mxu0
    %v2277 = vadd.f32 %v2158, %v2271
    %v2278 = vadd.f32 %v2161, %v2274
    %v2279 = vld [vmem:[#allocation2 + $0xc] sm:$0xf]
    %v2280 = vld [vmem:[#allocation2 + $0x2c] sm:$0xf]
    %v2281 = vld [vmem:[%s75] sm:$0xf]
    %v2282 = vld [vmem:[%s75 + $0x4] sm:$0xf]
    %v2283 = vld [vmem:[%s75 + $0x8] sm:$0xf]
    %v2284 = vld [vmem:[%s75 + $0xc] sm:$0xf]
    %v2285 = vld [vmem:[%s75 + $0x10] sm:$0xf]
    %v2286 = vld [vmem:[%s75 + $0x14] sm:$0xf]
    %v2287 = vld [vmem:[%s75 + $0x18] sm:$0xf]
    %v2288 = vld [vmem:[%s75 + $0x1c] sm:$0xf]
    %v2289 = vld [vmem:[%s75 + $0x20] sm:$0xf]
    %v2290 = vld [vmem:[%s75 + $0x24] sm:$0xf]
    %v2291 = vld [vmem:[%s75 + $0x28] sm:$0xf]
    %v2292 = vld [vmem:[%s75 + $0x2c] sm:$0xf]
    %v2293 = vld [vmem:[%s75 + $0x30] sm:$0xf]
    %v2294 = vld [vmem:[%s75 + $0x34] sm:$0xf]
    %v2295 = vld [vmem:[%s75 + $0x38] sm:$0xf]
    %v2296 = vld [vmem:[%s75 + $0x3c] sm:$0xf]
    %v2299 = vunpack.c.l.b16 %v2279
    %v2300 = vunpack.c.l.b16 %v2280
    %v2301 = vpack.c.b16 %v2300, %v2299
    %v2319 = vunpack.c.l.b16 %v2281
    %v2320 = vunpack.c.l.b16 %v2282
    %v2321 = vunpack.c.l.b16 %v2283
    %v2322 = vunpack.c.l.b16 %v2284
    %v2323 = vunpack.c.l.b16 %v2285
    %v2324 = vunpack.c.l.b16 %v2286
    %v2325 = vunpack.c.l.b16 %v2287
    %v2326 = vunpack.c.l.b16 %v2288
    %v2327 = vunpack.c.l.b16 %v2289
    %v2328 = vunpack.c.l.b16 %v2290
    %v2329 = vunpack.c.l.b16 %v2291
    %v2330 = vunpack.c.l.b16 %v2292
    %v2331 = vunpack.c.l.b16 %v2293
    %v2332 = vunpack.c.l.b16 %v2294
    %v2333 = vunpack.c.l.b16 %v2295
    %v2334 = vunpack.c.l.b16 %v2296
    %v2335 = vpack.c.b16 %v2320, %v2319
    %v2336 = vpack.c.b16 %v2322, %v2321
    %v2337 = vpack.c.b16 %v2324, %v2323
    %v2338 = vpack.c.b16 %v2326, %v2325
    %v2339 = vpack.c.b16 %v2328, %v2327
    %v2340 = vpack.c.b16 %v2330, %v2329
    %v2341 = vpack.c.b16 %v2332, %v2331
    %v2342 = vpack.c.b16 %v2334, %v2333
    %2351 = vmatprep.subr.bf16.mxu0 0
    %2352 = vmatpush1.bf16.msra.mxu0 %v2342
    %2353 = vmatprep.subr.bf16.mxu0 0
    %2354 = vmatpush1.bf16.msra.mxu0 %v2341
    %2355 = vmatprep.subr.bf16.mxu0 0
    %2356 = vmatpush1.bf16.msra.mxu0 %v2340
    %2357 = vmatprep.subr.bf16.mxu0 0
    %2358 = vmatpush1.bf16.msra.mxu0 %v2339
    %2359 = vmatprep.subr.bf16.mxu0 0
    %2360 = vmatpush1.bf16.msra.mxu0 %v2338
    %2361 = vmatprep.subr.bf16.mxu0 0
    %2362 = vmatpush1.bf16.msra.mxu0 %v2337
    %2363 = vmatprep.subr.bf16.mxu0 0
    %2364 = vmatpush1.bf16.msra.mxu0 %v2336
    %2365 = vmatprep.subr.bf16.mxu0 0
    %2366 = vmatpush1.bf16.msra.mxu0 %v2335
    %2367 = vmatprep.subr.bf16.mxu0 0
    %2368 = vmatpush2.bf16.msra.mxu0 0
    %2369 = vmatprep.subr.bf16.mxu0 0
    %2370 = vmatpush2.bf16.msra.mxu0 0
    %2371 = vmatprep.subr.bf16.mxu0 0
    %2372 = vmatpush2.bf16.msra.mxu0 0
    %2373 = vmatprep.subr.bf16.mxu0 0
    %2374 = vmatpush2.bf16.msra.mxu0 0
    %2375 = vmatprep.subr.bf16.mxu0 0
    %2376 = vmatpush2.bf16.msra.mxu0 0
    %2377 = vmatprep.subr.bf16.mxu0 0
    %2378 = vmatpush2.bf16.msra.mxu0 0
    %2379 = vmatprep.subr.bf16.mxu0 0
    %2380 = vmatpush2.bf16.msra.mxu0 0
    %2381 = vmatprep.subr.bf16.mxu0 0
    %2382 = vmatpush2.bf16.msra.mxu0 0
    %2383 = vmatprep.mubr.bf16.mxu0 0
    %2384 = vmatmul.mubr.bf16.gmra.mxu0 %v2301
    %v2385 = vpop.f32.mrf.mxu0
    %v2386 = vadd.f32 0.0, %v2385
    %v2387 = vpop.f32.mrf.mxu0
    %v2388 = vpop.f32.mrf.mxu0
    %v2389 = vadd.f32 0.0, %v2388
    %v2390 = vpop.f32.mrf.mxu0
    %2391 = vdwg.mxu0
    %v2392 = vadd.f32 %v2277, %v2386
    %v2393 = vadd.f32 %v2278, %v2389
    %v2394 = vld [vmem:[#allocation2 + $0x10] sm:$0xf]
    %v2395 = vld [vmem:[#allocation2 + $0x30] sm:$0xf]
    %v2396 = vld [vmem:[%s758] sm:$0xf]
    %v2397 = vld [vmem:[%s758 + $0x4] sm:$0xf]
    %v2398 = vld [vmem:[%s758 + $0x8] sm:$0xf]
    %v2399 = vld [vmem:[%s758 + $0xc] sm:$0xf]
    %v2400 = vld [vmem:[%s758 + $0x10] sm:$0xf]
    %v2401 = vld [vmem:[%s758 + $0x14] sm:$0xf]
    %v2402 = vld [vmem:[%s758 + $0x18] sm:$0xf]
    %v2403 = vld [vmem:[%s758 + $0x1c] sm:$0xf]
    %v2404 = vld [vmem:[%s758 + $0x20] sm:$0xf]
    %v2405 = vld [vmem:[%s758 + $0x24] sm:$0xf]
    %v2406 = vld [vmem:[%s758 + $0x28] sm:$0xf]
    %v2407 = vld [vmem:[%s758 + $0x2c] sm:$0xf]
    %v2408 = vld [vmem:[%s758 + $0x30] sm:$0xf]
    %v2409 = vld [vmem:[%s758 + $0x34] sm:$0xf]
    %v2410 = vld [vmem:[%s758 + $0x38] sm:$0xf]
    %v2411 = vld [vmem:[%s758 + $0x3c] sm:$0xf]
    %v2414 = vunpack.c.l.b16 %v2394
    %v2415 = vunpack.c.l.b16 %v2395
    %v2416 = vpack.c.b16 %v2415, %v2414
    %v2434 = vunpack.c.l.b16 %v2396
    %v2435 = vunpack.c.l.b16 %v2397
    %v2436 = vunpack.c.l.b16 %v2398
    %v2437 = vunpack.c.l.b16 %v2399
    %v2438 = vunpack.c.l.b16 %v2400
    %v2439 = vunpack.c.l.b16 %v2401
    %v2440 = vunpack.c.l.b16 %v2402
    %v2441 = vunpack.c.l.b16 %v2403
    %v2442 = vunpack.c.l.b16 %v2404
    %v2443 = vunpack.c.l.b16 %v2405
    %v2444 = vunpack.c.l.b16 %v2406
    %v2445 = vunpack.c.l.b16 %v2407
    %v2446 = vunpack.c.l.b16 %v2408
    %v2447 = vunpack.c.l.b16 %v2409
    %v2448 = vunpack.c.l.b16 %v2410
    %v2449 = vunpack.c.l.b16 %v2411
    %v2450 = vpack.c.b16 %v2435, %v2434
    %v2451 = vpack.c.b16 %v2437, %v2436
    %v2452 = vpack.c.b16 %v2439, %v2438
    %v2453 = vpack.c.b16 %v2441, %v2440
    %v2454 = vpack.c.b16 %v2443, %v2442
    %v2455 = vpack.c.b16 %v2445, %v2444
    %v2456 = vpack.c.b16 %v2447, %v2446
    %v2457 = vpack.c.b16 %v2449, %v2448
    %2466 = vmatprep.subr.bf16.mxu0 0
    %2467 = vmatpush1.bf16.msra.mxu0 %v2457
    %2468 = vmatprep.subr.bf16.mxu0 0
    %2469 = vmatpush1.bf16.msra.mxu0 %v2456
    %2470 = vmatprep.subr.bf16.mxu0 0
    %2471 = vmatpush1.bf16.msra.mxu0 %v2455
    %2472 = vmatprep.subr.bf16.mxu0 0
    %2473 = vmatpush1.bf16.msra.mxu0 %v2454
    %2474 = vmatprep.subr.bf16.mxu0 0
    %2475 = vmatpush1.bf16.msra.mxu0 %v2453
    %2476 = vmatprep.subr.bf16.mxu0 0
    %2477 = vmatpush1.bf16.msra.mxu0 %v2452
    %2478 = vmatprep.subr.bf16.mxu0 0
    %2479 = vmatpush1.bf16.msra.mxu0 %v2451
    %2480 = vmatprep.subr.bf16.mxu0 0
    %2481 = vmatpush1.bf16.msra.mxu0 %v2450
    %2482 = vmatprep.subr.bf16.mxu0 0
    %2483 = vmatpush2.bf16.msra.mxu0 0
    %2484 = vmatprep.subr.bf16.mxu0 0
    %2485 = vmatpush2.bf16.msra.mxu0 0
    %2486 = vmatprep.subr.bf16.mxu0 0
    %2487 = vmatpush2.bf16.msra.mxu0 0
    %2488 = vmatprep.subr.bf16.mxu0 0
    %2489 = vmatpush2.bf16.msra.mxu0 0
    %2490 = vmatprep.subr.bf16.mxu0 0
    %2491 = vmatpush2.bf16.msra.mxu0 0
    %2492 = vmatprep.subr.bf16.mxu0 0
    %2493 = vmatpush2.bf16.msra.mxu0 0
    %2494 = vmatprep.subr.bf16.mxu0 0
    %2495 = vmatpush2.bf16.msra.mxu0 0
    %2496 = vmatprep.subr.bf16.mxu0 0
    %2497 = vmatpush2.bf16.msra.mxu0 0
    %2498 = vmatprep.mubr.bf16.mxu0 0
    %2499 = vmatmul.mubr.bf16.gmra.mxu0 %v2416
    %v2500 = vpop.f32.mrf.mxu0
    %v2501 = vadd.f32 0.0, %v2500
    %v2502 = vpop.f32.mrf.mxu0
    %v2503 = vpop.f32.mrf.mxu0
    %v2504 = vadd.f32 0.0, %v2503
    %v2505 = vpop.f32.mrf.mxu0
    %2506 = vdwg.mxu0
    %v2507 = vadd.f32 %v2392, %v2501
    %v2508 = vadd.f32 %v2393, %v2504
    %v2509 = vld [vmem:[#allocation2 + $0x14] sm:$0xf]
    %v2510 = vld [vmem:[#allocation2 + $0x34] sm:$0xf]
    %v2511 = vld [vmem:[%s876] sm:$0xf]
    %v2512 = vld [vmem:[%s876 + $0x4] sm:$0xf]
    %v2513 = vld [vmem:[%s876 + $0x8] sm:$0xf]
    %v2514 = vld [vmem:[%s876 + $0xc] sm:$0xf]
    %v2515 = vld [vmem:[%s876 + $0x10] sm:$0xf]
    %v2516 = vld [vmem:[%s876 + $0x14] sm:$0xf]
    %v2517 = vld [vmem:[%s876 + $0x18] sm:$0xf]
    %v2518 = vld [vmem:[%s876 + $0x1c] sm:$0xf]
    %v2519 = vld [vmem:[%s876 + $0x20] sm:$0xf]
    %v2520 = vld [vmem:[%s876 + $0x24] sm:$0xf]
    %v2521 = vld [vmem:[%s876 + $0x28] sm:$0xf]
    %v2522 = vld [vmem:[%s876 + $0x2c] sm:$0xf]
    %v2523 = vld [vmem:[%s876 + $0x30] sm:$0xf]
    %v2524 = vld [vmem:[%s876 + $0x34] sm:$0xf]
    %v2525 = vld [vmem:[%s876 + $0x38] sm:$0xf]
    %v2526 = vld [vmem:[%s876 + $0x3c] sm:$0xf]
    %v2529 = vunpack.c.l.b16 %v2509
    %v2530 = vunpack.c.l.b16 %v2510
    %v2531 = vpack.c.b16 %v2530, %v2529
    %v2549 = vunpack.c.l.b16 %v2511
    %v2550 = vunpack.c.l.b16 %v2512
    %v2551 = vunpack.c.l.b16 %v2513
    %v2552 = vunpack.c.l.b16 %v2514
    %v2553 = vunpack.c.l.b16 %v2515
    %v2554 = vunpack.c.l.b16 %v2516
    %v2555 = vunpack.c.l.b16 %v2517
    %v2556 = vunpack.c.l.b16 %v2518
    %v2557 = vunpack.c.l.b16 %v2519
    %v2558 = vunpack.c.l.b16 %v2520
    %v2559 = vunpack.c.l.b16 %v2521
    %v2560 = vunpack.c.l.b16 %v2522
    %v2561 = vunpack.c.l.b16 %v2523
    %v2562 = vunpack.c.l.b16 %v2524
    %v2563 = vunpack.c.l.b16 %v2525
    %v2564 = vunpack.c.l.b16 %v2526
    %v2565 = vpack.c.b16 %v2550, %v2549
    %v2566 = vpack.c.b16 %v2552, %v2551
    %v2567 = vpack.c.b16 %v2554, %v2553
    %v2568 = vpack.c.b16 %v2556, %v2555
    %v2569 = vpack.c.b16 %v2558, %v2557
    %v2570 = vpack.c.b16 %v2560, %v2559
    %v2571 = vpack.c.b16 %v2562, %v2561
    %v2572 = vpack.c.b16 %v2564, %v2563
    %2581 = vmatprep.subr.bf16.mxu0 0
    %2582 = vmatpush1.bf16.msra.mxu0 %v2572
    %2583 = vmatprep.subr.bf16.mxu0 0
    %2584 = vmatpush1.bf16.msra.mxu0 %v2571
    %2585 = vmatprep.subr.bf16.mxu0 0
    %2586 = vmatpush1.bf16.msra.mxu0 %v2570
    %2587 = vmatprep.subr.bf16.mxu0 0
    %2588 = vmatpush1.bf16.msra.mxu0 %v2569
    %2589 = vmatprep.subr.bf16.mxu0 0
    %2590 = vmatpush1.bf16.msra.mxu0 %v2568
    %2591 = vmatprep.subr.bf16.mxu0 0
    %2592 = vmatpush1.bf16.msra.mxu0 %v2567
    %2593 = vmatprep.subr.bf16.mxu0 0
    %2594 = vmatpush1.bf16.msra.mxu0 %v2566
    %2595 = vmatprep.subr.bf16.mxu0 0
    %2596 = vmatpush1.bf16.msra.mxu0 %v2565
    %2597 = vmatprep.subr.bf16.mxu0 0
    %2598 = vmatpush2.bf16.msra.mxu0 0
    %2599 = vmatprep.subr.bf16.mxu0 0
    %2600 = vmatpush2.bf16.msra.mxu0 0
    %2601 = vmatprep.subr.bf16.mxu0 0
    %2602 = vmatpush2.bf16.msra.mxu0 0
    %2603 = vmatprep.subr.bf16.mxu0 0
    %2604 = vmatpush2.bf16.msra.mxu0 0
    %2605 = vmatprep.subr.bf16.mxu0 0
    %2606 = vmatpush2.bf16.msra.mxu0 0
    %2607 = vmatprep.subr.bf16.mxu0 0
    %2608 = vmatpush2.bf16.msra.mxu0 0
    %2609 = vmatprep.subr.bf16.mxu0 0
    %2610 = vmatpush2.bf16.msra.mxu0 0
    %2611 = vmatprep.subr.bf16.mxu0 0
    %2612 = vmatpush2.bf16.msra.mxu0 0
    %2613 = vmatprep.mubr.bf16.mxu0 0
    %2614 = vmatmul.mubr.bf16.gmra.mxu0 %v2531
    %v2615 = vpop.f32.mrf.mxu0
    %v2616 = vadd.f32 0.0, %v2615
    %v2617 = vpop.f32.mrf.mxu0
    %v2618 = vpop.f32.mrf.mxu0
    %v2619 = vadd.f32 0.0, %v2618
    %v2620 = vpop.f32.mrf.mxu0
    %2621 = vdwg.mxu0
    %v2622 = vadd.f32 %v2507, %v2616
    %v2623 = vadd.f32 %v2508, %v2619
    %v2624 = vld [vmem:[#allocation2 + $0x18] sm:$0xf]
    %v2625 = vld [vmem:[#allocation2 + $0x38] sm:$0xf]
    %v2626 = vld [vmem:[%s522] sm:$0xf]
    %v2627 = vld [vmem:[%s522 + $0x4] sm:$0xf]
    %v2628 = vld [vmem:[%s522 + $0x8] sm:$0xf]
    %v2629 = vld [vmem:[%s522 + $0xc] sm:$0xf]
    %v2630 = vld [vmem:[%s522 + $0x10] sm:$0xf]
    %v2631 = vld [vmem:[%s522 + $0x14] sm:$0xf]
    %v2632 = vld [vmem:[%s522 + $0x18] sm:$0xf]
    %v2633 = vld [vmem:[%s522 + $0x1c] sm:$0xf]
    %v2634 = vld [vmem:[%s522 + $0x20] sm:$0xf]
    %v2635 = vld [vmem:[%s522 + $0x24] sm:$0xf]
    %v2636 = vld [vmem:[%s522 + $0x28] sm:$0xf]
    %v2637 = vld [vmem:[%s522 + $0x2c] sm:$0xf]
    %v2638 = vld [vmem:[%s522 + $0x30] sm:$0xf]
    %v2639 = vld [vmem:[%s522 + $0x34] sm:$0xf]
    %v2640 = vld [vmem:[%s522 + $0x38] sm:$0xf]
    %v2641 = vld [vmem:[%s522 + $0x3c] sm:$0xf]
    %v2644 = vunpack.c.l.b16 %v2624
    %v2645 = vunpack.c.l.b16 %v2625
    %v2646 = vpack.c.b16 %v2645, %v2644
    %v2664 = vunpack.c.l.b16 %v2626
    %v2665 = vunpack.c.l.b16 %v2627
    %v2666 = vunpack.c.l.b16 %v2628
    %v2667 = vunpack.c.l.b16 %v2629
    %v2668 = vunpack.c.l.b16 %v2630
    %v2669 = vunpack.c.l.b16 %v2631
    %v2670 = vunpack.c.l.b16 %v2632
    %v2671 = vunpack.c.l.b16 %v2633
    %v2672 = vunpack.c.l.b16 %v2634
    %v2673 = vunpack.c.l.b16 %v2635
    %v2674 = vunpack.c.l.b16 %v2636
    %v2675 = vunpack.c.l.b16 %v2637
    %v2676 = vunpack.c.l.b16 %v2638
    %v2677 = vunpack.c.l.b16 %v2639
    %v2678 = vunpack.c.l.b16 %v2640
    %v2679 = vunpack.c.l.b16 %v2641
    %v2680 = vpack.c.b16 %v2665, %v2664
    %v2681 = vpack.c.b16 %v2667, %v2666
    %v2682 = vpack.c.b16 %v2669, %v2668
    %v2683 = vpack.c.b16 %v2671, %v2670
    %v2684 = vpack.c.b16 %v2673, %v2672
    %v2685 = vpack.c.b16 %v2675, %v2674
    %v2686 = vpack.c.b16 %v2677, %v2676
    %v2687 = vpack.c.b16 %v2679, %v2678
    %2696 = vmatprep.subr.bf16.mxu0 0
    %2697 = vmatpush1.bf16.msra.mxu0 %v2687
    %2698 = vmatprep.subr.bf16.mxu0 0
    %2699 = vmatpush1.bf16.msra.mxu0 %v2686
    %2700 = vmatprep.subr.bf16.mxu0 0
    %2701 = vmatpush1.bf16.msra.mxu0 %v2685
    %2702 = vmatprep.subr.bf16.mxu0 0
    %2703 = vmatpush1.bf16.msra.mxu0 %v2684
    %2704 = vmatprep.subr.bf16.mxu0 0
    %2705 = vmatpush1.bf16.msra.mxu0 %v2683
    %2706 = vmatprep.subr.bf16.mxu0 0
    %2707 = vmatpush1.bf16.msra.mxu0 %v2682
    %2708 = vmatprep.subr.bf16.mxu0 0
    %2709 = vmatpush1.bf16.msra.mxu0 %v2681
    %2710 = vmatprep.subr.bf16.mxu0 0
    %2711 = vmatpush1.bf16.msra.mxu0 %v2680
    %2712 = vmatprep.subr.bf16.mxu0 0
    %2713 = vmatpush2.bf16.msra.mxu0 0
    %2714 = vmatprep.subr.bf16.mxu0 0
    %2715 = vmatpush2.bf16.msra.mxu0 0
    %2716 = vmatprep.subr.bf16.mxu0 0
    %2717 = vmatpush2.bf16.msra.mxu0 0
    %2718 = vmatprep.subr.bf16.mxu0 0
    %2719 = vmatpush2.bf16.msra.mxu0 0
    %2720 = vmatprep.subr.bf16.mxu0 0
    %2721 = vmatpush2.bf16.msra.mxu0 0
    %2722 = vmatprep.subr.bf16.mxu0 0
    %2723 = vmatpush2.bf16.msra.mxu0 0
    %2724 = vmatprep.subr.bf16.mxu0 0
    %2725 = vmatpush2.bf16.msra.mxu0 0
    %2726 = vmatprep.subr.bf16.mxu0 0
    %2727 = vmatpush2.bf16.msra.mxu0 0
    %2728 = vmatprep.mubr.bf16.mxu0 0
    %2729 = vmatmul.mubr.bf16.gmra.mxu0 %v2646
    %v2730 = vpop.f32.mrf.mxu0
    %v2731 = vadd.f32 0.0, %v2730
    %v2732 = vpop.f32.mrf.mxu0
    %v2733 = vpop.f32.mrf.mxu0
    %v2734 = vadd.f32 0.0, %v2733
    %v2735 = vpop.f32.mrf.mxu0
    %2736 = vdwg.mxu0
    %v2737 = vsub.f32 0.0, %v2731
    %v2738 = vsub.f32 0.0, %v2734
    %v2739 = vadd.f32 %v2622, %v2737
    %v2740 = vadd.f32 %v2623, %v2738
    %v2741 = vld [vmem:[#allocation2 + $0x1c] sm:$0xf]
    %v2742 = vld [vmem:[#allocation2 + $0x3c] sm:$0xf]
    %v2743 = vld [vmem:[%s640] sm:$0xf]
    %v2744 = vld [vmem:[%s640 + $0x4] sm:$0xf]
    %v2745 = vld [vmem:[%s640 + $0x8] sm:$0xf]
    %v2746 = vld [vmem:[%s640 + $0xc] sm:$0xf]
    %v2747 = vld [vmem:[%s640 + $0x10] sm:$0xf]
    %v2748 = vld [vmem:[%s640 + $0x14] sm:$0xf]
    %v2749 = vld [vmem:[%s640 + $0x18] sm:$0xf]
    %v2750 = vld [vmem:[%s640 + $0x1c] sm:$0xf]
    %v2751 = vld [vmem:[%s640 + $0x20] sm:$0xf]
    %v2752 = vld [vmem:[%s640 + $0x24] sm:$0xf]
    %v2753 = vld [vmem:[%s640 + $0x28] sm:$0xf]
    %v2754 = vld [vmem:[%s640 + $0x2c] sm:$0xf]
    %v2755 = vld [vmem:[%s640 + $0x30] sm:$0xf]
    %v2756 = vld [vmem:[%s640 + $0x34] sm:$0xf]
    %v2757 = vld [vmem:[%s640 + $0x38] sm:$0xf]
    %v2758 = vld [vmem:[%s640 + $0x3c] sm:$0xf]
    %v2761 = vunpack.c.l.b16 %v2741
    %v2762 = vunpack.c.l.b16 %v2742
    %v2763 = vpack.c.b16 %v2762, %v2761
    %v2781 = vunpack.c.l.b16 %v2743
    %v2782 = vunpack.c.l.b16 %v2744
    %v2783 = vunpack.c.l.b16 %v2745
    %v2784 = vunpack.c.l.b16 %v2746
    %v2785 = vunpack.c.l.b16 %v2747
    %v2786 = vunpack.c.l.b16 %v2748
    %v2787 = vunpack.c.l.b16 %v2749
    %v2788 = vunpack.c.l.b16 %v2750
    %v2789 = vunpack.c.l.b16 %v2751
    %v2790 = vunpack.c.l.b16 %v2752
    %v2791 = vunpack.c.l.b16 %v2753
    %v2792 = vunpack.c.l.b16 %v2754
    %v2793 = vunpack.c.l.b16 %v2755
    %v2794 = vunpack.c.l.b16 %v2756
    %v2795 = vunpack.c.l.b16 %v2757
    %v2796 = vunpack.c.l.b16 %v2758
    %v2797 = vpack.c.b16 %v2782, %v2781
    %v2798 = vpack.c.b16 %v2784, %v2783
    %v2799 = vpack.c.b16 %v2786, %v2785
    %v2800 = vpack.c.b16 %v2788, %v2787
    %v2801 = vpack.c.b16 %v2790, %v2789
    %v2802 = vpack.c.b16 %v2792, %v2791
    %v2803 = vpack.c.b16 %v2794, %v2793
    %v2804 = vpack.c.b16 %v2796, %v2795
    %2813 = vmatprep.subr.bf16.mxu0 0
    %2814 = vmatpush1.bf16.msra.mxu0 %v2804
    %2815 = vmatprep.subr.bf16.mxu0 0
    %2816 = vmatpush1.bf16.msra.mxu0 %v2803
    %2817 = vmatprep.subr.bf16.mxu0 0
    %2818 = vmatpush1.bf16.msra.mxu0 %v2802
    %2819 = vmatprep.subr.bf16.mxu0 0
    %2820 = vmatpush1.bf16.msra.mxu0 %v2801
    %2821 = vmatprep.subr.bf16.mxu0 0
    %2822 = vmatpush1.bf16.msra.mxu0 %v2800
    %2823 = vmatprep.subr.bf16.mxu0 0
    %2824 = vmatpush1.bf16.msra.mxu0 %v2799
    %2825 = vmatprep.subr.bf16.mxu0 0
    %2826 = vmatpush1.bf16.msra.mxu0 %v2798
    %2827 = vmatprep.subr.bf16.mxu0 0
    %2828 = vmatpush1.bf16.msra.mxu0 %v2797
    %2829 = vmatprep.subr.bf16.mxu0 0
    %2830 = vmatpush2.bf16.msra.mxu0 0
    %2831 = vmatprep.subr.bf16.mxu0 0
    %2832 = vmatpush2.bf16.msra.mxu0 0
    %2833 = vmatprep.subr.bf16.mxu0 0
    %2834 = vmatpush2.bf16.msra.mxu0 0
    %2835 = vmatprep.subr.bf16.mxu0 0
    %2836 = vmatpush2.bf16.msra.mxu0 0
    %2837 = vmatprep.subr.bf16.mxu0 0
    %2838 = vmatpush2.bf16.msra.mxu0 0
    %2839 = vmatprep.subr.bf16.mxu0 0
    %2840 = vmatpush2.bf16.msra.mxu0 0
    %2841 = vmatprep.subr.bf16.mxu0 0
    %2842 = vmatpush2.bf16.msra.mxu0 0
    %2843 = vmatprep.subr.bf16.mxu0 0
    %2844 = vmatpush2.bf16.msra.mxu0 0
    %2845 = vmatprep.mubr.bf16.mxu0 0
    %2846 = vmatmul.mubr.bf16.gmra.mxu0 %v2763
    %v2847 = vpop.f32.mrf.mxu0
    %v2848 = vadd.f32 0.0, %v2847
    %v2849 = vpop.f32.mrf.mxu0
    %v2850 = vpop.f32.mrf.mxu0
    %v2851 = vadd.f32 0.0, %v2850
    %v2852 = vpop.f32.mrf.mxu0
    %2853 = vdwg.mxu0
    %v2854 = vsub.f32 0.0, %v2848
    %v2855 = vsub.f32 0.0, %v2851
    %v2856 = vadd.f32 %v2739, %v2854
    %v2857 = vadd.f32 %v2740, %v2855
    %v2858 = vld [vmem:[#allocation7 + $0x2] sm:$0x1]
    %v2860 = vlaneseq
    %v2861 = vshrl.u32 %v2860, 7
    %v2862 = vsub.s32 0, %v2861
    %v2863 = vrot.slane %v2858, %v2862
    %v2865 = vadd.f32 %v2856, %v2863
    %v2866 = vadd.f32 %v2857, %v2863
    %2867 = vst [vmem:[#allocation8 + $0x10] sm:$0xff] %v2865
    %2868 = vst [vmem:[#allocation8 + $0x50] sm:$0xff] %v2866
    %v2869 = vld [vmem:[#allocation2] sm:$0xf]
    %v2870 = vld [vmem:[#allocation2 + $0x20] sm:$0xf]
    %v2871 = vld [vmem:[%s404] sm:$0xf]
    %v2872 = vld [vmem:[%s404 + $0x4] sm:$0xf]
    %v2873 = vld [vmem:[%s404 + $0x8] sm:$0xf]
    %v2874 = vld [vmem:[%s404 + $0xc] sm:$0xf]
    %v2875 = vld [vmem:[%s404 + $0x10] sm:$0xf]
    %v2876 = vld [vmem:[%s404 + $0x14] sm:$0xf]
    %v2877 = vld [vmem:[%s404 + $0x18] sm:$0xf]
    %v2878 = vld [vmem:[%s404 + $0x1c] sm:$0xf]
    %v2879 = vld [vmem:[%s404 + $0x20] sm:$0xf]
    %v2880 = vld [vmem:[%s404 + $0x24] sm:$0xf]
    %v2881 = vld [vmem:[%s404 + $0x28] sm:$0xf]
    %v2882 = vld [vmem:[%s404 + $0x2c] sm:$0xf]
    %v2883 = vld [vmem:[%s404 + $0x30] sm:$0xf]
    %v2884 = vld [vmem:[%s404 + $0x34] sm:$0xf]
    %v2885 = vld [vmem:[%s404 + $0x38] sm:$0xf]
    %v2886 = vld [vmem:[%s404 + $0x3c] sm:$0xf]
    %v2887 = vld [vmem:[#allocation2 + $0x4] sm:$0xf]
    %v2888 = vld [vmem:[#allocation2 + $0x24] sm:$0xf]
    %v2889 = vld [vmem:[%s286] sm:$0xf]
    %v2890 = vld [vmem:[%s286 + $0x4] sm:$0xf]
    %v2891 = vld [vmem:[%s286 + $0x8] sm:$0xf]
    %v2892 = vld [vmem:[%s286 + $0xc] sm:$0xf]
    %v2893 = vld [vmem:[%s286 + $0x10] sm:$0xf]
    %v2894 = vld [vmem:[%s286 + $0x14] sm:$0xf]
    %v2895 = vld [vmem:[%s286 + $0x18] sm:$0xf]
    %v2896 = vld [vmem:[%s286 + $0x1c] sm:$0xf]
    %v2897 = vld [vmem:[%s286 + $0x20] sm:$0xf]
    %v2898 = vld [vmem:[%s286 + $0x24] sm:$0xf]
    %v2899 = vld [vmem:[%s286 + $0x28] sm:$0xf]
    %v2900 = vld [vmem:[%s286 + $0x2c] sm:$0xf]
    %v2901 = vld [vmem:[%s286 + $0x30] sm:$0xf]
    %v2902 = vld [vmem:[%s286 + $0x34] sm:$0xf]
    %v2903 = vld [vmem:[%s286 + $0x38] sm:$0xf]
    %v2904 = vld [vmem:[%s286 + $0x3c] sm:$0xf]
    %v2907 = vunpack.c.l.b16 %v2887
    %v2908 = vunpack.c.l.b16 %v2888
    %v2909 = vpack.c.b16 %v2908, %v2907
    %v2927 = vunpack.c.l.b16 %v2889
    %v2928 = vunpack.c.l.b16 %v2890
    %v2929 = vunpack.c.l.b16 %v2891
    %v2930 = vunpack.c.l.b16 %v2892
    %v2931 = vunpack.c.l.b16 %v2893
    %v2932 = vunpack.c.l.b16 %v2894
    %v2933 = vunpack.c.l.b16 %v2895
    %v2934 = vunpack.c.l.b16 %v2896
    %v2935 = vunpack.c.l.b16 %v2897
    %v2936 = vunpack.c.l.b16 %v2898
    %v2937 = vunpack.c.l.b16 %v2899
    %v2938 = vunpack.c.l.b16 %v2900
    %v2939 = vunpack.c.l.b16 %v2901
    %v2940 = vunpack.c.l.b16 %v2902
    %v2941 = vunpack.c.l.b16 %v2903
    %v2942 = vunpack.c.l.b16 %v2904
    %v2943 = vpack.c.b16 %v2928, %v2927
    %v2944 = vpack.c.b16 %v2930, %v2929
    %v2945 = vpack.c.b16 %v2932, %v2931
    %v2946 = vpack.c.b16 %v2934, %v2933
    %v2947 = vpack.c.b16 %v2936, %v2935
    %v2948 = vpack.c.b16 %v2938, %v2937
    %v2949 = vpack.c.b16 %v2940, %v2939
    %v2950 = vpack.c.b16 %v2942, %v2941
    %2959 = vmatprep.subr.bf16.mxu0 0
    %2960 = vmatpush1.bf16.msra.mxu0 %v2950
    %2961 = vmatprep.subr.bf16.mxu0 0
    %2962 = vmatpush1.bf16.msra.mxu0 %v2949
    %2963 = vmatprep.subr.bf16.mxu0 0
    %2964 = vmatpush1.bf16.msra.mxu0 %v2948
    %2965 = vmatprep.subr.bf16.mxu0 0
    %2966 = vmatpush1.bf16.msra.mxu0 %v2947
    %2967 = vmatprep.subr.bf16.mxu0 0
    %2968 = vmatpush1.bf16.msra.mxu0 %v2946
    %2969 = vmatprep.subr.bf16.mxu0 0
    %2970 = vmatpush1.bf16.msra.mxu0 %v2945
    %2971 = vmatprep.subr.bf16.mxu0 0
    %2972 = vmatpush1.bf16.msra.mxu0 %v2944
    %2973 = vmatprep.subr.bf16.mxu0 0
    %2974 = vmatpush1.bf16.msra.mxu0 %v2943
    %2975 = vmatprep.subr.bf16.mxu0 0
    %2976 = vmatpush2.bf16.msra.mxu0 0
    %2977 = vmatprep.subr.bf16.mxu0 0
    %2978 = vmatpush2.bf16.msra.mxu0 0
    %2979 = vmatprep.subr.bf16.mxu0 0
    %2980 = vmatpush2.bf16.msra.mxu0 0
    %2981 = vmatprep.subr.bf16.mxu0 0
    %2982 = vmatpush2.bf16.msra.mxu0 0
    %2983 = vmatprep.subr.bf16.mxu0 0
    %2984 = vmatpush2.bf16.msra.mxu0 0
    %2985 = vmatprep.subr.bf16.mxu0 0
    %2986 = vmatpush2.bf16.msra.mxu0 0
    %2987 = vmatprep.subr.bf16.mxu0 0
    %2988 = vmatpush2.bf16.msra.mxu0 0
    %2989 = vmatprep.subr.bf16.mxu0 0
    %2990 = vmatpush2.bf16.msra.mxu0 0
    %2991 = vmatprep.mubr.bf16.mxu0 0
    %2992 = vmatmul.mubr.bf16.gmra.mxu0 %v2909
    %v2993 = vpop.f32.mrf.mxu0
    %v2994 = vadd.f32 0.0, %v2993
    %v2995 = vpop.f32.mrf.mxu0
    %v2996 = vpop.f32.mrf.mxu0
    %v2997 = vadd.f32 0.0, %v2996
    %v2998 = vpop.f32.mrf.mxu0
    %2999 = vdwg.mxu0
    %v3002 = vunpack.c.l.b16 %v2869
    %v3003 = vunpack.c.l.b16 %v2870
    %v3004 = vpack.c.b16 %v3003, %v3002
    %v3022 = vunpack.c.l.b16 %v2871
    %v3023 = vunpack.c.l.b16 %v2872
    %v3024 = vunpack.c.l.b16 %v2873
    %v3025 = vunpack.c.l.b16 %v2874
    %v3026 = vunpack.c.l.b16 %v2875
    %v3027 = vunpack.c.l.b16 %v2876
    %v3028 = vunpack.c.l.b16 %v2877
    %v3029 = vunpack.c.l.b16 %v2878
    %v3030 = vunpack.c.l.b16 %v2879
    %v3031 = vunpack.c.l.b16 %v2880
    %v3032 = vunpack.c.l.b16 %v2881
    %v3033 = vunpack.c.l.b16 %v2882
    %v3034 = vunpack.c.l.b16 %v2883
    %v3035 = vunpack.c.l.b16 %v2884
    %v3036 = vunpack.c.l.b16 %v2885
    %v3037 = vunpack.c.l.b16 %v2886
    %v3038 = vpack.c.b16 %v3023, %v3022
    %v3039 = vpack.c.b16 %v3025, %v3024
    %v3040 = vpack.c.b16 %v3027, %v3026
    %v3041 = vpack.c.b16 %v3029, %v3028
    %v3042 = vpack.c.b16 %v3031, %v3030
    %v3043 = vpack.c.b16 %v3033, %v3032
    %v3044 = vpack.c.b16 %v3035, %v3034
    %v3045 = vpack.c.b16 %v3037, %v3036
    %3054 = vmatprep.subr.bf16.mxu0 0
    %3055 = vmatpush1.bf16.msra.mxu0 %v3045
    %3056 = vmatprep.subr.bf16.mxu0 0
    %3057 = vmatpush1.bf16.msra.mxu0 %v3044
    %3058 = vmatprep.subr.bf16.mxu0 0
    %3059 = vmatpush1.bf16.msra.mxu0 %v3043
    %3060 = vmatprep.subr.bf16.mxu0 0
    %3061 = vmatpush1.bf16.msra.mxu0 %v3042
    %3062 = vmatprep.subr.bf16.mxu0 0
    %3063 = vmatpush1.bf16.msra.mxu0 %v3041
    %3064 = vmatprep.subr.bf16.mxu0 0
    %3065 = vmatpush1.bf16.msra.mxu0 %v3040
    %3066 = vmatprep.subr.bf16.mxu0 0
    %3067 = vmatpush1.bf16.msra.mxu0 %v3039
    %3068 = vmatprep.subr.bf16.mxu0 0
    %3069 = vmatpush1.bf16.msra.mxu0 %v3038
    %3070 = vmatprep.subr.bf16.mxu0 0
    %3071 = vmatpush2.bf16.msra.mxu0 0
    %3072 = vmatprep.subr.bf16.mxu0 0
    %3073 = vmatpush2.bf16.msra.mxu0 0
    %3074 = vmatprep.subr.bf16.mxu0 0
    %3075 = vmatpush2.bf16.msra.mxu0 0
    %3076 = vmatprep.subr.bf16.mxu0 0
    %3077 = vmatpush2.bf16.msra.mxu0 0
    %3078 = vmatprep.subr.bf16.mxu0 0
    %3079 = vmatpush2.bf16.msra.mxu0 0
    %3080 = vmatprep.subr.bf16.mxu0 0
    %3081 = vmatpush2.bf16.msra.mxu0 0
    %3082 = vmatprep.subr.bf16.mxu0 0
    %3083 = vmatpush2.bf16.msra.mxu0 0
    %3084 = vmatprep.subr.bf16.mxu0 0
    %3085 = vmatpush2.bf16.msra.mxu0 0
    %3086 = vmatprep.mubr.bf16.mxu0 0
    %3087 = vmatmul.mubr.bf16.gmra.mxu0 %v3004
    %v3088 = vpop.f32.mrf.mxu0
    %v3089 = vadd.f32 %v2994, %v3088
    %v3090 = vpop.f32.mrf.mxu0
    %v3091 = vpop.f32.mrf.mxu0
    %v3092 = vadd.f32 %v2997, %v3091
    %v3093 = vpop.f32.mrf.mxu0
    %3094 = vdwg.mxu0
    %v3095 = vld [vmem:[#allocation2 + $0x8] sm:$0xf]
    %v3096 = vld [vmem:[#allocation2 + $0x28] sm:$0xf]
    %v3097 = vld [vmem:[%s75] sm:$0xf]
    %v3098 = vld [vmem:[%s75 + $0x4] sm:$0xf]
    %v3099 = vld [vmem:[%s75 + $0x8] sm:$0xf]
    %v3100 = vld [vmem:[%s75 + $0xc] sm:$0xf]
    %v3101 = vld [vmem:[%s75 + $0x10] sm:$0xf]
    %v3102 = vld [vmem:[%s75 + $0x14] sm:$0xf]
    %v3103 = vld [vmem:[%s75 + $0x18] sm:$0xf]
    %v3104 = vld [vmem:[%s75 + $0x1c] sm:$0xf]
    %v3105 = vld [vmem:[%s75 + $0x20] sm:$0xf]
    %v3106 = vld [vmem:[%s75 + $0x24] sm:$0xf]
    %v3107 = vld [vmem:[%s75 + $0x28] sm:$0xf]
    %v3108 = vld [vmem:[%s75 + $0x2c] sm:$0xf]
    %v3109 = vld [vmem:[%s75 + $0x30] sm:$0xf]
    %v3110 = vld [vmem:[%s75 + $0x34] sm:$0xf]
    %v3111 = vld [vmem:[%s75 + $0x38] sm:$0xf]
    %v3112 = vld [vmem:[%s75 + $0x3c] sm:$0xf]
    %v3115 = vunpack.c.l.b16 %v3095
    %v3116 = vunpack.c.l.b16 %v3096
    %v3117 = vpack.c.b16 %v3116, %v3115
    %v3135 = vunpack.c.l.b16 %v3097
    %v3136 = vunpack.c.l.b16 %v3098
    %v3137 = vunpack.c.l.b16 %v3099
    %v3138 = vunpack.c.l.b16 %v3100
    %v3139 = vunpack.c.l.b16 %v3101
    %v3140 = vunpack.c.l.b16 %v3102
    %v3141 = vunpack.c.l.b16 %v3103
    %v3142 = vunpack.c.l.b16 %v3104
    %v3143 = vunpack.c.l.b16 %v3105
    %v3144 = vunpack.c.l.b16 %v3106
    %v3145 = vunpack.c.l.b16 %v3107
    %v3146 = vunpack.c.l.b16 %v3108
    %v3147 = vunpack.c.l.b16 %v3109
    %v3148 = vunpack.c.l.b16 %v3110
    %v3149 = vunpack.c.l.b16 %v3111
    %v3150 = vunpack.c.l.b16 %v3112
    %v3151 = vpack.c.b16 %v3136, %v3135
    %v3152 = vpack.c.b16 %v3138, %v3137
    %v3153 = vpack.c.b16 %v3140, %v3139
    %v3154 = vpack.c.b16 %v3142, %v3141
    %v3155 = vpack.c.b16 %v3144, %v3143
    %v3156 = vpack.c.b16 %v3146, %v3145
    %v3157 = vpack.c.b16 %v3148, %v3147
    %v3158 = vpack.c.b16 %v3150, %v3149
    %3167 = vmatprep.subr.bf16.mxu0 0
    %3168 = vmatpush1.bf16.msra.mxu0 %v3158
    %3169 = vmatprep.subr.bf16.mxu0 0
    %3170 = vmatpush1.bf16.msra.mxu0 %v3157
    %3171 = vmatprep.subr.bf16.mxu0 0
    %3172 = vmatpush1.bf16.msra.mxu0 %v3156
    %3173 = vmatprep.subr.bf16.mxu0 0
    %3174 = vmatpush1.bf16.msra.mxu0 %v3155
    %3175 = vmatprep.subr.bf16.mxu0 0
    %3176 = vmatpush1.bf16.msra.mxu0 %v3154
    %3177 = vmatprep.subr.bf16.mxu0 0
    %3178 = vmatpush1.bf16.msra.mxu0 %v3153
    %3179 = vmatprep.subr.bf16.mxu0 0
    %3180 = vmatpush1.bf16.msra.mxu0 %v3152
    %3181 = vmatprep.subr.bf16.mxu0 0
    %3182 = vmatpush1.bf16.msra.mxu0 %v3151
    %3183 = vmatprep.subr.bf16.mxu0 0
    %3184 = vmatpush2.bf16.msra.mxu0 0
    %3185 = vmatprep.subr.bf16.mxu0 0
    %3186 = vmatpush2.bf16.msra.mxu0 0
    %3187 = vmatprep.subr.bf16.mxu0 0
    %3188 = vmatpush2.bf16.msra.mxu0 0
    %3189 = vmatprep.subr.bf16.mxu0 0
    %3190 = vmatpush2.bf16.msra.mxu0 0
    %3191 = vmatprep.subr.bf16.mxu0 0
    %3192 = vmatpush2.bf16.msra.mxu0 0
    %3193 = vmatprep.subr.bf16.mxu0 0
    %3194 = vmatpush2.bf16.msra.mxu0 0
    %3195 = vmatprep.subr.bf16.mxu0 0
    %3196 = vmatpush2.bf16.msra.mxu0 0
    %3197 = vmatprep.subr.bf16.mxu0 0
    %3198 = vmatpush2.bf16.msra.mxu0 0
    %3199 = vmatprep.mubr.bf16.mxu0 0
    %3200 = vmatmul.mubr.bf16.gmra.mxu0 %v3117
    %v3201 = vpop.f32.mrf.mxu0
    %v3202 = vadd.f32 0.0, %v3201
    %v3203 = vpop.f32.mrf.mxu0
    %v3204 = vpop.f32.mrf.mxu0
    %v3205 = vadd.f32 0.0, %v3204
    %v3206 = vpop.f32.mrf.mxu0
    %3207 = vdwg.mxu0
    %v3208 = vsub.f32 0.0, %v3202
    %v3209 = vsub.f32 0.0, %v3205
    %v3210 = vadd.f32 %v3089, %v3208
    %v3211 = vadd.f32 %v3092, %v3209
    %v3212 = vld [vmem:[#allocation2 + $0xc] sm:$0xf]
    %v3213 = vld [vmem:[#allocation2 + $0x2c] sm:$0xf]
    %v3214 = vld [vmem:[#allocation5] sm:$0xf]
    %v3215 = vld [vmem:[#allocation5 + $0x4] sm:$0xf]
    %v3216 = vld [vmem:[#allocation5 + $0x8] sm:$0xf]
    %v3217 = vld [vmem:[#allocation5 + $0xc] sm:$0xf]
    %v3218 = vld [vmem:[#allocation5 + $0x10] sm:$0xf]
    %v3219 = vld [vmem:[#allocation5 + $0x14] sm:$0xf]
    %v3220 = vld [vmem:[#allocation5 + $0x18] sm:$0xf]
    %v3221 = vld [vmem:[#allocation5 + $0x1c] sm:$0xf]
    %v3222 = vld [vmem:[#allocation5 + $0x20] sm:$0xf]
    %v3223 = vld [vmem:[#allocation5 + $0x24] sm:$0xf]
    %v3224 = vld [vmem:[#allocation5 + $0x28] sm:$0xf]
    %v3225 = vld [vmem:[#allocation5 + $0x2c] sm:$0xf]
    %v3226 = vld [vmem:[#allocation5 + $0x30] sm:$0xf]
    %v3227 = vld [vmem:[#allocation5 + $0x34] sm:$0xf]
    %v3228 = vld [vmem:[#allocation5 + $0x38] sm:$0xf]
    %v3229 = vld [vmem:[#allocation5 + $0x3c] sm:$0xf]
    %v3232 = vunpack.c.l.b16 %v3212
    %v3233 = vunpack.c.l.b16 %v3213
    %v3234 = vpack.c.b16 %v3233, %v3232
    %v3252 = vunpack.c.l.b16 %v3214
    %v3253 = vunpack.c.l.b16 %v3215
    %v3254 = vunpack.c.l.b16 %v3216
    %v3255 = vunpack.c.l.b16 %v3217
    %v3256 = vunpack.c.l.b16 %v3218
    %v3257 = vunpack.c.l.b16 %v3219
    %v3258 = vunpack.c.l.b16 %v3220
    %v3259 = vunpack.c.l.b16 %v3221
    %v3260 = vunpack.c.l.b16 %v3222
    %v3261 = vunpack.c.l.b16 %v3223
    %v3262 = vunpack.c.l.b16 %v3224
    %v3263 = vunpack.c.l.b16 %v3225
    %v3264 = vunpack.c.l.b16 %v3226
    %v3265 = vunpack.c.l.b16 %v3227
    %v3266 = vunpack.c.l.b16 %v3228
    %v3267 = vunpack.c.l.b16 %v3229
    %v3268 = vpack.c.b16 %v3253, %v3252
    %v3269 = vpack.c.b16 %v3255, %v3254
    %v3270 = vpack.c.b16 %v3257, %v3256
    %v3271 = vpack.c.b16 %v3259, %v3258
    %v3272 = vpack.c.b16 %v3261, %v3260
    %v3273 = vpack.c.b16 %v3263, %v3262
    %v3274 = vpack.c.b16 %v3265, %v3264
    %v3275 = vpack.c.b16 %v3267, %v3266
    %3284 = vmatprep.subr.bf16.mxu0 0
    %3285 = vmatpush1.bf16.msra.mxu0 %v3275
    %3286 = vmatprep.subr.bf16.mxu0 0
    %3287 = vmatpush1.bf16.msra.mxu0 %v3274
    %3288 = vmatprep.subr.bf16.mxu0 0
    %3289 = vmatpush1.bf16.msra.mxu0 %v3273
    %3290 = vmatprep.subr.bf16.mxu0 0
    %3291 = vmatpush1.bf16.msra.mxu0 %v3272
    %3292 = vmatprep.subr.bf16.mxu0 0
    %3293 = vmatpush1.bf16.msra.mxu0 %v3271
    %3294 = vmatprep.subr.bf16.mxu0 0
    %3295 = vmatpush1.bf16.msra.mxu0 %v3270
    %3296 = vmatprep.subr.bf16.mxu0 0
    %3297 = vmatpush1.bf16.msra.mxu0 %v3269
    %3298 = vmatprep.subr.bf16.mxu0 0
    %3299 = vmatpush1.bf16.msra.mxu0 %v3268
    %3300 = vmatprep.subr.bf16.mxu0 0
    %3301 = vmatpush2.bf16.msra.mxu0 0
    %3302 = vmatprep.subr.bf16.mxu0 0
    %3303 = vmatpush2.bf16.msra.mxu0 0
    %3304 = vmatprep.subr.bf16.mxu0 0
    %3305 = vmatpush2.bf16.msra.mxu0 0
    %3306 = vmatprep.subr.bf16.mxu0 0
    %3307 = vmatpush2.bf16.msra.mxu0 0
    %3308 = vmatprep.subr.bf16.mxu0 0
    %3309 = vmatpush2.bf16.msra.mxu0 0
    %3310 = vmatprep.subr.bf16.mxu0 0
    %3311 = vmatpush2.bf16.msra.mxu0 0
    %3312 = vmatprep.subr.bf16.mxu0 0
    %3313 = vmatpush2.bf16.msra.mxu0 0
    %3314 = vmatprep.subr.bf16.mxu0 0
    %3315 = vmatpush2.bf16.msra.mxu0 0
    %3316 = vmatprep.mubr.bf16.mxu0 0
    %3317 = vmatmul.mubr.bf16.gmra.mxu0 %v3234
    %v3318 = vpop.f32.mrf.mxu0
    %v3319 = vadd.f32 0.0, %v3318
    %v3320 = vpop.f32.mrf.mxu0
    %v3321 = vpop.f32.mrf.mxu0
    %v3322 = vadd.f32 0.0, %v3321
    %v3323 = vpop.f32.mrf.mxu0
    %3324 = vdwg.mxu0
    %v3325 = vadd.f32 %v3210, %v3319
    %v3326 = vadd.f32 %v3211, %v3322
    %v3327 = vld [vmem:[#allocation2 + $0x10] sm:$0xf]
    %v3328 = vld [vmem:[#allocation2 + $0x30] sm:$0xf]
    %v3329 = vld [vmem:[%s876] sm:$0xf]
    %v3330 = vld [vmem:[%s876 + $0x4] sm:$0xf]
    %v3331 = vld [vmem:[%s876 + $0x8] sm:$0xf]
    %v3332 = vld [vmem:[%s876 + $0xc] sm:$0xf]
    %v3333 = vld [vmem:[%s876 + $0x10] sm:$0xf]
    %v3334 = vld [vmem:[%s876 + $0x14] sm:$0xf]
    %v3335 = vld [vmem:[%s876 + $0x18] sm:$0xf]
    %v3336 = vld [vmem:[%s876 + $0x1c] sm:$0xf]
    %v3337 = vld [vmem:[%s876 + $0x20] sm:$0xf]
    %v3338 = vld [vmem:[%s876 + $0x24] sm:$0xf]
    %v3339 = vld [vmem:[%s876 + $0x28] sm:$0xf]
    %v3340 = vld [vmem:[%s876 + $0x2c] sm:$0xf]
    %v3341 = vld [vmem:[%s876 + $0x30] sm:$0xf]
    %v3342 = vld [vmem:[%s876 + $0x34] sm:$0xf]
    %v3343 = vld [vmem:[%s876 + $0x38] sm:$0xf]
    %v3344 = vld [vmem:[%s876 + $0x3c] sm:$0xf]
    %v3347 = vunpack.c.l.b16 %v3327
    %v3348 = vunpack.c.l.b16 %v3328
    %v3349 = vpack.c.b16 %v3348, %v3347
    %v3367 = vunpack.c.l.b16 %v3329
    %v3368 = vunpack.c.l.b16 %v3330
    %v3369 = vunpack.c.l.b16 %v3331
    %v3370 = vunpack.c.l.b16 %v3332
    %v3371 = vunpack.c.l.b16 %v3333
    %v3372 = vunpack.c.l.b16 %v3334
    %v3373 = vunpack.c.l.b16 %v3335
    %v3374 = vunpack.c.l.b16 %v3336
    %v3375 = vunpack.c.l.b16 %v3337
    %v3376 = vunpack.c.l.b16 %v3338
    %v3377 = vunpack.c.l.b16 %v3339
    %v3378 = vunpack.c.l.b16 %v3340
    %v3379 = vunpack.c.l.b16 %v3341
    %v3380 = vunpack.c.l.b16 %v3342
    %v3381 = vunpack.c.l.b16 %v3343
    %v3382 = vunpack.c.l.b16 %v3344
    %v3383 = vpack.c.b16 %v3368, %v3367
    %v3384 = vpack.c.b16 %v3370, %v3369
    %v3385 = vpack.c.b16 %v3372, %v3371
    %v3386 = vpack.c.b16 %v3374, %v3373
    %v3387 = vpack.c.b16 %v3376, %v3375
    %v3388 = vpack.c.b16 %v3378, %v3377
    %v3389 = vpack.c.b16 %v3380, %v3379
    %v3390 = vpack.c.b16 %v3382, %v3381
    %3399 = vmatprep.subr.bf16.mxu0 0
    %3400 = vmatpush1.bf16.msra.mxu0 %v3390
    %3401 = vmatprep.subr.bf16.mxu0 0
    %3402 = vmatpush1.bf16.msra.mxu0 %v3389
    %3403 = vmatprep.subr.bf16.mxu0 0
    %3404 = vmatpush1.bf16.msra.mxu0 %v3388
    %3405 = vmatprep.subr.bf16.mxu0 0
    %3406 = vmatpush1.bf16.msra.mxu0 %v3387
    %3407 = vmatprep.subr.bf16.mxu0 0
    %3408 = vmatpush1.bf16.msra.mxu0 %v3386
    %3409 = vmatprep.subr.bf16.mxu0 0
    %3410 = vmatpush1.bf16.msra.mxu0 %v3385
    %3411 = vmatprep.subr.bf16.mxu0 0
    %3412 = vmatpush1.bf16.msra.mxu0 %v3384
    %3413 = vmatprep.subr.bf16.mxu0 0
    %3414 = vmatpush1.bf16.msra.mxu0 %v3383
    %3415 = vmatprep.subr.bf16.mxu0 0
    %3416 = vmatpush2.bf16.msra.mxu0 0
    %3417 = vmatprep.subr.bf16.mxu0 0
    %3418 = vmatpush2.bf16.msra.mxu0 0
    %3419 = vmatprep.subr.bf16.mxu0 0
    %3420 = vmatpush2.bf16.msra.mxu0 0
    %3421 = vmatprep.subr.bf16.mxu0 0
    %3422 = vmatpush2.bf16.msra.mxu0 0
    %3423 = vmatprep.subr.bf16.mxu0 0
    %3424 = vmatpush2.bf16.msra.mxu0 0
    %3425 = vmatprep.subr.bf16.mxu0 0
    %3426 = vmatpush2.bf16.msra.mxu0 0
    %3427 = vmatprep.subr.bf16.mxu0 0
    %3428 = vmatpush2.bf16.msra.mxu0 0
    %3429 = vmatprep.subr.bf16.mxu0 0
    %3430 = vmatpush2.bf16.msra.mxu0 0
    %3431 = vmatprep.mubr.bf16.mxu0 0
    %3432 = vmatmul.mubr.bf16.gmra.mxu0 %v3349
    %v3433 = vpop.f32.mrf.mxu0
    %v3434 = vadd.f32 0.0, %v3433
    %v3435 = vpop.f32.mrf.mxu0
    %v3436 = vpop.f32.mrf.mxu0
    %v3437 = vadd.f32 0.0, %v3436
    %v3438 = vpop.f32.mrf.mxu0
    %3439 = vdwg.mxu0
    %v3440 = vadd.f32 %v3325, %v3434
    %v3441 = vadd.f32 %v3326, %v3437
    %v3442 = vld [vmem:[#allocation2 + $0x14] sm:$0xf]
    %v3443 = vld [vmem:[#allocation2 + $0x34] sm:$0xf]
    %v3444 = vld [vmem:[%s758] sm:$0xf]
    %v3445 = vld [vmem:[%s758 + $0x4] sm:$0xf]
    %v3446 = vld [vmem:[%s758 + $0x8] sm:$0xf]
    %v3447 = vld [vmem:[%s758 + $0xc] sm:$0xf]
    %v3448 = vld [vmem:[%s758 + $0x10] sm:$0xf]
    %v3449 = vld [vmem:[%s758 + $0x14] sm:$0xf]
    %v3450 = vld [vmem:[%s758 + $0x18] sm:$0xf]
    %v3451 = vld [vmem:[%s758 + $0x1c] sm:$0xf]
    %v3452 = vld [vmem:[%s758 + $0x20] sm:$0xf]
    %v3453 = vld [vmem:[%s758 + $0x24] sm:$0xf]
    %v3454 = vld [vmem:[%s758 + $0x28] sm:$0xf]
    %v3455 = vld [vmem:[%s758 + $0x2c] sm:$0xf]
    %v3456 = vld [vmem:[%s758 + $0x30] sm:$0xf]
    %v3457 = vld [vmem:[%s758 + $0x34] sm:$0xf]
    %v3458 = vld [vmem:[%s758 + $0x38] sm:$0xf]
    %v3459 = vld [vmem:[%s758 + $0x3c] sm:$0xf]
    %v3462 = vunpack.c.l.b16 %v3442
    %v3463 = vunpack.c.l.b16 %v3443
    %v3464 = vpack.c.b16 %v3463, %v3462
    %v3482 = vunpack.c.l.b16 %v3444
    %v3483 = vunpack.c.l.b16 %v3445
    %v3484 = vunpack.c.l.b16 %v3446
    %v3485 = vunpack.c.l.b16 %v3447
    %v3486 = vunpack.c.l.b16 %v3448
    %v3487 = vunpack.c.l.b16 %v3449
    %v3488 = vunpack.c.l.b16 %v3450
    %v3489 = vunpack.c.l.b16 %v3451
    %v3490 = vunpack.c.l.b16 %v3452
    %v3491 = vunpack.c.l.b16 %v3453
    %v3492 = vunpack.c.l.b16 %v3454
    %v3493 = vunpack.c.l.b16 %v3455
    %v3494 = vunpack.c.l.b16 %v3456
    %v3495 = vunpack.c.l.b16 %v3457
    %v3496 = vunpack.c.l.b16 %v3458
    %v3497 = vunpack.c.l.b16 %v3459
    %v3498 = vpack.c.b16 %v3483, %v3482
    %v3499 = vpack.c.b16 %v3485, %v3484
    %v3500 = vpack.c.b16 %v3487, %v3486
    %v3501 = vpack.c.b16 %v3489, %v3488
    %v3502 = vpack.c.b16 %v3491, %v3490
    %v3503 = vpack.c.b16 %v3493, %v3492
    %v3504 = vpack.c.b16 %v3495, %v3494
    %v3505 = vpack.c.b16 %v3497, %v3496
    %3514 = vmatprep.subr.bf16.mxu0 0
    %3515 = vmatpush1.bf16.msra.mxu0 %v3505
    %3516 = vmatprep.subr.bf16.mxu0 0
    %3517 = vmatpush1.bf16.msra.mxu0 %v3504
    %3518 = vmatprep.subr.bf16.mxu0 0
    %3519 = vmatpush1.bf16.msra.mxu0 %v3503
    %3520 = vmatprep.subr.bf16.mxu0 0
    %3521 = vmatpush1.bf16.msra.mxu0 %v3502
    %3522 = vmatprep.subr.bf16.mxu0 0
    %3523 = vmatpush1.bf16.msra.mxu0 %v3501
    %3524 = vmatprep.subr.bf16.mxu0 0
    %3525 = vmatpush1.bf16.msra.mxu0 %v3500
    %3526 = vmatprep.subr.bf16.mxu0 0
    %3527 = vmatpush1.bf16.msra.mxu0 %v3499
    %3528 = vmatprep.subr.bf16.mxu0 0
    %3529 = vmatpush1.bf16.msra.mxu0 %v3498
    %3530 = vmatprep.subr.bf16.mxu0 0
    %3531 = vmatpush2.bf16.msra.mxu0 0
    %3532 = vmatprep.subr.bf16.mxu0 0
    %3533 = vmatpush2.bf16.msra.mxu0 0
    %3534 = vmatprep.subr.bf16.mxu0 0
    %3535 = vmatpush2.bf16.msra.mxu0 0
    %3536 = vmatprep.subr.bf16.mxu0 0
    %3537 = vmatpush2.bf16.msra.mxu0 0
    %3538 = vmatprep.subr.bf16.mxu0 0
    %3539 = vmatpush2.bf16.msra.mxu0 0
    %3540 = vmatprep.subr.bf16.mxu0 0
    %3541 = vmatpush2.bf16.msra.mxu0 0
    %3542 = vmatprep.subr.bf16.mxu0 0
    %3543 = vmatpush2.bf16.msra.mxu0 0
    %3544 = vmatprep.subr.bf16.mxu0 0
    %3545 = vmatpush2.bf16.msra.mxu0 0
    %3546 = vmatprep.mubr.bf16.mxu0 0
    %3547 = vmatmul.mubr.bf16.gmra.mxu0 %v3464
    %v3548 = vpop.f32.mrf.mxu0
    %v3549 = vadd.f32 0.0, %v3548
    %v3550 = vpop.f32.mrf.mxu0
    %v3551 = vpop.f32.mrf.mxu0
    %v3552 = vadd.f32 0.0, %v3551
    %v3553 = vpop.f32.mrf.mxu0
    %3554 = vdwg.mxu0
    %v3555 = vsub.f32 0.0, %v3549
    %v3556 = vsub.f32 0.0, %v3552
    %v3557 = vadd.f32 %v3440, %v3555
    %v3558 = vadd.f32 %v3441, %v3556
    %v3559 = vld [vmem:[#allocation2 + $0x18] sm:$0xf]
    %v3560 = vld [vmem:[#allocation2 + $0x38] sm:$0xf]
    %v3561 = vld [vmem:[%s640] sm:$0xf]
    %v3562 = vld [vmem:[%s640 + $0x4] sm:$0xf]
    %v3563 = vld [vmem:[%s640 + $0x8] sm:$0xf]
    %v3564 = vld [vmem:[%s640 + $0xc] sm:$0xf]
    %v3565 = vld [vmem:[%s640 + $0x10] sm:$0xf]
    %v3566 = vld [vmem:[%s640 + $0x14] sm:$0xf]
    %v3567 = vld [vmem:[%s640 + $0x18] sm:$0xf]
    %v3568 = vld [vmem:[%s640 + $0x1c] sm:$0xf]
    %v3569 = vld [vmem:[%s640 + $0x20] sm:$0xf]
    %v3570 = vld [vmem:[%s640 + $0x24] sm:$0xf]
    %v3571 = vld [vmem:[%s640 + $0x28] sm:$0xf]
    %v3572 = vld [vmem:[%s640 + $0x2c] sm:$0xf]
    %v3573 = vld [vmem:[%s640 + $0x30] sm:$0xf]
    %v3574 = vld [vmem:[%s640 + $0x34] sm:$0xf]
    %v3575 = vld [vmem:[%s640 + $0x38] sm:$0xf]
    %v3576 = vld [vmem:[%s640 + $0x3c] sm:$0xf]
    %v3579 = vunpack.c.l.b16 %v3559
    %v3580 = vunpack.c.l.b16 %v3560
    %v3581 = vpack.c.b16 %v3580, %v3579
    %v3599 = vunpack.c.l.b16 %v3561
    %v3600 = vunpack.c.l.b16 %v3562
    %v3601 = vunpack.c.l.b16 %v3563
    %v3602 = vunpack.c.l.b16 %v3564
    %v3603 = vunpack.c.l.b16 %v3565
    %v3604 = vunpack.c.l.b16 %v3566
    %v3605 = vunpack.c.l.b16 %v3567
    %v3606 = vunpack.c.l.b16 %v3568
    %v3607 = vunpack.c.l.b16 %v3569
    %v3608 = vunpack.c.l.b16 %v3570
    %v3609 = vunpack.c.l.b16 %v3571
    %v3610 = vunpack.c.l.b16 %v3572
    %v3611 = vunpack.c.l.b16 %v3573
    %v3612 = vunpack.c.l.b16 %v3574
    %v3613 = vunpack.c.l.b16 %v3575
    %v3614 = vunpack.c.l.b16 %v3576
    %v3615 = vpack.c.b16 %v3600, %v3599
    %v3616 = vpack.c.b16 %v3602, %v3601
    %v3617 = vpack.c.b16 %v3604, %v3603
    %v3618 = vpack.c.b16 %v3606, %v3605
    %v3619 = vpack.c.b16 %v3608, %v3607
    %v3620 = vpack.c.b16 %v3610, %v3609
    %v3621 = vpack.c.b16 %v3612, %v3611
    %v3622 = vpack.c.b16 %v3614, %v3613
    %3631 = vmatprep.subr.bf16.mxu0 0
    %3632 = vmatpush1.bf16.msra.mxu0 %v3622
    %3633 = vmatprep.subr.bf16.mxu0 0
    %3634 = vmatpush1.bf16.msra.mxu0 %v3621
    %3635 = vmatprep.subr.bf16.mxu0 0
    %3636 = vmatpush1.bf16.msra.mxu0 %v3620
    %3637 = vmatprep.subr.bf16.mxu0 0
    %3638 = vmatpush1.bf16.msra.mxu0 %v3619
    %3639 = vmatprep.subr.bf16.mxu0 0
    %3640 = vmatpush1.bf16.msra.mxu0 %v3618
    %3641 = vmatprep.subr.bf16.mxu0 0
    %3642 = vmatpush1.bf16.msra.mxu0 %v3617
    %3643 = vmatprep.subr.bf16.mxu0 0
    %3644 = vmatpush1.bf16.msra.mxu0 %v3616
    %3645 = vmatprep.subr.bf16.mxu0 0
    %3646 = vmatpush1.bf16.msra.mxu0 %v3615
    %3647 = vmatprep.subr.bf16.mxu0 0
    %3648 = vmatpush2.bf16.msra.mxu0 0
    %3649 = vmatprep.subr.bf16.mxu0 0
    %3650 = vmatpush2.bf16.msra.mxu0 0
    %3651 = vmatprep.subr.bf16.mxu0 0
    %3652 = vmatpush2.bf16.msra.mxu0 0
    %3653 = vmatprep.subr.bf16.mxu0 0
    %3654 = vmatpush2.bf16.msra.mxu0 0
    %3655 = vmatprep.subr.bf16.mxu0 0
    %3656 = vmatpush2.bf16.msra.mxu0 0
    %3657 = vmatprep.subr.bf16.mxu0 0
    %3658 = vmatpush2.bf16.msra.mxu0 0
    %3659 = vmatprep.subr.bf16.mxu0 0
    %3660 = vmatpush2.bf16.msra.mxu0 0
    %3661 = vmatprep.subr.bf16.mxu0 0
    %3662 = vmatpush2.bf16.msra.mxu0 0
    %3663 = vmatprep.mubr.bf16.mxu0 0
    %3664 = vmatmul.mubr.bf16.gmra.mxu0 %v3581
    %v3665 = vpop.f32.mrf.mxu0
    %v3666 = vadd.f32 0.0, %v3665
    %v3667 = vpop.f32.mrf.mxu0
    %v3668 = vpop.f32.mrf.mxu0
    %v3669 = vadd.f32 0.0, %v3668
    %v3670 = vpop.f32.mrf.mxu0
    %3671 = vdwg.mxu0
    %v3672 = vadd.f32 %v3557, %v3666
    %v3673 = vadd.f32 %v3558, %v3669
    %v3674 = vld [vmem:[#allocation2 + $0x1c] sm:$0xf]
    %v3675 = vld [vmem:[#allocation2 + $0x3c] sm:$0xf]
    %v3676 = vld [vmem:[%s522] sm:$0xf]
    %v3677 = vld [vmem:[%s522 + $0x4] sm:$0xf]
    %v3678 = vld [vmem:[%s522 + $0x8] sm:$0xf]
    %v3679 = vld [vmem:[%s522 + $0xc] sm:$0xf]
    %v3680 = vld [vmem:[%s522 + $0x10] sm:$0xf]
    %v3681 = vld [vmem:[%s522 + $0x14] sm:$0xf]
    %v3682 = vld [vmem:[%s522 + $0x18] sm:$0xf]
    %v3683 = vld [vmem:[%s522 + $0x1c] sm:$0xf]
    %v3684 = vld [vmem:[%s522 + $0x20] sm:$0xf]
    %v3685 = vld [vmem:[%s522 + $0x24] sm:$0xf]
    %v3686 = vld [vmem:[%s522 + $0x28] sm:$0xf]
    %v3687 = vld [vmem:[%s522 + $0x2c] sm:$0xf]
    %v3688 = vld [vmem:[%s522 + $0x30] sm:$0xf]
    %v3689 = vld [vmem:[%s522 + $0x34] sm:$0xf]
    %v3690 = vld [vmem:[%s522 + $0x38] sm:$0xf]
    %v3691 = vld [vmem:[%s522 + $0x3c] sm:$0xf]
    %v3694 = vunpack.c.l.b16 %v3674
    %v3695 = vunpack.c.l.b16 %v3675
    %v3696 = vpack.c.b16 %v3695, %v3694
    %v3714 = vunpack.c.l.b16 %v3676
    %v3715 = vunpack.c.l.b16 %v3677
    %v3716 = vunpack.c.l.b16 %v3678
    %v3717 = vunpack.c.l.b16 %v3679
    %v3718 = vunpack.c.l.b16 %v3680
    %v3719 = vunpack.c.l.b16 %v3681
    %v3720 = vunpack.c.l.b16 %v3682
    %v3721 = vunpack.c.l.b16 %v3683
    %v3722 = vunpack.c.l.b16 %v3684
    %v3723 = vunpack.c.l.b16 %v3685
    %v3724 = vunpack.c.l.b16 %v3686
    %v3725 = vunpack.c.l.b16 %v3687
    %v3726 = vunpack.c.l.b16 %v3688
    %v3727 = vunpack.c.l.b16 %v3689
    %v3728 = vunpack.c.l.b16 %v3690
    %v3729 = vunpack.c.l.b16 %v3691
    %v3730 = vpack.c.b16 %v3715, %v3714
    %v3731 = vpack.c.b16 %v3717, %v3716
    %v3732 = vpack.c.b16 %v3719, %v3718
    %v3733 = vpack.c.b16 %v3721, %v3720
    %v3734 = vpack.c.b16 %v3723, %v3722
    %v3735 = vpack.c.b16 %v3725, %v3724
    %v3736 = vpack.c.b16 %v3727, %v3726
    %v3737 = vpack.c.b16 %v3729, %v3728
    %3746 = vmatprep.subr.bf16.mxu0 0
    %3747 = vmatpush1.bf16.msra.mxu0 %v3737
    %3748 = vmatprep.subr.bf16.mxu0 0
    %3749 = vmatpush1.bf16.msra.mxu0 %v3736
    %3750 = vmatprep.subr.bf16.mxu0 0
    %3751 = vmatpush1.bf16.msra.mxu0 %v3735
    %3752 = vmatprep.subr.bf16.mxu0 0
    %3753 = vmatpush1.bf16.msra.mxu0 %v3734
    %3754 = vmatprep.subr.bf16.mxu0 0
    %3755 = vmatpush1.bf16.msra.mxu0 %v3733
    %3756 = vmatprep.subr.bf16.mxu0 0
    %3757 = vmatpush1.bf16.msra.mxu0 %v3732
    %3758 = vmatprep.subr.bf16.mxu0 0
    %3759 = vmatpush1.bf16.msra.mxu0 %v3731
    %3760 = vmatprep.subr.bf16.mxu0 0
    %3761 = vmatpush1.bf16.msra.mxu0 %v3730
    %3762 = vmatprep.subr.bf16.mxu0 0
    %3763 = vmatpush2.bf16.msra.mxu0 0
    %3764 = vmatprep.subr.bf16.mxu0 0
    %3765 = vmatpush2.bf16.msra.mxu0 0
    %3766 = vmatprep.subr.bf16.mxu0 0
    %3767 = vmatpush2.bf16.msra.mxu0 0
    %3768 = vmatprep.subr.bf16.mxu0 0
    %3769 = vmatpush2.bf16.msra.mxu0 0
    %3770 = vmatprep.subr.bf16.mxu0 0
    %3771 = vmatpush2.bf16.msra.mxu0 0
    %3772 = vmatprep.subr.bf16.mxu0 0
    %3773 = vmatpush2.bf16.msra.mxu0 0
    %3774 = vmatprep.subr.bf16.mxu0 0
    %3775 = vmatpush2.bf16.msra.mxu0 0
    %3776 = vmatprep.subr.bf16.mxu0 0
    %3777 = vmatpush2.bf16.msra.mxu0 0
    %3778 = vmatprep.mubr.bf16.mxu0 0
    %3779 = vmatmul.mubr.bf16.gmra.mxu0 %v3696
    %v3780 = vpop.f32.mrf.mxu0
    %v3781 = vadd.f32 0.0, %v3780
    %v3782 = vpop.f32.mrf.mxu0
    %v3783 = vpop.f32.mrf.mxu0
    %v3784 = vadd.f32 0.0, %v3783
    %v3785 = vpop.f32.mrf.mxu0
    %3786 = vdwg.mxu0
    %v3787 = vsub.f32 0.0, %v3781
    %v3788 = vsub.f32 0.0, %v3784
    %v3789 = vadd.f32 %v3672, %v3787
    %v3790 = vadd.f32 %v3673, %v3788
    %v3791 = vld [vmem:[#allocation7 + $0x3] sm:$0x1]
    %v3793 = vlaneseq
    %v3794 = vshrl.u32 %v3793, 7
    %v3795 = vsub.s32 0, %v3794
    %v3796 = vrot.slane %v3791, %v3795
    %v3798 = vadd.f32 %v3789, %v3796
    %v3799 = vadd.f32 %v3790, %v3796
    %3800 = vst [vmem:[#allocation8 + $0x18] sm:$0xff] %v3798
    %3801 = vst [vmem:[#allocation8 + $0x58] sm:$0xff] %v3799
    %v3802 = vld [vmem:[#allocation2] sm:$0xf]
    %v3803 = vld [vmem:[#allocation2 + $0x20] sm:$0xf]
    %v3804 = vld [vmem:[%s522] sm:$0xf]
    %v3805 = vld [vmem:[%s522 + $0x4] sm:$0xf]
    %v3806 = vld [vmem:[%s522 + $0x8] sm:$0xf]
    %v3807 = vld [vmem:[%s522 + $0xc] sm:$0xf]
    %v3808 = vld [vmem:[%s522 + $0x10] sm:$0xf]
    %v3809 = vld [vmem:[%s522 + $0x14] sm:$0xf]
    %v3810 = vld [vmem:[%s522 + $0x18] sm:$0xf]
    %v3811 = vld [vmem:[%s522 + $0x1c] sm:$0xf]
    %v3812 = vld [vmem:[%s522 + $0x20] sm:$0xf]
    %v3813 = vld [vmem:[%s522 + $0x24] sm:$0xf]
    %v3814 = vld [vmem:[%s522 + $0x28] sm:$0xf]
    %v3815 = vld [vmem:[%s522 + $0x2c] sm:$0xf]
    %v3816 = vld [vmem:[%s522 + $0x30] sm:$0xf]
    %v3817 = vld [vmem:[%s522 + $0x34] sm:$0xf]
    %v3818 = vld [vmem:[%s522 + $0x38] sm:$0xf]
    %v3819 = vld [vmem:[%s522 + $0x3c] sm:$0xf]
    %v3820 = vld [vmem:[#allocation2 + $0x4] sm:$0xf]
    %v3821 = vld [vmem:[#allocation2 + $0x24] sm:$0xf]
    %v3822 = vld [vmem:[%s640] sm:$0xf]
    %v3823 = vld [vmem:[%s640 + $0x4] sm:$0xf]
    %v3824 = vld [vmem:[%s640 + $0x8] sm:$0xf]
    %v3825 = vld [vmem:[%s640 + $0xc] sm:$0xf]
    %v3826 = vld [vmem:[%s640 + $0x10] sm:$0xf]
    %v3827 = vld [vmem:[%s640 + $0x14] sm:$0xf]
    %v3828 = vld [vmem:[%s640 + $0x18] sm:$0xf]
    %v3829 = vld [vmem:[%s640 + $0x1c] sm:$0xf]
    %v3830 = vld [vmem:[%s640 + $0x20] sm:$0xf]
    %v3831 = vld [vmem:[%s640 + $0x24] sm:$0xf]
    %v3832 = vld [vmem:[%s640 + $0x28] sm:$0xf]
    %v3833 = vld [vmem:[%s640 + $0x2c] sm:$0xf]
    %v3834 = vld [vmem:[%s640 + $0x30] sm:$0xf]
    %v3835 = vld [vmem:[%s640 + $0x34] sm:$0xf]
    %v3836 = vld [vmem:[%s640 + $0x38] sm:$0xf]
    %v3837 = vld [vmem:[%s640 + $0x3c] sm:$0xf]
    %v3840 = vunpack.c.l.b16 %v3820
    %v3841 = vunpack.c.l.b16 %v3821
    %v3842 = vpack.c.b16 %v3841, %v3840
    %v3860 = vunpack.c.l.b16 %v3822
    %v3861 = vunpack.c.l.b16 %v3823
    %v3862 = vunpack.c.l.b16 %v3824
    %v3863 = vunpack.c.l.b16 %v3825
    %v3864 = vunpack.c.l.b16 %v3826
    %v3865 = vunpack.c.l.b16 %v3827
    %v3866 = vunpack.c.l.b16 %v3828
    %v3867 = vunpack.c.l.b16 %v3829
    %v3868 = vunpack.c.l.b16 %v3830
    %v3869 = vunpack.c.l.b16 %v3831
    %v3870 = vunpack.c.l.b16 %v3832
    %v3871 = vunpack.c.l.b16 %v3833
    %v3872 = vunpack.c.l.b16 %v3834
    %v3873 = vunpack.c.l.b16 %v3835
    %v3874 = vunpack.c.l.b16 %v3836
    %v3875 = vunpack.c.l.b16 %v3837
    %v3876 = vpack.c.b16 %v3861, %v3860
    %v3877 = vpack.c.b16 %v3863, %v3862
    %v3878 = vpack.c.b16 %v3865, %v3864
    %v3879 = vpack.c.b16 %v3867, %v3866
    %v3880 = vpack.c.b16 %v3869, %v3868
    %v3881 = vpack.c.b16 %v3871, %v3870
    %v3882 = vpack.c.b16 %v3873, %v3872
    %v3883 = vpack.c.b16 %v3875, %v3874
    %3892 = vmatprep.subr.bf16.mxu0 0
    %3893 = vmatpush1.bf16.msra.mxu0 %v3883
    %3894 = vmatprep.subr.bf16.mxu0 0
    %3895 = vmatpush1.bf16.msra.mxu0 %v3882
    %3896 = vmatprep.subr.bf16.mxu0 0
    %3897 = vmatpush1.bf16.msra.mxu0 %v3881
    %3898 = vmatprep.subr.bf16.mxu0 0
    %3899 = vmatpush1.bf16.msra.mxu0 %v3880
    %3900 = vmatprep.subr.bf16.mxu0 0
    %3901 = vmatpush1.bf16.msra.mxu0 %v3879
    %3902 = vmatprep.subr.bf16.mxu0 0
    %3903 = vmatpush1.bf16.msra.mxu0 %v3878
    %3904 = vmatprep.subr.bf16.mxu0 0
    %3905 = vmatpush1.bf16.msra.mxu0 %v3877
    %3906 = vmatprep.subr.bf16.mxu0 0
    %3907 = vmatpush1.bf16.msra.mxu0 %v3876
    %3908 = vmatprep.subr.bf16.mxu0 0
    %3909 = vmatpush2.bf16.msra.mxu0 0
    %3910 = vmatprep.subr.bf16.mxu0 0
    %3911 = vmatpush2.bf16.msra.mxu0 0
    %3912 = vmatprep.subr.bf16.mxu0 0
    %3913 = vmatpush2.bf16.msra.mxu0 0
    %3914 = vmatprep.subr.bf16.mxu0 0
    %3915 = vmatpush2.bf16.msra.mxu0 0
    %3916 = vmatprep.subr.bf16.mxu0 0
    %3917 = vmatpush2.bf16.msra.mxu0 0
    %3918 = vmatprep.subr.bf16.mxu0 0
    %3919 = vmatpush2.bf16.msra.mxu0 0
    %3920 = vmatprep.subr.bf16.mxu0 0
    %3921 = vmatpush2.bf16.msra.mxu0 0
    %3922 = vmatprep.subr.bf16.mxu0 0
    %3923 = vmatpush2.bf16.msra.mxu0 0
    %3924 = vmatprep.mubr.bf16.mxu0 0
    %3925 = vmatmul.mubr.bf16.gmra.mxu0 %v3842
    %v3926 = vpop.f32.mrf.mxu0
    %v3927 = vadd.f32 0.0, %v3926
    %v3928 = vpop.f32.mrf.mxu0
    %v3929 = vpop.f32.mrf.mxu0
    %v3930 = vadd.f32 0.0, %v3929
    %v3931 = vpop.f32.mrf.mxu0
    %3932 = vdwg.mxu0
    %v3933 = vsub.f32 0.0, %v3927
    %v3934 = vsub.f32 0.0, %v3930
    %v3937 = vunpack.c.l.b16 %v3802
    %v3938 = vunpack.c.l.b16 %v3803
    %v3939 = vpack.c.b16 %v3938, %v3937
    %v3957 = vunpack.c.l.b16 %v3804
    %v3958 = vunpack.c.l.b16 %v3805
    %v3959 = vunpack.c.l.b16 %v3806
    %v3960 = vunpack.c.l.b16 %v3807
    %v3961 = vunpack.c.l.b16 %v3808
    %v3962 = vunpack.c.l.b16 %v3809
    %v3963 = vunpack.c.l.b16 %v3810
    %v3964 = vunpack.c.l.b16 %v3811
    %v3965 = vunpack.c.l.b16 %v3812
    %v3966 = vunpack.c.l.b16 %v3813
    %v3967 = vunpack.c.l.b16 %v3814
    %v3968 = vunpack.c.l.b16 %v3815
    %v3969 = vunpack.c.l.b16 %v3816
    %v3970 = vunpack.c.l.b16 %v3817
    %v3971 = vunpack.c.l.b16 %v3818
    %v3972 = vunpack.c.l.b16 %v3819
    %v3973 = vpack.c.b16 %v3958, %v3957
    %v3974 = vpack.c.b16 %v3960, %v3959
    %v3975 = vpack.c.b16 %v3962, %v3961
    %v3976 = vpack.c.b16 %v3964, %v3963
    %v3977 = vpack.c.b16 %v3966, %v3965
    %v3978 = vpack.c.b16 %v3968, %v3967
    %v3979 = vpack.c.b16 %v3970, %v3969
    %v3980 = vpack.c.b16 %v3972, %v3971
    %3989 = vmatprep.subr.bf16.mxu0 0
    %3990 = vmatpush1.bf16.msra.mxu0 %v3980
    %3991 = vmatprep.subr.bf16.mxu0 0
    %3992 = vmatpush1.bf16.msra.mxu0 %v3979
    %3993 = vmatprep.subr.bf16.mxu0 0
    %3994 = vmatpush1.bf16.msra.mxu0 %v3978
    %3995 = vmatprep.subr.bf16.mxu0 0
    %3996 = vmatpush1.bf16.msra.mxu0 %v3977
    %3997 = vmatprep.subr.bf16.mxu0 0
    %3998 = vmatpush1.bf16.msra.mxu0 %v3976
    %3999 = vmatprep.subr.bf16.mxu0 0
    %4000 = vmatpush1.bf16.msra.mxu0 %v3975
    %4001 = vmatprep.subr.bf16.mxu0 0
    %4002 = vmatpush1.bf16.msra.mxu0 %v3974
    %4003 = vmatprep.subr.bf16.mxu0 0
    %4004 = vmatpush1.bf16.msra.mxu0 %v3973
    %4005 = vmatprep.subr.bf16.mxu0 0
    %4006 = vmatpush2.bf16.msra.mxu0 0
    %4007 = vmatprep.subr.bf16.mxu0 0
    %4008 = vmatpush2.bf16.msra.mxu0 0
    %4009 = vmatprep.subr.bf16.mxu0 0
    %4010 = vmatpush2.bf16.msra.mxu0 0
    %4011 = vmatprep.subr.bf16.mxu0 0
    %4012 = vmatpush2.bf16.msra.mxu0 0
    %4013 = vmatprep.subr.bf16.mxu0 0
    %4014 = vmatpush2.bf16.msra.mxu0 0
    %4015 = vmatprep.subr.bf16.mxu0 0
    %4016 = vmatpush2.bf16.msra.mxu0 0
    %4017 = vmatprep.subr.bf16.mxu0 0
    %4018 = vmatpush2.bf16.msra.mxu0 0
    %4019 = vmatprep.subr.bf16.mxu0 0
    %4020 = vmatpush2.bf16.msra.mxu0 0
    %4021 = vmatprep.mubr.bf16.mxu0 0
    %4022 = vmatmul.mubr.bf16.gmra.mxu0 %v3939
    %v4023 = vpop.f32.mrf.mxu0
    %v4024 = vadd.f32 %v3933, %v4023
    %v4025 = vpop.f32.mrf.mxu0
    %v4026 = vpop.f32.mrf.mxu0
    %v4027 = vadd.f32 %v3934, %v4026
    %v4028 = vpop.f32.mrf.mxu0
    %4029 = vdwg.mxu0
    %v4030 = vld [vmem:[#allocation2 + $0x8] sm:$0xf]
    %v4031 = vld [vmem:[#allocation2 + $0x28] sm:$0xf]
    %v4032 = vld [vmem:[%s758] sm:$0xf]
    %v4033 = vld [vmem:[%s758 + $0x4] sm:$0xf]
    %v4034 = vld [vmem:[%s758 + $0x8] sm:$0xf]
    %v4035 = vld [vmem:[%s758 + $0xc] sm:$0xf]
    %v4036 = vld [vmem:[%s758 + $0x10] sm:$0xf]
    %v4037 = vld [vmem:[%s758 + $0x14] sm:$0xf]
    %v4038 = vld [vmem:[%s758 + $0x18] sm:$0xf]
    %v4039 = vld [vmem:[%s758 + $0x1c] sm:$0xf]
    %v4040 = vld [vmem:[%s758 + $0x20] sm:$0xf]
    %v4041 = vld [vmem:[%s758 + $0x24] sm:$0xf]
    %v4042 = vld [vmem:[%s758 + $0x28] sm:$0xf]
    %v4043 = vld [vmem:[%s758 + $0x2c] sm:$0xf]
    %v4044 = vld [vmem:[%s758 + $0x30] sm:$0xf]
    %v4045 = vld [vmem:[%s758 + $0x34] sm:$0xf]
    %v4046 = vld [vmem:[%s758 + $0x38] sm:$0xf]
    %v4047 = vld [vmem:[%s758 + $0x3c] sm:$0xf]
    %v4050 = vunpack.c.l.b16 %v4030
    %v4051 = vunpack.c.l.b16 %v4031
    %v4052 = vpack.c.b16 %v4051, %v4050
    %v4070 = vunpack.c.l.b16 %v4032
    %v4071 = vunpack.c.l.b16 %v4033
    %v4072 = vunpack.c.l.b16 %v4034
    %v4073 = vunpack.c.l.b16 %v4035
    %v4074 = vunpack.c.l.b16 %v4036
    %v4075 = vunpack.c.l.b16 %v4037
    %v4076 = vunpack.c.l.b16 %v4038
    %v4077 = vunpack.c.l.b16 %v4039
    %v4078 = vunpack.c.l.b16 %v4040
    %v4079 = vunpack.c.l.b16 %v4041
    %v4080 = vunpack.c.l.b16 %v4042
    %v4081 = vunpack.c.l.b16 %v4043
    %v4082 = vunpack.c.l.b16 %v4044
    %v4083 = vunpack.c.l.b16 %v4045
    %v4084 = vunpack.c.l.b16 %v4046
    %v4085 = vunpack.c.l.b16 %v4047
    %v4086 = vpack.c.b16 %v4071, %v4070
    %v4087 = vpack.c.b16 %v4073, %v4072
    %v4088 = vpack.c.b16 %v4075, %v4074
    %v4089 = vpack.c.b16 %v4077, %v4076
    %v4090 = vpack.c.b16 %v4079, %v4078
    %v4091 = vpack.c.b16 %v4081, %v4080
    %v4092 = vpack.c.b16 %v4083, %v4082
    %v4093 = vpack.c.b16 %v4085, %v4084
    %4102 = vmatprep.subr.bf16.mxu0 0
    %4103 = vmatpush1.bf16.msra.mxu0 %v4093
    %4104 = vmatprep.subr.bf16.mxu0 0
    %4105 = vmatpush1.bf16.msra.mxu0 %v4092
    %4106 = vmatprep.subr.bf16.mxu0 0
    %4107 = vmatpush1.bf16.msra.mxu0 %v4091
    %4108 = vmatprep.subr.bf16.mxu0 0
    %4109 = vmatpush1.bf16.msra.mxu0 %v4090
    %4110 = vmatprep.subr.bf16.mxu0 0
    %4111 = vmatpush1.bf16.msra.mxu0 %v4089
    %4112 = vmatprep.subr.bf16.mxu0 0
    %4113 = vmatpush1.bf16.msra.mxu0 %v4088
    %4114 = vmatprep.subr.bf16.mxu0 0
    %4115 = vmatpush1.bf16.msra.mxu0 %v4087
    %4116 = vmatprep.subr.bf16.mxu0 0
    %4117 = vmatpush1.bf16.msra.mxu0 %v4086
    %4118 = vmatprep.subr.bf16.mxu0 0
    %4119 = vmatpush2.bf16.msra.mxu0 0
    %4120 = vmatprep.subr.bf16.mxu0 0
    %4121 = vmatpush2.bf16.msra.mxu0 0
    %4122 = vmatprep.subr.bf16.mxu0 0
    %4123 = vmatpush2.bf16.msra.mxu0 0
    %4124 = vmatprep.subr.bf16.mxu0 0
    %4125 = vmatpush2.bf16.msra.mxu0 0
    %4126 = vmatprep.subr.bf16.mxu0 0
    %4127 = vmatpush2.bf16.msra.mxu0 0
    %4128 = vmatprep.subr.bf16.mxu0 0
    %4129 = vmatpush2.bf16.msra.mxu0 0
    %4130 = vmatprep.subr.bf16.mxu0 0
    %4131 = vmatpush2.bf16.msra.mxu0 0
    %4132 = vmatprep.subr.bf16.mxu0 0
    %4133 = vmatpush2.bf16.msra.mxu0 0
    %4134 = vmatprep.mubr.bf16.mxu0 0
    %4135 = vmatmul.mubr.bf16.gmra.mxu0 %v4052
    %v4136 = vpop.f32.mrf.mxu0
    %v4137 = vadd.f32 0.0, %v4136
    %v4138 = vpop.f32.mrf.mxu0
    %v4139 = vpop.f32.mrf.mxu0
    %v4140 = vadd.f32 0.0, %v4139
    %v4141 = vpop.f32.mrf.mxu0
    %4142 = vdwg.mxu0
    %v4143 = vsub.f32 0.0, %v4137
    %v4144 = vsub.f32 0.0, %v4140
    %v4145 = vadd.f32 %v4024, %v4143
    %v4146 = vadd.f32 %v4027, %v4144
    %v4147 = vld [vmem:[#allocation2 + $0xc] sm:$0xf]
    %v4148 = vld [vmem:[#allocation2 + $0x2c] sm:$0xf]
    %v4149 = vld [vmem:[%s876] sm:$0xf]
    %v4150 = vld [vmem:[%s876 + $0x4] sm:$0xf]
    %v4151 = vld [vmem:[%s876 + $0x8] sm:$0xf]
    %v4152 = vld [vmem:[%s876 + $0xc] sm:$0xf]
    %v4153 = vld [vmem:[%s876 + $0x10] sm:$0xf]
    %v4154 = vld [vmem:[%s876 + $0x14] sm:$0xf]
    %v4155 = vld [vmem:[%s876 + $0x18] sm:$0xf]
    %v4156 = vld [vmem:[%s876 + $0x1c] sm:$0xf]
    %v4157 = vld [vmem:[%s876 + $0x20] sm:$0xf]
    %v4158 = vld [vmem:[%s876 + $0x24] sm:$0xf]
    %v4159 = vld [vmem:[%s876 + $0x28] sm:$0xf]
    %v4160 = vld [vmem:[%s876 + $0x2c] sm:$0xf]
    %v4161 = vld [vmem:[%s876 + $0x30] sm:$0xf]
    %v4162 = vld [vmem:[%s876 + $0x34] sm:$0xf]
    %v4163 = vld [vmem:[%s876 + $0x38] sm:$0xf]
    %v4164 = vld [vmem:[%s876 + $0x3c] sm:$0xf]
    %v4167 = vunpack.c.l.b16 %v4147
    %v4168 = vunpack.c.l.b16 %v4148
    %v4169 = vpack.c.b16 %v4168, %v4167
    %v4187 = vunpack.c.l.b16 %v4149
    %v4188 = vunpack.c.l.b16 %v4150
    %v4189 = vunpack.c.l.b16 %v4151
    %v4190 = vunpack.c.l.b16 %v4152
    %v4191 = vunpack.c.l.b16 %v4153
    %v4192 = vunpack.c.l.b16 %v4154
    %v4193 = vunpack.c.l.b16 %v4155
    %v4194 = vunpack.c.l.b16 %v4156
    %v4195 = vunpack.c.l.b16 %v4157
    %v4196 = vunpack.c.l.b16 %v4158
    %v4197 = vunpack.c.l.b16 %v4159
    %v4198 = vunpack.c.l.b16 %v4160
    %v4199 = vunpack.c.l.b16 %v4161
    %v4200 = vunpack.c.l.b16 %v4162
    %v4201 = vunpack.c.l.b16 %v4163
    %v4202 = vunpack.c.l.b16 %v4164
    %v4203 = vpack.c.b16 %v4188, %v4187
    %v4204 = vpack.c.b16 %v4190, %v4189
    %v4205 = vpack.c.b16 %v4192, %v4191
    %v4206 = vpack.c.b16 %v4194, %v4193
    %v4207 = vpack.c.b16 %v4196, %v4195
    %v4208 = vpack.c.b16 %v4198, %v4197
    %v4209 = vpack.c.b16 %v4200, %v4199
    %v4210 = vpack.c.b16 %v4202, %v4201
    %4219 = vmatprep.subr.bf16.mxu0 0
    %4220 = vmatpush1.bf16.msra.mxu0 %v4210
    %4221 = vmatprep.subr.bf16.mxu0 0
    %4222 = vmatpush1.bf16.msra.mxu0 %v4209
    %4223 = vmatprep.subr.bf16.mxu0 0
    %4224 = vmatpush1.bf16.msra.mxu0 %v4208
    %4225 = vmatprep.subr.bf16.mxu0 0
    %4226 = vmatpush1.bf16.msra.mxu0 %v4207
    %4227 = vmatprep.subr.bf16.mxu0 0
    %4228 = vmatpush1.bf16.msra.mxu0 %v4206
    %4229 = vmatprep.subr.bf16.mxu0 0
    %4230 = vmatpush1.bf16.msra.mxu0 %v4205
    %4231 = vmatprep.subr.bf16.mxu0 0
    %4232 = vmatpush1.bf16.msra.mxu0 %v4204
    %4233 = vmatprep.subr.bf16.mxu0 0
    %4234 = vmatpush1.bf16.msra.mxu0 %v4203
    %4235 = vmatprep.subr.bf16.mxu0 0
    %4236 = vmatpush2.bf16.msra.mxu0 0
    %4237 = vmatprep.subr.bf16.mxu0 0
    %4238 = vmatpush2.bf16.msra.mxu0 0
    %4239 = vmatprep.subr.bf16.mxu0 0
    %4240 = vmatpush2.bf16.msra.mxu0 0
    %4241 = vmatprep.subr.bf16.mxu0 0
    %4242 = vmatpush2.bf16.msra.mxu0 0
    %4243 = vmatprep.subr.bf16.mxu0 0
    %4244 = vmatpush2.bf16.msra.mxu0 0
    %4245 = vmatprep.subr.bf16.mxu0 0
    %4246 = vmatpush2.bf16.msra.mxu0 0
    %4247 = vmatprep.subr.bf16.mxu0 0
    %4248 = vmatpush2.bf16.msra.mxu0 0
    %4249 = vmatprep.subr.bf16.mxu0 0
    %4250 = vmatpush2.bf16.msra.mxu0 0
    %4251 = vmatprep.mubr.bf16.mxu0 0
    %4252 = vmatmul.mubr.bf16.gmra.mxu0 %v4169
    %v4253 = vpop.f32.mrf.mxu0
    %v4254 = vadd.f32 0.0, %v4253
    %v4255 = vpop.f32.mrf.mxu0
    %v4256 = vpop.f32.mrf.mxu0
    %v4257 = vadd.f32 0.0, %v4256
    %v4258 = vpop.f32.mrf.mxu0
    %4259 = vdwg.mxu0
    %v4260 = vsub.f32 0.0, %v4254
    %v4261 = vsub.f32 0.0, %v4257
    %v4262 = vadd.f32 %v4145, %v4260
    %v4263 = vadd.f32 %v4146, %v4261
    %v4264 = vld [vmem:[#allocation2 + $0x10] sm:$0xf]
    %v4265 = vld [vmem:[#allocation2 + $0x30] sm:$0xf]
    %v4266 = vld [vmem:[#allocation5] sm:$0xf]
    %v4267 = vld [vmem:[#allocation5 + $0x4] sm:$0xf]
    %v4268 = vld [vmem:[#allocation5 + $0x8] sm:$0xf]
    %v4269 = vld [vmem:[#allocation5 + $0xc] sm:$0xf]
    %v4270 = vld [vmem:[#allocation5 + $0x10] sm:$0xf]
    %v4271 = vld [vmem:[#allocation5 + $0x14] sm:$0xf]
    %v4272 = vld [vmem:[#allocation5 + $0x18] sm:$0xf]
    %v4273 = vld [vmem:[#allocation5 + $0x1c] sm:$0xf]
    %v4274 = vld [vmem:[#allocation5 + $0x20] sm:$0xf]
    %v4275 = vld [vmem:[#allocation5 + $0x24] sm:$0xf]
    %v4276 = vld [vmem:[#allocation5 + $0x28] sm:$0xf]
    %v4277 = vld [vmem:[#allocation5 + $0x2c] sm:$0xf]
    %v4278 = vld [vmem:[#allocation5 + $0x30] sm:$0xf]
    %v4279 = vld [vmem:[#allocation5 + $0x34] sm:$0xf]
    %v4280 = vld [vmem:[#allocation5 + $0x38] sm:$0xf]
    %v4281 = vld [vmem:[#allocation5 + $0x3c] sm:$0xf]
    %v4284 = vunpack.c.l.b16 %v4264
    %v4285 = vunpack.c.l.b16 %v4265
    %v4286 = vpack.c.b16 %v4285, %v4284
    %v4304 = vunpack.c.l.b16 %v4266
    %v4305 = vunpack.c.l.b16 %v4267
    %v4306 = vunpack.c.l.b16 %v4268
    %v4307 = vunpack.c.l.b16 %v4269
    %v4308 = vunpack.c.l.b16 %v4270
    %v4309 = vunpack.c.l.b16 %v4271
    %v4310 = vunpack.c.l.b16 %v4272
    %v4311 = vunpack.c.l.b16 %v4273
    %v4312 = vunpack.c.l.b16 %v4274
    %v4313 = vunpack.c.l.b16 %v4275
    %v4314 = vunpack.c.l.b16 %v4276
    %v4315 = vunpack.c.l.b16 %v4277
    %v4316 = vunpack.c.l.b16 %v4278
    %v4317 = vunpack.c.l.b16 %v4279
    %v4318 = vunpack.c.l.b16 %v4280
    %v4319 = vunpack.c.l.b16 %v4281
    %v4320 = vpack.c.b16 %v4305, %v4304
    %v4321 = vpack.c.b16 %v4307, %v4306
    %v4322 = vpack.c.b16 %v4309, %v4308
    %v4323 = vpack.c.b16 %v4311, %v4310
    %v4324 = vpack.c.b16 %v4313, %v4312
    %v4325 = vpack.c.b16 %v4315, %v4314
    %v4326 = vpack.c.b16 %v4317, %v4316
    %v4327 = vpack.c.b16 %v4319, %v4318
    %4336 = vmatprep.subr.bf16.mxu0 0
    %4337 = vmatpush1.bf16.msra.mxu0 %v4327
    %4338 = vmatprep.subr.bf16.mxu0 0
    %4339 = vmatpush1.bf16.msra.mxu0 %v4326
    %4340 = vmatprep.subr.bf16.mxu0 0
    %4341 = vmatpush1.bf16.msra.mxu0 %v4325
    %4342 = vmatprep.subr.bf16.mxu0 0
    %4343 = vmatpush1.bf16.msra.mxu0 %v4324
    %4344 = vmatprep.subr.bf16.mxu0 0
    %4345 = vmatpush1.bf16.msra.mxu0 %v4323
    %4346 = vmatprep.subr.bf16.mxu0 0
    %4347 = vmatpush1.bf16.msra.mxu0 %v4322
    %4348 = vmatprep.subr.bf16.mxu0 0
    %4349 = vmatpush1.bf16.msra.mxu0 %v4321
    %4350 = vmatprep.subr.bf16.mxu0 0
    %4351 = vmatpush1.bf16.msra.mxu0 %v4320
    %4352 = vmatprep.subr.bf16.mxu0 0
    %4353 = vmatpush2.bf16.msra.mxu0 0
    %4354 = vmatprep.subr.bf16.mxu0 0
    %4355 = vmatpush2.bf16.msra.mxu0 0
    %4356 = vmatprep.subr.bf16.mxu0 0
    %4357 = vmatpush2.bf16.msra.mxu0 0
    %4358 = vmatprep.subr.bf16.mxu0 0
    %4359 = vmatpush2.bf16.msra.mxu0 0
    %4360 = vmatprep.subr.bf16.mxu0 0
    %4361 = vmatpush2.bf16.msra.mxu0 0
    %4362 = vmatprep.subr.bf16.mxu0 0
    %4363 = vmatpush2.bf16.msra.mxu0 0
    %4364 = vmatprep.subr.bf16.mxu0 0
    %4365 = vmatpush2.bf16.msra.mxu0 0
    %4366 = vmatprep.subr.bf16.mxu0 0
    %4367 = vmatpush2.bf16.msra.mxu0 0
    %4368 = vmatprep.mubr.bf16.mxu0 0
    %4369 = vmatmul.mubr.bf16.gmra.mxu0 %v4286
    %v4370 = vpop.f32.mrf.mxu0
    %v4371 = vadd.f32 0.0, %v4370
    %v4372 = vpop.f32.mrf.mxu0
    %v4373 = vpop.f32.mrf.mxu0
    %v4374 = vadd.f32 0.0, %v4373
    %v4375 = vpop.f32.mrf.mxu0
    %4376 = vdwg.mxu0
    %v4377 = vadd.f32 %v4262, %v4371
    %v4378 = vadd.f32 %v4263, %v4374
    %v4379 = vld [vmem:[#allocation2 + $0x14] sm:$0xf]
    %v4380 = vld [vmem:[#allocation2 + $0x34] sm:$0xf]
    %v4381 = vld [vmem:[%s75] sm:$0xf]
    %v4382 = vld [vmem:[%s75 + $0x4] sm:$0xf]
    %v4383 = vld [vmem:[%s75 + $0x8] sm:$0xf]
    %v4384 = vld [vmem:[%s75 + $0xc] sm:$0xf]
    %v4385 = vld [vmem:[%s75 + $0x10] sm:$0xf]
    %v4386 = vld [vmem:[%s75 + $0x14] sm:$0xf]
    %v4387 = vld [vmem:[%s75 + $0x18] sm:$0xf]
    %v4388 = vld [vmem:[%s75 + $0x1c] sm:$0xf]
    %v4389 = vld [vmem:[%s75 + $0x20] sm:$0xf]
    %v4390 = vld [vmem:[%s75 + $0x24] sm:$0xf]
    %v4391 = vld [vmem:[%s75 + $0x28] sm:$0xf]
    %v4392 = vld [vmem:[%s75 + $0x2c] sm:$0xf]
    %v4393 = vld [vmem:[%s75 + $0x30] sm:$0xf]
    %v4394 = vld [vmem:[%s75 + $0x34] sm:$0xf]
    %v4395 = vld [vmem:[%s75 + $0x38] sm:$0xf]
    %v4396 = vld [vmem:[%s75 + $0x3c] sm:$0xf]
    %v4399 = vunpack.c.l.b16 %v4379
    %v4400 = vunpack.c.l.b16 %v4380
    %v4401 = vpack.c.b16 %v4400, %v4399
    %v4419 = vunpack.c.l.b16 %v4381
    %v4420 = vunpack.c.l.b16 %v4382
    %v4421 = vunpack.c.l.b16 %v4383
    %v4422 = vunpack.c.l.b16 %v4384
    %v4423 = vunpack.c.l.b16 %v4385
    %v4424 = vunpack.c.l.b16 %v4386
    %v4425 = vunpack.c.l.b16 %v4387
    %v4426 = vunpack.c.l.b16 %v4388
    %v4427 = vunpack.c.l.b16 %v4389
    %v4428 = vunpack.c.l.b16 %v4390
    %v4429 = vunpack.c.l.b16 %v4391
    %v4430 = vunpack.c.l.b16 %v4392
    %v4431 = vunpack.c.l.b16 %v4393
    %v4432 = vunpack.c.l.b16 %v4394
    %v4433 = vunpack.c.l.b16 %v4395
    %v4434 = vunpack.c.l.b16 %v4396
    %v4435 = vpack.c.b16 %v4420, %v4419
    %v4436 = vpack.c.b16 %v4422, %v4421
    %v4437 = vpack.c.b16 %v4424, %v4423
    %v4438 = vpack.c.b16 %v4426, %v4425
    %v4439 = vpack.c.b16 %v4428, %v4427
    %v4440 = vpack.c.b16 %v4430, %v4429
    %v4441 = vpack.c.b16 %v4432, %v4431
    %v4442 = vpack.c.b16 %v4434, %v4433
    %4451 = vmatprep.subr.bf16.mxu0 0
    %4452 = vmatpush1.bf16.msra.mxu0 %v4442
    %4453 = vmatprep.subr.bf16.mxu0 0
    %4454 = vmatpush1.bf16.msra.mxu0 %v4441
    %4455 = vmatprep.subr.bf16.mxu0 0
    %4456 = vmatpush1.bf16.msra.mxu0 %v4440
    %4457 = vmatprep.subr.bf16.mxu0 0
    %4458 = vmatpush1.bf16.msra.mxu0 %v4439
    %4459 = vmatprep.subr.bf16.mxu0 0
    %4460 = vmatpush1.bf16.msra.mxu0 %v4438
    %4461 = vmatprep.subr.bf16.mxu0 0
    %4462 = vmatpush1.bf16.msra.mxu0 %v4437
    %4463 = vmatprep.subr.bf16.mxu0 0
    %4464 = vmatpush1.bf16.msra.mxu0 %v4436
    %4465 = vmatprep.subr.bf16.mxu0 0
    %4466 = vmatpush1.bf16.msra.mxu0 %v4435
    %4467 = vmatprep.subr.bf16.mxu0 0
    %4468 = vmatpush2.bf16.msra.mxu0 0
    %4469 = vmatprep.subr.bf16.mxu0 0
    %4470 = vmatpush2.bf16.msra.mxu0 0
    %4471 = vmatprep.subr.bf16.mxu0 0
    %4472 = vmatpush2.bf16.msra.mxu0 0
    %4473 = vmatprep.subr.bf16.mxu0 0
    %4474 = vmatpush2.bf16.msra.mxu0 0
    %4475 = vmatprep.subr.bf16.mxu0 0
    %4476 = vmatpush2.bf16.msra.mxu0 0
    %4477 = vmatprep.subr.bf16.mxu0 0
    %4478 = vmatpush2.bf16.msra.mxu0 0
    %4479 = vmatprep.subr.bf16.mxu0 0
    %4480 = vmatpush2.bf16.msra.mxu0 0
    %4481 = vmatprep.subr.bf16.mxu0 0
    %4482 = vmatpush2.bf16.msra.mxu0 0
    %4483 = vmatprep.mubr.bf16.mxu0 0
    %4484 = vmatmul.mubr.bf16.gmra.mxu0 %v4401
    %v4485 = vpop.f32.mrf.mxu0
    %v4486 = vadd.f32 0.0, %v4485
    %v4487 = vpop.f32.mrf.mxu0
    %v4488 = vpop.f32.mrf.mxu0
    %v4489 = vadd.f32 0.0, %v4488
    %v4490 = vpop.f32.mrf.mxu0
    %4491 = vdwg.mxu0
    %v4492 = vadd.f32 %v4377, %v4486
    %v4493 = vadd.f32 %v4378, %v4489
    %v4494 = vld [vmem:[#allocation2 + $0x18] sm:$0xf]
    %v4495 = vld [vmem:[#allocation2 + $0x38] sm:$0xf]
    %v4496 = vld [vmem:[%s286] sm:$0xf]
    %v4497 = vld [vmem:[%s286 + $0x4] sm:$0xf]
    %v4498 = vld [vmem:[%s286 + $0x8] sm:$0xf]
    %v4499 = vld [vmem:[%s286 + $0xc] sm:$0xf]
    %v4500 = vld [vmem:[%s286 + $0x10] sm:$0xf]
    %v4501 = vld [vmem:[%s286 + $0x14] sm:$0xf]
    %v4502 = vld [vmem:[%s286 + $0x18] sm:$0xf]
    %v4503 = vld [vmem:[%s286 + $0x1c] sm:$0xf]
    %v4504 = vld [vmem:[%s286 + $0x20] sm:$0xf]
    %v4505 = vld [vmem:[%s286 + $0x24] sm:$0xf]
    %v4506 = vld [vmem:[%s286 + $0x28] sm:$0xf]
    %v4507 = vld [vmem:[%s286 + $0x2c] sm:$0xf]
    %v4508 = vld [vmem:[%s286 + $0x30] sm:$0xf]
    %v4509 = vld [vmem:[%s286 + $0x34] sm:$0xf]
    %v4510 = vld [vmem:[%s286 + $0x38] sm:$0xf]
    %v4511 = vld [vmem:[%s286 + $0x3c] sm:$0xf]
    %v4514 = vunpack.c.l.b16 %v4494
    %v4515 = vunpack.c.l.b16 %v4495
    %v4516 = vpack.c.b16 %v4515, %v4514
    %v4534 = vunpack.c.l.b16 %v4496
    %v4535 = vunpack.c.l.b16 %v4497
    %v4536 = vunpack.c.l.b16 %v4498
    %v4537 = vunpack.c.l.b16 %v4499
    %v4538 = vunpack.c.l.b16 %v4500
    %v4539 = vunpack.c.l.b16 %v4501
    %v4540 = vunpack.c.l.b16 %v4502
    %v4541 = vunpack.c.l.b16 %v4503
    %v4542 = vunpack.c.l.b16 %v4504
    %v4543 = vunpack.c.l.b16 %v4505
    %v4544 = vunpack.c.l.b16 %v4506
    %v4545 = vunpack.c.l.b16 %v4507
    %v4546 = vunpack.c.l.b16 %v4508
    %v4547 = vunpack.c.l.b16 %v4509
    %v4548 = vunpack.c.l.b16 %v4510
    %v4549 = vunpack.c.l.b16 %v4511
    %v4550 = vpack.c.b16 %v4535, %v4534
    %v4551 = vpack.c.b16 %v4537, %v4536
    %v4552 = vpack.c.b16 %v4539, %v4538
    %v4553 = vpack.c.b16 %v4541, %v4540
    %v4554 = vpack.c.b16 %v4543, %v4542
    %v4555 = vpack.c.b16 %v4545, %v4544
    %v4556 = vpack.c.b16 %v4547, %v4546
    %v4557 = vpack.c.b16 %v4549, %v4548
    %4566 = vmatprep.subr.bf16.mxu0 0
    %4567 = vmatpush1.bf16.msra.mxu0 %v4557
    %4568 = vmatprep.subr.bf16.mxu0 0
    %4569 = vmatpush1.bf16.msra.mxu0 %v4556
    %4570 = vmatprep.subr.bf16.mxu0 0
    %4571 = vmatpush1.bf16.msra.mxu0 %v4555
    %4572 = vmatprep.subr.bf16.mxu0 0
    %4573 = vmatpush1.bf16.msra.mxu0 %v4554
    %4574 = vmatprep.subr.bf16.mxu0 0
    %4575 = vmatpush1.bf16.msra.mxu0 %v4553
    %4576 = vmatprep.subr.bf16.mxu0 0
    %4577 = vmatpush1.bf16.msra.mxu0 %v4552
    %4578 = vmatprep.subr.bf16.mxu0 0
    %4579 = vmatpush1.bf16.msra.mxu0 %v4551
    %4580 = vmatprep.subr.bf16.mxu0 0
    %4581 = vmatpush1.bf16.msra.mxu0 %v4550
    %4582 = vmatprep.subr.bf16.mxu0 0
    %4583 = vmatpush2.bf16.msra.mxu0 0
    %4584 = vmatprep.subr.bf16.mxu0 0
    %4585 = vmatpush2.bf16.msra.mxu0 0
    %4586 = vmatprep.subr.bf16.mxu0 0
    %4587 = vmatpush2.bf16.msra.mxu0 0
    %4588 = vmatprep.subr.bf16.mxu0 0
    %4589 = vmatpush2.bf16.msra.mxu0 0
    %4590 = vmatprep.subr.bf16.mxu0 0
    %4591 = vmatpush2.bf16.msra.mxu0 0
    %4592 = vmatprep.subr.bf16.mxu0 0
    %4593 = vmatpush2.bf16.msra.mxu0 0
    %4594 = vmatprep.subr.bf16.mxu0 0
    %4595 = vmatpush2.bf16.msra.mxu0 0
    %4596 = vmatprep.subr.bf16.mxu0 0
    %4597 = vmatpush2.bf16.msra.mxu0 0
    %4598 = vmatprep.mubr.bf16.mxu0 0
    %4599 = vmatmul.mubr.bf16.gmra.mxu0 %v4516
    %v4600 = vpop.f32.mrf.mxu0
    %v4601 = vadd.f32 0.0, %v4600
    %v4602 = vpop.f32.mrf.mxu0
    %v4603 = vpop.f32.mrf.mxu0
    %v4604 = vadd.f32 0.0, %v4603
    %v4605 = vpop.f32.mrf.mxu0
    %4606 = vdwg.mxu0
    %v4607 = vadd.f32 %v4492, %v4601
    %v4608 = vadd.f32 %v4493, %v4604
    %v4609 = vld [vmem:[#allocation2 + $0x1c] sm:$0xf]
    %v4610 = vld [vmem:[#allocation2 + $0x3c] sm:$0xf]
    %v4611 = vld [vmem:[%s404] sm:$0xf]
    %v4612 = vld [vmem:[%s404 + $0x4] sm:$0xf]
    %v4613 = vld [vmem:[%s404 + $0x8] sm:$0xf]
    %v4614 = vld [vmem:[%s404 + $0xc] sm:$0xf]
    %v4615 = vld [vmem:[%s404 + $0x10] sm:$0xf]
    %v4616 = vld [vmem:[%s404 + $0x14] sm:$0xf]
    %v4617 = vld [vmem:[%s404 + $0x18] sm:$0xf]
    %v4618 = vld [vmem:[%s404 + $0x1c] sm:$0xf]
    %v4619 = vld [vmem:[%s404 + $0x20] sm:$0xf]
    %v4620 = vld [vmem:[%s404 + $0x24] sm:$0xf]
    %v4621 = vld [vmem:[%s404 + $0x28] sm:$0xf]
    %v4622 = vld [vmem:[%s404 + $0x2c] sm:$0xf]
    %v4623 = vld [vmem:[%s404 + $0x30] sm:$0xf]
    %v4624 = vld [vmem:[%s404 + $0x34] sm:$0xf]
    %v4625 = vld [vmem:[%s404 + $0x38] sm:$0xf]
    %v4626 = vld [vmem:[%s404 + $0x3c] sm:$0xf]
    %v4629 = vunpack.c.l.b16 %v4609
    %v4630 = vunpack.c.l.b16 %v4610
    %v4631 = vpack.c.b16 %v4630, %v4629
    %v4649 = vunpack.c.l.b16 %v4611
    %v4650 = vunpack.c.l.b16 %v4612
    %v4651 = vunpack.c.l.b16 %v4613
    %v4652 = vunpack.c.l.b16 %v4614
    %v4653 = vunpack.c.l.b16 %v4615
    %v4654 = vunpack.c.l.b16 %v4616
    %v4655 = vunpack.c.l.b16 %v4617
    %v4656 = vunpack.c.l.b16 %v4618
    %v4657 = vunpack.c.l.b16 %v4619
    %v4658 = vunpack.c.l.b16 %v4620
    %v4659 = vunpack.c.l.b16 %v4621
    %v4660 = vunpack.c.l.b16 %v4622
    %v4661 = vunpack.c.l.b16 %v4623
    %v4662 = vunpack.c.l.b16 %v4624
    %v4663 = vunpack.c.l.b16 %v4625
    %v4664 = vunpack.c.l.b16 %v4626
    %v4665 = vpack.c.b16 %v4650, %v4649
    %v4666 = vpack.c.b16 %v4652, %v4651
    %v4667 = vpack.c.b16 %v4654, %v4653
    %v4668 = vpack.c.b16 %v4656, %v4655
    %v4669 = vpack.c.b16 %v4658, %v4657
    %v4670 = vpack.c.b16 %v4660, %v4659
    %v4671 = vpack.c.b16 %v4662, %v4661
    %v4672 = vpack.c.b16 %v4664, %v4663
    %4681 = vmatprep.subr.bf16.mxu0 0
    %4682 = vmatpush1.bf16.msra.mxu0 %v4672
    %4683 = vmatprep.subr.bf16.mxu0 0
    %4684 = vmatpush1.bf16.msra.mxu0 %v4671
    %4685 = vmatprep.subr.bf16.mxu0 0
    %4686 = vmatpush1.bf16.msra.mxu0 %v4670
    %4687 = vmatprep.subr.bf16.mxu0 0
    %4688 = vmatpush1.bf16.msra.mxu0 %v4669
    %4689 = vmatprep.subr.bf16.mxu0 0
    %4690 = vmatpush1.bf16.msra.mxu0 %v4668
    %4691 = vmatprep.subr.bf16.mxu0 0
    %4692 = vmatpush1.bf16.msra.mxu0 %v4667
    %4693 = vmatprep.subr.bf16.mxu0 0
    %4694 = vmatpush1.bf16.msra.mxu0 %v4666
    %4695 = vmatprep.subr.bf16.mxu0 0
    %4696 = vmatpush1.bf16.msra.mxu0 %v4665
    %4697 = vmatprep.subr.bf16.mxu0 0
    %4698 = vmatpush2.bf16.msra.mxu0 0
    %4699 = vmatprep.subr.bf16.mxu0 0
    %4700 = vmatpush2.bf16.msra.mxu0 0
    %4701 = vmatprep.subr.bf16.mxu0 0
    %4702 = vmatpush2.bf16.msra.mxu0 0
    %4703 = vmatprep.subr.bf16.mxu0 0
    %4704 = vmatpush2.bf16.msra.mxu0 0
    %4705 = vmatprep.subr.bf16.mxu0 0
    %4706 = vmatpush2.bf16.msra.mxu0 0
    %4707 = vmatprep.subr.bf16.mxu0 0
    %4708 = vmatpush2.bf16.msra.mxu0 0
    %4709 = vmatprep.subr.bf16.mxu0 0
    %4710 = vmatpush2.bf16.msra.mxu0 0
    %4711 = vmatprep.subr.bf16.mxu0 0
    %4712 = vmatpush2.bf16.msra.mxu0 0
    %4713 = vmatprep.mubr.bf16.mxu0 0
    %4714 = vmatmul.mubr.bf16.gmra.mxu0 %v4631
    %v4715 = vpop.f32.mrf.mxu0
    %v4716 = vadd.f32 0.0, %v4715
    %v4717 = vpop.f32.mrf.mxu0
    %v4718 = vpop.f32.mrf.mxu0
    %v4719 = vadd.f32 0.0, %v4718
    %v4720 = vpop.f32.mrf.mxu0
    %4721 = vdwg.mxu0
    %v4722 = vadd.f32 %v4607, %v4716
    %v4723 = vadd.f32 %v4608, %v4719
    %v4724 = vld [vmem:[#allocation7 + $0x4] sm:$0x1]
    %v4726 = vlaneseq
    %v4727 = vshrl.u32 %v4726, 7
    %v4728 = vsub.s32 0, %v4727
    %v4729 = vrot.slane %v4724, %v4728
    %v4731 = vadd.f32 %v4722, %v4729
    %v4732 = vadd.f32 %v4723, %v4729
    %4733 = vst [vmem:[#allocation8 + $0x20] sm:$0xff] %v4731
    %4734 = vst [vmem:[#allocation8 + $0x60] sm:$0xff] %v4732
    %v4735 = vld [vmem:[#allocation2] sm:$0xf]
    %v4736 = vld [vmem:[#allocation2 + $0x20] sm:$0xf]
    %v4737 = vld [vmem:[%s640] sm:$0xf]
    %v4738 = vld [vmem:[%s640 + $0x4] sm:$0xf]
    %v4739 = vld [vmem:[%s640 + $0x8] sm:$0xf]
    %v4740 = vld [vmem:[%s640 + $0xc] sm:$0xf]
    %v4741 = vld [vmem:[%s640 + $0x10] sm:$0xf]
    %v4742 = vld [vmem:[%s640 + $0x14] sm:$0xf]
    %v4743 = vld [vmem:[%s640 + $0x18] sm:$0xf]
    %v4744 = vld [vmem:[%s640 + $0x1c] sm:$0xf]
    %v4745 = vld [vmem:[%s640 + $0x20] sm:$0xf]
    %v4746 = vld [vmem:[%s640 + $0x24] sm:$0xf]
    %v4747 = vld [vmem:[%s640 + $0x28] sm:$0xf]
    %v4748 = vld [vmem:[%s640 + $0x2c] sm:$0xf]
    %v4749 = vld [vmem:[%s640 + $0x30] sm:$0xf]
    %v4750 = vld [vmem:[%s640 + $0x34] sm:$0xf]
    %v4751 = vld [vmem:[%s640 + $0x38] sm:$0xf]
    %v4752 = vld [vmem:[%s640 + $0x3c] sm:$0xf]
    %v4753 = vld [vmem:[#allocation2 + $0x4] sm:$0xf]
    %v4754 = vld [vmem:[#allocation2 + $0x24] sm:$0xf]
    %v4755 = vld [vmem:[%s522] sm:$0xf]
    %v4756 = vld [vmem:[%s522 + $0x4] sm:$0xf]
    %v4757 = vld [vmem:[%s522 + $0x8] sm:$0xf]
    %v4758 = vld [vmem:[%s522 + $0xc] sm:$0xf]
    %v4759 = vld [vmem:[%s522 + $0x10] sm:$0xf]
    %v4760 = vld [vmem:[%s522 + $0x14] sm:$0xf]
    %v4761 = vld [vmem:[%s522 + $0x18] sm:$0xf]
    %v4762 = vld [vmem:[%s522 + $0x1c] sm:$0xf]
    %v4763 = vld [vmem:[%s522 + $0x20] sm:$0xf]
    %v4764 = vld [vmem:[%s522 + $0x24] sm:$0xf]
    %v4765 = vld [vmem:[%s522 + $0x28] sm:$0xf]
    %v4766 = vld [vmem:[%s522 + $0x2c] sm:$0xf]
    %v4767 = vld [vmem:[%s522 + $0x30] sm:$0xf]
    %v4768 = vld [vmem:[%s522 + $0x34] sm:$0xf]
    %v4769 = vld [vmem:[%s522 + $0x38] sm:$0xf]
    %v4770 = vld [vmem:[%s522 + $0x3c] sm:$0xf]
    %v4773 = vunpack.c.l.b16 %v4753
    %v4774 = vunpack.c.l.b16 %v4754
    %v4775 = vpack.c.b16 %v4774, %v4773
    %v4793 = vunpack.c.l.b16 %v4755
    %v4794 = vunpack.c.l.b16 %v4756
    %v4795 = vunpack.c.l.b16 %v4757
    %v4796 = vunpack.c.l.b16 %v4758
    %v4797 = vunpack.c.l.b16 %v4759
    %v4798 = vunpack.c.l.b16 %v4760
    %v4799 = vunpack.c.l.b16 %v4761
    %v4800 = vunpack.c.l.b16 %v4762
    %v4801 = vunpack.c.l.b16 %v4763
    %v4802 = vunpack.c.l.b16 %v4764
    %v4803 = vunpack.c.l.b16 %v4765
    %v4804 = vunpack.c.l.b16 %v4766
    %v4805 = vunpack.c.l.b16 %v4767
    %v4806 = vunpack.c.l.b16 %v4768
    %v4807 = vunpack.c.l.b16 %v4769
    %v4808 = vunpack.c.l.b16 %v4770
    %v4809 = vpack.c.b16 %v4794, %v4793
    %v4810 = vpack.c.b16 %v4796, %v4795
    %v4811 = vpack.c.b16 %v4798, %v4797
    %v4812 = vpack.c.b16 %v4800, %v4799
    %v4813 = vpack.c.b16 %v4802, %v4801
    %v4814 = vpack.c.b16 %v4804, %v4803
    %v4815 = vpack.c.b16 %v4806, %v4805
    %v4816 = vpack.c.b16 %v4808, %v4807
    %4825 = vmatprep.subr.bf16.mxu0 0
    %4826 = vmatpush1.bf16.msra.mxu0 %v4816
    %4827 = vmatprep.subr.bf16.mxu0 0
    %4828 = vmatpush1.bf16.msra.mxu0 %v4815
    %4829 = vmatprep.subr.bf16.mxu0 0
    %4830 = vmatpush1.bf16.msra.mxu0 %v4814
    %4831 = vmatprep.subr.bf16.mxu0 0
    %4832 = vmatpush1.bf16.msra.mxu0 %v4813
    %4833 = vmatprep.subr.bf16.mxu0 0
    %4834 = vmatpush1.bf16.msra.mxu0 %v4812
    %4835 = vmatprep.subr.bf16.mxu0 0
    %4836 = vmatpush1.bf16.msra.mxu0 %v4811
    %4837 = vmatprep.subr.bf16.mxu0 0
    %4838 = vmatpush1.bf16.msra.mxu0 %v4810
    %4839 = vmatprep.subr.bf16.mxu0 0
    %4840 = vmatpush1.bf16.msra.mxu0 %v4809
    %4841 = vmatprep.subr.bf16.mxu0 0
    %4842 = vmatpush2.bf16.msra.mxu0 0
    %4843 = vmatprep.subr.bf16.mxu0 0
    %4844 = vmatpush2.bf16.msra.mxu0 0
    %4845 = vmatprep.subr.bf16.mxu0 0
    %4846 = vmatpush2.bf16.msra.mxu0 0
    %4847 = vmatprep.subr.bf16.mxu0 0
    %4848 = vmatpush2.bf16.msra.mxu0 0
    %4849 = vmatprep.subr.bf16.mxu0 0
    %4850 = vmatpush2.bf16.msra.mxu0 0
    %4851 = vmatprep.subr.bf16.mxu0 0
    %4852 = vmatpush2.bf16.msra.mxu0 0
    %4853 = vmatprep.subr.bf16.mxu0 0
    %4854 = vmatpush2.bf16.msra.mxu0 0
    %4855 = vmatprep.subr.bf16.mxu0 0
    %4856 = vmatpush2.bf16.msra.mxu0 0
    %4857 = vmatprep.mubr.bf16.mxu0 0
    %4858 = vmatmul.mubr.bf16.gmra.mxu0 %v4775
    %v4859 = vpop.f32.mrf.mxu0
    %v4860 = vadd.f32 0.0, %v4859
    %v4861 = vpop.f32.mrf.mxu0
    %v4862 = vpop.f32.mrf.mxu0
    %v4863 = vadd.f32 0.0, %v4862
    %v4864 = vpop.f32.mrf.mxu0
    %4865 = vdwg.mxu0
    %v4868 = vunpack.c.l.b16 %v4735
    %v4869 = vunpack.c.l.b16 %v4736
    %v4870 = vpack.c.b16 %v4869, %v4868
    %v4888 = vunpack.c.l.b16 %v4737
    %v4889 = vunpack.c.l.b16 %v4738
    %v4890 = vunpack.c.l.b16 %v4739
    %v4891 = vunpack.c.l.b16 %v4740
    %v4892 = vunpack.c.l.b16 %v4741
    %v4893 = vunpack.c.l.b16 %v4742
    %v4894 = vunpack.c.l.b16 %v4743
    %v4895 = vunpack.c.l.b16 %v4744
    %v4896 = vunpack.c.l.b16 %v4745
    %v4897 = vunpack.c.l.b16 %v4746
    %v4898 = vunpack.c.l.b16 %v4747
    %v4899 = vunpack.c.l.b16 %v4748
    %v4900 = vunpack.c.l.b16 %v4749
    %v4901 = vunpack.c.l.b16 %v4750
    %v4902 = vunpack.c.l.b16 %v4751
    %v4903 = vunpack.c.l.b16 %v4752
    %v4904 = vpack.c.b16 %v4889, %v4888
    %v4905 = vpack.c.b16 %v4891, %v4890
    %v4906 = vpack.c.b16 %v4893, %v4892
    %v4907 = vpack.c.b16 %v4895, %v4894
    %v4908 = vpack.c.b16 %v4897, %v4896
    %v4909 = vpack.c.b16 %v4899, %v4898
    %v4910 = vpack.c.b16 %v4901, %v4900
    %v4911 = vpack.c.b16 %v4903, %v4902
    %4920 = vmatprep.subr.bf16.mxu0 0
    %4921 = vmatpush1.bf16.msra.mxu0 %v4911
    %4922 = vmatprep.subr.bf16.mxu0 0
    %4923 = vmatpush1.bf16.msra.mxu0 %v4910
    %4924 = vmatprep.subr.bf16.mxu0 0
    %4925 = vmatpush1.bf16.msra.mxu0 %v4909
    %4926 = vmatprep.subr.bf16.mxu0 0
    %4927 = vmatpush1.bf16.msra.mxu0 %v4908
    %4928 = vmatprep.subr.bf16.mxu0 0
    %4929 = vmatpush1.bf16.msra.mxu0 %v4907
    %4930 = vmatprep.subr.bf16.mxu0 0
    %4931 = vmatpush1.bf16.msra.mxu0 %v4906
    %4932 = vmatprep.subr.bf16.mxu0 0
    %4933 = vmatpush1.bf16.msra.mxu0 %v4905
    %4934 = vmatprep.subr.bf16.mxu0 0
    %4935 = vmatpush1.bf16.msra.mxu0 %v4904
    %4936 = vmatprep.subr.bf16.mxu0 0
    %4937 = vmatpush2.bf16.msra.mxu0 0
    %4938 = vmatprep.subr.bf16.mxu0 0
    %4939 = vmatpush2.bf16.msra.mxu0 0
    %4940 = vmatprep.subr.bf16.mxu0 0
    %4941 = vmatpush2.bf16.msra.mxu0 0
    %4942 = vmatprep.subr.bf16.mxu0 0
    %4943 = vmatpush2.bf16.msra.mxu0 0
    %4944 = vmatprep.subr.bf16.mxu0 0
    %4945 = vmatpush2.bf16.msra.mxu0 0
    %4946 = vmatprep.subr.bf16.mxu0 0
    %4947 = vmatpush2.bf16.msra.mxu0 0
    %4948 = vmatprep.subr.bf16.mxu0 0
    %4949 = vmatpush2.bf16.msra.mxu0 0
    %4950 = vmatprep.subr.bf16.mxu0 0
    %4951 = vmatpush2.bf16.msra.mxu0 0
    %4952 = vmatprep.mubr.bf16.mxu0 0
    %4953 = vmatmul.mubr.bf16.gmra.mxu0 %v4870
    %v4954 = vpop.f32.mrf.mxu0
    %v4955 = vadd.f32 %v4860, %v4954
    %v4956 = vpop.f32.mrf.mxu0
    %v4957 = vpop.f32.mrf.mxu0
    %v4958 = vadd.f32 %v4863, %v4957
    %v4959 = vpop.f32.mrf.mxu0
    %4960 = vdwg.mxu0
    %v4961 = vld [vmem:[#allocation2 + $0x8] sm:$0xf]
    %v4962 = vld [vmem:[#allocation2 + $0x28] sm:$0xf]
    %v4963 = vld [vmem:[%s876] sm:$0xf]
    %v4964 = vld [vmem:[%s876 + $0x4] sm:$0xf]
    %v4965 = vld [vmem:[%s876 + $0x8] sm:$0xf]
    %v4966 = vld [vmem:[%s876 + $0xc] sm:$0xf]
    %v4967 = vld [vmem:[%s876 + $0x10] sm:$0xf]
    %v4968 = vld [vmem:[%s876 + $0x14] sm:$0xf]
    %v4969 = vld [vmem:[%s876 + $0x18] sm:$0xf]
    %v4970 = vld [vmem:[%s876 + $0x1c] sm:$0xf]
    %v4971 = vld [vmem:[%s876 + $0x20] sm:$0xf]
    %v4972 = vld [vmem:[%s876 + $0x24] sm:$0xf]
    %v4973 = vld [vmem:[%s876 + $0x28] sm:$0xf]
    %v4974 = vld [vmem:[%s876 + $0x2c] sm:$0xf]
    %v4975 = vld [vmem:[%s876 + $0x30] sm:$0xf]
    %v4976 = vld [vmem:[%s876 + $0x34] sm:$0xf]
    %v4977 = vld [vmem:[%s876 + $0x38] sm:$0xf]
    %v4978 = vld [vmem:[%s876 + $0x3c] sm:$0xf]
    %v4981 = vunpack.c.l.b16 %v4961
    %v4982 = vunpack.c.l.b16 %v4962
    %v4983 = vpack.c.b16 %v4982, %v4981
    %v5001 = vunpack.c.l.b16 %v4963
    %v5002 = vunpack.c.l.b16 %v4964
    %v5003 = vunpack.c.l.b16 %v4965
    %v5004 = vunpack.c.l.b16 %v4966
    %v5005 = vunpack.c.l.b16 %v4967
    %v5006 = vunpack.c.l.b16 %v4968
    %v5007 = vunpack.c.l.b16 %v4969
    %v5008 = vunpack.c.l.b16 %v4970
    %v5009 = vunpack.c.l.b16 %v4971
    %v5010 = vunpack.c.l.b16 %v4972
    %v5011 = vunpack.c.l.b16 %v4973
    %v5012 = vunpack.c.l.b16 %v4974
    %v5013 = vunpack.c.l.b16 %v4975
    %v5014 = vunpack.c.l.b16 %v4976
    %v5015 = vunpack.c.l.b16 %v4977
    %v5016 = vunpack.c.l.b16 %v4978
    %v5017 = vpack.c.b16 %v5002, %v5001
    %v5018 = vpack.c.b16 %v5004, %v5003
    %v5019 = vpack.c.b16 %v5006, %v5005
    %v5020 = vpack.c.b16 %v5008, %v5007
    %v5021 = vpack.c.b16 %v5010, %v5009
    %v5022 = vpack.c.b16 %v5012, %v5011
    %v5023 = vpack.c.b16 %v5014, %v5013
    %v5024 = vpack.c.b16 %v5016, %v5015
    %5033 = vmatprep.subr.bf16.mxu0 0
    %5034 = vmatpush1.bf16.msra.mxu0 %v5024
    %5035 = vmatprep.subr.bf16.mxu0 0
    %5036 = vmatpush1.bf16.msra.mxu0 %v5023
    %5037 = vmatprep.subr.bf16.mxu0 0
    %5038 = vmatpush1.bf16.msra.mxu0 %v5022
    %5039 = vmatprep.subr.bf16.mxu0 0
    %5040 = vmatpush1.bf16.msra.mxu0 %v5021
    %5041 = vmatprep.subr.bf16.mxu0 0
    %5042 = vmatpush1.bf16.msra.mxu0 %v5020
    %5043 = vmatprep.subr.bf16.mxu0 0
    %5044 = vmatpush1.bf16.msra.mxu0 %v5019
    %5045 = vmatprep.subr.bf16.mxu0 0
    %5046 = vmatpush1.bf16.msra.mxu0 %v5018
    %5047 = vmatprep.subr.bf16.mxu0 0
    %5048 = vmatpush1.bf16.msra.mxu0 %v5017
    %5049 = vmatprep.subr.bf16.mxu0 0
    %5050 = vmatpush2.bf16.msra.mxu0 0
    %5051 = vmatprep.subr.bf16.mxu0 0
    %5052 = vmatpush2.bf16.msra.mxu0 0
    %5053 = vmatprep.subr.bf16.mxu0 0
    %5054 = vmatpush2.bf16.msra.mxu0 0
    %5055 = vmatprep.subr.bf16.mxu0 0
    %5056 = vmatpush2.bf16.msra.mxu0 0
    %5057 = vmatprep.subr.bf16.mxu0 0
    %5058 = vmatpush2.bf16.msra.mxu0 0
    %5059 = vmatprep.subr.bf16.mxu0 0
    %5060 = vmatpush2.bf16.msra.mxu0 0
    %5061 = vmatprep.subr.bf16.mxu0 0
    %5062 = vmatpush2.bf16.msra.mxu0 0
    %5063 = vmatprep.subr.bf16.mxu0 0
    %5064 = vmatpush2.bf16.msra.mxu0 0
    %5065 = vmatprep.mubr.bf16.mxu0 0
    %5066 = vmatmul.mubr.bf16.gmra.mxu0 %v4983
    %v5067 = vpop.f32.mrf.mxu0
    %v5068 = vadd.f32 0.0, %v5067
    %v5069 = vpop.f32.mrf.mxu0
    %v5070 = vpop.f32.mrf.mxu0
    %v5071 = vadd.f32 0.0, %v5070
    %v5072 = vpop.f32.mrf.mxu0
    %5073 = vdwg.mxu0
    %v5074 = vsub.f32 0.0, %v5068
    %v5075 = vsub.f32 0.0, %v5071
    %v5076 = vadd.f32 %v4955, %v5074
    %v5077 = vadd.f32 %v4958, %v5075
    %v5078 = vld [vmem:[#allocation2 + $0xc] sm:$0xf]
    %v5079 = vld [vmem:[#allocation2 + $0x2c] sm:$0xf]
    %v5080 = vld [vmem:[%s758] sm:$0xf]
    %v5081 = vld [vmem:[%s758 + $0x4] sm:$0xf]
    %v5082 = vld [vmem:[%s758 + $0x8] sm:$0xf]
    %v5083 = vld [vmem:[%s758 + $0xc] sm:$0xf]
    %v5084 = vld [vmem:[%s758 + $0x10] sm:$0xf]
    %v5085 = vld [vmem:[%s758 + $0x14] sm:$0xf]
    %v5086 = vld [vmem:[%s758 + $0x18] sm:$0xf]
    %v5087 = vld [vmem:[%s758 + $0x1c] sm:$0xf]
    %v5088 = vld [vmem:[%s758 + $0x20] sm:$0xf]
    %v5089 = vld [vmem:[%s758 + $0x24] sm:$0xf]
    %v5090 = vld [vmem:[%s758 + $0x28] sm:$0xf]
    %v5091 = vld [vmem:[%s758 + $0x2c] sm:$0xf]
    %v5092 = vld [vmem:[%s758 + $0x30] sm:$0xf]
    %v5093 = vld [vmem:[%s758 + $0x34] sm:$0xf]
    %v5094 = vld [vmem:[%s758 + $0x38] sm:$0xf]
    %v5095 = vld [vmem:[%s758 + $0x3c] sm:$0xf]
    %v5098 = vunpack.c.l.b16 %v5078
    %v5099 = vunpack.c.l.b16 %v5079
    %v5100 = vpack.c.b16 %v5099, %v5098
    %v5118 = vunpack.c.l.b16 %v5080
    %v5119 = vunpack.c.l.b16 %v5081
    %v5120 = vunpack.c.l.b16 %v5082
    %v5121 = vunpack.c.l.b16 %v5083
    %v5122 = vunpack.c.l.b16 %v5084
    %v5123 = vunpack.c.l.b16 %v5085
    %v5124 = vunpack.c.l.b16 %v5086
    %v5125 = vunpack.c.l.b16 %v5087
    %v5126 = vunpack.c.l.b16 %v5088
    %v5127 = vunpack.c.l.b16 %v5089
    %v5128 = vunpack.c.l.b16 %v5090
    %v5129 = vunpack.c.l.b16 %v5091
    %v5130 = vunpack.c.l.b16 %v5092
    %v5131 = vunpack.c.l.b16 %v5093
    %v5132 = vunpack.c.l.b16 %v5094
    %v5133 = vunpack.c.l.b16 %v5095
    %v5134 = vpack.c.b16 %v5119, %v5118
    %v5135 = vpack.c.b16 %v5121, %v5120
    %v5136 = vpack.c.b16 %v5123, %v5122
    %v5137 = vpack.c.b16 %v5125, %v5124
    %v5138 = vpack.c.b16 %v5127, %v5126
    %v5139 = vpack.c.b16 %v5129, %v5128
    %v5140 = vpack.c.b16 %v5131, %v5130
    %v5141 = vpack.c.b16 %v5133, %v5132
    %5150 = vmatprep.subr.bf16.mxu0 0
    %5151 = vmatpush1.bf16.msra.mxu0 %v5141
    %5152 = vmatprep.subr.bf16.mxu0 0
    %5153 = vmatpush1.bf16.msra.mxu0 %v5140
    %5154 = vmatprep.subr.bf16.mxu0 0
    %5155 = vmatpush1.bf16.msra.mxu0 %v5139
    %5156 = vmatprep.subr.bf16.mxu0 0
    %5157 = vmatpush1.bf16.msra.mxu0 %v5138
    %5158 = vmatprep.subr.bf16.mxu0 0
    %5159 = vmatpush1.bf16.msra.mxu0 %v5137
    %5160 = vmatprep.subr.bf16.mxu0 0
    %5161 = vmatpush1.bf16.msra.mxu0 %v5136
    %5162 = vmatprep.subr.bf16.mxu0 0
    %5163 = vmatpush1.bf16.msra.mxu0 %v5135
    %5164 = vmatprep.subr.bf16.mxu0 0
    %5165 = vmatpush1.bf16.msra.mxu0 %v5134
    %5166 = vmatprep.subr.bf16.mxu0 0
    %5167 = vmatpush2.bf16.msra.mxu0 0
    %5168 = vmatprep.subr.bf16.mxu0 0
    %5169 = vmatpush2.bf16.msra.mxu0 0
    %5170 = vmatprep.subr.bf16.mxu0 0
    %5171 = vmatpush2.bf16.msra.mxu0 0
    %5172 = vmatprep.subr.bf16.mxu0 0
    %5173 = vmatpush2.bf16.msra.mxu0 0
    %5174 = vmatprep.subr.bf16.mxu0 0
    %5175 = vmatpush2.bf16.msra.mxu0 0
    %5176 = vmatprep.subr.bf16.mxu0 0
    %5177 = vmatpush2.bf16.msra.mxu0 0
    %5178 = vmatprep.subr.bf16.mxu0 0
    %5179 = vmatpush2.bf16.msra.mxu0 0
    %5180 = vmatprep.subr.bf16.mxu0 0
    %5181 = vmatpush2.bf16.msra.mxu0 0
    %5182 = vmatprep.mubr.bf16.mxu0 0
    %5183 = vmatmul.mubr.bf16.gmra.mxu0 %v5100
    %v5184 = vpop.f32.mrf.mxu0
    %v5185 = vadd.f32 0.0, %v5184
    %v5186 = vpop.f32.mrf.mxu0
    %v5187 = vpop.f32.mrf.mxu0
    %v5188 = vadd.f32 0.0, %v5187
    %v5189 = vpop.f32.mrf.mxu0
    %5190 = vdwg.mxu0
    %v5191 = vadd.f32 %v5076, %v5185
    %v5192 = vadd.f32 %v5077, %v5188
    %v5193 = vld [vmem:[#allocation2 + $0x10] sm:$0xf]
    %v5194 = vld [vmem:[#allocation2 + $0x30] sm:$0xf]
    %v5195 = vld [vmem:[%s75] sm:$0xf]
    %v5196 = vld [vmem:[%s75 + $0x4] sm:$0xf]
    %v5197 = vld [vmem:[%s75 + $0x8] sm:$0xf]
    %v5198 = vld [vmem:[%s75 + $0xc] sm:$0xf]
    %v5199 = vld [vmem:[%s75 + $0x10] sm:$0xf]
    %v5200 = vld [vmem:[%s75 + $0x14] sm:$0xf]
    %v5201 = vld [vmem:[%s75 + $0x18] sm:$0xf]
    %v5202 = vld [vmem:[%s75 + $0x1c] sm:$0xf]
    %v5203 = vld [vmem:[%s75 + $0x20] sm:$0xf]
    %v5204 = vld [vmem:[%s75 + $0x24] sm:$0xf]
    %v5205 = vld [vmem:[%s75 + $0x28] sm:$0xf]
    %v5206 = vld [vmem:[%s75 + $0x2c] sm:$0xf]
    %v5207 = vld [vmem:[%s75 + $0x30] sm:$0xf]
    %v5208 = vld [vmem:[%s75 + $0x34] sm:$0xf]
    %v5209 = vld [vmem:[%s75 + $0x38] sm:$0xf]
    %v5210 = vld [vmem:[%s75 + $0x3c] sm:$0xf]
    %v5213 = vunpack.c.l.b16 %v5193
    %v5214 = vunpack.c.l.b16 %v5194
    %v5215 = vpack.c.b16 %v5214, %v5213
    %v5233 = vunpack.c.l.b16 %v5195
    %v5234 = vunpack.c.l.b16 %v5196
    %v5235 = vunpack.c.l.b16 %v5197
    %v5236 = vunpack.c.l.b16 %v5198
    %v5237 = vunpack.c.l.b16 %v5199
    %v5238 = vunpack.c.l.b16 %v5200
    %v5239 = vunpack.c.l.b16 %v5201
    %v5240 = vunpack.c.l.b16 %v5202
    %v5241 = vunpack.c.l.b16 %v5203
    %v5242 = vunpack.c.l.b16 %v5204
    %v5243 = vunpack.c.l.b16 %v5205
    %v5244 = vunpack.c.l.b16 %v5206
    %v5245 = vunpack.c.l.b16 %v5207
    %v5246 = vunpack.c.l.b16 %v5208
    %v5247 = vunpack.c.l.b16 %v5209
    %v5248 = vunpack.c.l.b16 %v5210
    %v5249 = vpack.c.b16 %v5234, %v5233
    %v5250 = vpack.c.b16 %v5236, %v5235
    %v5251 = vpack.c.b16 %v5238, %v5237
    %v5252 = vpack.c.b16 %v5240, %v5239
    %v5253 = vpack.c.b16 %v5242, %v5241
    %v5254 = vpack.c.b16 %v5244, %v5243
    %v5255 = vpack.c.b16 %v5246, %v5245
    %v5256 = vpack.c.b16 %v5248, %v5247
    %5265 = vmatprep.subr.bf16.mxu0 0
    %5266 = vmatpush1.bf16.msra.mxu0 %v5256
    %5267 = vmatprep.subr.bf16.mxu0 0
    %5268 = vmatpush1.bf16.msra.mxu0 %v5255
    %5269 = vmatprep.subr.bf16.mxu0 0
    %5270 = vmatpush1.bf16.msra.mxu0 %v5254
    %5271 = vmatprep.subr.bf16.mxu0 0
    %5272 = vmatpush1.bf16.msra.mxu0 %v5253
    %5273 = vmatprep.subr.bf16.mxu0 0
    %5274 = vmatpush1.bf16.msra.mxu0 %v5252
    %5275 = vmatprep.subr.bf16.mxu0 0
    %5276 = vmatpush1.bf16.msra.mxu0 %v5251
    %5277 = vmatprep.subr.bf16.mxu0 0
    %5278 = vmatpush1.bf16.msra.mxu0 %v5250
    %5279 = vmatprep.subr.bf16.mxu0 0
    %5280 = vmatpush1.bf16.msra.mxu0 %v5249
    %5281 = vmatprep.subr.bf16.mxu0 0
    %5282 = vmatpush2.bf16.msra.mxu0 0
    %5283 = vmatprep.subr.bf16.mxu0 0
    %5284 = vmatpush2.bf16.msra.mxu0 0
    %5285 = vmatprep.subr.bf16.mxu0 0
    %5286 = vmatpush2.bf16.msra.mxu0 0
    %5287 = vmatprep.subr.bf16.mxu0 0
    %5288 = vmatpush2.bf16.msra.mxu0 0
    %5289 = vmatprep.subr.bf16.mxu0 0
    %5290 = vmatpush2.bf16.msra.mxu0 0
    %5291 = vmatprep.subr.bf16.mxu0 0
    %5292 = vmatpush2.bf16.msra.mxu0 0
    %5293 = vmatprep.subr.bf16.mxu0 0
    %5294 = vmatpush2.bf16.msra.mxu0 0
    %5295 = vmatprep.subr.bf16.mxu0 0
    %5296 = vmatpush2.bf16.msra.mxu0 0
    %5297 = vmatprep.mubr.bf16.mxu0 0
    %5298 = vmatmul.mubr.bf16.gmra.mxu0 %v5215
    %v5299 = vpop.f32.mrf.mxu0
    %v5300 = vadd.f32 0.0, %v5299
    %v5301 = vpop.f32.mrf.mxu0
    %v5302 = vpop.f32.mrf.mxu0
    %v5303 = vadd.f32 0.0, %v5302
    %v5304 = vpop.f32.mrf.mxu0
    %5305 = vdwg.mxu0
    %v5306 = vsub.f32 0.0, %v5300
    %v5307 = vsub.f32 0.0, %v5303
    %v5308 = vadd.f32 %v5191, %v5306
    %v5309 = vadd.f32 %v5192, %v5307
    %v5310 = vld [vmem:[#allocation2 + $0x14] sm:$0xf]
    %v5311 = vld [vmem:[#allocation2 + $0x34] sm:$0xf]
    %v5312 = vld [vmem:[#allocation5] sm:$0xf]
    %v5313 = vld [vmem:[#allocation5 + $0x4] sm:$0xf]
    %v5314 = vld [vmem:[#allocation5 + $0x8] sm:$0xf]
    %v5315 = vld [vmem:[#allocation5 + $0xc] sm:$0xf]
    %v5316 = vld [vmem:[#allocation5 + $0x10] sm:$0xf]
    %v5317 = vld [vmem:[#allocation5 + $0x14] sm:$0xf]
    %v5318 = vld [vmem:[#allocation5 + $0x18] sm:$0xf]
    %v5319 = vld [vmem:[#allocation5 + $0x1c] sm:$0xf]
    %v5320 = vld [vmem:[#allocation5 + $0x20] sm:$0xf]
    %v5321 = vld [vmem:[#allocation5 + $0x24] sm:$0xf]
    %v5322 = vld [vmem:[#allocation5 + $0x28] sm:$0xf]
    %v5323 = vld [vmem:[#allocation5 + $0x2c] sm:$0xf]
    %v5324 = vld [vmem:[#allocation5 + $0x30] sm:$0xf]
    %v5325 = vld [vmem:[#allocation5 + $0x34] sm:$0xf]
    %v5326 = vld [vmem:[#allocation5 + $0x38] sm:$0xf]
    %v5327 = vld [vmem:[#allocation5 + $0x3c] sm:$0xf]
    %v5330 = vunpack.c.l.b16 %v5310
    %v5331 = vunpack.c.l.b16 %v5311
    %v5332 = vpack.c.b16 %v5331, %v5330
    %v5350 = vunpack.c.l.b16 %v5312
    %v5351 = vunpack.c.l.b16 %v5313
    %v5352 = vunpack.c.l.b16 %v5314
    %v5353 = vunpack.c.l.b16 %v5315
    %v5354 = vunpack.c.l.b16 %v5316
    %v5355 = vunpack.c.l.b16 %v5317
    %v5356 = vunpack.c.l.b16 %v5318
    %v5357 = vunpack.c.l.b16 %v5319
    %v5358 = vunpack.c.l.b16 %v5320
    %v5359 = vunpack.c.l.b16 %v5321
    %v5360 = vunpack.c.l.b16 %v5322
    %v5361 = vunpack.c.l.b16 %v5323
    %v5362 = vunpack.c.l.b16 %v5324
    %v5363 = vunpack.c.l.b16 %v5325
    %v5364 = vunpack.c.l.b16 %v5326
    %v5365 = vunpack.c.l.b16 %v5327
    %v5366 = vpack.c.b16 %v5351, %v5350
    %v5367 = vpack.c.b16 %v5353, %v5352
    %v5368 = vpack.c.b16 %v5355, %v5354
    %v5369 = vpack.c.b16 %v5357, %v5356
    %v5370 = vpack.c.b16 %v5359, %v5358
    %v5371 = vpack.c.b16 %v5361, %v5360
    %v5372 = vpack.c.b16 %v5363, %v5362
    %v5373 = vpack.c.b16 %v5365, %v5364
    %5382 = vmatprep.subr.bf16.mxu0 0
    %5383 = vmatpush1.bf16.msra.mxu0 %v5373
    %5384 = vmatprep.subr.bf16.mxu0 0
    %5385 = vmatpush1.bf16.msra.mxu0 %v5372
    %5386 = vmatprep.subr.bf16.mxu0 0
    %5387 = vmatpush1.bf16.msra.mxu0 %v5371
    %5388 = vmatprep.subr.bf16.mxu0 0
    %5389 = vmatpush1.bf16.msra.mxu0 %v5370
    %5390 = vmatprep.subr.bf16.mxu0 0
    %5391 = vmatpush1.bf16.msra.mxu0 %v5369
    %5392 = vmatprep.subr.bf16.mxu0 0
    %5393 = vmatpush1.bf16.msra.mxu0 %v5368
    %5394 = vmatprep.subr.bf16.mxu0 0
    %5395 = vmatpush1.bf16.msra.mxu0 %v5367
    %5396 = vmatprep.subr.bf16.mxu0 0
    %5397 = vmatpush1.bf16.msra.mxu0 %v5366
    %5398 = vmatprep.subr.bf16.mxu0 0
    %5399 = vmatpush2.bf16.msra.mxu0 0
    %5400 = vmatprep.subr.bf16.mxu0 0
    %5401 = vmatpush2.bf16.msra.mxu0 0
    %5402 = vmatprep.subr.bf16.mxu0 0
    %5403 = vmatpush2.bf16.msra.mxu0 0
    %5404 = vmatprep.subr.bf16.mxu0 0
    %5405 = vmatpush2.bf16.msra.mxu0 0
    %5406 = vmatprep.subr.bf16.mxu0 0
    %5407 = vmatpush2.bf16.msra.mxu0 0
    %5408 = vmatprep.subr.bf16.mxu0 0
    %5409 = vmatpush2.bf16.msra.mxu0 0
    %5410 = vmatprep.subr.bf16.mxu0 0
    %5411 = vmatpush2.bf16.msra.mxu0 0
    %5412 = vmatprep.subr.bf16.mxu0 0
    %5413 = vmatpush2.bf16.msra.mxu0 0
    %5414 = vmatprep.mubr.bf16.mxu0 0
    %5415 = vmatmul.mubr.bf16.gmra.mxu0 %v5332
    %v5416 = vpop.f32.mrf.mxu0
    %v5417 = vadd.f32 0.0, %v5416
    %v5418 = vpop.f32.mrf.mxu0
    %v5419 = vpop.f32.mrf.mxu0
    %v5420 = vadd.f32 0.0, %v5419
    %v5421 = vpop.f32.mrf.mxu0
    %5422 = vdwg.mxu0
    %v5423 = vadd.f32 %v5308, %v5417
    %v5424 = vadd.f32 %v5309, %v5420
    %v5425 = vld [vmem:[#allocation2 + $0x18] sm:$0xf]
    %v5426 = vld [vmem:[#allocation2 + $0x38] sm:$0xf]
    %v5427 = vld [vmem:[%s404] sm:$0xf]
    %v5428 = vld [vmem:[%s404 + $0x4] sm:$0xf]
    %v5429 = vld [vmem:[%s404 + $0x8] sm:$0xf]
    %v5430 = vld [vmem:[%s404 + $0xc] sm:$0xf]
    %v5431 = vld [vmem:[%s404 + $0x10] sm:$0xf]
    %v5432 = vld [vmem:[%s404 + $0x14] sm:$0xf]
    %v5433 = vld [vmem:[%s404 + $0x18] sm:$0xf]
    %v5434 = vld [vmem:[%s404 + $0x1c] sm:$0xf]
    %v5435 = vld [vmem:[%s404 + $0x20] sm:$0xf]
    %v5436 = vld [vmem:[%s404 + $0x24] sm:$0xf]
    %v5437 = vld [vmem:[%s404 + $0x28] sm:$0xf]
    %v5438 = vld [vmem:[%s404 + $0x2c] sm:$0xf]
    %v5439 = vld [vmem:[%s404 + $0x30] sm:$0xf]
    %v5440 = vld [vmem:[%s404 + $0x34] sm:$0xf]
    %v5441 = vld [vmem:[%s404 + $0x38] sm:$0xf]
    %v5442 = vld [vmem:[%s404 + $0x3c] sm:$0xf]
    %v5445 = vunpack.c.l.b16 %v5425
    %v5446 = vunpack.c.l.b16 %v5426
    %v5447 = vpack.c.b16 %v5446, %v5445
    %v5465 = vunpack.c.l.b16 %v5427
    %v5466 = vunpack.c.l.b16 %v5428
    %v5467 = vunpack.c.l.b16 %v5429
    %v5468 = vunpack.c.l.b16 %v5430
    %v5469 = vunpack.c.l.b16 %v5431
    %v5470 = vunpack.c.l.b16 %v5432
    %v5471 = vunpack.c.l.b16 %v5433
    %v5472 = vunpack.c.l.b16 %v5434
    %v5473 = vunpack.c.l.b16 %v5435
    %v5474 = vunpack.c.l.b16 %v5436
    %v5475 = vunpack.c.l.b16 %v5437
    %v5476 = vunpack.c.l.b16 %v5438
    %v5477 = vunpack.c.l.b16 %v5439
    %v5478 = vunpack.c.l.b16 %v5440
    %v5479 = vunpack.c.l.b16 %v5441
    %v5480 = vunpack.c.l.b16 %v5442
    %v5481 = vpack.c.b16 %v5466, %v5465
    %v5482 = vpack.c.b16 %v5468, %v5467
    %v5483 = vpack.c.b16 %v5470, %v5469
    %v5484 = vpack.c.b16 %v5472, %v5471
    %v5485 = vpack.c.b16 %v5474, %v5473
    %v5486 = vpack.c.b16 %v5476, %v5475
    %v5487 = vpack.c.b16 %v5478, %v5477
    %v5488 = vpack.c.b16 %v5480, %v5479
    %5497 = vmatprep.subr.bf16.mxu0 0
    %5498 = vmatpush1.bf16.msra.mxu0 %v5488
    %5499 = vmatprep.subr.bf16.mxu0 0
    %5500 = vmatpush1.bf16.msra.mxu0 %v5487
    %5501 = vmatprep.subr.bf16.mxu0 0
    %5502 = vmatpush1.bf16.msra.mxu0 %v5486
    %5503 = vmatprep.subr.bf16.mxu0 0
    %5504 = vmatpush1.bf16.msra.mxu0 %v5485
    %5505 = vmatprep.subr.bf16.mxu0 0
    %5506 = vmatpush1.bf16.msra.mxu0 %v5484
    %5507 = vmatprep.subr.bf16.mxu0 0
    %5508 = vmatpush1.bf16.msra.mxu0 %v5483
    %5509 = vmatprep.subr.bf16.mxu0 0
    %5510 = vmatpush1.bf16.msra.mxu0 %v5482
    %5511 = vmatprep.subr.bf16.mxu0 0
    %5512 = vmatpush1.bf16.msra.mxu0 %v5481
    %5513 = vmatprep.subr.bf16.mxu0 0
    %5514 = vmatpush2.bf16.msra.mxu0 0
    %5515 = vmatprep.subr.bf16.mxu0 0
    %5516 = vmatpush2.bf16.msra.mxu0 0
    %5517 = vmatprep.subr.bf16.mxu0 0
    %5518 = vmatpush2.bf16.msra.mxu0 0
    %5519 = vmatprep.subr.bf16.mxu0 0
    %5520 = vmatpush2.bf16.msra.mxu0 0
    %5521 = vmatprep.subr.bf16.mxu0 0
    %5522 = vmatpush2.bf16.msra.mxu0 0
    %5523 = vmatprep.subr.bf16.mxu0 0
    %5524 = vmatpush2.bf16.msra.mxu0 0
    %5525 = vmatprep.subr.bf16.mxu0 0
    %5526 = vmatpush2.bf16.msra.mxu0 0
    %5527 = vmatprep.subr.bf16.mxu0 0
    %5528 = vmatpush2.bf16.msra.mxu0 0
    %5529 = vmatprep.mubr.bf16.mxu0 0
    %5530 = vmatmul.mubr.bf16.gmra.mxu0 %v5447
    %v5531 = vpop.f32.mrf.mxu0
    %v5532 = vadd.f32 0.0, %v5531
    %v5533 = vpop.f32.mrf.mxu0
    %v5534 = vpop.f32.mrf.mxu0
    %v5535 = vadd.f32 0.0, %v5534
    %v5536 = vpop.f32.mrf.mxu0
    %5537 = vdwg.mxu0
    %v5538 = vsub.f32 0.0, %v5532
    %v5539 = vsub.f32 0.0, %v5535
    %v5540 = vadd.f32 %v5423, %v5538
    %v5541 = vadd.f32 %v5424, %v5539
    %v5542 = vld [vmem:[#allocation2 + $0x1c] sm:$0xf]
    %v5543 = vld [vmem:[#allocation2 + $0x3c] sm:$0xf]
    %v5544 = vld [vmem:[%s286] sm:$0xf]
    %v5545 = vld [vmem:[%s286 + $0x4] sm:$0xf]
    %v5546 = vld [vmem:[%s286 + $0x8] sm:$0xf]
    %v5547 = vld [vmem:[%s286 + $0xc] sm:$0xf]
    %v5548 = vld [vmem:[%s286 + $0x10] sm:$0xf]
    %v5549 = vld [vmem:[%s286 + $0x14] sm:$0xf]
    %v5550 = vld [vmem:[%s286 + $0x18] sm:$0xf]
    %v5551 = vld [vmem:[%s286 + $0x1c] sm:$0xf]
    %v5552 = vld [vmem:[%s286 + $0x20] sm:$0xf]
    %v5553 = vld [vmem:[%s286 + $0x24] sm:$0xf]
    %v5554 = vld [vmem:[%s286 + $0x28] sm:$0xf]
    %v5555 = vld [vmem:[%s286 + $0x2c] sm:$0xf]
    %v5556 = vld [vmem:[%s286 + $0x30] sm:$0xf]
    %v5557 = vld [vmem:[%s286 + $0x34] sm:$0xf]
    %v5558 = vld [vmem:[%s286 + $0x38] sm:$0xf]
    %v5559 = vld [vmem:[%s286 + $0x3c] sm:$0xf]
    %v5562 = vunpack.c.l.b16 %v5542
    %v5563 = vunpack.c.l.b16 %v5543
    %v5564 = vpack.c.b16 %v5563, %v5562
    %v5582 = vunpack.c.l.b16 %v5544
    %v5583 = vunpack.c.l.b16 %v5545
    %v5584 = vunpack.c.l.b16 %v5546
    %v5585 = vunpack.c.l.b16 %v5547
    %v5586 = vunpack.c.l.b16 %v5548
    %v5587 = vunpack.c.l.b16 %v5549
    %v5588 = vunpack.c.l.b16 %v5550
    %v5589 = vunpack.c.l.b16 %v5551
    %v5590 = vunpack.c.l.b16 %v5552
    %v5591 = vunpack.c.l.b16 %v5553
    %v5592 = vunpack.c.l.b16 %v5554
    %v5593 = vunpack.c.l.b16 %v5555
    %v5594 = vunpack.c.l.b16 %v5556
    %v5595 = vunpack.c.l.b16 %v5557
    %v5596 = vunpack.c.l.b16 %v5558
    %v5597 = vunpack.c.l.b16 %v5559
    %v5598 = vpack.c.b16 %v5583, %v5582
    %v5599 = vpack.c.b16 %v5585, %v5584
    %v5600 = vpack.c.b16 %v5587, %v5586
    %v5601 = vpack.c.b16 %v5589, %v5588
    %v5602 = vpack.c.b16 %v5591, %v5590
    %v5603 = vpack.c.b16 %v5593, %v5592
    %v5604 = vpack.c.b16 %v5595, %v5594
    %v5605 = vpack.c.b16 %v5597, %v5596
    %5614 = vmatprep.subr.bf16.mxu0 0
    %5615 = vmatpush1.bf16.msra.mxu0 %v5605
    %5616 = vmatprep.subr.bf16.mxu0 0
    %5617 = vmatpush1.bf16.msra.mxu0 %v5604
    %5618 = vmatprep.subr.bf16.mxu0 0
    %5619 = vmatpush1.bf16.msra.mxu0 %v5603
    %5620 = vmatprep.subr.bf16.mxu0 0
    %5621 = vmatpush1.bf16.msra.mxu0 %v5602
    %5622 = vmatprep.subr.bf16.mxu0 0
    %5623 = vmatpush1.bf16.msra.mxu0 %v5601
    %5624 = vmatprep.subr.bf16.mxu0 0
    %5625 = vmatpush1.bf16.msra.mxu0 %v5600
    %5626 = vmatprep.subr.bf16.mxu0 0
    %5627 = vmatpush1.bf16.msra.mxu0 %v5599
    %5628 = vmatprep.subr.bf16.mxu0 0
    %5629 = vmatpush1.bf16.msra.mxu0 %v5598
    %5630 = vmatprep.subr.bf16.mxu0 0
    %5631 = vmatpush2.bf16.msra.mxu0 0
    %5632 = vmatprep.subr.bf16.mxu0 0
    %5633 = vmatpush2.bf16.msra.mxu0 0
    %5634 = vmatprep.subr.bf16.mxu0 0
    %5635 = vmatpush2.bf16.msra.mxu0 0
    %5636 = vmatprep.subr.bf16.mxu0 0
    %5637 = vmatpush2.bf16.msra.mxu0 0
    %5638 = vmatprep.subr.bf16.mxu0 0
    %5639 = vmatpush2.bf16.msra.mxu0 0
    %5640 = vmatprep.subr.bf16.mxu0 0
    %5641 = vmatpush2.bf16.msra.mxu0 0
    %5642 = vmatprep.subr.bf16.mxu0 0
    %5643 = vmatpush2.bf16.msra.mxu0 0
    %5644 = vmatprep.subr.bf16.mxu0 0
    %5645 = vmatpush2.bf16.msra.mxu0 0
    %5646 = vmatprep.mubr.bf16.mxu0 0
    %5647 = vmatmul.mubr.bf16.gmra.mxu0 %v5564
    %v5648 = vpop.f32.mrf.mxu0
    %v5649 = vadd.f32 0.0, %v5648
    %v5650 = vpop.f32.mrf.mxu0
    %v5651 = vpop.f32.mrf.mxu0
    %v5652 = vadd.f32 0.0, %v5651
    %v5653 = vpop.f32.mrf.mxu0
    %5654 = vdwg.mxu0
    %v5655 = vadd.f32 %v5540, %v5649
    %v5656 = vadd.f32 %v5541, %v5652
    %v5657 = vld [vmem:[#allocation7 + $0x5] sm:$0x1]
    %v5659 = vlaneseq
    %v5660 = vshrl.u32 %v5659, 7
    %v5661 = vsub.s32 0, %v5660
    %v5662 = vrot.slane %v5657, %v5661
    %v5664 = vadd.f32 %v5655, %v5662
    %v5665 = vadd.f32 %v5656, %v5662
    %5666 = vst [vmem:[#allocation8 + $0x28] sm:$0xff] %v5664
    %5667 = vst [vmem:[#allocation8 + $0x68] sm:$0xff] %v5665
    %v5668 = vld [vmem:[#allocation2] sm:$0xf]
    %v5669 = vld [vmem:[#allocation2 + $0x20] sm:$0xf]
    %v5670 = vld [vmem:[%s758] sm:$0xf]
    %v5671 = vld [vmem:[%s758 + $0x4] sm:$0xf]
    %v5672 = vld [vmem:[%s758 + $0x8] sm:$0xf]
    %v5673 = vld [vmem:[%s758 + $0xc] sm:$0xf]
    %v5674 = vld [vmem:[%s758 + $0x10] sm:$0xf]
    %v5675 = vld [vmem:[%s758 + $0x14] sm:$0xf]
    %v5676 = vld [vmem:[%s758 + $0x18] sm:$0xf]
    %v5677 = vld [vmem:[%s758 + $0x1c] sm:$0xf]
    %v5678 = vld [vmem:[%s758 + $0x20] sm:$0xf]
    %v5679 = vld [vmem:[%s758 + $0x24] sm:$0xf]
    %v5680 = vld [vmem:[%s758 + $0x28] sm:$0xf]
    %v5681 = vld [vmem:[%s758 + $0x2c] sm:$0xf]
    %v5682 = vld [vmem:[%s758 + $0x30] sm:$0xf]
    %v5683 = vld [vmem:[%s758 + $0x34] sm:$0xf]
    %v5684 = vld [vmem:[%s758 + $0x38] sm:$0xf]
    %v5685 = vld [vmem:[%s758 + $0x3c] sm:$0xf]
    %v5686 = vld [vmem:[#allocation2 + $0x4] sm:$0xf]
    %v5687 = vld [vmem:[#allocation2 + $0x24] sm:$0xf]
    %v5688 = vld [vmem:[%s876] sm:$0xf]
    %v5689 = vld [vmem:[%s876 + $0x4] sm:$0xf]
    %v5690 = vld [vmem:[%s876 + $0x8] sm:$0xf]
    %v5691 = vld [vmem:[%s876 + $0xc] sm:$0xf]
    %v5692 = vld [vmem:[%s876 + $0x10] sm:$0xf]
    %v5693 = vld [vmem:[%s876 + $0x14] sm:$0xf]
    %v5694 = vld [vmem:[%s876 + $0x18] sm:$0xf]
    %v5695 = vld [vmem:[%s876 + $0x1c] sm:$0xf]
    %v5696 = vld [vmem:[%s876 + $0x20] sm:$0xf]
    %v5697 = vld [vmem:[%s876 + $0x24] sm:$0xf]
    %v5698 = vld [vmem:[%s876 + $0x28] sm:$0xf]
    %v5699 = vld [vmem:[%s876 + $0x2c] sm:$0xf]
    %v5700 = vld [vmem:[%s876 + $0x30] sm:$0xf]
    %v5701 = vld [vmem:[%s876 + $0x34] sm:$0xf]
    %v5702 = vld [vmem:[%s876 + $0x38] sm:$0xf]
    %v5703 = vld [vmem:[%s876 + $0x3c] sm:$0xf]
    %v5706 = vunpack.c.l.b16 %v5686
    %v5707 = vunpack.c.l.b16 %v5687
    %v5708 = vpack.c.b16 %v5707, %v5706
    %v5726 = vunpack.c.l.b16 %v5688
    %v5727 = vunpack.c.l.b16 %v5689
    %v5728 = vunpack.c.l.b16 %v5690
    %v5729 = vunpack.c.l.b16 %v5691
    %v5730 = vunpack.c.l.b16 %v5692
    %v5731 = vunpack.c.l.b16 %v5693
    %v5732 = vunpack.c.l.b16 %v5694
    %v5733 = vunpack.c.l.b16 %v5695
    %v5734 = vunpack.c.l.b16 %v5696
    %v5735 = vunpack.c.l.b16 %v5697
    %v5736 = vunpack.c.l.b16 %v5698
    %v5737 = vunpack.c.l.b16 %v5699
    %v5738 = vunpack.c.l.b16 %v5700
    %v5739 = vunpack.c.l.b16 %v5701
    %v5740 = vunpack.c.l.b16 %v5702
    %v5741 = vunpack.c.l.b16 %v5703
    %v5742 = vpack.c.b16 %v5727, %v5726
    %v5743 = vpack.c.b16 %v5729, %v5728
    %v5744 = vpack.c.b16 %v5731, %v5730
    %v5745 = vpack.c.b16 %v5733, %v5732
    %v5746 = vpack.c.b16 %v5735, %v5734
    %v5747 = vpack.c.b16 %v5737, %v5736
    %v5748 = vpack.c.b16 %v5739, %v5738
    %v5749 = vpack.c.b16 %v5741, %v5740
    %5758 = vmatprep.subr.bf16.mxu0 0
    %5759 = vmatpush1.bf16.msra.mxu0 %v5749
    %5760 = vmatprep.subr.bf16.mxu0 0
    %5761 = vmatpush1.bf16.msra.mxu0 %v5748
    %5762 = vmatprep.subr.bf16.mxu0 0
    %5763 = vmatpush1.bf16.msra.mxu0 %v5747
    %5764 = vmatprep.subr.bf16.mxu0 0
    %5765 = vmatpush1.bf16.msra.mxu0 %v5746
    %5766 = vmatprep.subr.bf16.mxu0 0
    %5767 = vmatpush1.bf16.msra.mxu0 %v5745
    %5768 = vmatprep.subr.bf16.mxu0 0
    %5769 = vmatpush1.bf16.msra.mxu0 %v5744
    %5770 = vmatprep.subr.bf16.mxu0 0
    %5771 = vmatpush1.bf16.msra.mxu0 %v5743
    %5772 = vmatprep.subr.bf16.mxu0 0
    %5773 = vmatpush1.bf16.msra.mxu0 %v5742
    %5774 = vmatprep.subr.bf16.mxu0 0
    %5775 = vmatpush2.bf16.msra.mxu0 0
    %5776 = vmatprep.subr.bf16.mxu0 0
    %5777 = vmatpush2.bf16.msra.mxu0 0
    %5778 = vmatprep.subr.bf16.mxu0 0
    %5779 = vmatpush2.bf16.msra.mxu0 0
    %5780 = vmatprep.subr.bf16.mxu0 0
    %5781 = vmatpush2.bf16.msra.mxu0 0
    %5782 = vmatprep.subr.bf16.mxu0 0
    %5783 = vmatpush2.bf16.msra.mxu0 0
    %5784 = vmatprep.subr.bf16.mxu0 0
    %5785 = vmatpush2.bf16.msra.mxu0 0
    %5786 = vmatprep.subr.bf16.mxu0 0
    %5787 = vmatpush2.bf16.msra.mxu0 0
    %5788 = vmatprep.subr.bf16.mxu0 0
    %5789 = vmatpush2.bf16.msra.mxu0 0
    %5790 = vmatprep.mubr.bf16.mxu0 0
    %5791 = vmatmul.mubr.bf16.gmra.mxu0 %v5708
    %v5792 = vpop.f32.mrf.mxu0
    %v5793 = vadd.f32 0.0, %v5792
    %v5794 = vpop.f32.mrf.mxu0
    %v5795 = vpop.f32.mrf.mxu0
    %v5796 = vadd.f32 0.0, %v5795
    %v5797 = vpop.f32.mrf.mxu0
    %5798 = vdwg.mxu0
    %v5801 = vunpack.c.l.b16 %v5668
    %v5802 = vunpack.c.l.b16 %v5669
    %v5803 = vpack.c.b16 %v5802, %v5801
    %v5821 = vunpack.c.l.b16 %v5670
    %v5822 = vunpack.c.l.b16 %v5671
    %v5823 = vunpack.c.l.b16 %v5672
    %v5824 = vunpack.c.l.b16 %v5673
    %v5825 = vunpack.c.l.b16 %v5674
    %v5826 = vunpack.c.l.b16 %v5675
    %v5827 = vunpack.c.l.b16 %v5676
    %v5828 = vunpack.c.l.b16 %v5677
    %v5829 = vunpack.c.l.b16 %v5678
    %v5830 = vunpack.c.l.b16 %v5679
    %v5831 = vunpack.c.l.b16 %v5680
    %v5832 = vunpack.c.l.b16 %v5681
    %v5833 = vunpack.c.l.b16 %v5682
    %v5834 = vunpack.c.l.b16 %v5683
    %v5835 = vunpack.c.l.b16 %v5684
    %v5836 = vunpack.c.l.b16 %v5685
    %v5837 = vpack.c.b16 %v5822, %v5821
    %v5838 = vpack.c.b16 %v5824, %v5823
    %v5839 = vpack.c.b16 %v5826, %v5825
    %v5840 = vpack.c.b16 %v5828, %v5827
    %v5841 = vpack.c.b16 %v5830, %v5829
    %v5842 = vpack.c.b16 %v5832, %v5831
    %v5843 = vpack.c.b16 %v5834, %v5833
    %v5844 = vpack.c.b16 %v5836, %v5835
    %5853 = vmatprep.subr.bf16.mxu0 0
    %5854 = vmatpush1.bf16.msra.mxu0 %v5844
    %5855 = vmatprep.subr.bf16.mxu0 0
    %5856 = vmatpush1.bf16.msra.mxu0 %v5843
    %5857 = vmatprep.subr.bf16.mxu0 0
    %5858 = vmatpush1.bf16.msra.mxu0 %v5842
    %5859 = vmatprep.subr.bf16.mxu0 0
    %5860 = vmatpush1.bf16.msra.mxu0 %v5841
    %5861 = vmatprep.subr.bf16.mxu0 0
    %5862 = vmatpush1.bf16.msra.mxu0 %v5840
    %5863 = vmatprep.subr.bf16.mxu0 0
    %5864 = vmatpush1.bf16.msra.mxu0 %v5839
    %5865 = vmatprep.subr.bf16.mxu0 0
    %5866 = vmatpush1.bf16.msra.mxu0 %v5838
    %5867 = vmatprep.subr.bf16.mxu0 0
    %5868 = vmatpush1.bf16.msra.mxu0 %v5837
    %5869 = vmatprep.subr.bf16.mxu0 0
    %5870 = vmatpush2.bf16.msra.mxu0 0
    %5871 = vmatprep.subr.bf16.mxu0 0
    %5872 = vmatpush2.bf16.msra.mxu0 0
    %5873 = vmatprep.subr.bf16.mxu0 0
    %5874 = vmatpush2.bf16.msra.mxu0 0
    %5875 = vmatprep.subr.bf16.mxu0 0
    %5876 = vmatpush2.bf16.msra.mxu0 0
    %5877 = vmatprep.subr.bf16.mxu0 0
    %5878 = vmatpush2.bf16.msra.mxu0 0
    %5879 = vmatprep.subr.bf16.mxu0 0
    %5880 = vmatpush2.bf16.msra.mxu0 0
    %5881 = vmatprep.subr.bf16.mxu0 0
    %5882 = vmatpush2.bf16.msra.mxu0 0
    %5883 = vmatprep.subr.bf16.mxu0 0
    %5884 = vmatpush2.bf16.msra.mxu0 0
    %5885 = vmatprep.mubr.bf16.mxu0 0
    %5886 = vmatmul.mubr.bf16.gmra.mxu0 %v5803
    %v5887 = vpop.f32.mrf.mxu0
    %v5888 = vadd.f32 %v5793, %v5887
    %v5889 = vpop.f32.mrf.mxu0
    %v5890 = vpop.f32.mrf.mxu0
    %v5891 = vadd.f32 %v5796, %v5890
    %v5892 = vpop.f32.mrf.mxu0
    %5893 = vdwg.mxu0
    %v5894 = vld [vmem:[#allocation2 + $0x8] sm:$0xf]
    %v5895 = vld [vmem:[#allocation2 + $0x28] sm:$0xf]
    %v5896 = vld [vmem:[%s522] sm:$0xf]
    %v5897 = vld [vmem:[%s522 + $0x4] sm:$0xf]
    %v5898 = vld [vmem:[%s522 + $0x8] sm:$0xf]
    %v5899 = vld [vmem:[%s522 + $0xc] sm:$0xf]
    %v5900 = vld [vmem:[%s522 + $0x10] sm:$0xf]
    %v5901 = vld [vmem:[%s522 + $0x14] sm:$0xf]
    %v5902 = vld [vmem:[%s522 + $0x18] sm:$0xf]
    %v5903 = vld [vmem:[%s522 + $0x1c] sm:$0xf]
    %v5904 = vld [vmem:[%s522 + $0x20] sm:$0xf]
    %v5905 = vld [vmem:[%s522 + $0x24] sm:$0xf]
    %v5906 = vld [vmem:[%s522 + $0x28] sm:$0xf]
    %v5907 = vld [vmem:[%s522 + $0x2c] sm:$0xf]
    %v5908 = vld [vmem:[%s522 + $0x30] sm:$0xf]
    %v5909 = vld [vmem:[%s522 + $0x34] sm:$0xf]
    %v5910 = vld [vmem:[%s522 + $0x38] sm:$0xf]
    %v5911 = vld [vmem:[%s522 + $0x3c] sm:$0xf]
    %v5914 = vunpack.c.l.b16 %v5894
    %v5915 = vunpack.c.l.b16 %v5895
    %v5916 = vpack.c.b16 %v5915, %v5914
    %v5934 = vunpack.c.l.b16 %v5896
    %v5935 = vunpack.c.l.b16 %v5897
    %v5936 = vunpack.c.l.b16 %v5898
    %v5937 = vunpack.c.l.b16 %v5899
    %v5938 = vunpack.c.l.b16 %v5900
    %v5939 = vunpack.c.l.b16 %v5901
    %v5940 = vunpack.c.l.b16 %v5902
    %v5941 = vunpack.c.l.b16 %v5903
    %v5942 = vunpack.c.l.b16 %v5904
    %v5943 = vunpack.c.l.b16 %v5905
    %v5944 = vunpack.c.l.b16 %v5906
    %v5945 = vunpack.c.l.b16 %v5907
    %v5946 = vunpack.c.l.b16 %v5908
    %v5947 = vunpack.c.l.b16 %v5909
    %v5948 = vunpack.c.l.b16 %v5910
    %v5949 = vunpack.c.l.b16 %v5911
    %v5950 = vpack.c.b16 %v5935, %v5934
    %v5951 = vpack.c.b16 %v5937, %v5936
    %v5952 = vpack.c.b16 %v5939, %v5938
    %v5953 = vpack.c.b16 %v5941, %v5940
    %v5954 = vpack.c.b16 %v5943, %v5942
    %v5955 = vpack.c.b16 %v5945, %v5944
    %v5956 = vpack.c.b16 %v5947, %v5946
    %v5957 = vpack.c.b16 %v5949, %v5948
    %5966 = vmatprep.subr.bf16.mxu0 0
    %5967 = vmatpush1.bf16.msra.mxu0 %v5957
    %5968 = vmatprep.subr.bf16.mxu0 0
    %5969 = vmatpush1.bf16.msra.mxu0 %v5956
    %5970 = vmatprep.subr.bf16.mxu0 0
    %5971 = vmatpush1.bf16.msra.mxu0 %v5955
    %5972 = vmatprep.subr.bf16.mxu0 0
    %5973 = vmatpush1.bf16.msra.mxu0 %v5954
    %5974 = vmatprep.subr.bf16.mxu0 0
    %5975 = vmatpush1.bf16.msra.mxu0 %v5953
    %5976 = vmatprep.subr.bf16.mxu0 0
    %5977 = vmatpush1.bf16.msra.mxu0 %v5952
    %5978 = vmatprep.subr.bf16.mxu0 0
    %5979 = vmatpush1.bf16.msra.mxu0 %v5951
    %5980 = vmatprep.subr.bf16.mxu0 0
    %5981 = vmatpush1.bf16.msra.mxu0 %v5950
    %5982 = vmatprep.subr.bf16.mxu0 0
    %5983 = vmatpush2.bf16.msra.mxu0 0
    %5984 = vmatprep.subr.bf16.mxu0 0
    %5985 = vmatpush2.bf16.msra.mxu0 0
    %5986 = vmatprep.subr.bf16.mxu0 0
    %5987 = vmatpush2.bf16.msra.mxu0 0
    %5988 = vmatprep.subr.bf16.mxu0 0
    %5989 = vmatpush2.bf16.msra.mxu0 0
    %5990 = vmatprep.subr.bf16.mxu0 0
    %5991 = vmatpush2.bf16.msra.mxu0 0
    %5992 = vmatprep.subr.bf16.mxu0 0
    %5993 = vmatpush2.bf16.msra.mxu0 0
    %5994 = vmatprep.subr.bf16.mxu0 0
    %5995 = vmatpush2.bf16.msra.mxu0 0
    %5996 = vmatprep.subr.bf16.mxu0 0
    %5997 = vmatpush2.bf16.msra.mxu0 0
    %5998 = vmatprep.mubr.bf16.mxu0 0
    %5999 = vmatmul.mubr.bf16.gmra.mxu0 %v5916
    %v6000 = vpop.f32.mrf.mxu0
    %v6001 = vadd.f32 0.0, %v6000
    %v6002 = vpop.f32.mrf.mxu0
    %v6003 = vpop.f32.mrf.mxu0
    %v6004 = vadd.f32 0.0, %v6003
    %v6005 = vpop.f32.mrf.mxu0
    %6006 = vdwg.mxu0
    %v6007 = vadd.f32 %v5888, %v6001
    %v6008 = vadd.f32 %v5891, %v6004
    %v6009 = vld [vmem:[#allocation2 + $0xc] sm:$0xf]
    %v6010 = vld [vmem:[#allocation2 + $0x2c] sm:$0xf]
    %v6011 = vld [vmem:[%s640] sm:$0xf]
    %v6012 = vld [vmem:[%s640 + $0x4] sm:$0xf]
    %v6013 = vld [vmem:[%s640 + $0x8] sm:$0xf]
    %v6014 = vld [vmem:[%s640 + $0xc] sm:$0xf]
    %v6015 = vld [vmem:[%s640 + $0x10] sm:$0xf]
    %v6016 = vld [vmem:[%s640 + $0x14] sm:$0xf]
    %v6017 = vld [vmem:[%s640 + $0x18] sm:$0xf]
    %v6018 = vld [vmem:[%s640 + $0x1c] sm:$0xf]
    %v6019 = vld [vmem:[%s640 + $0x20] sm:$0xf]
    %v6020 = vld [vmem:[%s640 + $0x24] sm:$0xf]
    %v6021 = vld [vmem:[%s640 + $0x28] sm:$0xf]
    %v6022 = vld [vmem:[%s640 + $0x2c] sm:$0xf]
    %v6023 = vld [vmem:[%s640 + $0x30] sm:$0xf]
    %v6024 = vld [vmem:[%s640 + $0x34] sm:$0xf]
    %v6025 = vld [vmem:[%s640 + $0x38] sm:$0xf]
    %v6026 = vld [vmem:[%s640 + $0x3c] sm:$0xf]
    %v6029 = vunpack.c.l.b16 %v6009
    %v6030 = vunpack.c.l.b16 %v6010
    %v6031 = vpack.c.b16 %v6030, %v6029
    %v6049 = vunpack.c.l.b16 %v6011
    %v6050 = vunpack.c.l.b16 %v6012
    %v6051 = vunpack.c.l.b16 %v6013
    %v6052 = vunpack.c.l.b16 %v6014
    %v6053 = vunpack.c.l.b16 %v6015
    %v6054 = vunpack.c.l.b16 %v6016
    %v6055 = vunpack.c.l.b16 %v6017
    %v6056 = vunpack.c.l.b16 %v6018
    %v6057 = vunpack.c.l.b16 %v6019
    %v6058 = vunpack.c.l.b16 %v6020
    %v6059 = vunpack.c.l.b16 %v6021
    %v6060 = vunpack.c.l.b16 %v6022
    %v6061 = vunpack.c.l.b16 %v6023
    %v6062 = vunpack.c.l.b16 %v6024
    %v6063 = vunpack.c.l.b16 %v6025
    %v6064 = vunpack.c.l.b16 %v6026
    %v6065 = vpack.c.b16 %v6050, %v6049
    %v6066 = vpack.c.b16 %v6052, %v6051
    %v6067 = vpack.c.b16 %v6054, %v6053
    %v6068 = vpack.c.b16 %v6056, %v6055
    %v6069 = vpack.c.b16 %v6058, %v6057
    %v6070 = vpack.c.b16 %v6060, %v6059
    %v6071 = vpack.c.b16 %v6062, %v6061
    %v6072 = vpack.c.b16 %v6064, %v6063
    %6081 = vmatprep.subr.bf16.mxu0 0
    %6082 = vmatpush1.bf16.msra.mxu0 %v6072
    %6083 = vmatprep.subr.bf16.mxu0 0
    %6084 = vmatpush1.bf16.msra.mxu0 %v6071
    %6085 = vmatprep.subr.bf16.mxu0 0
    %6086 = vmatpush1.bf16.msra.mxu0 %v6070
    %6087 = vmatprep.subr.bf16.mxu0 0
    %6088 = vmatpush1.bf16.msra.mxu0 %v6069
    %6089 = vmatprep.subr.bf16.mxu0 0
    %6090 = vmatpush1.bf16.msra.mxu0 %v6068
    %6091 = vmatprep.subr.bf16.mxu0 0
    %6092 = vmatpush1.bf16.msra.mxu0 %v6067
    %6093 = vmatprep.subr.bf16.mxu0 0
    %6094 = vmatpush1.bf16.msra.mxu0 %v6066
    %6095 = vmatprep.subr.bf16.mxu0 0
    %6096 = vmatpush1.bf16.msra.mxu0 %v6065
    %6097 = vmatprep.subr.bf16.mxu0 0
    %6098 = vmatpush2.bf16.msra.mxu0 0
    %6099 = vmatprep.subr.bf16.mxu0 0
    %6100 = vmatpush2.bf16.msra.mxu0 0
    %6101 = vmatprep.subr.bf16.mxu0 0
    %6102 = vmatpush2.bf16.msra.mxu0 0
    %6103 = vmatprep.subr.bf16.mxu0 0
    %6104 = vmatpush2.bf16.msra.mxu0 0
    %6105 = vmatprep.subr.bf16.mxu0 0
    %6106 = vmatpush2.bf16.msra.mxu0 0
    %6107 = vmatprep.subr.bf16.mxu0 0
    %6108 = vmatpush2.bf16.msra.mxu0 0
    %6109 = vmatprep.subr.bf16.mxu0 0
    %6110 = vmatpush2.bf16.msra.mxu0 0
    %6111 = vmatprep.subr.bf16.mxu0 0
    %6112 = vmatpush2.bf16.msra.mxu0 0
    %6113 = vmatprep.mubr.bf16.mxu0 0
    %6114 = vmatmul.mubr.bf16.gmra.mxu0 %v6031
    %v6115 = vpop.f32.mrf.mxu0
    %v6116 = vadd.f32 0.0, %v6115
    %v6117 = vpop.f32.mrf.mxu0
    %v6118 = vpop.f32.mrf.mxu0
    %v6119 = vadd.f32 0.0, %v6118
    %v6120 = vpop.f32.mrf.mxu0
    %6121 = vdwg.mxu0
    %v6122 = vsub.f32 0.0, %v6116
    %v6123 = vsub.f32 0.0, %v6119
    %v6124 = vadd.f32 %v6007, %v6122
    %v6125 = vadd.f32 %v6008, %v6123
    %v6126 = vld [vmem:[#allocation2 + $0x10] sm:$0xf]
    %v6127 = vld [vmem:[#allocation2 + $0x30] sm:$0xf]
    %v6128 = vld [vmem:[%s286] sm:$0xf]
    %v6129 = vld [vmem:[%s286 + $0x4] sm:$0xf]
    %v6130 = vld [vmem:[%s286 + $0x8] sm:$0xf]
    %v6131 = vld [vmem:[%s286 + $0xc] sm:$0xf]
    %v6132 = vld [vmem:[%s286 + $0x10] sm:$0xf]
    %v6133 = vld [vmem:[%s286 + $0x14] sm:$0xf]
    %v6134 = vld [vmem:[%s286 + $0x18] sm:$0xf]
    %v6135 = vld [vmem:[%s286 + $0x1c] sm:$0xf]
    %v6136 = vld [vmem:[%s286 + $0x20] sm:$0xf]
    %v6137 = vld [vmem:[%s286 + $0x24] sm:$0xf]
    %v6138 = vld [vmem:[%s286 + $0x28] sm:$0xf]
    %v6139 = vld [vmem:[%s286 + $0x2c] sm:$0xf]
    %v6140 = vld [vmem:[%s286 + $0x30] sm:$0xf]
    %v6141 = vld [vmem:[%s286 + $0x34] sm:$0xf]
    %v6142 = vld [vmem:[%s286 + $0x38] sm:$0xf]
    %v6143 = vld [vmem:[%s286 + $0x3c] sm:$0xf]
    %v6146 = vunpack.c.l.b16 %v6126
    %v6147 = vunpack.c.l.b16 %v6127
    %v6148 = vpack.c.b16 %v6147, %v6146
    %v6166 = vunpack.c.l.b16 %v6128
    %v6167 = vunpack.c.l.b16 %v6129
    %v6168 = vunpack.c.l.b16 %v6130
    %v6169 = vunpack.c.l.b16 %v6131
    %v6170 = vunpack.c.l.b16 %v6132
    %v6171 = vunpack.c.l.b16 %v6133
    %v6172 = vunpack.c.l.b16 %v6134
    %v6173 = vunpack.c.l.b16 %v6135
    %v6174 = vunpack.c.l.b16 %v6136
    %v6175 = vunpack.c.l.b16 %v6137
    %v6176 = vunpack.c.l.b16 %v6138
    %v6177 = vunpack.c.l.b16 %v6139
    %v6178 = vunpack.c.l.b16 %v6140
    %v6179 = vunpack.c.l.b16 %v6141
    %v6180 = vunpack.c.l.b16 %v6142
    %v6181 = vunpack.c.l.b16 %v6143
    %v6182 = vpack.c.b16 %v6167, %v6166
    %v6183 = vpack.c.b16 %v6169, %v6168
    %v6184 = vpack.c.b16 %v6171, %v6170
    %v6185 = vpack.c.b16 %v6173, %v6172
    %v6186 = vpack.c.b16 %v6175, %v6174
    %v6187 = vpack.c.b16 %v6177, %v6176
    %v6188 = vpack.c.b16 %v6179, %v6178
    %v6189 = vpack.c.b16 %v6181, %v6180
    %6198 = vmatprep.subr.bf16.mxu0 0
    %6199 = vmatpush1.bf16.msra.mxu0 %v6189
    %6200 = vmatprep.subr.bf16.mxu0 0
    %6201 = vmatpush1.bf16.msra.mxu0 %v6188
    %6202 = vmatprep.subr.bf16.mxu0 0
    %6203 = vmatpush1.bf16.msra.mxu0 %v6187
    %6204 = vmatprep.subr.bf16.mxu0 0
    %6205 = vmatpush1.bf16.msra.mxu0 %v6186
    %6206 = vmatprep.subr.bf16.mxu0 0
    %6207 = vmatpush1.bf16.msra.mxu0 %v6185
    %6208 = vmatprep.subr.bf16.mxu0 0
    %6209 = vmatpush1.bf16.msra.mxu0 %v6184
    %6210 = vmatprep.subr.bf16.mxu0 0
    %6211 = vmatpush1.bf16.msra.mxu0 %v6183
    %6212 = vmatprep.subr.bf16.mxu0 0
    %6213 = vmatpush1.bf16.msra.mxu0 %v6182
    %6214 = vmatprep.subr.bf16.mxu0 0
    %6215 = vmatpush2.bf16.msra.mxu0 0
    %6216 = vmatprep.subr.bf16.mxu0 0
    %6217 = vmatpush2.bf16.msra.mxu0 0
    %6218 = vmatprep.subr.bf16.mxu0 0
    %6219 = vmatpush2.bf16.msra.mxu0 0
    %6220 = vmatprep.subr.bf16.mxu0 0
    %6221 = vmatpush2.bf16.msra.mxu0 0
    %6222 = vmatprep.subr.bf16.mxu0 0
    %6223 = vmatpush2.bf16.msra.mxu0 0
    %6224 = vmatprep.subr.bf16.mxu0 0
    %6225 = vmatpush2.bf16.msra.mxu0 0
    %6226 = vmatprep.subr.bf16.mxu0 0
    %6227 = vmatpush2.bf16.msra.mxu0 0
    %6228 = vmatprep.subr.bf16.mxu0 0
    %6229 = vmatpush2.bf16.msra.mxu0 0
    %6230 = vmatprep.mubr.bf16.mxu0 0
    %6231 = vmatmul.mubr.bf16.gmra.mxu0 %v6148
    %v6232 = vpop.f32.mrf.mxu0
    %v6233 = vadd.f32 0.0, %v6232
    %v6234 = vpop.f32.mrf.mxu0
    %v6235 = vpop.f32.mrf.mxu0
    %v6236 = vadd.f32 0.0, %v6235
    %v6237 = vpop.f32.mrf.mxu0
    %6238 = vdwg.mxu0
    %v6239 = vsub.f32 0.0, %v6233
    %v6240 = vsub.f32 0.0, %v6236
    %v6241 = vadd.f32 %v6124, %v6239
    %v6242 = vadd.f32 %v6125, %v6240
    %v6243 = vld [vmem:[#allocation2 + $0x14] sm:$0xf]
    %v6244 = vld [vmem:[#allocation2 + $0x34] sm:$0xf]
    %v6245 = vld [vmem:[%s404] sm:$0xf]
    %v6246 = vld [vmem:[%s404 + $0x4] sm:$0xf]
    %v6247 = vld [vmem:[%s404 + $0x8] sm:$0xf]
    %v6248 = vld [vmem:[%s404 + $0xc] sm:$0xf]
    %v6249 = vld [vmem:[%s404 + $0x10] sm:$0xf]
    %v6250 = vld [vmem:[%s404 + $0x14] sm:$0xf]
    %v6251 = vld [vmem:[%s404 + $0x18] sm:$0xf]
    %v6252 = vld [vmem:[%s404 + $0x1c] sm:$0xf]
    %v6253 = vld [vmem:[%s404 + $0x20] sm:$0xf]
    %v6254 = vld [vmem:[%s404 + $0x24] sm:$0xf]
    %v6255 = vld [vmem:[%s404 + $0x28] sm:$0xf]
    %v6256 = vld [vmem:[%s404 + $0x2c] sm:$0xf]
    %v6257 = vld [vmem:[%s404 + $0x30] sm:$0xf]
    %v6258 = vld [vmem:[%s404 + $0x34] sm:$0xf]
    %v6259 = vld [vmem:[%s404 + $0x38] sm:$0xf]
    %v6260 = vld [vmem:[%s404 + $0x3c] sm:$0xf]
    %v6263 = vunpack.c.l.b16 %v6243
    %v6264 = vunpack.c.l.b16 %v6244
    %v6265 = vpack.c.b16 %v6264, %v6263
    %v6283 = vunpack.c.l.b16 %v6245
    %v6284 = vunpack.c.l.b16 %v6246
    %v6285 = vunpack.c.l.b16 %v6247
    %v6286 = vunpack.c.l.b16 %v6248
    %v6287 = vunpack.c.l.b16 %v6249
    %v6288 = vunpack.c.l.b16 %v6250
    %v6289 = vunpack.c.l.b16 %v6251
    %v6290 = vunpack.c.l.b16 %v6252
    %v6291 = vunpack.c.l.b16 %v6253
    %v6292 = vunpack.c.l.b16 %v6254
    %v6293 = vunpack.c.l.b16 %v6255
    %v6294 = vunpack.c.l.b16 %v6256
    %v6295 = vunpack.c.l.b16 %v6257
    %v6296 = vunpack.c.l.b16 %v6258
    %v6297 = vunpack.c.l.b16 %v6259
    %v6298 = vunpack.c.l.b16 %v6260
    %v6299 = vpack.c.b16 %v6284, %v6283
    %v6300 = vpack.c.b16 %v6286, %v6285
    %v6301 = vpack.c.b16 %v6288, %v6287
    %v6302 = vpack.c.b16 %v6290, %v6289
    %v6303 = vpack.c.b16 %v6292, %v6291
    %v6304 = vpack.c.b16 %v6294, %v6293
    %v6305 = vpack.c.b16 %v6296, %v6295
    %v6306 = vpack.c.b16 %v6298, %v6297
    %6315 = vmatprep.subr.bf16.mxu0 0
    %6316 = vmatpush1.bf16.msra.mxu0 %v6306
    %6317 = vmatprep.subr.bf16.mxu0 0
    %6318 = vmatpush1.bf16.msra.mxu0 %v6305
    %6319 = vmatprep.subr.bf16.mxu0 0
    %6320 = vmatpush1.bf16.msra.mxu0 %v6304
    %6321 = vmatprep.subr.bf16.mxu0 0
    %6322 = vmatpush1.bf16.msra.mxu0 %v6303
    %6323 = vmatprep.subr.bf16.mxu0 0
    %6324 = vmatpush1.bf16.msra.mxu0 %v6302
    %6325 = vmatprep.subr.bf16.mxu0 0
    %6326 = vmatpush1.bf16.msra.mxu0 %v6301
    %6327 = vmatprep.subr.bf16.mxu0 0
    %6328 = vmatpush1.bf16.msra.mxu0 %v6300
    %6329 = vmatprep.subr.bf16.mxu0 0
    %6330 = vmatpush1.bf16.msra.mxu0 %v6299
    %6331 = vmatprep.subr.bf16.mxu0 0
    %6332 = vmatpush2.bf16.msra.mxu0 0
    %6333 = vmatprep.subr.bf16.mxu0 0
    %6334 = vmatpush2.bf16.msra.mxu0 0
    %6335 = vmatprep.subr.bf16.mxu0 0
    %6336 = vmatpush2.bf16.msra.mxu0 0
    %6337 = vmatprep.subr.bf16.mxu0 0
    %6338 = vmatpush2.bf16.msra.mxu0 0
    %6339 = vmatprep.subr.bf16.mxu0 0
    %6340 = vmatpush2.bf16.msra.mxu0 0
    %6341 = vmatprep.subr.bf16.mxu0 0
    %6342 = vmatpush2.bf16.msra.mxu0 0
    %6343 = vmatprep.subr.bf16.mxu0 0
    %6344 = vmatpush2.bf16.msra.mxu0 0
    %6345 = vmatprep.subr.bf16.mxu0 0
    %6346 = vmatpush2.bf16.msra.mxu0 0
    %6347 = vmatprep.mubr.bf16.mxu0 0
    %6348 = vmatmul.mubr.bf16.gmra.mxu0 %v6265
    %v6349 = vpop.f32.mrf.mxu0
    %v6350 = vadd.f32 0.0, %v6349
    %v6351 = vpop.f32.mrf.mxu0
    %v6352 = vpop.f32.mrf.mxu0
    %v6353 = vadd.f32 0.0, %v6352
    %v6354 = vpop.f32.mrf.mxu0
    %6355 = vdwg.mxu0
    %v6356 = vadd.f32 %v6241, %v6350
    %v6357 = vadd.f32 %v6242, %v6353
    %v6358 = vld [vmem:[#allocation2 + $0x18] sm:$0xf]
    %v6359 = vld [vmem:[#allocation2 + $0x38] sm:$0xf]
    %v6360 = vld [vmem:[#allocation5] sm:$0xf]
    %v6361 = vld [vmem:[#allocation5 + $0x4] sm:$0xf]
    %v6362 = vld [vmem:[#allocation5 + $0x8] sm:$0xf]
    %v6363 = vld [vmem:[#allocation5 + $0xc] sm:$0xf]
    %v6364 = vld [vmem:[#allocation5 + $0x10] sm:$0xf]
    %v6365 = vld [vmem:[#allocation5 + $0x14] sm:$0xf]
    %v6366 = vld [vmem:[#allocation5 + $0x18] sm:$0xf]
    %v6367 = vld [vmem:[#allocation5 + $0x1c] sm:$0xf]
    %v6368 = vld [vmem:[#allocation5 + $0x20] sm:$0xf]
    %v6369 = vld [vmem:[#allocation5 + $0x24] sm:$0xf]
    %v6370 = vld [vmem:[#allocation5 + $0x28] sm:$0xf]
    %v6371 = vld [vmem:[#allocation5 + $0x2c] sm:$0xf]
    %v6372 = vld [vmem:[#allocation5 + $0x30] sm:$0xf]
    %v6373 = vld [vmem:[#allocation5 + $0x34] sm:$0xf]
    %v6374 = vld [vmem:[#allocation5 + $0x38] sm:$0xf]
    %v6375 = vld [vmem:[#allocation5 + $0x3c] sm:$0xf]
    %v6378 = vunpack.c.l.b16 %v6358
    %v6379 = vunpack.c.l.b16 %v6359
    %v6380 = vpack.c.b16 %v6379, %v6378
    %v6398 = vunpack.c.l.b16 %v6360
    %v6399 = vunpack.c.l.b16 %v6361
    %v6400 = vunpack.c.l.b16 %v6362
    %v6401 = vunpack.c.l.b16 %v6363
    %v6402 = vunpack.c.l.b16 %v6364
    %v6403 = vunpack.c.l.b16 %v6365
    %v6404 = vunpack.c.l.b16 %v6366
    %v6405 = vunpack.c.l.b16 %v6367
    %v6406 = vunpack.c.l.b16 %v6368
    %v6407 = vunpack.c.l.b16 %v6369
    %v6408 = vunpack.c.l.b16 %v6370
    %v6409 = vunpack.c.l.b16 %v6371
    %v6410 = vunpack.c.l.b16 %v6372
    %v6411 = vunpack.c.l.b16 %v6373
    %v6412 = vunpack.c.l.b16 %v6374
    %v6413 = vunpack.c.l.b16 %v6375
    %v6414 = vpack.c.b16 %v6399, %v6398
    %v6415 = vpack.c.b16 %v6401, %v6400
    %v6416 = vpack.c.b16 %v6403, %v6402
    %v6417 = vpack.c.b16 %v6405, %v6404
    %v6418 = vpack.c.b16 %v6407, %v6406
    %v6419 = vpack.c.b16 %v6409, %v6408
    %v6420 = vpack.c.b16 %v6411, %v6410
    %v6421 = vpack.c.b16 %v6413, %v6412
    %6430 = vmatprep.subr.bf16.mxu0 0
    %6431 = vmatpush1.bf16.msra.mxu0 %v6421
    %6432 = vmatprep.subr.bf16.mxu0 0
    %6433 = vmatpush1.bf16.msra.mxu0 %v6420
    %6434 = vmatprep.subr.bf16.mxu0 0
    %6435 = vmatpush1.bf16.msra.mxu0 %v6419
    %6436 = vmatprep.subr.bf16.mxu0 0
    %6437 = vmatpush1.bf16.msra.mxu0 %v6418
    %6438 = vmatprep.subr.bf16.mxu0 0
    %6439 = vmatpush1.bf16.msra.mxu0 %v6417
    %6440 = vmatprep.subr.bf16.mxu0 0
    %6441 = vmatpush1.bf16.msra.mxu0 %v6416
    %6442 = vmatprep.subr.bf16.mxu0 0
    %6443 = vmatpush1.bf16.msra.mxu0 %v6415
    %6444 = vmatprep.subr.bf16.mxu0 0
    %6445 = vmatpush1.bf16.msra.mxu0 %v6414
    %6446 = vmatprep.subr.bf16.mxu0 0
    %6447 = vmatpush2.bf16.msra.mxu0 0
    %6448 = vmatprep.subr.bf16.mxu0 0
    %6449 = vmatpush2.bf16.msra.mxu0 0
    %6450 = vmatprep.subr.bf16.mxu0 0
    %6451 = vmatpush2.bf16.msra.mxu0 0
    %6452 = vmatprep.subr.bf16.mxu0 0
    %6453 = vmatpush2.bf16.msra.mxu0 0
    %6454 = vmatprep.subr.bf16.mxu0 0
    %6455 = vmatpush2.bf16.msra.mxu0 0
    %6456 = vmatprep.subr.bf16.mxu0 0
    %6457 = vmatpush2.bf16.msra.mxu0 0
    %6458 = vmatprep.subr.bf16.mxu0 0
    %6459 = vmatpush2.bf16.msra.mxu0 0
    %6460 = vmatprep.subr.bf16.mxu0 0
    %6461 = vmatpush2.bf16.msra.mxu0 0
    %6462 = vmatprep.mubr.bf16.mxu0 0
    %6463 = vmatmul.mubr.bf16.gmra.mxu0 %v6380
    %v6464 = vpop.f32.mrf.mxu0
    %v6465 = vadd.f32 0.0, %v6464
    %v6466 = vpop.f32.mrf.mxu0
    %v6467 = vpop.f32.mrf.mxu0
    %v6468 = vadd.f32 0.0, %v6467
    %v6469 = vpop.f32.mrf.mxu0
    %6470 = vdwg.mxu0
    %v6471 = vadd.f32 %v6356, %v6465
    %v6472 = vadd.f32 %v6357, %v6468
    %v6473 = vld [vmem:[#allocation2 + $0x1c] sm:$0xf]
    %v6474 = vld [vmem:[#allocation2 + $0x3c] sm:$0xf]
    %v6475 = vld [vmem:[%s75] sm:$0xf]
    %v6476 = vld [vmem:[%s75 + $0x4] sm:$0xf]
    %v6477 = vld [vmem:[%s75 + $0x8] sm:$0xf]
    %v6478 = vld [vmem:[%s75 + $0xc] sm:$0xf]
    %v6479 = vld [vmem:[%s75 + $0x10] sm:$0xf]
    %v6480 = vld [vmem:[%s75 + $0x14] sm:$0xf]
    %v6481 = vld [vmem:[%s75 + $0x18] sm:$0xf]
    %v6482 = vld [vmem:[%s75 + $0x1c] sm:$0xf]
    %v6483 = vld [vmem:[%s75 + $0x20] sm:$0xf]
    %v6484 = vld [vmem:[%s75 + $0x24] sm:$0xf]
    %v6485 = vld [vmem:[%s75 + $0x28] sm:$0xf]
    %v6486 = vld [vmem:[%s75 + $0x2c] sm:$0xf]
    %v6487 = vld [vmem:[%s75 + $0x30] sm:$0xf]
    %v6488 = vld [vmem:[%s75 + $0x34] sm:$0xf]
    %v6489 = vld [vmem:[%s75 + $0x38] sm:$0xf]
    %v6490 = vld [vmem:[%s75 + $0x3c] sm:$0xf]
    %v6493 = vunpack.c.l.b16 %v6473
    %v6494 = vunpack.c.l.b16 %v6474
    %v6495 = vpack.c.b16 %v6494, %v6493
    %v6513 = vunpack.c.l.b16 %v6475
    %v6514 = vunpack.c.l.b16 %v6476
    %v6515 = vunpack.c.l.b16 %v6477
    %v6516 = vunpack.c.l.b16 %v6478
    %v6517 = vunpack.c.l.b16 %v6479
    %v6518 = vunpack.c.l.b16 %v6480
    %v6519 = vunpack.c.l.b16 %v6481
    %v6520 = vunpack.c.l.b16 %v6482
    %v6521 = vunpack.c.l.b16 %v6483
    %v6522 = vunpack.c.l.b16 %v6484
    %v6523 = vunpack.c.l.b16 %v6485
    %v6524 = vunpack.c.l.b16 %v6486
    %v6525 = vunpack.c.l.b16 %v6487
    %v6526 = vunpack.c.l.b16 %v6488
    %v6527 = vunpack.c.l.b16 %v6489
    %v6528 = vunpack.c.l.b16 %v6490
    %v6529 = vpack.c.b16 %v6514, %v6513
    %v6530 = vpack.c.b16 %v6516, %v6515
    %v6531 = vpack.c.b16 %v6518, %v6517
    %v6532 = vpack.c.b16 %v6520, %v6519
    %v6533 = vpack.c.b16 %v6522, %v6521
    %v6534 = vpack.c.b16 %v6524, %v6523
    %v6535 = vpack.c.b16 %v6526, %v6525
    %v6536 = vpack.c.b16 %v6528, %v6527
    %6545 = vmatprep.subr.bf16.mxu0 0
    %6546 = vmatpush1.bf16.msra.mxu0 %v6536
    %6547 = vmatprep.subr.bf16.mxu0 0
    %6548 = vmatpush1.bf16.msra.mxu0 %v6535
    %6549 = vmatprep.subr.bf16.mxu0 0
    %6550 = vmatpush1.bf16.msra.mxu0 %v6534
    %6551 = vmatprep.subr.bf16.mxu0 0
    %6552 = vmatpush1.bf16.msra.mxu0 %v6533
    %6553 = vmatprep.subr.bf16.mxu0 0
    %6554 = vmatpush1.bf16.msra.mxu0 %v6532
    %6555 = vmatprep.subr.bf16.mxu0 0
    %6556 = vmatpush1.bf16.msra.mxu0 %v6531
    %6557 = vmatprep.subr.bf16.mxu0 0
    %6558 = vmatpush1.bf16.msra.mxu0 %v6530
    %6559 = vmatprep.subr.bf16.mxu0 0
    %6560 = vmatpush1.bf16.msra.mxu0 %v6529
    %6561 = vmatprep.subr.bf16.mxu0 0
    %6562 = vmatpush2.bf16.msra.mxu0 0
    %6563 = vmatprep.subr.bf16.mxu0 0
    %6564 = vmatpush2.bf16.msra.mxu0 0
    %6565 = vmatprep.subr.bf16.mxu0 0
    %6566 = vmatpush2.bf16.msra.mxu0 0
    %6567 = vmatprep.subr.bf16.mxu0 0
    %6568 = vmatpush2.bf16.msra.mxu0 0
    %6569 = vmatprep.subr.bf16.mxu0 0
    %6570 = vmatpush2.bf16.msra.mxu0 0
    %6571 = vmatprep.subr.bf16.mxu0 0
    %6572 = vmatpush2.bf16.msra.mxu0 0
    %6573 = vmatprep.subr.bf16.mxu0 0
    %6574 = vmatpush2.bf16.msra.mxu0 0
    %6575 = vmatprep.subr.bf16.mxu0 0
    %6576 = vmatpush2.bf16.msra.mxu0 0
    %6577 = vmatprep.mubr.bf16.mxu0 0
    %6578 = vmatmul.mubr.bf16.gmra.mxu0 %v6495
    %v6579 = vpop.f32.mrf.mxu0
    %v6580 = vadd.f32 0.0, %v6579
    %v6581 = vpop.f32.mrf.mxu0
    %v6582 = vpop.f32.mrf.mxu0
    %v6583 = vadd.f32 0.0, %v6582
    %v6584 = vpop.f32.mrf.mxu0
    %6585 = vdwg.mxu0
    %v6586 = vsub.f32 0.0, %v6580
    %v6587 = vsub.f32 0.0, %v6583
    %v6588 = vadd.f32 %v6471, %v6586
    %v6589 = vadd.f32 %v6472, %v6587
    %v6590 = vld [vmem:[#allocation7 + $0x6] sm:$0x1]
    %v6592 = vlaneseq
    %v6593 = vshrl.u32 %v6592, 7
    %v6594 = vsub.s32 0, %v6593
    %v6595 = vrot.slane %v6590, %v6594
    %v6597 = vadd.f32 %v6588, %v6595
    %v6598 = vadd.f32 %v6589, %v6595
    %6599 = vst [vmem:[#allocation8 + $0x30] sm:$0xff] %v6597
    %6600 = vst [vmem:[#allocation8 + $0x70] sm:$0xff] %v6598
    %v6601 = vld [vmem:[#allocation2] sm:$0xf]
    %v6602 = vld [vmem:[#allocation2 + $0x20] sm:$0xf]
    %v6603 = vld [vmem:[%s876] sm:$0xf]
    %v6604 = vld [vmem:[%s876 + $0x4] sm:$0xf]
    %v6605 = vld [vmem:[%s876 + $0x8] sm:$0xf]
    %v6606 = vld [vmem:[%s876 + $0xc] sm:$0xf]
    %v6607 = vld [vmem:[%s876 + $0x10] sm:$0xf]
    %v6608 = vld [vmem:[%s876 + $0x14] sm:$0xf]
    %v6609 = vld [vmem:[%s876 + $0x18] sm:$0xf]
    %v6610 = vld [vmem:[%s876 + $0x1c] sm:$0xf]
    %v6611 = vld [vmem:[%s876 + $0x20] sm:$0xf]
    %v6612 = vld [vmem:[%s876 + $0x24] sm:$0xf]
    %v6613 = vld [vmem:[%s876 + $0x28] sm:$0xf]
    %v6614 = vld [vmem:[%s876 + $0x2c] sm:$0xf]
    %v6615 = vld [vmem:[%s876 + $0x30] sm:$0xf]
    %v6616 = vld [vmem:[%s876 + $0x34] sm:$0xf]
    %v6617 = vld [vmem:[%s876 + $0x38] sm:$0xf]
    %v6618 = vld [vmem:[%s876 + $0x3c] sm:$0xf]
    %v6619 = vld [vmem:[#allocation2 + $0x4] sm:$0xf]
    %v6620 = vld [vmem:[#allocation2 + $0x24] sm:$0xf]
    %v6621 = vld [vmem:[%s758] sm:$0xf]
    %v6622 = vld [vmem:[%s758 + $0x4] sm:$0xf]
    %v6623 = vld [vmem:[%s758 + $0x8] sm:$0xf]
    %v6624 = vld [vmem:[%s758 + $0xc] sm:$0xf]
    %v6625 = vld [vmem:[%s758 + $0x10] sm:$0xf]
    %v6626 = vld [vmem:[%s758 + $0x14] sm:$0xf]
    %v6627 = vld [vmem:[%s758 + $0x18] sm:$0xf]
    %v6628 = vld [vmem:[%s758 + $0x1c] sm:$0xf]
    %v6629 = vld [vmem:[%s758 + $0x20] sm:$0xf]
    %v6630 = vld [vmem:[%s758 + $0x24] sm:$0xf]
    %v6631 = vld [vmem:[%s758 + $0x28] sm:$0xf]
    %v6632 = vld [vmem:[%s758 + $0x2c] sm:$0xf]
    %v6633 = vld [vmem:[%s758 + $0x30] sm:$0xf]
    %v6634 = vld [vmem:[%s758 + $0x34] sm:$0xf]
    %v6635 = vld [vmem:[%s758 + $0x38] sm:$0xf]
    %v6636 = vld [vmem:[%s758 + $0x3c] sm:$0xf]
    %v6639 = vunpack.c.l.b16 %v6619
    %v6640 = vunpack.c.l.b16 %v6620
    %v6641 = vpack.c.b16 %v6640, %v6639
    %v6659 = vunpack.c.l.b16 %v6621
    %v6660 = vunpack.c.l.b16 %v6622
    %v6661 = vunpack.c.l.b16 %v6623
    %v6662 = vunpack.c.l.b16 %v6624
    %v6663 = vunpack.c.l.b16 %v6625
    %v6664 = vunpack.c.l.b16 %v6626
    %v6665 = vunpack.c.l.b16 %v6627
    %v6666 = vunpack.c.l.b16 %v6628
    %v6667 = vunpack.c.l.b16 %v6629
    %v6668 = vunpack.c.l.b16 %v6630
    %v6669 = vunpack.c.l.b16 %v6631
    %v6670 = vunpack.c.l.b16 %v6632
    %v6671 = vunpack.c.l.b16 %v6633
    %v6672 = vunpack.c.l.b16 %v6634
    %v6673 = vunpack.c.l.b16 %v6635
    %v6674 = vunpack.c.l.b16 %v6636
    %v6675 = vpack.c.b16 %v6660, %v6659
    %v6676 = vpack.c.b16 %v6662, %v6661
    %v6677 = vpack.c.b16 %v6664, %v6663
    %v6678 = vpack.c.b16 %v6666, %v6665
    %v6679 = vpack.c.b16 %v6668, %v6667
    %v6680 = vpack.c.b16 %v6670, %v6669
    %v6681 = vpack.c.b16 %v6672, %v6671
    %v6682 = vpack.c.b16 %v6674, %v6673
    %6691 = vmatprep.subr.bf16.mxu0 0
    %6692 = vmatpush1.bf16.msra.mxu0 %v6682
    %6693 = vmatprep.subr.bf16.mxu0 0
    %6694 = vmatpush1.bf16.msra.mxu0 %v6681
    %6695 = vmatprep.subr.bf16.mxu0 0
    %6696 = vmatpush1.bf16.msra.mxu0 %v6680
    %6697 = vmatprep.subr.bf16.mxu0 0
    %6698 = vmatpush1.bf16.msra.mxu0 %v6679
    %6699 = vmatprep.subr.bf16.mxu0 0
    %6700 = vmatpush1.bf16.msra.mxu0 %v6678
    %6701 = vmatprep.subr.bf16.mxu0 0
    %6702 = vmatpush1.bf16.msra.mxu0 %v6677
    %6703 = vmatprep.subr.bf16.mxu0 0
    %6704 = vmatpush1.bf16.msra.mxu0 %v6676
    %6705 = vmatprep.subr.bf16.mxu0 0
    %6706 = vmatpush1.bf16.msra.mxu0 %v6675
    %6707 = vmatprep.subr.bf16.mxu0 0
    %6708 = vmatpush2.bf16.msra.mxu0 0
    %6709 = vmatprep.subr.bf16.mxu0 0
    %6710 = vmatpush2.bf16.msra.mxu0 0
    %6711 = vmatprep.subr.bf16.mxu0 0
    %6712 = vmatpush2.bf16.msra.mxu0 0
    %6713 = vmatprep.subr.bf16.mxu0 0
    %6714 = vmatpush2.bf16.msra.mxu0 0
    %6715 = vmatprep.subr.bf16.mxu0 0
    %6716 = vmatpush2.bf16.msra.mxu0 0
    %6717 = vmatprep.subr.bf16.mxu0 0
    %6718 = vmatpush2.bf16.msra.mxu0 0
    %6719 = vmatprep.subr.bf16.mxu0 0
    %6720 = vmatpush2.bf16.msra.mxu0 0
    %6721 = vmatprep.subr.bf16.mxu0 0
    %6722 = vmatpush2.bf16.msra.mxu0 0
    %6723 = vmatprep.mubr.bf16.mxu0 0
    %6724 = vmatmul.mubr.bf16.gmra.mxu0 %v6641
    %v6725 = vpop.f32.mrf.mxu0
    %v6726 = vadd.f32 0.0, %v6725
    %v6727 = vpop.f32.mrf.mxu0
    %v6728 = vpop.f32.mrf.mxu0
    %v6729 = vadd.f32 0.0, %v6728
    %v6730 = vpop.f32.mrf.mxu0
    %6731 = vdwg.mxu0
    %v6732 = vsub.f32 0.0, %v6726
    %v6733 = vsub.f32 0.0, %v6729
    %v6736 = vunpack.c.l.b16 %v6601
    %v6737 = vunpack.c.l.b16 %v6602
    %v6738 = vpack.c.b16 %v6737, %v6736
    %v6756 = vunpack.c.l.b16 %v6603
    %v6757 = vunpack.c.l.b16 %v6604
    %v6758 = vunpack.c.l.b16 %v6605
    %v6759 = vunpack.c.l.b16 %v6606
    %v6760 = vunpack.c.l.b16 %v6607
    %v6761 = vunpack.c.l.b16 %v6608
    %v6762 = vunpack.c.l.b16 %v6609
    %v6763 = vunpack.c.l.b16 %v6610
    %v6764 = vunpack.c.l.b16 %v6611
    %v6765 = vunpack.c.l.b16 %v6612
    %v6766 = vunpack.c.l.b16 %v6613
    %v6767 = vunpack.c.l.b16 %v6614
    %v6768 = vunpack.c.l.b16 %v6615
    %v6769 = vunpack.c.l.b16 %v6616
    %v6770 = vunpack.c.l.b16 %v6617
    %v6771 = vunpack.c.l.b16 %v6618
    %v6772 = vpack.c.b16 %v6757, %v6756
    %v6773 = vpack.c.b16 %v6759, %v6758
    %v6774 = vpack.c.b16 %v6761, %v6760
    %v6775 = vpack.c.b16 %v6763, %v6762
    %v6776 = vpack.c.b16 %v6765, %v6764
    %v6777 = vpack.c.b16 %v6767, %v6766
    %v6778 = vpack.c.b16 %v6769, %v6768
    %v6779 = vpack.c.b16 %v6771, %v6770
    %6788 = vmatprep.subr.bf16.mxu0 0
    %6789 = vmatpush1.bf16.msra.mxu0 %v6779
    %6790 = vmatprep.subr.bf16.mxu0 0
    %6791 = vmatpush1.bf16.msra.mxu0 %v6778
    %6792 = vmatprep.subr.bf16.mxu0 0
    %6793 = vmatpush1.bf16.msra.mxu0 %v6777
    %6794 = vmatprep.subr.bf16.mxu0 0
    %6795 = vmatpush1.bf16.msra.mxu0 %v6776
    %6796 = vmatprep.subr.bf16.mxu0 0
    %6797 = vmatpush1.bf16.msra.mxu0 %v6775
    %6798 = vmatprep.subr.bf16.mxu0 0
    %6799 = vmatpush1.bf16.msra.mxu0 %v6774
    %6800 = vmatprep.subr.bf16.mxu0 0
    %6801 = vmatpush1.bf16.msra.mxu0 %v6773
    %6802 = vmatprep.subr.bf16.mxu0 0
    %6803 = vmatpush1.bf16.msra.mxu0 %v6772
    %6804 = vmatprep.subr.bf16.mxu0 0
    %6805 = vmatpush2.bf16.msra.mxu0 0
    %6806 = vmatprep.subr.bf16.mxu0 0
    %6807 = vmatpush2.bf16.msra.mxu0 0
    %6808 = vmatprep.subr.bf16.mxu0 0
    %6809 = vmatpush2.bf16.msra.mxu0 0
    %6810 = vmatprep.subr.bf16.mxu0 0
    %6811 = vmatpush2.bf16.msra.mxu0 0
    %6812 = vmatprep.subr.bf16.mxu0 0
    %6813 = vmatpush2.bf16.msra.mxu0 0
    %6814 = vmatprep.subr.bf16.mxu0 0
    %6815 = vmatpush2.bf16.msra.mxu0 0
    %6816 = vmatprep.subr.bf16.mxu0 0
    %6817 = vmatpush2.bf16.msra.mxu0 0
    %6818 = vmatprep.subr.bf16.mxu0 0
    %6819 = vmatpush2.bf16.msra.mxu0 0
    %6820 = vmatprep.mubr.bf16.mxu0 0
    %6821 = vmatmul.mubr.bf16.gmra.mxu0 %v6738
    %v6822 = vpop.f32.mrf.mxu0
    %v6823 = vadd.f32 %v6732, %v6822
    %v6824 = vpop.f32.mrf.mxu0
    %v6825 = vpop.f32.mrf.mxu0
    %v6826 = vadd.f32 %v6733, %v6825
    %v6827 = vpop.f32.mrf.mxu0
    %6828 = vdwg.mxu0
    %v6829 = vld [vmem:[#allocation2 + $0x8] sm:$0xf]
    %v6830 = vld [vmem:[#allocation2 + $0x28] sm:$0xf]
    %v6831 = vld [vmem:[%s640] sm:$0xf]
    %v6832 = vld [vmem:[%s640 + $0x4] sm:$0xf]
    %v6833 = vld [vmem:[%s640 + $0x8] sm:$0xf]
    %v6834 = vld [vmem:[%s640 + $0xc] sm:$0xf]
    %v6835 = vld [vmem:[%s640 + $0x10] sm:$0xf]
    %v6836 = vld [vmem:[%s640 + $0x14] sm:$0xf]
    %v6837 = vld [vmem:[%s640 + $0x18] sm:$0xf]
    %v6838 = vld [vmem:[%s640 + $0x1c] sm:$0xf]
    %v6839 = vld [vmem:[%s640 + $0x20] sm:$0xf]
    %v6840 = vld [vmem:[%s640 + $0x24] sm:$0xf]
    %v6841 = vld [vmem:[%s640 + $0x28] sm:$0xf]
    %v6842 = vld [vmem:[%s640 + $0x2c] sm:$0xf]
    %v6843 = vld [vmem:[%s640 + $0x30] sm:$0xf]
    %v6844 = vld [vmem:[%s640 + $0x34] sm:$0xf]
    %v6845 = vld [vmem:[%s640 + $0x38] sm:$0xf]
    %v6846 = vld [vmem:[%s640 + $0x3c] sm:$0xf]
    %v6849 = vunpack.c.l.b16 %v6829
    %v6850 = vunpack.c.l.b16 %v6830
    %v6851 = vpack.c.b16 %v6850, %v6849
    %v6869 = vunpack.c.l.b16 %v6831
    %v6870 = vunpack.c.l.b16 %v6832
    %v6871 = vunpack.c.l.b16 %v6833
    %v6872 = vunpack.c.l.b16 %v6834
    %v6873 = vunpack.c.l.b16 %v6835
    %v6874 = vunpack.c.l.b16 %v6836
    %v6875 = vunpack.c.l.b16 %v6837
    %v6876 = vunpack.c.l.b16 %v6838
    %v6877 = vunpack.c.l.b16 %v6839
    %v6878 = vunpack.c.l.b16 %v6840
    %v6879 = vunpack.c.l.b16 %v6841
    %v6880 = vunpack.c.l.b16 %v6842
    %v6881 = vunpack.c.l.b16 %v6843
    %v6882 = vunpack.c.l.b16 %v6844
    %v6883 = vunpack.c.l.b16 %v6845
    %v6884 = vunpack.c.l.b16 %v6846
    %v6885 = vpack.c.b16 %v6870, %v6869
    %v6886 = vpack.c.b16 %v6872, %v6871
    %v6887 = vpack.c.b16 %v6874, %v6873
    %v6888 = vpack.c.b16 %v6876, %v6875
    %v6889 = vpack.c.b16 %v6878, %v6877
    %v6890 = vpack.c.b16 %v6880, %v6879
    %v6891 = vpack.c.b16 %v6882, %v6881
    %v6892 = vpack.c.b16 %v6884, %v6883
    %6901 = vmatprep.subr.bf16.mxu0 0
    %6902 = vmatpush1.bf16.msra.mxu0 %v6892
    %6903 = vmatprep.subr.bf16.mxu0 0
    %6904 = vmatpush1.bf16.msra.mxu0 %v6891
    %6905 = vmatprep.subr.bf16.mxu0 0
    %6906 = vmatpush1.bf16.msra.mxu0 %v6890
    %6907 = vmatprep.subr.bf16.mxu0 0
    %6908 = vmatpush1.bf16.msra.mxu0 %v6889
    %6909 = vmatprep.subr.bf16.mxu0 0
    %6910 = vmatpush1.bf16.msra.mxu0 %v6888
    %6911 = vmatprep.subr.bf16.mxu0 0
    %6912 = vmatpush1.bf16.msra.mxu0 %v6887
    %6913 = vmatprep.subr.bf16.mxu0 0
    %6914 = vmatpush1.bf16.msra.mxu0 %v6886
    %6915 = vmatprep.subr.bf16.mxu0 0
    %6916 = vmatpush1.bf16.msra.mxu0 %v6885
    %6917 = vmatprep.subr.bf16.mxu0 0
    %6918 = vmatpush2.bf16.msra.mxu0 0
    %6919 = vmatprep.subr.bf16.mxu0 0
    %6920 = vmatpush2.bf16.msra.mxu0 0
    %6921 = vmatprep.subr.bf16.mxu0 0
    %6922 = vmatpush2.bf16.msra.mxu0 0
    %6923 = vmatprep.subr.bf16.mxu0 0
    %6924 = vmatpush2.bf16.msra.mxu0 0
    %6925 = vmatprep.subr.bf16.mxu0 0
    %6926 = vmatpush2.bf16.msra.mxu0 0
    %6927 = vmatprep.subr.bf16.mxu0 0
    %6928 = vmatpush2.bf16.msra.mxu0 0
    %6929 = vmatprep.subr.bf16.mxu0 0
    %6930 = vmatpush2.bf16.msra.mxu0 0
    %6931 = vmatprep.subr.bf16.mxu0 0
    %6932 = vmatpush2.bf16.msra.mxu0 0
    %6933 = vmatprep.mubr.bf16.mxu0 0
    %6934 = vmatmul.mubr.bf16.gmra.mxu0 %v6851
    %v6935 = vpop.f32.mrf.mxu0
    %v6936 = vadd.f32 0.0, %v6935
    %v6937 = vpop.f32.mrf.mxu0
    %v6938 = vpop.f32.mrf.mxu0
    %v6939 = vadd.f32 0.0, %v6938
    %v6940 = vpop.f32.mrf.mxu0
    %6941 = vdwg.mxu0
    %v6942 = vadd.f32 %v6823, %v6936
    %v6943 = vadd.f32 %v6826, %v6939
    %v6944 = vld [vmem:[#allocation2 + $0xc] sm:$0xf]
    %v6945 = vld [vmem:[#allocation2 + $0x2c] sm:$0xf]
    %v6946 = vld [vmem:[%s522] sm:$0xf]
    %v6947 = vld [vmem:[%s522 + $0x4] sm:$0xf]
    %v6948 = vld [vmem:[%s522 + $0x8] sm:$0xf]
    %v6949 = vld [vmem:[%s522 + $0xc] sm:$0xf]
    %v6950 = vld [vmem:[%s522 + $0x10] sm:$0xf]
    %v6951 = vld [vmem:[%s522 + $0x14] sm:$0xf]
    %v6952 = vld [vmem:[%s522 + $0x18] sm:$0xf]
    %v6953 = vld [vmem:[%s522 + $0x1c] sm:$0xf]
    %v6954 = vld [vmem:[%s522 + $0x20] sm:$0xf]
    %v6955 = vld [vmem:[%s522 + $0x24] sm:$0xf]
    %v6956 = vld [vmem:[%s522 + $0x28] sm:$0xf]
    %v6957 = vld [vmem:[%s522 + $0x2c] sm:$0xf]
    %v6958 = vld [vmem:[%s522 + $0x30] sm:$0xf]
    %v6959 = vld [vmem:[%s522 + $0x34] sm:$0xf]
    %v6960 = vld [vmem:[%s522 + $0x38] sm:$0xf]
    %v6961 = vld [vmem:[%s522 + $0x3c] sm:$0xf]
    %v6964 = vunpack.c.l.b16 %v6944
    %v6965 = vunpack.c.l.b16 %v6945
    %v6966 = vpack.c.b16 %v6965, %v6964
    %v6984 = vunpack.c.l.b16 %v6946
    %v6985 = vunpack.c.l.b16 %v6947
    %v6986 = vunpack.c.l.b16 %v6948
    %v6987 = vunpack.c.l.b16 %v6949
    %v6988 = vunpack.c.l.b16 %v6950
    %v6989 = vunpack.c.l.b16 %v6951
    %v6990 = vunpack.c.l.b16 %v6952
    %v6991 = vunpack.c.l.b16 %v6953
    %v6992 = vunpack.c.l.b16 %v6954
    %v6993 = vunpack.c.l.b16 %v6955
    %v6994 = vunpack.c.l.b16 %v6956
    %v6995 = vunpack.c.l.b16 %v6957
    %v6996 = vunpack.c.l.b16 %v6958
    %v6997 = vunpack.c.l.b16 %v6959
    %v6998 = vunpack.c.l.b16 %v6960
    %v6999 = vunpack.c.l.b16 %v6961
    %v7000 = vpack.c.b16 %v6985, %v6984
    %v7001 = vpack.c.b16 %v6987, %v6986
    %v7002 = vpack.c.b16 %v6989, %v6988
    %v7003 = vpack.c.b16 %v6991, %v6990
    %v7004 = vpack.c.b16 %v6993, %v6992
    %v7005 = vpack.c.b16 %v6995, %v6994
    %v7006 = vpack.c.b16 %v6997, %v6996
    %v7007 = vpack.c.b16 %v6999, %v6998
    %7016 = vmatprep.subr.bf16.mxu0 0
    %7017 = vmatpush1.bf16.msra.mxu0 %v7007
    %7018 = vmatprep.subr.bf16.mxu0 0
    %7019 = vmatpush1.bf16.msra.mxu0 %v7006
    %7020 = vmatprep.subr.bf16.mxu0 0
    %7021 = vmatpush1.bf16.msra.mxu0 %v7005
    %7022 = vmatprep.subr.bf16.mxu0 0
    %7023 = vmatpush1.bf16.msra.mxu0 %v7004
    %7024 = vmatprep.subr.bf16.mxu0 0
    %7025 = vmatpush1.bf16.msra.mxu0 %v7003
    %7026 = vmatprep.subr.bf16.mxu0 0
    %7027 = vmatpush1.bf16.msra.mxu0 %v7002
    %7028 = vmatprep.subr.bf16.mxu0 0
    %7029 = vmatpush1.bf16.msra.mxu0 %v7001
    %7030 = vmatprep.subr.bf16.mxu0 0
    %7031 = vmatpush1.bf16.msra.mxu0 %v7000
    %7032 = vmatprep.subr.bf16.mxu0 0
    %7033 = vmatpush2.bf16.msra.mxu0 0
    %7034 = vmatprep.subr.bf16.mxu0 0
    %7035 = vmatpush2.bf16.msra.mxu0 0
    %7036 = vmatprep.subr.bf16.mxu0 0
    %7037 = vmatpush2.bf16.msra.mxu0 0
    %7038 = vmatprep.subr.bf16.mxu0 0
    %7039 = vmatpush2.bf16.msra.mxu0 0
    %7040 = vmatprep.subr.bf16.mxu0 0
    %7041 = vmatpush2.bf16.msra.mxu0 0
    %7042 = vmatprep.subr.bf16.mxu0 0
    %7043 = vmatpush2.bf16.msra.mxu0 0
    %7044 = vmatprep.subr.bf16.mxu0 0
    %7045 = vmatpush2.bf16.msra.mxu0 0
    %7046 = vmatprep.subr.bf16.mxu0 0
    %7047 = vmatpush2.bf16.msra.mxu0 0
    %7048 = vmatprep.mubr.bf16.mxu0 0
    %7049 = vmatmul.mubr.bf16.gmra.mxu0 %v6966
    %v7050 = vpop.f32.mrf.mxu0
    %v7051 = vadd.f32 0.0, %v7050
    %v7052 = vpop.f32.mrf.mxu0
    %v7053 = vpop.f32.mrf.mxu0
    %v7054 = vadd.f32 0.0, %v7053
    %v7055 = vpop.f32.mrf.mxu0
    %7056 = vdwg.mxu0
    %v7057 = vadd.f32 %v6942, %v7051
    %v7058 = vadd.f32 %v6943, %v7054
    %v7059 = vld [vmem:[#allocation2 + $0x10] sm:$0xf]
    %v7060 = vld [vmem:[#allocation2 + $0x30] sm:$0xf]
    %v7061 = vld [vmem:[%s404] sm:$0xf]
    %v7062 = vld [vmem:[%s404 + $0x4] sm:$0xf]
    %v7063 = vld [vmem:[%s404 + $0x8] sm:$0xf]
    %v7064 = vld [vmem:[%s404 + $0xc] sm:$0xf]
    %v7065 = vld [vmem:[%s404 + $0x10] sm:$0xf]
    %v7066 = vld [vmem:[%s404 + $0x14] sm:$0xf]
    %v7067 = vld [vmem:[%s404 + $0x18] sm:$0xf]
    %v7068 = vld [vmem:[%s404 + $0x1c] sm:$0xf]
    %v7069 = vld [vmem:[%s404 + $0x20] sm:$0xf]
    %v7070 = vld [vmem:[%s404 + $0x24] sm:$0xf]
    %v7071 = vld [vmem:[%s404 + $0x28] sm:$0xf]
    %v7072 = vld [vmem:[%s404 + $0x2c] sm:$0xf]
    %v7073 = vld [vmem:[%s404 + $0x30] sm:$0xf]
    %v7074 = vld [vmem:[%s404 + $0x34] sm:$0xf]
    %v7075 = vld [vmem:[%s404 + $0x38] sm:$0xf]
    %v7076 = vld [vmem:[%s404 + $0x3c] sm:$0xf]
    %v7079 = vunpack.c.l.b16 %v7059
    %v7080 = vunpack.c.l.b16 %v7060
    %v7081 = vpack.c.b16 %v7080, %v7079
    %v7099 = vunpack.c.l.b16 %v7061
    %v7100 = vunpack.c.l.b16 %v7062
    %v7101 = vunpack.c.l.b16 %v7063
    %v7102 = vunpack.c.l.b16 %v7064
    %v7103 = vunpack.c.l.b16 %v7065
    %v7104 = vunpack.c.l.b16 %v7066
    %v7105 = vunpack.c.l.b16 %v7067
    %v7106 = vunpack.c.l.b16 %v7068
    %v7107 = vunpack.c.l.b16 %v7069
    %v7108 = vunpack.c.l.b16 %v7070
    %v7109 = vunpack.c.l.b16 %v7071
    %v7110 = vunpack.c.l.b16 %v7072
    %v7111 = vunpack.c.l.b16 %v7073
    %v7112 = vunpack.c.l.b16 %v7074
    %v7113 = vunpack.c.l.b16 %v7075
    %v7114 = vunpack.c.l.b16 %v7076
    %v7115 = vpack.c.b16 %v7100, %v7099
    %v7116 = vpack.c.b16 %v7102, %v7101
    %v7117 = vpack.c.b16 %v7104, %v7103
    %v7118 = vpack.c.b16 %v7106, %v7105
    %v7119 = vpack.c.b16 %v7108, %v7107
    %v7120 = vpack.c.b16 %v7110, %v7109
    %v7121 = vpack.c.b16 %v7112, %v7111
    %v7122 = vpack.c.b16 %v7114, %v7113
    %7131 = vmatprep.subr.bf16.mxu0 0
    %7132 = vmatpush1.bf16.msra.mxu0 %v7122
    %7133 = vmatprep.subr.bf16.mxu0 0
    %7134 = vmatpush1.bf16.msra.mxu0 %v7121
    %7135 = vmatprep.subr.bf16.mxu0 0
    %7136 = vmatpush1.bf16.msra.mxu0 %v7120
    %7137 = vmatprep.subr.bf16.mxu0 0
    %7138 = vmatpush1.bf16.msra.mxu0 %v7119
    %7139 = vmatprep.subr.bf16.mxu0 0
    %7140 = vmatpush1.bf16.msra.mxu0 %v7118
    %7141 = vmatprep.subr.bf16.mxu0 0
    %7142 = vmatpush1.bf16.msra.mxu0 %v7117
    %7143 = vmatprep.subr.bf16.mxu0 0
    %7144 = vmatpush1.bf16.msra.mxu0 %v7116
    %7145 = vmatprep.subr.bf16.mxu0 0
    %7146 = vmatpush1.bf16.msra.mxu0 %v7115
    %7147 = vmatprep.subr.bf16.mxu0 0
    %7148 = vmatpush2.bf16.msra.mxu0 0
    %7149 = vmatprep.subr.bf16.mxu0 0
    %7150 = vmatpush2.bf16.msra.mxu0 0
    %7151 = vmatprep.subr.bf16.mxu0 0
    %7152 = vmatpush2.bf16.msra.mxu0 0
    %7153 = vmatprep.subr.bf16.mxu0 0
    %7154 = vmatpush2.bf16.msra.mxu0 0
    %7155 = vmatprep.subr.bf16.mxu0 0
    %7156 = vmatpush2.bf16.msra.mxu0 0
    %7157 = vmatprep.subr.bf16.mxu0 0
    %7158 = vmatpush2.bf16.msra.mxu0 0
    %7159 = vmatprep.subr.bf16.mxu0 0
    %7160 = vmatpush2.bf16.msra.mxu0 0
    %7161 = vmatprep.subr.bf16.mxu0 0
    %7162 = vmatpush2.bf16.msra.mxu0 0
    %7163 = vmatprep.mubr.bf16.mxu0 0
    %7164 = vmatmul.mubr.bf16.gmra.mxu0 %v7081
    %v7165 = vpop.f32.mrf.mxu0
    %v7166 = vadd.f32 0.0, %v7165
    %v7167 = vpop.f32.mrf.mxu0
    %v7168 = vpop.f32.mrf.mxu0
    %v7169 = vadd.f32 0.0, %v7168
    %v7170 = vpop.f32.mrf.mxu0
    %7171 = vdwg.mxu0
    %v7172 = vsub.f32 0.0, %v7166
    %v7173 = vsub.f32 0.0, %v7169
    %v7174 = vadd.f32 %v7057, %v7172
    %v7175 = vadd.f32 %v7058, %v7173
    %v7176 = vld [vmem:[#allocation2 + $0x14] sm:$0xf]
    %v7177 = vld [vmem:[#allocation2 + $0x34] sm:$0xf]
    %v7178 = vld [vmem:[%s286] sm:$0xf]
    %v7179 = vld [vmem:[%s286 + $0x4] sm:$0xf]
    %v7180 = vld [vmem:[%s286 + $0x8] sm:$0xf]
    %v7181 = vld [vmem:[%s286 + $0xc] sm:$0xf]
    %v7182 = vld [vmem:[%s286 + $0x10] sm:$0xf]
    %v7183 = vld [vmem:[%s286 + $0x14] sm:$0xf]
    %v7184 = vld [vmem:[%s286 + $0x18] sm:$0xf]
    %v7185 = vld [vmem:[%s286 + $0x1c] sm:$0xf]
    %v7186 = vld [vmem:[%s286 + $0x20] sm:$0xf]
    %v7187 = vld [vmem:[%s286 + $0x24] sm:$0xf]
    %v7188 = vld [vmem:[%s286 + $0x28] sm:$0xf]
    %v7189 = vld [vmem:[%s286 + $0x2c] sm:$0xf]
    %v7190 = vld [vmem:[%s286 + $0x30] sm:$0xf]
    %v7191 = vld [vmem:[%s286 + $0x34] sm:$0xf]
    %v7192 = vld [vmem:[%s286 + $0x38] sm:$0xf]
    %v7193 = vld [vmem:[%s286 + $0x3c] sm:$0xf]
    %v7196 = vunpack.c.l.b16 %v7176
    %v7197 = vunpack.c.l.b16 %v7177
    %v7198 = vpack.c.b16 %v7197, %v7196
    %v7216 = vunpack.c.l.b16 %v7178
    %v7217 = vunpack.c.l.b16 %v7179
    %v7218 = vunpack.c.l.b16 %v7180
    %v7219 = vunpack.c.l.b16 %v7181
    %v7220 = vunpack.c.l.b16 %v7182
    %v7221 = vunpack.c.l.b16 %v7183
    %v7222 = vunpack.c.l.b16 %v7184
    %v7223 = vunpack.c.l.b16 %v7185
    %v7224 = vunpack.c.l.b16 %v7186
    %v7225 = vunpack.c.l.b16 %v7187
    %v7226 = vunpack.c.l.b16 %v7188
    %v7227 = vunpack.c.l.b16 %v7189
    %v7228 = vunpack.c.l.b16 %v7190
    %v7229 = vunpack.c.l.b16 %v7191
    %v7230 = vunpack.c.l.b16 %v7192
    %v7231 = vunpack.c.l.b16 %v7193
    %v7232 = vpack.c.b16 %v7217, %v7216
    %v7233 = vpack.c.b16 %v7219, %v7218
    %v7234 = vpack.c.b16 %v7221, %v7220
    %v7235 = vpack.c.b16 %v7223, %v7222
    %v7236 = vpack.c.b16 %v7225, %v7224
    %v7237 = vpack.c.b16 %v7227, %v7226
    %v7238 = vpack.c.b16 %v7229, %v7228
    %v7239 = vpack.c.b16 %v7231, %v7230
    %7248 = vmatprep.subr.bf16.mxu0 0
    %7249 = vmatpush1.bf16.msra.mxu0 %v7239
    %7250 = vmatprep.subr.bf16.mxu0 0
    %7251 = vmatpush1.bf16.msra.mxu0 %v7238
    %7252 = vmatprep.subr.bf16.mxu0 0
    %7253 = vmatpush1.bf16.msra.mxu0 %v7237
    %7254 = vmatprep.subr.bf16.mxu0 0
    %7255 = vmatpush1.bf16.msra.mxu0 %v7236
    %7256 = vmatprep.subr.bf16.mxu0 0
    %7257 = vmatpush1.bf16.msra.mxu0 %v7235
    %7258 = vmatprep.subr.bf16.mxu0 0
    %7259 = vmatpush1.bf16.msra.mxu0 %v7234
    %7260 = vmatprep.subr.bf16.mxu0 0
    %7261 = vmatpush1.bf16.msra.mxu0 %v7233
    %7262 = vmatprep.subr.bf16.mxu0 0
    %7263 = vmatpush1.bf16.msra.mxu0 %v7232
    %7264 = vmatprep.subr.bf16.mxu0 0
    %7265 = vmatpush2.bf16.msra.mxu0 0
    %7266 = vmatprep.subr.bf16.mxu0 0
    %7267 = vmatpush2.bf16.msra.mxu0 0
    %7268 = vmatprep.subr.bf16.mxu0 0
    %7269 = vmatpush2.bf16.msra.mxu0 0
    %7270 = vmatprep.subr.bf16.mxu0 0
    %7271 = vmatpush2.bf16.msra.mxu0 0
    %7272 = vmatprep.subr.bf16.mxu0 0
    %7273 = vmatpush2.bf16.msra.mxu0 0
    %7274 = vmatprep.subr.bf16.mxu0 0
    %7275 = vmatpush2.bf16.msra.mxu0 0
    %7276 = vmatprep.subr.bf16.mxu0 0
    %7277 = vmatpush2.bf16.msra.mxu0 0
    %7278 = vmatprep.subr.bf16.mxu0 0
    %7279 = vmatpush2.bf16.msra.mxu0 0
    %7280 = vmatprep.mubr.bf16.mxu0 0
    %7281 = vmatmul.mubr.bf16.gmra.mxu0 %v7198
    %v7282 = vpop.f32.mrf.mxu0
    %v7283 = vadd.f32 0.0, %v7282
    %v7284 = vpop.f32.mrf.mxu0
    %v7285 = vpop.f32.mrf.mxu0
    %v7286 = vadd.f32 0.0, %v7285
    %v7287 = vpop.f32.mrf.mxu0
    %7288 = vdwg.mxu0
    %v7289 = vsub.f32 0.0, %v7283
    %v7290 = vsub.f32 0.0, %v7286
    %v7291 = vadd.f32 %v7174, %v7289
    %v7292 = vadd.f32 %v7175, %v7290
    %v7293 = vld [vmem:[#allocation2 + $0x18] sm:$0xf]
    %v7294 = vld [vmem:[#allocation2 + $0x38] sm:$0xf]
    %v7295 = vld [vmem:[%s75] sm:$0xf]
    %v7296 = vld [vmem:[%s75 + $0x4] sm:$0xf]
    %v7297 = vld [vmem:[%s75 + $0x8] sm:$0xf]
    %v7298 = vld [vmem:[%s75 + $0xc] sm:$0xf]
    %v7299 = vld [vmem:[%s75 + $0x10] sm:$0xf]
    %v7300 = vld [vmem:[%s75 + $0x14] sm:$0xf]
    %v7301 = vld [vmem:[%s75 + $0x18] sm:$0xf]
    %v7302 = vld [vmem:[%s75 + $0x1c] sm:$0xf]
    %v7303 = vld [vmem:[%s75 + $0x20] sm:$0xf]
    %v7304 = vld [vmem:[%s75 + $0x24] sm:$0xf]
    %v7305 = vld [vmem:[%s75 + $0x28] sm:$0xf]
    %v7306 = vld [vmem:[%s75 + $0x2c] sm:$0xf]
    %v7307 = vld [vmem:[%s75 + $0x30] sm:$0xf]
    %v7308 = vld [vmem:[%s75 + $0x34] sm:$0xf]
    %v7309 = vld [vmem:[%s75 + $0x38] sm:$0xf]
    %v7310 = vld [vmem:[%s75 + $0x3c] sm:$0xf]
    %v7313 = vunpack.c.l.b16 %v7293
    %v7314 = vunpack.c.l.b16 %v7294
    %v7315 = vpack.c.b16 %v7314, %v7313
    %v7333 = vunpack.c.l.b16 %v7295
    %v7334 = vunpack.c.l.b16 %v7296
    %v7335 = vunpack.c.l.b16 %v7297
    %v7336 = vunpack.c.l.b16 %v7298
    %v7337 = vunpack.c.l.b16 %v7299
    %v7338 = vunpack.c.l.b16 %v7300
    %v7339 = vunpack.c.l.b16 %v7301
    %v7340 = vunpack.c.l.b16 %v7302
    %v7341 = vunpack.c.l.b16 %v7303
    %v7342 = vunpack.c.l.b16 %v7304
    %v7343 = vunpack.c.l.b16 %v7305
    %v7344 = vunpack.c.l.b16 %v7306
    %v7345 = vunpack.c.l.b16 %v7307
    %v7346 = vunpack.c.l.b16 %v7308
    %v7347 = vunpack.c.l.b16 %v7309
    %v7348 = vunpack.c.l.b16 %v7310
    %v7349 = vpack.c.b16 %v7334, %v7333
    %v7350 = vpack.c.b16 %v7336, %v7335
    %v7351 = vpack.c.b16 %v7338, %v7337
    %v7352 = vpack.c.b16 %v7340, %v7339
    %v7353 = vpack.c.b16 %v7342, %v7341
    %v7354 = vpack.c.b16 %v7344, %v7343
    %v7355 = vpack.c.b16 %v7346, %v7345
    %v7356 = vpack.c.b16 %v7348, %v7347
    %7365 = vmatprep.subr.bf16.mxu0 0
    %7366 = vmatpush1.bf16.msra.mxu0 %v7356
    %7367 = vmatprep.subr.bf16.mxu0 0
    %7368 = vmatpush1.bf16.msra.mxu0 %v7355
    %7369 = vmatprep.subr.bf16.mxu0 0
    %7370 = vmatpush1.bf16.msra.mxu0 %v7354
    %7371 = vmatprep.subr.bf16.mxu0 0
    %7372 = vmatpush1.bf16.msra.mxu0 %v7353
    %7373 = vmatprep.subr.bf16.mxu0 0
    %7374 = vmatpush1.bf16.msra.mxu0 %v7352
    %7375 = vmatprep.subr.bf16.mxu0 0
    %7376 = vmatpush1.bf16.msra.mxu0 %v7351
    %7377 = vmatprep.subr.bf16.mxu0 0
    %7378 = vmatpush1.bf16.msra.mxu0 %v7350
    %7379 = vmatprep.subr.bf16.mxu0 0
    %7380 = vmatpush1.bf16.msra.mxu0 %v7349
    %7381 = vmatprep.subr.bf16.mxu0 0
    %7382 = vmatpush2.bf16.msra.mxu0 0
    %7383 = vmatprep.subr.bf16.mxu0 0
    %7384 = vmatpush2.bf16.msra.mxu0 0
    %7385 = vmatprep.subr.bf16.mxu0 0
    %7386 = vmatpush2.bf16.msra.mxu0 0
    %7387 = vmatprep.subr.bf16.mxu0 0
    %7388 = vmatpush2.bf16.msra.mxu0 0
    %7389 = vmatprep.subr.bf16.mxu0 0
    %7390 = vmatpush2.bf16.msra.mxu0 0
    %7391 = vmatprep.subr.bf16.mxu0 0
    %7392 = vmatpush2.bf16.msra.mxu0 0
    %7393 = vmatprep.subr.bf16.mxu0 0
    %7394 = vmatpush2.bf16.msra.mxu0 0
    %7395 = vmatprep.subr.bf16.mxu0 0
    %7396 = vmatpush2.bf16.msra.mxu0 0
    %7397 = vmatprep.mubr.bf16.mxu0 0
    %7398 = vmatmul.mubr.bf16.gmra.mxu0 %v7315
    %v7399 = vpop.f32.mrf.mxu0
    %v7400 = vadd.f32 0.0, %v7399
    %v7401 = vpop.f32.mrf.mxu0
    %v7402 = vpop.f32.mrf.mxu0
    %v7403 = vadd.f32 0.0, %v7402
    %v7404 = vpop.f32.mrf.mxu0
    %7405 = vdwg.mxu0
    %v7406 = vadd.f32 %v7291, %v7400
    %v7407 = vadd.f32 %v7292, %v7403
    %v7408 = vld [vmem:[#allocation2 + $0x1c] sm:$0xf]
    %v7409 = vld [vmem:[#allocation2 + $0x3c] sm:$0xf]
    %v7410 = vld [vmem:[#allocation5] sm:$0xf]
    %v7411 = vld [vmem:[#allocation5 + $0x4] sm:$0xf]
    %v7412 = vld [vmem:[#allocation5 + $0x8] sm:$0xf]
    %v7413 = vld [vmem:[#allocation5 + $0xc] sm:$0xf]
    %v7414 = vld [vmem:[#allocation5 + $0x10] sm:$0xf]
    %v7415 = vld [vmem:[#allocation5 + $0x14] sm:$0xf]
    %v7416 = vld [vmem:[#allocation5 + $0x18] sm:$0xf]
    %v7417 = vld [vmem:[#allocation5 + $0x1c] sm:$0xf]
    %v7418 = vld [vmem:[#allocation5 + $0x20] sm:$0xf]
    %v7419 = vld [vmem:[#allocation5 + $0x24] sm:$0xf]
    %v7420 = vld [vmem:[#allocation5 + $0x28] sm:$0xf]
    %v7421 = vld [vmem:[#allocation5 + $0x2c] sm:$0xf]
    %v7422 = vld [vmem:[#allocation5 + $0x30] sm:$0xf]
    %v7423 = vld [vmem:[#allocation5 + $0x34] sm:$0xf]
    %v7424 = vld [vmem:[#allocation5 + $0x38] sm:$0xf]
    %v7425 = vld [vmem:[#allocation5 + $0x3c] sm:$0xf]
    %v7428 = vunpack.c.l.b16 %v7408
    %v7429 = vunpack.c.l.b16 %v7409
    %v7430 = vpack.c.b16 %v7429, %v7428
    %v7448 = vunpack.c.l.b16 %v7410
    %v7449 = vunpack.c.l.b16 %v7411
    %v7450 = vunpack.c.l.b16 %v7412
    %v7451 = vunpack.c.l.b16 %v7413
    %v7452 = vunpack.c.l.b16 %v7414
    %v7453 = vunpack.c.l.b16 %v7415
    %v7454 = vunpack.c.l.b16 %v7416
    %v7455 = vunpack.c.l.b16 %v7417
    %v7456 = vunpack.c.l.b16 %v7418
    %v7457 = vunpack.c.l.b16 %v7419
    %v7458 = vunpack.c.l.b16 %v7420
    %v7459 = vunpack.c.l.b16 %v7421
    %v7460 = vunpack.c.l.b16 %v7422
    %v7461 = vunpack.c.l.b16 %v7423
    %v7462 = vunpack.c.l.b16 %v7424
    %v7463 = vunpack.c.l.b16 %v7425
    %v7464 = vpack.c.b16 %v7449, %v7448
    %v7465 = vpack.c.b16 %v7451, %v7450
    %v7466 = vpack.c.b16 %v7453, %v7452
    %v7467 = vpack.c.b16 %v7455, %v7454
    %v7468 = vpack.c.b16 %v7457, %v7456
    %v7469 = vpack.c.b16 %v7459, %v7458
    %v7470 = vpack.c.b16 %v7461, %v7460
    %v7471 = vpack.c.b16 %v7463, %v7462
    %7480 = vmatprep.subr.bf16.mxu0 0
    %7481 = vmatpush1.bf16.msra.mxu0 %v7471
    %7482 = vmatprep.subr.bf16.mxu0 0
    %7483 = vmatpush1.bf16.msra.mxu0 %v7470
    %7484 = vmatprep.subr.bf16.mxu0 0
    %7485 = vmatpush1.bf16.msra.mxu0 %v7469
    %7486 = vmatprep.subr.bf16.mxu0 0
    %7487 = vmatpush1.bf16.msra.mxu0 %v7468
    %7488 = vmatprep.subr.bf16.mxu0 0
    %7489 = vmatpush1.bf16.msra.mxu0 %v7467
    %7490 = vmatprep.subr.bf16.mxu0 0
    %7491 = vmatpush1.bf16.msra.mxu0 %v7466
    %7492 = vmatprep.subr.bf16.mxu0 0
    %7493 = vmatpush1.bf16.msra.mxu0 %v7465
    %7494 = vmatprep.subr.bf16.mxu0 0
    %7495 = vmatpush1.bf16.msra.mxu0 %v7464
    %7496 = vmatprep.subr.bf16.mxu0 0
    %7497 = vmatpush2.bf16.msra.mxu0 0
    %7498 = vmatprep.subr.bf16.mxu0 0
    %7499 = vmatpush2.bf16.msra.mxu0 0
    %7500 = vmatprep.subr.bf16.mxu0 0
    %7501 = vmatpush2.bf16.msra.mxu0 0
    %7502 = vmatprep.subr.bf16.mxu0 0
    %7503 = vmatpush2.bf16.msra.mxu0 0
    %7504 = vmatprep.subr.bf16.mxu0 0
    %7505 = vmatpush2.bf16.msra.mxu0 0
    %7506 = vmatprep.subr.bf16.mxu0 0
    %7507 = vmatpush2.bf16.msra.mxu0 0
    %7508 = vmatprep.subr.bf16.mxu0 0
    %7509 = vmatpush2.bf16.msra.mxu0 0
    %7510 = vmatprep.subr.bf16.mxu0 0
    %7511 = vmatpush2.bf16.msra.mxu0 0
    %7512 = vmatprep.mubr.bf16.mxu0 0
    %7513 = vmatmul.mubr.bf16.gmra.mxu0 %v7430
    %v7514 = vpop.f32.mrf.mxu0
    %v7515 = vadd.f32 0.0, %v7514
    %v7516 = vpop.f32.mrf.mxu0
    %v7517 = vpop.f32.mrf.mxu0
    %v7518 = vadd.f32 0.0, %v7517
    %v7519 = vpop.f32.mrf.mxu0
    %7520 = vdwg.mxu0
    %v7521 = vadd.f32 %v7406, %v7515
    %v7522 = vadd.f32 %v7407, %v7518
    %v7523 = vld [vmem:[#allocation7 + $0x7] sm:$0x1]
    %v7525 = vlaneseq
    %v7526 = vshrl.u32 %v7525, 7
    %v7527 = vsub.s32 0, %v7526
    %v7528 = vrot.slane %v7523, %v7527
    %v7530 = vadd.f32 %v7521, %v7528
    %v7531 = vadd.f32 %v7522, %v7528
    %7532 = vst [vmem:[#allocation8 + $0x38] sm:$0xff] %v7530
    %7533 = vst [vmem:[#allocation8 + $0x78] sm:$0xff] %v7531
    // Predicated region
    $region26: #{tpu_custom_call.1} parent=1 // pred_check
      _
    $region27: #{tpu_custom_call.1} parent=1 // pred_check_branch
      %7535 = sbr.rel (0) target = $region29
    $region28: #{tpu_custom_call.1} parent=1 // pred_region
      %s7537 = ssub.s32 2048, 2048
      %7538 = vsyncadd [#allocation4], %s7537
      %s7539 = sshll.u32 [#allocation8], 4
      %s7540 = int_to_ptr.vmem [resolvable:$true] %s7539
      %7545 = dma.vmem_to_hbm [thread:$0]  %s7540, 2048, %s3, [#allocation4], 1024, 1024, 64
    $region29: #{tpu_custom_call.1} parent=1 // pred_fallthru
      _
    // Predicated region
    $region30: #{tpu_custom_call.1} parent=1 // pred_check
      _
    $region31: #{tpu_custom_call.1} parent=1 // pred_check_branch
      %7547 = sbr.rel (0) target = $region33
    $region32: #{tpu_custom_call.1} parent=1 // pred_region
      %7548 = dma.done [#allocation4], 2048
    $region33: #{tpu_custom_call.1} parent=1 // pred_fallthru
      _
    %7549 = vsyncpa [#allocation3], 1
    %7550 = vsyncpa [#allocation6], 1
    %7551 = vsyncpa [#allocation4], 1

</llo_original>
